<compile_context>
chip_gen: v6e
topology: v6e:2x2x1
jax: 0.10.0
libtpu: 0.0.40
codegen_flags: <defaults>
</compile_context>

<pallas_src>
import functools

import jax
import jax.numpy as jnp
from jax.experimental import pallas as pl
from jax.experimental.pallas import tpu as pltpu


def msconv_kernel(x_ref, mask_ref, w1_ref, b1_ref, w2_ref, b2_ref,
                  w3_ref, b3_ref, wc_ref, bc_ref, out_ref,
                  *, C, Q, M1, M2, M3):
    # x_ref    : (N, C)      bf16, one zero-padded (by 3) image, rows flattened
    # mask_ref : (N, 1)      f32, 1.0 at true-image pixels, 0.0 in the padding ring
    # w1_ref   : (3, 3C, 3C) bf16, conv11/12/13 row-packed taps (BN-folded)
    # w2_ref   : (3, 3C, 2C) bf16, conv22/23
    # w3_ref   : (3, 3C, C)  bf16, conv33
    # wc_ref   : (3C, C)     bf16, convcat 1x1 (BN-folded, pre-transposed)
    # b*_ref   : (1, Cout)   f32 folded-BN biases
    # out_ref  : (H*Q, C)    final slab; row k = padded-grid row 3*(Q+1)+k
    QP1 = Q + 1

    x = x_ref[...]                                   # (N, C)  bf16
    mask = mask_ref[...]                             # (N, 1)  f32

    def conv3x3_relu6(src, rows, w_ref, b_ref):
        # 3x3 "same" conv + folded-BN bias + ReLU6.  Each kernel row ky is ONE
        # K=3C matmul (3 horizontal taps lane-packed); f32 accumulation.
        acc = None
        for ky in range(3):
            o = ky * Q
            packed = jnp.concatenate(
                [src[o:o + rows, :],
                 src[o + 1:o + 1 + rows, :],
                 src[o + 2:o + 2 + rows, :]], axis=1)          # (rows, 3C) bf16
            part = jnp.dot(packed, w_ref[ky],
                           preferred_element_type=jnp.float32)
            acc = part if acc is None else acc + part
        return jnp.clip(acc + b_ref[...], 0.0, 6.0)            # f32 (rows, Cout)

    # Stage 1: conv11 / conv12 / conv13 fused along output lanes (Cout = 3C).
    y1 = conv3x3_relu6(x, M1, w1_ref, b1_ref)                  # (M1, 3C) f32
    x112_f32 = (y1[:, :C] + y1[:, C:2 * C] + y1[:, 2 * C:]) \
        * mask[QP1:QP1 + M1, :]                                # re-zero padding ring
    x112 = x112_f32.astype(jnp.bfloat16)

    # Stage 2: conv22 / conv23 fused (Cout = 2C).
    y2 = conv3x3_relu6(x112, M2, w2_ref, b2_ref)               # (M2, 2C) f32
    x223_f32 = (y2[:, :C] + y2[:, C:]) * mask[2 * QP1:2 * QP1 + M2, :]
    x223 = x223_f32.astype(jnp.bfloat16)

    # Stage 3: conv33 (Cout = C).
    x33 = conv3x3_relu6(x223, M3, w3_ref, b3_ref)              # (M3, C) f32

    # convcat (1x1 over cat([x112, x223, x33]) + folded BN) + shortcut + ReLU,
    # as a single K=3C matmul.  Bias / residual add stay in f32.
    cat = jnp.concatenate([x112[2 * QP1:2 * QP1 + M3, :],
                           x223[QP1:QP1 + M3, :],
                           x33.astype(jnp.bfloat16)], axis=1)  # (M3, 3C) bf16
    shortcut = x[3 * QP1:3 * QP1 + M3, :].astype(jnp.float32)
    res = (jnp.dot(cat, wc_ref[...], preferred_element_type=jnp.float32)
           + bc_ref[...] + shortcut)
    out_ref[0:M3, :] = jnp.maximum(res, 0.0).astype(out_ref.dtype)
    # The last H*Q - M3 (= 6) rows are cropped by the wrapper; zero them anyway.
    out_ref[M3:, :] = jnp.zeros((out_ref.shape[0] - M3, out_ref.shape[1]),
                                out_ref.dtype)


def _fold_conv_bn(w, gamma, beta, mean, var, eps):
    # eval-mode BN folded into the conv: y = conv(x)*scale + (beta - mean*scale)
    scale = gamma / jnp.sqrt(var + eps)
    return w * scale[:, None, None, None], beta - mean * scale


def _conv3x3_row_taps(w):
    # (Cout, Cin, 3, 3) -> (3, 3*Cin, Cout): row ky holds the three horizontal
    # taps packed along Cin so each kernel row is ONE K=3*Cin matmul.
    cout, cin = w.shape[0], w.shape[1]
    return jnp.transpose(w, (2, 3, 1, 0)).reshape(3, 3 * cin, cout)


def _stack_branches(branches, eps):
    ws, bs = [], []
    for (w, g, b, m, v) in branches:
        wf, bf = _fold_conv_bn(w, g, b, m, v, eps)
        ws.append(_conv3x3_row_taps(wf))
        bs.append(bf)
    return (jnp.concatenate(ws, axis=2).astype(jnp.bfloat16),
            jnp.concatenate(bs)[None, :].astype(jnp.float32))


def msconv_forward(x, params, *, bn_eps=1e-5, vmem_limit_bytes=None):
    """MSConv forward pass (BatchNorm in eval mode, folded into the convs)."""
    B, C, H, W = x.shape

    # ---- parameter prep (tiny, pure JAX; pre-packed / pre-transposed, bf16)
    w1, b1 = _stack_branches(
        [params["conv11"], params["conv12"], params["conv13"]], bn_eps)
    w2, b2 = _stack_branches([params["conv22"], params["conv23"]], bn_eps)
    w3, b3 = _stack_branches([params["conv33"]], bn_eps)
    wcf, bcf = _fold_conv_bn(*params["convcat"], bn_eps)
    wc = jnp.transpose(wcf[:, :, 0, 0], (1, 0)).astype(jnp.bfloat16)   # (3C, C)
    bc = bcf[None, :].astype(jnp.float32)                              # (1, C)

    # ---- layout: NCHW -> NHWC, zero-pad spatial by 3, flatten rows, cast bf16
    # TODO(synk): if the surrounding model stays NHWC these relayout passes go away.
    P, Q = H + 6, W + 6
    N = P * Q
    HQ = H * Q
    QP1 = Q + 1
    M1 = N - 2 * QP1        # x112 slab (padded-grid rows [QP1, N - QP1))
    M2 = N - 4 * QP1        # x223 slab
    M3 = N - 6 * QP1        # final slab (== HQ - 6)

    xh = jnp.transpose(x, (0, 2, 3, 1))
    xp = jnp.pad(xh, ((0, 0), (3, 3), (3, 3), (0, 0)))
    x_flat = xp.reshape(B, N, C).astype(jnp.bfloat16)

    # validity mask over the flattened padded grid, as a single column
    ii = jnp.arange(P)
    jj = jnp.arange(Q)
    valid = ((ii[:, None] >= 3) & (ii[:, None] < 3 + H)
             & (jj[None, :] >= 3) & (jj[None, :] < 3 + W))
    mask = valid.reshape(N, 1).astype(jnp.float32)

    kernel = functools.partial(msconv_kernel, C=C, Q=Q, M1=M1, M2=M2, M3=M3)

    out_isize = jnp.dtype(x.dtype).itemsize
    flops = int(B * C * C * (54 * M1 + 36 * M2 + 24 * M3))
    bytes_accessed = int(
        B * (N * C * 2 + N * 4 + HQ * C * out_isize)
        + (w1.size + w2.size + w3.size + wc.size) * 2
        + (b1.size + b2.size + b3.size + bc.size) * 4)

    out = pl.pallas_call(
        kernel,
        out_shape=jax.ShapeDtypeStruct((B, HQ, C), x.dtype),
        grid=(B,),
        in_specs=[
            pl.BlockSpec((None, N, C), lambda b: (b, 0, 0)),          # x (1 image/step)
            pl.BlockSpec((N, 1), lambda b: (0, 0)),                   # mask column
            pl.BlockSpec((3, 3 * C, 3 * C), lambda b: (0, 0, 0)),     # w1
            pl.BlockSpec((1, 3 * C), lambda b: (0, 0)),               # b1
            pl.BlockSpec((3, 3 * C, 2 * C), lambda b: (0, 0, 0)),     # w2
            pl.BlockSpec((1, 2 * C), lambda b: (0, 0)),               # b2
            pl.BlockSpec((3, 3 * C, C), lambda b: (0, 0, 0)),         # w3
            pl.BlockSpec((1, C), lambda b: (0, 0)),                   # b3
            pl.BlockSpec((3 * C, C), lambda b: (0, 0)),               # wc
            pl.BlockSpec((1, C), lambda b: (0, 0)),                   # bc
        ],
        out_specs=pl.BlockSpec((None, HQ, C), lambda b: (b, 0, 0)),
        compiler_params=pltpu.CompilerParams(
            dimension_semantics=("parallel",),
            vmem_limit_bytes=vmem_limit_bytes),
        cost_estimate=pl.CostEstimate(flops=flops, transcendentals=0,
                                      bytes_accessed=bytes_accessed),
    )(x_flat, mask, w1, b1, w2, b2, w3, b3, wc, bc)

    # out row k corresponds to padded-grid row 3*(Q+1)+k, i.e. image pixel
    # (ih, iw) sits at k = ih*Q + iw -> reshape + crop, then back to NCHW.
    out_img = out.reshape(B, H, Q, C)[:, :, :W, :]
    return jnp.transpose(out_img, (0, 3, 1, 2))


# ---------------- pure-JAX reference (eval-mode BN, f32) ----------------
def _conv_bn_ref(x, p, eps, relu6):
    w, gamma, beta, mean, var = p
    y = jax.lax.conv_general_dilated(
        x, w, window_strides=(1, 1), padding="SAME",
        dimension_numbers=("NCHW", "OIHW", "NCHW"),
        precision=jax.lax.Precision.HIGHEST)
    scale = gamma / jnp.sqrt(var + eps)
    y = y * scale[None, :, None, None] + (beta - mean * scale)[None, :, None, None]
    return jnp.clip(y, 0.0, 6.0) if relu6 else y


def msconv_reference(x, params, *, bn_eps=1e-5):
    x11 = _conv_bn_ref(x, params["conv11"], bn_eps, True)
    x12 = _conv_bn_ref(x, params["conv12"], bn_eps, True)
    x13 = _conv_bn_ref(x, params["conv13"], bn_eps, True)
    x112 = x11 + x13 + x12
    x22 = _conv_bn_ref(x112, params["conv22"], bn_eps, True)
    x23 = _conv_bn_ref(x112, params["conv23"], bn_eps, True)
    x223 = x22 + x23
    x33 = _conv_bn_ref(x223, params["conv33"], bn_eps, True)
    xcat = jnp.concatenate([x112, x223, x33], axis=1)
    y = _conv_bn_ref(xcat, params["convcat"], bn_eps, False)
    return jnp.maximum(y + x, 0.0)


if __name__ == "__main__":
    key = jax.random.PRNGKey(0)
    # MSConv's residual add / branch chaining requires in_channels == out_channels.
    B, C, H, W = 2, 32, 16, 16

    def conv_bn_params(k, cin, cout, ksize):
        ks = jax.random.split(k, 5)
        w = 0.1 * jax.random.normal(ks[0], (cout, cin, ksize, ksize), jnp.float32)
        gamma = 1.0 + 0.1 * jax.random.normal(ks[1], (cout,), jnp.float32)
        beta = 0.05 * jax.random.normal(ks[2], (cout,), jnp.float32)
        mean = 0.1 * jax.random.normal(ks[3], (cout,), jnp.float32)
        var = jax.random.uniform(ks[4], (cout,), jnp.float32, minval=0.5, maxval=1.5)
        return (w, gamma, beta, mean, var)

    keys = jax.random.split(key, 8)
    x = jax.random.normal(keys[0], (B, C, H, W), jnp.float32)
    params = {
        "conv11": conv_bn_params(keys[1], C, C, 3),
        "conv12": conv_bn_params(keys[2], C, C, 3),
        "conv13": conv_bn_params(keys[3], C, C, 3),
        "conv22": conv_bn_params(keys[4], C, C, 3),
        "conv23": conv_bn_params(keys[5], C, C, 3),
        "conv33": conv_bn_params(keys[6], C, C, 3),
        "convcat": conv_bn_params(keys[7], 3 * C, C, 1),
    }

    out = jax.jit(msconv_forward)(x, params)
    jax.block_until_ready(out)
    assert out.shape == (B, C, H, W) and out.dtype == jnp.float32
    assert bool(jnp.isfinite(out).all())

    # Numerical check against the f32 reference (loose tolerance: activations and
    # weights run through the MXU in bf16 with f32 accumulation).
    ref = msconv_reference(x, params)
    err = float(jnp.max(jnp.abs(out - ref)))
    tol = 0.08 * float(jnp.max(jnp.abs(ref))) + 0.15
    assert err <= tol, f"max abs err {err} exceeds tol {tol}"
    print("KERNEL_OK")
</pallas_src>

<mosaic_0001>
module attributes {stable_mosaic.version = 11 : i64} {
  func.func @msconv_kernel(%arg0: i32, %arg1: memref<1x484x32xbf16, #tpu.memory_space<vmem>>, %arg2: memref<484x1xf32, #tpu.memory_space<vmem>>, %arg3: memref<3x96x96xbf16, #tpu.memory_space<vmem>>, %arg4: memref<1x96xf32, #tpu.memory_space<vmem>>, %arg5: memref<3x96x64xbf16, #tpu.memory_space<vmem>>, %arg6: memref<1x64xf32, #tpu.memory_space<vmem>>, %arg7: memref<3x96x32xbf16, #tpu.memory_space<vmem>>, %arg8: memref<1x32xf32, #tpu.memory_space<vmem>>, %arg9: memref<96x32xbf16, #tpu.memory_space<vmem>>, %arg10: memref<1x32xf32, #tpu.memory_space<vmem>>, %arg11: memref<1x352x32xf32, #tpu.memory_space<vmem>>) attributes {dimension_semantics = [#tpu.dimension_semantics<parallel>], iteration_bounds = array<i64: 2>, scalar_prefetch = 0 : i64, scratch_operands = 0 : i64, tpu.core_type = #tpu.core_type<tc>, window_params = [{transform_indices = @transform_0, window_bounds = array<i64: 1, 484, 32>}, {pipeline_mode = #tpu.pipeline_mode<synchronous>, transform_indices = @transform_1, window_bounds = array<i64: 484, 1>}, {pipeline_mode = #tpu.pipeline_mode<synchronous>, transform_indices = @transform_2, window_bounds = array<i64: 3, 96, 96>}, {pipeline_mode = #tpu.pipeline_mode<synchronous>, transform_indices = @transform_3, window_bounds = array<i64: 1, 96>}, {pipeline_mode = #tpu.pipeline_mode<synchronous>, transform_indices = @transform_4, window_bounds = array<i64: 3, 96, 64>}, {pipeline_mode = #tpu.pipeline_mode<synchronous>, transform_indices = @transform_5, window_bounds = array<i64: 1, 64>}, {pipeline_mode = #tpu.pipeline_mode<synchronous>, transform_indices = @transform_6, window_bounds = array<i64: 3, 96, 32>}, {pipeline_mode = #tpu.pipeline_mode<synchronous>, transform_indices = @transform_7, window_bounds = array<i64: 1, 32>}, {pipeline_mode = #tpu.pipeline_mode<synchronous>, transform_indices = @transform_8, window_bounds = array<i64: 96, 32>}, {pipeline_mode = #tpu.pipeline_mode<synchronous>, transform_indices = @transform_9, window_bounds = array<i64: 1, 32>}, {transform_indices = @transform_10, window_bounds = array<i64: 1, 352, 32>}]} {
    %c0 = arith.constant 0 : index
    %c0_0 = arith.constant 0 : index
    %c0_1 = arith.constant 0 : index
    %0 = vector.load %arg1[%c0, %c0_0, %c0_1] : memref<1x484x32xbf16, #tpu.memory_space<vmem>>, vector<1x484x32xbf16>
    %1 = vector.shape_cast %0 : vector<1x484x32xbf16> to vector<484x32xbf16>
    %c0_2 = arith.constant 0 : index
    %c0_3 = arith.constant 0 : index
    %2 = vector.load %arg2[%c0_2, %c0_3] : memref<484x1xf32, #tpu.memory_space<vmem>>, vector<484x1xf32>
    %3 = vector.extract_strided_slice %1 {offsets = [0, 0], sizes = [438, 32], strides = [1, 1]} : vector<484x32xbf16> to vector<438x32xbf16>
    %4 = vector.extract_strided_slice %1 {offsets = [1, 0], sizes = [438, 32], strides = [1, 1]} : vector<484x32xbf16> to vector<438x32xbf16>
    %5 = vector.extract_strided_slice %1 {offsets = [2, 0], sizes = [438, 32], strides = [1, 1]} : vector<484x32xbf16> to vector<438x32xbf16>
    %6 = tpu.concatenate %3, %4, %5 in 1 : vector<438x32xbf16>, vector<438x32xbf16>, vector<438x32xbf16> -> vector<438x96xbf16>
    %c0_4 = arith.constant 0 : index
    %c0_5 = arith.constant 0 : index
    %c0_6 = arith.constant 0 : index
    %7 = vector.load %arg3[%c0_4, %c0_5, %c0_6] : memref<3x96x96xbf16, #tpu.memory_space<vmem>>, vector<1x96x96xbf16>
    %8 = vector.shape_cast %7 : vector<1x96x96xbf16> to vector<96x96xbf16>
    %cst = arith.constant dense<0.000000e+00> : vector<438x96xf32>
    %9 = tpu.matmul %6, %8, %cst {dimension_numbers = #tpu.dot_dimension_numbers<[1], [0], [0], [1], [0, 0, 1, 1], [], []>} : vector<438x96xbf16>, vector<96x96xbf16>, vector<438x96xf32> -> vector<438x96xf32>
    %10 = vector.extract_strided_slice %1 {offsets = [22, 0], sizes = [438, 32], strides = [1, 1]} : vector<484x32xbf16> to vector<438x32xbf16>
    %11 = vector.extract_strided_slice %1 {offsets = [23, 0], sizes = [438, 32], strides = [1, 1]} : vector<484x32xbf16> to vector<438x32xbf16>
    %12 = vector.extract_strided_slice %1 {offsets = [24, 0], sizes = [438, 32], strides = [1, 1]} : vector<484x32xbf16> to vector<438x32xbf16>
    %13 = tpu.concatenate %10, %11, %12 in 1 : vector<438x32xbf16>, vector<438x32xbf16>, vector<438x32xbf16> -> vector<438x96xbf16>
    %c1 = arith.constant 1 : index
    %c0_7 = arith.constant 0 : index
    %c0_8 = arith.constant 0 : index
    %14 = vector.load %arg3[%c1, %c0_7, %c0_8] : memref<3x96x96xbf16, #tpu.memory_space<vmem>>, vector<1x96x96xbf16>
    %15 = vector.shape_cast %14 : vector<1x96x96xbf16> to vector<96x96xbf16>
    %cst_9 = arith.constant dense<0.000000e+00> : vector<438x96xf32>
    %16 = tpu.matmul %13, %15, %cst_9 {dimension_numbers = #tpu.dot_dimension_numbers<[1], [0], [0], [1], [0, 0, 1, 1], [], []>} : vector<438x96xbf16>, vector<96x96xbf16>, vector<438x96xf32> -> vector<438x96xf32>
    %17 = arith.addf %9, %16 : vector<438x96xf32>
    %18 = vector.extract_strided_slice %1 {offsets = [44, 0], sizes = [438, 32], strides = [1, 1]} : vector<484x32xbf16> to vector<438x32xbf16>
    %19 = vector.extract_strided_slice %1 {offsets = [45, 0], sizes = [438, 32], strides = [1, 1]} : vector<484x32xbf16> to vector<438x32xbf16>
    %20 = vector.extract_strided_slice %1 {offsets = [46, 0], sizes = [438, 32], strides = [1, 1]} : vector<484x32xbf16> to vector<438x32xbf16>
    %21 = tpu.concatenate %18, %19, %20 in 1 : vector<438x32xbf16>, vector<438x32xbf16>, vector<438x32xbf16> -> vector<438x96xbf16>
    %c2 = arith.constant 2 : index
    %c0_10 = arith.constant 0 : index
    %c0_11 = arith.constant 0 : index
    %22 = vector.load %arg3[%c2, %c0_10, %c0_11] : memref<3x96x96xbf16, #tpu.memory_space<vmem>>, vector<1x96x96xbf16>
    %23 = vector.shape_cast %22 : vector<1x96x96xbf16> to vector<96x96xbf16>
    %cst_12 = arith.constant dense<0.000000e+00> : vector<438x96xf32>
    %24 = tpu.matmul %21, %23, %cst_12 {dimension_numbers = #tpu.dot_dimension_numbers<[1], [0], [0], [1], [0, 0, 1, 1], [], []>} : vector<438x96xbf16>, vector<96x96xbf16>, vector<438x96xf32> -> vector<438x96xf32>
    %25 = arith.addf %17, %24 : vector<438x96xf32>
    %c0_13 = arith.constant 0 : index
    %c0_14 = arith.constant 0 : index
    %26 = vector.load %arg4[%c0_13, %c0_14] : memref<1x96xf32, #tpu.memory_space<vmem>>, vector<1x96xf32>
    %27 = vector.broadcast %26 : vector<1x96xf32> to vector<438x96xf32>
    %28 = arith.addf %25, %27 : vector<438x96xf32>
    %cst_15 = arith.constant 0.000000e+00 : f32
    %cst_16 = arith.constant 6.000000e+00 : f32
    %29 = vector.broadcast %cst_15 : f32 to vector<438x96xf32>
    %30 = arith.maximumf %29, %28 : vector<438x96xf32>
    %31 = vector.broadcast %cst_16 : f32 to vector<438x96xf32>
    %32 = arith.minimumf %31, %30 : vector<438x96xf32>
    %33 = vector.extract_strided_slice %32 {offsets = [0, 0], sizes = [438, 32], strides = [1, 1]} : vector<438x96xf32> to vector<438x32xf32>
    %34 = vector.extract_strided_slice %32 {offsets = [0, 32], sizes = [438, 32], strides = [1, 1]} : vector<438x96xf32> to vector<438x32xf32>
    %35 = arith.addf %33, %34 : vector<438x32xf32>
    %36 = vector.extract_strided_slice %32 {offsets = [0, 64], sizes = [438, 32], strides = [1, 1]} : vector<438x96xf32> to vector<438x32xf32>
    %37 = arith.addf %35, %36 : vector<438x32xf32>
    %38 = vector.extract_strided_slice %2 {offsets = [23, 0], sizes = [438, 1], strides = [1, 1]} : vector<484x1xf32> to vector<438x1xf32>
    %39 = vector.broadcast %38 : vector<438x1xf32> to vector<438x32xf32>
    %40 = arith.mulf %37, %39 : vector<438x32xf32>
    %41 = arith.truncf %40 : vector<438x32xf32> to vector<438x32xbf16>
    %42 = vector.extract_strided_slice %41 {offsets = [0, 0], sizes = [392, 32], strides = [1, 1]} : vector<438x32xbf16> to vector<392x32xbf16>
    %43 = vector.extract_strided_slice %41 {offsets = [1, 0], sizes = [392, 32], strides = [1, 1]} : vector<438x32xbf16> to vector<392x32xbf16>
    %44 = vector.extract_strided_slice %41 {offsets = [2, 0], sizes = [392, 32], strides = [1, 1]} : vector<438x32xbf16> to vector<392x32xbf16>
    %45 = tpu.concatenate %42, %43, %44 in 1 : vector<392x32xbf16>, vector<392x32xbf16>, vector<392x32xbf16> -> vector<392x96xbf16>
    %c0_17 = arith.constant 0 : index
    %c0_18 = arith.constant 0 : index
    %c0_19 = arith.constant 0 : index
    %46 = vector.load %arg5[%c0_17, %c0_18, %c0_19] : memref<3x96x64xbf16, #tpu.memory_space<vmem>>, vector<1x96x64xbf16>
    %47 = vector.shape_cast %46 : vector<1x96x64xbf16> to vector<96x64xbf16>
    %cst_20 = arith.constant dense<0.000000e+00> : vector<392x64xf32>
    %48 = tpu.matmul %45, %47, %cst_20 {dimension_numbers = #tpu.dot_dimension_numbers<[1], [0], [0], [1], [0, 0, 1, 1], [], []>} : vector<392x96xbf16>, vector<96x64xbf16>, vector<392x64xf32> -> vector<392x64xf32>
    %49 = vector.extract_strided_slice %41 {offsets = [22, 0], sizes = [392, 32], strides = [1, 1]} : vector<438x32xbf16> to vector<392x32xbf16>
    %50 = vector.extract_strided_slice %41 {offsets = [23, 0], sizes = [392, 32], strides = [1, 1]} : vector<438x32xbf16> to vector<392x32xbf16>
    %51 = vector.extract_strided_slice %41 {offsets = [24, 0], sizes = [392, 32], strides = [1, 1]} : vector<438x32xbf16> to vector<392x32xbf16>
    %52 = tpu.concatenate %49, %50, %51 in 1 : vector<392x32xbf16>, vector<392x32xbf16>, vector<392x32xbf16> -> vector<392x96xbf16>
    %c1_21 = arith.constant 1 : index
    %c0_22 = arith.constant 0 : index
    %c0_23 = arith.constant 0 : index
    %53 = vector.load %arg5[%c1_21, %c0_22, %c0_23] : memref<3x96x64xbf16, #tpu.memory_space<vmem>>, vector<1x96x64xbf16>
    %54 = vector.shape_cast %53 : vector<1x96x64xbf16> to vector<96x64xbf16>
    %cst_24 = arith.constant dense<0.000000e+00> : vector<392x64xf32>
    %55 = tpu.matmul %52, %54, %cst_24 {dimension_numbers = #tpu.dot_dimension_numbers<[1], [0], [0], [1], [0, 0, 1, 1], [], []>} : vector<392x96xbf16>, vector<96x64xbf16>, vector<392x64xf32> -> vector<392x64xf32>
    %56 = arith.addf %48, %55 : vector<392x64xf32>
    %57 = vector.extract_strided_slice %41 {offsets = [44, 0], sizes = [392, 32], strides = [1, 1]} : vector<438x32xbf16> to vector<392x32xbf16>
    %58 = vector.extract_strided_slice %41 {offsets = [45, 0], sizes = [392, 32], strides = [1, 1]} : vector<438x32xbf16> to vector<392x32xbf16>
    %59 = vector.extract_strided_slice %41 {offsets = [46, 0], sizes = [392, 32], strides = [1, 1]} : vector<438x32xbf16> to vector<392x32xbf16>
    %60 = tpu.concatenate %57, %58, %59 in 1 : vector<392x32xbf16>, vector<392x32xbf16>, vector<392x32xbf16> -> vector<392x96xbf16>
    %c2_25 = arith.constant 2 : index
    %c0_26 = arith.constant 0 : index
    %c0_27 = arith.constant 0 : index
    %61 = vector.load %arg5[%c2_25, %c0_26, %c0_27] : memref<3x96x64xbf16, #tpu.memory_space<vmem>>, vector<1x96x64xbf16>
    %62 = vector.shape_cast %61 : vector<1x96x64xbf16> to vector<96x64xbf16>
    %cst_28 = arith.constant dense<0.000000e+00> : vector<392x64xf32>
    %63 = tpu.matmul %60, %62, %cst_28 {dimension_numbers = #tpu.dot_dimension_numbers<[1], [0], [0], [1], [0, 0, 1, 1], [], []>} : vector<392x96xbf16>, vector<96x64xbf16>, vector<392x64xf32> -> vector<392x64xf32>
    %64 = arith.addf %56, %63 : vector<392x64xf32>
    %c0_29 = arith.constant 0 : index
    %c0_30 = arith.constant 0 : index
    %65 = vector.load %arg6[%c0_29, %c0_30] : memref<1x64xf32, #tpu.memory_space<vmem>>, vector<1x64xf32>
    %66 = vector.broadcast %65 : vector<1x64xf32> to vector<392x64xf32>
    %67 = arith.addf %64, %66 : vector<392x64xf32>
    %cst_31 = arith.constant 0.000000e+00 : f32
    %cst_32 = arith.constant 6.000000e+00 : f32
    %68 = vector.broadcast %cst_31 : f32 to vector<392x64xf32>
    %69 = arith.maximumf %68, %67 : vector<392x64xf32>
    %70 = vector.broadcast %cst_32 : f32 to vector<392x64xf32>
    %71 = arith.minimumf %70, %69 : vector<392x64xf32>
    %72 = vector.extract_strided_slice %71 {offsets = [0, 0], sizes = [392, 32], strides = [1, 1]} : vector<392x64xf32> to vector<392x32xf32>
    %73 = vector.extract_strided_slice %71 {offsets = [0, 32], sizes = [392, 32], strides = [1, 1]} : vector<392x64xf32> to vector<392x32xf32>
    %74 = arith.addf %72, %73 : vector<392x32xf32>
    %75 = vector.extract_strided_slice %2 {offsets = [46, 0], sizes = [392, 1], strides = [1, 1]} : vector<484x1xf32> to vector<392x1xf32>
    %76 = vector.broadcast %75 : vector<392x1xf32> to vector<392x32xf32>
    %77 = arith.mulf %74, %76 : vector<392x32xf32>
    %78 = arith.truncf %77 : vector<392x32xf32> to vector<392x32xbf16>
    %79 = vector.extract_strided_slice %78 {offsets = [0, 0], sizes = [346, 32], strides = [1, 1]} : vector<392x32xbf16> to vector<346x32xbf16>
    %80 = vector.extract_strided_slice %78 {offsets = [1, 0], sizes = [346, 32], strides = [1, 1]} : vector<392x32xbf16> to vector<346x32xbf16>
    %81 = vector.extract_strided_slice %78 {offsets = [2, 0], sizes = [346, 32], strides = [1, 1]} : vector<392x32xbf16> to vector<346x32xbf16>
    %82 = tpu.concatenate %79, %80, %81 in 1 : vector<346x32xbf16>, vector<346x32xbf16>, vector<346x32xbf16> -> vector<346x96xbf16>
    %c0_33 = arith.constant 0 : index
    %c0_34 = arith.constant 0 : index
    %c0_35 = arith.constant 0 : index
    %83 = vector.load %arg7[%c0_33, %c0_34, %c0_35] : memref<3x96x32xbf16, #tpu.memory_space<vmem>>, vector<1x96x32xbf16>
    %84 = vector.shape_cast %83 : vector<1x96x32xbf16> to vector<96x32xbf16>
    %cst_36 = arith.constant dense<0.000000e+00> : vector<346x32xf32>
    %85 = tpu.matmul %82, %84, %cst_36 {dimension_numbers = #tpu.dot_dimension_numbers<[1], [0], [0], [1], [0, 0, 1, 1], [], []>} : vector<346x96xbf16>, vector<96x32xbf16>, vector<346x32xf32> -> vector<346x32xf32>
    %86 = vector.extract_strided_slice %78 {offsets = [22, 0], sizes = [346, 32], strides = [1, 1]} : vector<392x32xbf16> to vector<346x32xbf16>
    %87 = vector.extract_strided_slice %78 {offsets = [23, 0], sizes = [346, 32], strides = [1, 1]} : vector<392x32xbf16> to vector<346x32xbf16>
    %88 = vector.extract_strided_slice %78 {offsets = [24, 0], sizes = [346, 32], strides = [1, 1]} : vector<392x32xbf16> to vector<346x32xbf16>
    %89 = tpu.concatenate %86, %87, %88 in 1 : vector<346x32xbf16>, vector<346x32xbf16>, vector<346x32xbf16> -> vector<346x96xbf16>
    %c1_37 = arith.constant 1 : index
    %c0_38 = arith.constant 0 : index
    %c0_39 = arith.constant 0 : index
    %90 = vector.load %arg7[%c1_37, %c0_38, %c0_39] : memref<3x96x32xbf16, #tpu.memory_space<vmem>>, vector<1x96x32xbf16>
    %91 = vector.shape_cast %90 : vector<1x96x32xbf16> to vector<96x32xbf16>
    %cst_40 = arith.constant dense<0.000000e+00> : vector<346x32xf32>
    %92 = tpu.matmul %89, %91, %cst_40 {dimension_numbers = #tpu.dot_dimension_numbers<[1], [0], [0], [1], [0, 0, 1, 1], [], []>} : vector<346x96xbf16>, vector<96x32xbf16>, vector<346x32xf32> -> vector<346x32xf32>
    %93 = arith.addf %85, %92 : vector<346x32xf32>
    %94 = vector.extract_strided_slice %78 {offsets = [44, 0], sizes = [346, 32], strides = [1, 1]} : vector<392x32xbf16> to vector<346x32xbf16>
    %95 = vector.extract_strided_slice %78 {offsets = [45, 0], sizes = [346, 32], strides = [1, 1]} : vector<392x32xbf16> to vector<346x32xbf16>
    %96 = vector.extract_strided_slice %78 {offsets = [46, 0], sizes = [346, 32], strides = [1, 1]} : vector<392x32xbf16> to vector<346x32xbf16>
    %97 = tpu.concatenate %94, %95, %96 in 1 : vector<346x32xbf16>, vector<346x32xbf16>, vector<346x32xbf16> -> vector<346x96xbf16>
    %c2_41 = arith.constant 2 : index
    %c0_42 = arith.constant 0 : index
    %c0_43 = arith.constant 0 : index
    %98 = vector.load %arg7[%c2_41, %c0_42, %c0_43] : memref<3x96x32xbf16, #tpu.memory_space<vmem>>, vector<1x96x32xbf16>
    %99 = vector.shape_cast %98 : vector<1x96x32xbf16> to vector<96x32xbf16>
    %cst_44 = arith.constant dense<0.000000e+00> : vector<346x32xf32>
    %100 = tpu.matmul %97, %99, %cst_44 {dimension_numbers = #tpu.dot_dimension_numbers<[1], [0], [0], [1], [0, 0, 1, 1], [], []>} : vector<346x96xbf16>, vector<96x32xbf16>, vector<346x32xf32> -> vector<346x32xf32>
    %101 = arith.addf %93, %100 : vector<346x32xf32>
    %c0_45 = arith.constant 0 : index
    %c0_46 = arith.constant 0 : index
    %102 = vector.load %arg8[%c0_45, %c0_46] : memref<1x32xf32, #tpu.memory_space<vmem>>, vector<1x32xf32>
    %103 = vector.broadcast %102 : vector<1x32xf32> to vector<346x32xf32>
    %104 = arith.addf %101, %103 : vector<346x32xf32>
    %cst_47 = arith.constant 0.000000e+00 : f32
    %cst_48 = arith.constant 6.000000e+00 : f32
    %105 = vector.broadcast %cst_47 : f32 to vector<346x32xf32>
    %106 = arith.maximumf %105, %104 : vector<346x32xf32>
    %107 = vector.broadcast %cst_48 : f32 to vector<346x32xf32>
    %108 = arith.minimumf %107, %106 : vector<346x32xf32>
    %109 = vector.extract_strided_slice %41 {offsets = [46, 0], sizes = [346, 32], strides = [1, 1]} : vector<438x32xbf16> to vector<346x32xbf16>
    %110 = vector.extract_strided_slice %78 {offsets = [23, 0], sizes = [346, 32], strides = [1, 1]} : vector<392x32xbf16> to vector<346x32xbf16>
    %111 = arith.truncf %108 : vector<346x32xf32> to vector<346x32xbf16>
    %112 = tpu.concatenate %109, %110, %111 in 1 : vector<346x32xbf16>, vector<346x32xbf16>, vector<346x32xbf16> -> vector<346x96xbf16>
    %113 = vector.extract_strided_slice %1 {offsets = [69, 0], sizes = [346, 32], strides = [1, 1]} : vector<484x32xbf16> to vector<346x32xbf16>
    %114 = arith.extf %113 : vector<346x32xbf16> to vector<346x32xf32>
    %c0_49 = arith.constant 0 : index
    %c0_50 = arith.constant 0 : index
    %115 = vector.load %arg9[%c0_49, %c0_50] : memref<96x32xbf16, #tpu.memory_space<vmem>>, vector<96x32xbf16>
    %cst_51 = arith.constant dense<0.000000e+00> : vector<346x32xf32>
    %116 = tpu.matmul %112, %115, %cst_51 {dimension_numbers = #tpu.dot_dimension_numbers<[1], [0], [0], [1], [0, 0, 1, 1], [], []>} : vector<346x96xbf16>, vector<96x32xbf16>, vector<346x32xf32> -> vector<346x32xf32>
    %c0_52 = arith.constant 0 : index
    %c0_53 = arith.constant 0 : index
    %117 = vector.load %arg10[%c0_52, %c0_53] : memref<1x32xf32, #tpu.memory_space<vmem>>, vector<1x32xf32>
    %118 = vector.broadcast %117 : vector<1x32xf32> to vector<346x32xf32>
    %119 = arith.addf %116, %118 : vector<346x32xf32>
    %120 = arith.addf %119, %114 : vector<346x32xf32>
    %cst_54 = arith.constant 0.000000e+00 : f32
    %121 = vector.broadcast %cst_54 : f32 to vector<346x32xf32>
    %122 = arith.maximumf %120, %121 : vector<346x32xf32>
    %c0_55 = arith.constant 0 : index
    %c0_56 = arith.constant 0 : index
    %c0_57 = arith.constant 0 : index
    %123 = vector.load %arg11[%c0_55, %c0_56, %c0_57] : memref<1x352x32xf32, #tpu.memory_space<vmem>>, vector<1x346x32xf32>
    %124 = vector.shape_cast %123 : vector<1x346x32xf32> to vector<346x32xf32>
    %125 = vector.shape_cast %122 : vector<346x32xf32> to vector<1x346x32xf32>
    tpu.vector_store %arg11[%c0_55, %c0_56, %c0_57], %125 {strides = array<i32>} : memref<1x352x32xf32, #tpu.memory_space<vmem>>, vector<1x346x32xf32>,
    %cst_58 = arith.constant 0.000000e+00 : f32
    %126 = vector.broadcast %cst_58 : f32 to vector<6x32xf32>
    %c0_59 = arith.constant 0 : index
    %c346 = arith.constant 346 : index
    %c0_60 = arith.constant 0 : index
    %127 = vector.load %arg11[%c0_59, %c346, %c0_60] : memref<1x352x32xf32, #tpu.memory_space<vmem>>, vector<1x6x32xf32>
    %128 = vector.shape_cast %127 : vector<1x6x32xf32> to vector<6x32xf32>
    %129 = vector.shape_cast %126 : vector<6x32xf32> to vector<1x6x32xf32>
    tpu.vector_store %arg11[%c0_59, %c346, %c0_60], %129 {strides = array<i32>} : memref<1x352x32xf32, #tpu.memory_space<vmem>>, vector<1x6x32xf32>,
    return
  }
  func.func @transform_0(%arg0: i32) -> (i32, i32, i32) {
    %c0_i32 = arith.constant 0 : i32
    %c0_i32_0 = arith.constant 0 : i32
    %c0_i32_1 = arith.constant 0 : i32
    return %arg0, %c0_i32, %c0_i32_0 : i32, i32, i32
  }
  func.func @transform_1(%arg0: i32) -> (i32, i32) {
    %c0_i32 = arith.constant 0 : i32
    %c0_i32_0 = arith.constant 0 : i32
    %c0_i32_1 = arith.constant 0 : i32
    return %c0_i32, %c0_i32_0 : i32, i32
  }
  func.func @transform_2(%arg0: i32) -> (i32, i32, i32) {
    %c0_i32 = arith.constant 0 : i32
    %c0_i32_0 = arith.constant 0 : i32
    %c0_i32_1 = arith.constant 0 : i32
    %c0_i32_2 = arith.constant 0 : i32
    return %c0_i32, %c0_i32_0, %c0_i32_1 : i32, i32, i32
  }
  func.func @transform_3(%arg0: i32) -> (i32, i32) {
    %c0_i32 = arith.constant 0 : i32
    %c0_i32_0 = arith.constant 0 : i32
    %c0_i32_1 = arith.constant 0 : i32
    return %c0_i32, %c0_i32_0 : i32, i32
  }
  func.func @transform_4(%arg0: i32) -> (i32, i32, i32) {
    %c0_i32 = arith.constant 0 : i32
    %c0_i32_0 = arith.constant 0 : i32
    %c0_i32_1 = arith.constant 0 : i32
    %c0_i32_2 = arith.constant 0 : i32
    return %c0_i32, %c0_i32_0, %c0_i32_1 : i32, i32, i32
  }
  func.func @transform_5(%arg0: i32) -> (i32, i32) {
    %c0_i32 = arith.constant 0 : i32
    %c0_i32_0 = arith.constant 0 : i32
    %c0_i32_1 = arith.constant 0 : i32
    return %c0_i32, %c0_i32_0 : i32, i32
  }
  func.func @transform_6(%arg0: i32) -> (i32, i32, i32) {
    %c0_i32 = arith.constant 0 : i32
    %c0_i32_0 = arith.constant 0 : i32
    %c0_i32_1 = arith.constant 0 : i32
    %c0_i32_2 = arith.constant 0 : i32
    return %c0_i32, %c0_i32_0, %c0_i32_1 : i32, i32, i32
  }
  func.func @transform_7(%arg0: i32) -> (i32, i32) {
    %c0_i32 = arith.constant 0 : i32
    %c0_i32_0 = arith.constant 0 : i32
    %c0_i32_1 = arith.constant 0 : i32
    return %c0_i32, %c0_i32_0 : i32, i32
  }
  func.func @transform_8(%arg0: i32) -> (i32, i32) {
    %c0_i32 = arith.constant 0 : i32
    %c0_i32_0 = arith.constant 0 : i32
    %c0_i32_1 = arith.constant 0 : i32
    return %c0_i32, %c0_i32_0 : i32, i32
  }
  func.func @transform_9(%arg0: i32) -> (i32, i32) {
    %c0_i32 = arith.constant 0 : i32
    %c0_i32_0 = arith.constant 0 : i32
    %c0_i32_1 = arith.constant 0 : i32
    return %c0_i32, %c0_i32_0 : i32, i32
  }
  func.func @transform_10(%arg0: i32) -> (i32, i32, i32) {
    %c0_i32 = arith.constant 0 : i32
    %c0_i32_0 = arith.constant 0 : i32
    %c0_i32_1 = arith.constant 0 : i32
    return %arg0, %c0_i32, %c0_i32_0 : i32, i32, i32
  }
}

</mosaic_0001>

<llo_original>
// kernel: msconv_forward.1
$region0: #{msconv_forward.1}
  #allocation0 [shape = 'u32[]', space=smem, size = 0x4, offset = 0x4, fixed_abs, tag = 'smem constant byte address 0x4 - core index']
  #allocation1 [shape = 'u32[144,128]{1,0:T(1,128)}', space=vmem, size = 0x12000, scoped, tag = 'internal scratch']
  %s0 = inlined_call_operand.vmem [shape: bf16[2,484,32], index: 0, kind: input, shape index: {}]
  %s1 = inlined_call_operand.vmem [shape: f32[484,1], index: 1, kind: input, shape index: {}]
  %s2 = inlined_call_operand.vmem [shape: bf16[3,96,96], index: 2, kind: input, shape index: {}]
  %s3 = inlined_call_operand.vmem [shape: f32[1,96], index: 3, kind: input, shape index: {}]
  %s4 = inlined_call_operand.vmem [shape: bf16[3,96,64], index: 4, kind: input, shape index: {}]
  %s5 = inlined_call_operand.vmem [shape: f32[1,64], index: 5, kind: input, shape index: {}]
  %s6 = inlined_call_operand.vmem [shape: bf16[3,96,32], index: 6, kind: input, shape index: {}]
  %s7 = inlined_call_operand.vmem [shape: f32[1,32], index: 7, kind: input, shape index: {}]
  %s8 = inlined_call_operand.vmem [shape: bf16[96,32], index: 8, kind: input, shape index: {}]
  %s9 = inlined_call_operand.vmem [shape: f32[1,32], index: 9, kind: input, shape index: {}]
  %s10 = inlined_call_operand.vmem [shape: f32[2,352,32], index: 10, kind: output, shape index: {}]
  %s11 = sld [smem:[#allocation0]]
  $region73: #{msconv_forward.1} parent=0
    _
  %s13 = ssub.s32 1, %s11
  %s14 = scalar_select 0, %s13, %s11
  loop: start=0, step=1, limit=4
  $region2: #{msconv_forward.1} parent=0 // loop_pre_header
    _
  $region3: #{msconv_forward.1} parent=0 // loop_header
    %s16 = sphi 0, %s20
    %p17 = scmp.ge.s32.totalorder %s16, 4
    %s26 = sphi 0, %s28
    %s29 = sphi 0, %s26
    %s30 = sphi 0, %s29
    %s46 = sphi 0, %s30
    %s50 = sphi 0, %s50
    %s52 = sphi 0, %s50
    %s53 = sphi 0, %s52
    %s67 = sphi 0, %s53
    %s71 = sphi 0, %s71
    %s73 = sphi 0, %s71
    %s74 = sphi 0, %s73
    %s88 = sphi 0, %s74
    %s92 = sphi 0, %s92
    %s94 = sphi 0, %s92
    %s95 = sphi 0, %s94
    %s109 = sphi 0, %s95
    %s113 = sphi 0, %s113
    %s115 = sphi 0, %s113
    %s116 = sphi 0, %s115
    %s130 = sphi 0, %s116
    %s134 = sphi 0, %s134
    %s136 = sphi 0, %s134
    %s137 = sphi 0, %s136
    %s151 = sphi 0, %s137
    %s155 = sphi 0, %s155
    %s157 = sphi 0, %s155
    %s158 = sphi 0, %s157
    %s172 = sphi 0, %s158
    %s176 = sphi 0, %s176
    %s178 = sphi 0, %s176
    %s179 = sphi 0, %s178
    %s193 = sphi 0, %s179
    %s197 = sphi 0, %s197
    %s199 = sphi 0, %s197
    %s200 = sphi 0, %s199
    %s214 = sphi 0, %s200
    %s218 = sphi 0, %s218
    %s220 = sphi 0, %s218
    %s221 = sphi 0, %s220
    %s235 = sphi 0, %s221
    %s241 = sphi 0, %s243
    %s244 = sphi 0, %s241
    %s245 = sphi 0, %s244
    %s261 = sphi 0, %s245
  $region4: #{msconv_forward.1} parent=0 // loop_header_branch
    %19 = sbr.rel (%p17) target = $region8
  $region5: #{msconv_forward.1} parent=0 // loop_body
    %s21 = ssub.s32 %s16, 1
    %s22 = ssub.s32 %s16, 2
    %s23 = sadd.s32 %s16, 1
    %s24 = ssub.s32 %s16, %s23
    %p25 = scmp.eq.s32.totalorder %s24, 0
    %s27 = sadd.s32 %s26, 1
    %s28 = scalar_select %p25, %s26, %s27
    %p31 = pneg %p25
    %p32 = scmp.eq.s32.totalorder %s16, 1
    %p33 = por %p31, %p32
    %p34 = scmp.ne.s32.totalorder %s26, %s29
    %p35 = scmp.eq.s32.totalorder %s16, 0
    %p36 = por %p34, %p35
    %p37 = scmp.ne.s32.totalorder %s26, %s29
    %p38 = scmp.eq.s32.totalorder %s21, 1
    %p39 = por %p37, %p38
    %p40 = scmp.ne.s32.totalorder %s29, %s30
    %p41 = scmp.eq.s32.totalorder %s21, 0
    %p42 = por %p40, %p41
    %p43 = scmp.ne.s32.totalorder %s29, %s30
    %p44 = scmp.eq.s32.totalorder %s22, 1
    %p45 = por %p43, %p44
    %p47 = scmp.ne.s32.totalorder %s30, %s46
    %p48 = scmp.eq.s32.totalorder %s22, 0
    %p49 = por %p47, %p48
    %s51 = sadd.s32 %s50, 1
    %p54 = scmp.eq.s32.totalorder %s16, 1
    %p55 = scmp.ne.s32.totalorder %s50, %s52
    %p56 = scmp.eq.s32.totalorder %s16, 0
    %p57 = por %p55, %p56
    %p58 = scmp.ne.s32.totalorder %s50, %s52
    %p59 = scmp.eq.s32.totalorder %s21, 1
    %p60 = por %p58, %p59
    %p61 = scmp.ne.s32.totalorder %s52, %s53
    %p62 = scmp.eq.s32.totalorder %s21, 0
    %p63 = por %p61, %p62
    %p64 = scmp.ne.s32.totalorder %s52, %s53
    %p65 = scmp.eq.s32.totalorder %s22, 1
    %p66 = por %p64, %p65
    %p68 = scmp.ne.s32.totalorder %s53, %s67
    %p69 = scmp.eq.s32.totalorder %s22, 0
    %p70 = por %p68, %p69
    %s72 = sadd.s32 %s71, 1
    %p75 = scmp.eq.s32.totalorder %s16, 1
    %p76 = scmp.ne.s32.totalorder %s71, %s73
    %p77 = scmp.eq.s32.totalorder %s16, 0
    %p78 = por %p76, %p77
    %p79 = scmp.ne.s32.totalorder %s71, %s73
    %p80 = scmp.eq.s32.totalorder %s21, 1
    %p81 = por %p79, %p80
    %p82 = scmp.ne.s32.totalorder %s73, %s74
    %p83 = scmp.eq.s32.totalorder %s21, 0
    %p84 = por %p82, %p83
    %p85 = scmp.ne.s32.totalorder %s73, %s74
    %p86 = scmp.eq.s32.totalorder %s22, 1
    %p87 = por %p85, %p86
    %p89 = scmp.ne.s32.totalorder %s74, %s88
    %p90 = scmp.eq.s32.totalorder %s22, 0
    %p91 = por %p89, %p90
    %s93 = sadd.s32 %s92, 1
    %p96 = scmp.eq.s32.totalorder %s16, 1
    %p97 = scmp.ne.s32.totalorder %s92, %s94
    %p98 = scmp.eq.s32.totalorder %s16, 0
    %p99 = por %p97, %p98
    %p100 = scmp.ne.s32.totalorder %s92, %s94
    %p101 = scmp.eq.s32.totalorder %s21, 1
    %p102 = por %p100, %p101
    %p103 = scmp.ne.s32.totalorder %s94, %s95
    %p104 = scmp.eq.s32.totalorder %s21, 0
    %p105 = por %p103, %p104
    %p106 = scmp.ne.s32.totalorder %s94, %s95
    %p107 = scmp.eq.s32.totalorder %s22, 1
    %p108 = por %p106, %p107
    %p110 = scmp.ne.s32.totalorder %s95, %s109
    %p111 = scmp.eq.s32.totalorder %s22, 0
    %p112 = por %p110, %p111
    %s114 = sadd.s32 %s113, 1
    %p117 = scmp.eq.s32.totalorder %s16, 1
    %p118 = scmp.ne.s32.totalorder %s113, %s115
    %p119 = scmp.eq.s32.totalorder %s16, 0
    %p120 = por %p118, %p119
    %p121 = scmp.ne.s32.totalorder %s113, %s115
    %p122 = scmp.eq.s32.totalorder %s21, 1
    %p123 = por %p121, %p122
    %p124 = scmp.ne.s32.totalorder %s115, %s116
    %p125 = scmp.eq.s32.totalorder %s21, 0
    %p126 = por %p124, %p125
    %p127 = scmp.ne.s32.totalorder %s115, %s116
    %p128 = scmp.eq.s32.totalorder %s22, 1
    %p129 = por %p127, %p128
    %p131 = scmp.ne.s32.totalorder %s116, %s130
    %p132 = scmp.eq.s32.totalorder %s22, 0
    %p133 = por %p131, %p132
    %s135 = sadd.s32 %s134, 1
    %p138 = scmp.eq.s32.totalorder %s16, 1
    %p139 = scmp.ne.s32.totalorder %s134, %s136
    %p140 = scmp.eq.s32.totalorder %s16, 0
    %p141 = por %p139, %p140
    %p142 = scmp.ne.s32.totalorder %s134, %s136
    %p143 = scmp.eq.s32.totalorder %s21, 1
    %p144 = por %p142, %p143
    %p145 = scmp.ne.s32.totalorder %s136, %s137
    %p146 = scmp.eq.s32.totalorder %s21, 0
    %p147 = por %p145, %p146
    %p148 = scmp.ne.s32.totalorder %s136, %s137
    %p149 = scmp.eq.s32.totalorder %s22, 1
    %p150 = por %p148, %p149
    %p152 = scmp.ne.s32.totalorder %s137, %s151
    %p153 = scmp.eq.s32.totalorder %s22, 0
    %p154 = por %p152, %p153
    %s156 = sadd.s32 %s155, 1
    %p159 = scmp.eq.s32.totalorder %s16, 1
    %p160 = scmp.ne.s32.totalorder %s155, %s157
    %p161 = scmp.eq.s32.totalorder %s16, 0
    %p162 = por %p160, %p161
    %p163 = scmp.ne.s32.totalorder %s155, %s157
    %p164 = scmp.eq.s32.totalorder %s21, 1
    %p165 = por %p163, %p164
    %p166 = scmp.ne.s32.totalorder %s157, %s158
    %p167 = scmp.eq.s32.totalorder %s21, 0
    %p168 = por %p166, %p167
    %p169 = scmp.ne.s32.totalorder %s157, %s158
    %p170 = scmp.eq.s32.totalorder %s22, 1
    %p171 = por %p169, %p170
    %p173 = scmp.ne.s32.totalorder %s158, %s172
    %p174 = scmp.eq.s32.totalorder %s22, 0
    %p175 = por %p173, %p174
    %s177 = sadd.s32 %s176, 1
    %p180 = scmp.eq.s32.totalorder %s16, 1
    %p181 = scmp.ne.s32.totalorder %s176, %s178
    %p182 = scmp.eq.s32.totalorder %s16, 0
    %p183 = por %p181, %p182
    %p184 = scmp.ne.s32.totalorder %s176, %s178
    %p185 = scmp.eq.s32.totalorder %s21, 1
    %p186 = por %p184, %p185
    %p187 = scmp.ne.s32.totalorder %s178, %s179
    %p188 = scmp.eq.s32.totalorder %s21, 0
    %p189 = por %p187, %p188
    %p190 = scmp.ne.s32.totalorder %s178, %s179
    %p191 = scmp.eq.s32.totalorder %s22, 1
    %p192 = por %p190, %p191
    %p194 = scmp.ne.s32.totalorder %s179, %s193
    %p195 = scmp.eq.s32.totalorder %s22, 0
    %p196 = por %p194, %p195
    %s198 = sadd.s32 %s197, 1
    %p201 = scmp.eq.s32.totalorder %s16, 1
    %p202 = scmp.ne.s32.totalorder %s197, %s199
    %p203 = scmp.eq.s32.totalorder %s16, 0
    %p204 = por %p202, %p203
    %p205 = scmp.ne.s32.totalorder %s197, %s199
    %p206 = scmp.eq.s32.totalorder %s21, 1
    %p207 = por %p205, %p206
    %p208 = scmp.ne.s32.totalorder %s199, %s200
    %p209 = scmp.eq.s32.totalorder %s21, 0
    %p210 = por %p208, %p209
    %p211 = scmp.ne.s32.totalorder %s199, %s200
    %p212 = scmp.eq.s32.totalorder %s22, 1
    %p213 = por %p211, %p212
    %p215 = scmp.ne.s32.totalorder %s200, %s214
    %p216 = scmp.eq.s32.totalorder %s22, 0
    %p217 = por %p215, %p216
    %s219 = sadd.s32 %s218, 1
    %p222 = scmp.eq.s32.totalorder %s16, 1
    %p223 = scmp.ne.s32.totalorder %s218, %s220
    %p224 = scmp.eq.s32.totalorder %s16, 0
    %p225 = por %p223, %p224
    %p226 = scmp.ne.s32.totalorder %s218, %s220
    %p227 = scmp.eq.s32.totalorder %s21, 1
    %p228 = por %p226, %p227
    %p229 = scmp.ne.s32.totalorder %s220, %s221
    %p230 = scmp.eq.s32.totalorder %s21, 0
    %p231 = por %p229, %p230
    %p232 = scmp.ne.s32.totalorder %s220, %s221
    %p233 = scmp.eq.s32.totalorder %s22, 1
    %p234 = por %p232, %p233
    %p236 = scmp.ne.s32.totalorder %s221, %s235
    %p237 = scmp.eq.s32.totalorder %s22, 0
    %p238 = por %p236, %p237
    %s239 = ssub.s32 %s16, %s23
    %p240 = scmp.eq.s32.totalorder %s239, 0
    %s242 = sadd.s32 %s241, 1
    %s243 = scalar_select %p240, %s241, %s242
    %p246 = pneg %p240
    %p247 = scmp.eq.s32.totalorder %s16, 1
    %p248 = por %p246, %p247
    %p249 = scmp.ne.s32.totalorder %s241, %s244
    %p250 = scmp.eq.s32.totalorder %s16, 0
    %p251 = por %p249, %p250
    %p252 = scmp.ne.s32.totalorder %s241, %s244
    %p253 = scmp.eq.s32.totalorder %s21, 1
    %p254 = por %p252, %p253
    %p255 = scmp.ne.s32.totalorder %s244, %s245
    %p256 = scmp.eq.s32.totalorder %s21, 0
    %p257 = por %p255, %p256
    %p258 = scmp.ne.s32.totalorder %s244, %s245
    %p259 = scmp.eq.s32.totalorder %s22, 1
    %p260 = por %p258, %p259
    %p262 = scmp.ne.s32.totalorder %s245, %s261
    %p263 = scmp.eq.s32.totalorder %s22, 0
    %p264 = por %p262, %p263
    %p265 = scmp.le.s32.totalorder 1, %s16
    %p266 = scmp.lt.s32.totalorder %s16, 3
    %p267 = pnand %p265, %p266
    %p268 = pneg %p267
    // Predicated region
    $region9: #{msconv_forward.1} parent=5 // pred_check
      _
    $region10: #{msconv_forward.1} parent=5 // pred_check_branch
      %270 = sbr.rel (%p267) target = $region12
    $region11: #{msconv_forward.1} parent=5 // pred_region
      %s271 = ssub.s32 %s16, 1
      // Predicated region
      $region13: #{msconv_forward.1} parent=11 // pred_check
        %p272 = pneg %p63
      $region14: #{msconv_forward.1} parent=11 // pred_check_branch
        %274 = sbr.rel (%p272) target = $region16
      $region15: #{msconv_forward.1} parent=11 // pred_region
        _
      $region16: #{msconv_forward.1} parent=11 // pred_fallthru
        _
      // Predicated region
      $region17: #{msconv_forward.1} parent=11 // pred_check
        %p275 = pneg %p84
      $region18: #{msconv_forward.1} parent=11 // pred_check_branch
        %277 = sbr.rel (%p275) target = $region20
      $region19: #{msconv_forward.1} parent=11 // pred_region
        _
      $region20: #{msconv_forward.1} parent=11 // pred_fallthru
        _
      // Predicated region
      $region21: #{msconv_forward.1} parent=11 // pred_check
        %p278 = pneg %p105
      $region22: #{msconv_forward.1} parent=11 // pred_check_branch
        %280 = sbr.rel (%p278) target = $region24
      $region23: #{msconv_forward.1} parent=11 // pred_region
        _
      $region24: #{msconv_forward.1} parent=11 // pred_fallthru
        _
      // Predicated region
      $region25: #{msconv_forward.1} parent=11 // pred_check
        %p281 = pneg %p126
      $region26: #{msconv_forward.1} parent=11 // pred_check_branch
        %283 = sbr.rel (%p281) target = $region28
      $region27: #{msconv_forward.1} parent=11 // pred_region
        _
      $region28: #{msconv_forward.1} parent=11 // pred_fallthru
        _
      // Predicated region
      $region29: #{msconv_forward.1} parent=11 // pred_check
        %p284 = pneg %p147
      $region30: #{msconv_forward.1} parent=11 // pred_check_branch
        %286 = sbr.rel (%p284) target = $region32
      $region31: #{msconv_forward.1} parent=11 // pred_region
        _
      $region32: #{msconv_forward.1} parent=11 // pred_fallthru
        _
      // Predicated region
      $region33: #{msconv_forward.1} parent=11 // pred_check
        %p287 = pneg %p168
      $region34: #{msconv_forward.1} parent=11 // pred_check_branch
        %289 = sbr.rel (%p287) target = $region36
      $region35: #{msconv_forward.1} parent=11 // pred_region
        _
      $region36: #{msconv_forward.1} parent=11 // pred_fallthru
        _
      // Predicated region
      $region37: #{msconv_forward.1} parent=11 // pred_check
        %p290 = pneg %p189
      $region38: #{msconv_forward.1} parent=11 // pred_check_branch
        %292 = sbr.rel (%p290) target = $region40
      $region39: #{msconv_forward.1} parent=11 // pred_region
        _
      $region40: #{msconv_forward.1} parent=11 // pred_fallthru
        _
      // Predicated region
      $region41: #{msconv_forward.1} parent=11 // pred_check
        %p293 = pneg %p210
      $region42: #{msconv_forward.1} parent=11 // pred_check_branch
        %295 = sbr.rel (%p293) target = $region44
      $region43: #{msconv_forward.1} parent=11 // pred_region
        _
      $region44: #{msconv_forward.1} parent=11 // pred_fallthru
        _
      // Predicated region
      $region45: #{msconv_forward.1} parent=11 // pred_check
        %p296 = pneg %p231
      $region46: #{msconv_forward.1} parent=11 // pred_check_branch
        %298 = sbr.rel (%p296) target = $region48
      $region47: #{msconv_forward.1} parent=11 // pred_region
        _
      $region48: #{msconv_forward.1} parent=11 // pred_fallthru
        _
    $region12: #{msconv_forward.1} parent=5 // pred_fallthru
      _
    %p299 = scmp.lt.s32.totalorder %s16, 2
    // Predicated region
    $region49: #{msconv_forward.1} parent=5 // pred_check
      %p300 = pneg %p299
    $region50: #{msconv_forward.1} parent=5 // pred_check_branch
      %302 = sbr.rel (%p300) target = $region52
    $region51: #{msconv_forward.1} parent=5 // pred_region
      // Predicated region
      $region53: #{msconv_forward.1} parent=51 // pred_check
        %p303 = pneg %p36
      $region54: #{msconv_forward.1} parent=51 // pred_check_branch
        %305 = sbr.rel (%p303) target = $region56
      $region55: #{msconv_forward.1} parent=51 // pred_region
        %p306 = scmp.lt.s32.totalorder %s16, 1
        %s307 = scalar_select %p306, %s16, 1
        %s308 = smul.addr %s307, 61
        %s309 = smul.addr %s308, 4
        %s310 = scalar_lea.vmem %s0, %s309
      $region56: #{msconv_forward.1} parent=51 // pred_fallthru
        _
    $region52: #{msconv_forward.1} parent=5 // pred_fallthru
      _
    %p311 = scmp.le.s32.totalorder 1, %s16
    %p312 = scmp.lt.s32.totalorder %s16, 3
    %p313 = pnand %p311, %p312
    %p314 = pneg %p313
    // Predicated region
    $region57: #{msconv_forward.1} parent=5 // pred_check
      _
    $region58: #{msconv_forward.1} parent=5 // pred_check_branch
      %316 = sbr.rel (%p313) target = $region60
    $region59: #{msconv_forward.1} parent=5 // pred_region
      %s317 = ssub.s32 %s16, 1
      %p318 = scmp.lt.s32.totalorder %s21, 1
      %s319 = scalar_select %p318, %s21, 1
      %s320 = smul.addr %s319, 61
      %s321 = smul.addr %s320, 4
      %s322 = scalar_lea.vmem %s0, %s321
      %p323 = pneg %p42
      %p324 = pneg %p39
      %p325 = pneg %p63
      %p326 = pneg %p60
      %p327 = pneg %p84
      %p328 = pneg %p81
      %p329 = pneg %p105
      %p330 = pneg %p102
      %p331 = pneg %p126
      %p332 = pneg %p123
      %p333 = pneg %p147
      %p334 = pneg %p144
      %p335 = pneg %p168
      %p336 = pneg %p165
      %p337 = pneg %p189
      %p338 = pneg %p186
      %p339 = pneg %p210
      %p340 = pneg %p207
      %p341 = pneg %p231
      %p342 = pneg %p228
      %p343 = pneg %p257
      %p344 = pneg %p254
      %p345 = scmp.lt.s32.totalorder %s21, 1
      %s346 = scalar_select %p345, %s21, 1
      %s347 = smul.addr %s346, 44
      %s348 = smul.addr %s347, 8
      %s349 = scalar_lea.vmem %s10, %s348
      %p350 = scmp.lt.s32.totalorder %s21, 1
      %s351 = scalar_select %p350, %s21, 1
      %s352 = smul.addr %s351, 61
      %s353 = smul.addr %s352, 4
      %s354 = scalar_lea.vmem %s0, %s353
      %p355 = scmp.lt.s32.totalorder %s21, 1
      %s356 = scalar_select %p355, %s21, 1
      %s357 = smul.addr %s356, 44
      %s358 = smul.addr %s357, 8
      %s359 = scalar_lea.vmem %s10, %s358
      %v361 = vld [vmem:[%s354] sm:$0xf]
      %v362 = vld [vmem:[%s354 + $0x4] sm:$0xf]
      %v363 = vld [vmem:[%s354 + $0x8] sm:$0xf]
      %v364 = vld [vmem:[%s354 + $0xc] sm:$0xf]
      %v365 = vld [vmem:[%s354 + $0x10] sm:$0xf]
      %v366 = vld [vmem:[%s354 + $0x14] sm:$0xf]
      %v367 = vld [vmem:[%s354 + $0x18] sm:$0xf]
      %v368 = vld [vmem:[%s354 + $0x1c] sm:$0xf]
      %v369 = vld [vmem:[%s354 + $0x20] sm:$0xf]
      %v370 = vld [vmem:[%s354 + $0x24] sm:$0xf]
      %v371 = vld [vmem:[%s354 + $0x28] sm:$0xf]
      %v372 = vld [vmem:[%s354 + $0x2c] sm:$0xf]
      %v373 = vld [vmem:[%s354 + $0x30] sm:$0xf]
      %v374 = vld [vmem:[%s354 + $0x34] sm:$0xf]
      %v375 = vld [vmem:[%s354 + $0x38] sm:$0xf]
      %v376 = vld [vmem:[%s354 + $0x3c] sm:$0xf]
      %v377 = vld [vmem:[%s354 + $0x40] sm:$0xf]
      %v378 = vld [vmem:[%s354 + $0x44] sm:$0xf]
      %v379 = vld [vmem:[%s354 + $0x48] sm:$0xf]
      %v380 = vld [vmem:[%s354 + $0x4c] sm:$0xf]
      %v381 = vld [vmem:[%s354 + $0x50] sm:$0xf]
      %v382 = vld [vmem:[%s354 + $0x54] sm:$0xf]
      %v383 = vld [vmem:[%s354 + $0x58] sm:$0xf]
      %v384 = vld [vmem:[%s354 + $0x5c] sm:$0xf]
      %v385 = vld [vmem:[%s354 + $0x60] sm:$0xf]
      %v386 = vld [vmem:[%s354 + $0x64] sm:$0xf]
      %v387 = vld [vmem:[%s354 + $0x68] sm:$0xf]
      %v388 = vld [vmem:[%s354 + $0x6c] sm:$0xf]
      %v389 = vld [vmem:[%s354 + $0x70] sm:$0xf]
      %v390 = vld [vmem:[%s354 + $0x74] sm:$0xf]
      %v391 = vld [vmem:[%s354 + $0x78] sm:$0xf]
      %v392 = vld [vmem:[%s354 + $0x7c] sm:$0xf]
      %v393 = vld [vmem:[%s354 + $0x80] sm:$0xf]
      %v394 = vld [vmem:[%s354 + $0x84] sm:$0xf]
      %v395 = vld [vmem:[%s354 + $0x88] sm:$0xf]
      %v396 = vld [vmem:[%s354 + $0x8c] sm:$0xf]
      %v397 = vld [vmem:[%s354 + $0x90] sm:$0xf]
      %v398 = vld [vmem:[%s354 + $0x94] sm:$0xf]
      %v399 = vld [vmem:[%s354 + $0x98] sm:$0xf]
      %v400 = vld [vmem:[%s354 + $0x9c] sm:$0xf]
      %v401 = vld [vmem:[%s354 + $0xa0] sm:$0xf]
      %v402 = vld [vmem:[%s354 + $0xa4] sm:$0xf]
      %v403 = vld [vmem:[%s354 + $0xa8] sm:$0xf]
      %v404 = vld [vmem:[%s354 + $0xac] sm:$0xf]
      %v405 = vld [vmem:[%s354 + $0xb0] sm:$0xf]
      %v406 = vld [vmem:[%s354 + $0xb4] sm:$0xf]
      %v407 = vld [vmem:[%s354 + $0xb8] sm:$0xf]
      %v408 = vld [vmem:[%s354 + $0xbc] sm:$0xf]
      %v409 = vld [vmem:[%s354 + $0xc0] sm:$0xf]
      %v410 = vld [vmem:[%s354 + $0xc4] sm:$0xf]
      %v411 = vld [vmem:[%s354 + $0xc8] sm:$0xf]
      %v412 = vld [vmem:[%s354 + $0xcc] sm:$0xf]
      %v413 = vld [vmem:[%s354 + $0xd0] sm:$0xf]
      %v414 = vld [vmem:[%s354 + $0xd4] sm:$0xf]
      %v415 = vld [vmem:[%s354 + $0xd8] sm:$0xf]
      %v416 = vld [vmem:[%s354 + $0xdc] sm:$0xf]
      %v417 = vld [vmem:[%s354 + $0xe0] sm:$0xf]
      %v418 = vld [vmem:[%s354 + $0xe4] sm:$0xf]
      %v419 = vld [vmem:[%s354 + $0xe8] sm:$0xf]
      %v420 = vld [vmem:[%s354 + $0xec] sm:$0xf]
      %v421 = vld [vmem:[%s354 + $0xf0] sm:$0x3]
      %v422 = vld [vmem:[%s1 + $0x10] sm:$0xff]
      %v423 = vld [vmem:[%s1 + $0x18] sm:$0xff]
      %v424 = vld [vmem:[%s1 + $0x20] sm:$0xff]
      %v425 = vld [vmem:[%s1 + $0x28] sm:$0xff]
      %v426 = vld [vmem:[%s1 + $0x30] sm:$0xff]
      %v427 = vld [vmem:[%s1 + $0x38] sm:$0xff]
      %v428 = vld [vmem:[%s1 + $0x40] sm:$0xff]
      %v429 = vld [vmem:[%s1 + $0x48] sm:$0xff]
      %v430 = vld [vmem:[%s1 + $0x50] sm:$0xff]
      %v431 = vld [vmem:[%s1 + $0x58] sm:$0xff]
      %v432 = vld [vmem:[%s1 + $0x60] sm:$0xff]
      %v433 = vld [vmem:[%s1 + $0x68] sm:$0xff]
      %v434 = vld [vmem:[%s1 + $0x70] sm:$0xff]
      %v435 = vld [vmem:[%s1 + $0x78] sm:$0xff]
      %v436 = vld [vmem:[%s1 + $0x80] sm:$0xff]
      %v437 = vld [vmem:[%s1 + $0x88] sm:$0xff]
      %v438 = vld [vmem:[%s1 + $0x90] sm:$0xff]
      %v439 = vld [vmem:[%s1 + $0x98] sm:$0xff]
      %v440 = vld [vmem:[%s1 + $0xa0] sm:$0xff]
      %v441 = vld [vmem:[%s1 + $0xa8] sm:$0xff]
      %v442 = vld [vmem:[%s1 + $0xb0] sm:$0xff]
      %v443 = vld [vmem:[%s1 + $0xb8] sm:$0xff]
      %v444 = vld [vmem:[%s1 + $0xc0] sm:$0xff]
      %v445 = vld [vmem:[%s1 + $0xc8] sm:$0xff]
      %v446 = vld [vmem:[%s1 + $0xd0] sm:$0xff]
      %v447 = vld [vmem:[%s1 + $0xd8] sm:$0xff]
      %v448 = vld [vmem:[%s1 + $0xe0] sm:$0xff]
      %v449 = vld [vmem:[%s1 + $0xe8] sm:$0xff]
      %v450 = vld [vmem:[%s1 + $0xf0] sm:$0xff]
      %v451 = vld [vmem:[%s1 + $0xf8] sm:$0xff]
      %v452 = vld [vmem:[%s1 + $0x100] sm:$0xff]
      %v453 = vld [vmem:[%s1 + $0x108] sm:$0xff]
      %v454 = vld [vmem:[%s1 + $0x110] sm:$0xff]
      %v455 = vld [vmem:[%s1 + $0x118] sm:$0xff]
      %v456 = vld [vmem:[%s1 + $0x120] sm:$0xff]
      %v457 = vld [vmem:[%s1 + $0x128] sm:$0xff]
      %v458 = vld [vmem:[%s1 + $0x130] sm:$0xff]
      %v459 = vld [vmem:[%s1 + $0x138] sm:$0xff]
      %v460 = vld [vmem:[%s1 + $0x140] sm:$0xff]
      %v461 = vld [vmem:[%s1 + $0x148] sm:$0xff]
      %v462 = vld [vmem:[%s1 + $0x150] sm:$0xff]
      %v463 = vld [vmem:[%s1 + $0x158] sm:$0xff]
      %v464 = vld [vmem:[%s1 + $0x160] sm:$0xff]
      %v465 = vld [vmem:[%s1 + $0x168] sm:$0xff]
      %v466 = vld [vmem:[%s1 + $0x170] sm:$0xff]
      %v467 = vld [vmem:[%s1 + $0x178] sm:$0xff]
      %v468 = vld [vmem:[%s1 + $0x180] sm:$0xff]
      %v469 = vld [vmem:[%s1 + $0x188] sm:$0xff]
      %v470 = vld [vmem:[%s1 + $0x190] sm:$0xff]
      %v471 = vld [vmem:[%s1 + $0x198] sm:$0xff]
      %v472 = vld [vmem:[%s1 + $0x1a0] sm:$0xff]
      %v473 = vld [vmem:[%s1 + $0x1a8] sm:$0xff]
      %v474 = vld [vmem:[%s1 + $0x1b0] sm:$0xff]
      %v475 = vld [vmem:[%s1 + $0x1b8] sm:$0xff]
      %v476 = vld [vmem:[%s1 + $0x1c0] sm:$0xff]
      %v477 = vld [vmem:[%s1 + $0x1c8] sm:$0xff]
      %v533 = vunpack.c.l.b16 %v361
      %v534 = vunpack.c.l.b16 %v362
      %v535 = vunpack.c.l.b16 %v363
      %v536 = vunpack.c.l.b16 %v364
      %v537 = vunpack.c.l.b16 %v365
      %v538 = vunpack.c.l.b16 %v366
      %v539 = vunpack.c.l.b16 %v367
      %v540 = vunpack.c.l.b16 %v368
      %v541 = vunpack.c.l.b16 %v369
      %v542 = vunpack.c.l.b16 %v370
      %v543 = vunpack.c.l.b16 %v371
      %v544 = vunpack.c.l.b16 %v372
      %v545 = vunpack.c.l.b16 %v373
      %v546 = vunpack.c.l.b16 %v374
      %v547 = vunpack.c.l.b16 %v375
      %v548 = vunpack.c.l.b16 %v376
      %v549 = vunpack.c.l.b16 %v377
      %v550 = vunpack.c.l.b16 %v378
      %v551 = vunpack.c.l.b16 %v379
      %v552 = vunpack.c.l.b16 %v380
      %v553 = vunpack.c.l.b16 %v381
      %v554 = vunpack.c.l.b16 %v382
      %v555 = vunpack.c.l.b16 %v383
      %v556 = vunpack.c.l.b16 %v384
      %v557 = vunpack.c.l.b16 %v385
      %v558 = vunpack.c.l.b16 %v386
      %v559 = vunpack.c.l.b16 %v387
      %v560 = vunpack.c.l.b16 %v388
      %v561 = vunpack.c.l.b16 %v389
      %v562 = vunpack.c.l.b16 %v390
      %v563 = vunpack.c.l.b16 %v391
      %v564 = vunpack.c.l.b16 %v392
      %v565 = vunpack.c.l.b16 %v393
      %v566 = vunpack.c.l.b16 %v394
      %v567 = vunpack.c.l.b16 %v395
      %v568 = vunpack.c.l.b16 %v396
      %v569 = vunpack.c.l.b16 %v397
      %v570 = vunpack.c.l.b16 %v398
      %v571 = vunpack.c.l.b16 %v399
      %v572 = vunpack.c.l.b16 %v400
      %v573 = vunpack.c.l.b16 %v401
      %v574 = vunpack.c.l.b16 %v402
      %v575 = vunpack.c.l.b16 %v403
      %v576 = vunpack.c.l.b16 %v404
      %v577 = vunpack.c.l.b16 %v405
      %v578 = vunpack.c.l.b16 %v406
      %v579 = vunpack.c.l.b16 %v407
      %v580 = vunpack.c.l.b16 %v408
      %v581 = vunpack.c.l.b16 %v409
      %v582 = vunpack.c.l.b16 %v410
      %v583 = vunpack.c.l.b16 %v411
      %v584 = vunpack.c.l.b16 %v412
      %v585 = vunpack.c.l.b16 %v413
      %v586 = vunpack.c.l.b16 %v414
      %v587 = vunpack.c.l.b16 %v415
      %v588 = vpack.c.b16 %v534, %v533
      %v589 = vpack.c.b16 %v536, %v535
      %v590 = vpack.c.b16 %v538, %v537
      %v591 = vpack.c.b16 %v540, %v539
      %v592 = vpack.c.b16 %v542, %v541
      %v593 = vpack.c.b16 %v544, %v543
      %v594 = vpack.c.b16 %v546, %v545
      %v595 = vpack.c.b16 %v548, %v547
      %v596 = vpack.c.b16 %v550, %v549
      %v597 = vpack.c.b16 %v552, %v551
      %v598 = vpack.c.b16 %v554, %v553
      %v599 = vpack.c.b16 %v556, %v555
      %v600 = vpack.c.b16 %v558, %v557
      %v601 = vpack.c.b16 %v560, %v559
      %v602 = vpack.c.b16 %v562, %v561
      %v603 = vpack.c.b16 %v564, %v563
      %v604 = vpack.c.b16 %v566, %v565
      %v605 = vpack.c.b16 %v568, %v567
      %v606 = vpack.c.b16 %v570, %v569
      %v607 = vpack.c.b16 %v572, %v571
      %v608 = vpack.c.b16 %v574, %v573
      %v609 = vpack.c.b16 %v576, %v575
      %v610 = vpack.c.b16 %v578, %v577
      %v611 = vpack.c.b16 %v580, %v579
      %v612 = vpack.c.b16 %v582, %v581
      %v613 = vpack.c.b16 %v584, %v583
      %v614 = vpack.c.b16 %v586, %v585
      %v615 = vpack.c.b16 %v587, %v587
      %vm616 = vsmask.f32 7424
      %v618 = vshrl.u32 %v588, 16
      %v620 = vshll.u32 %v588, 16
      %v622 = vrot.slane %v620, 1
      %v623 = vor.u32 %v618, %v622
      %v625 = vshll.u32 %v589, 16
      %v627 = vrot.slane %v625, 1
      %v628 = vsel %vm616, %v623, %v627
      %v629 = vshrl.u32 %v589, 16
      %v631 = vor.u32 %v629, %v627
      %v633 = vshll.u32 %v590, 16
      %v635 = vrot.slane %v633, 1
      %v636 = vsel %vm616, %v631, %v635
      %v637 = vshrl.u32 %v590, 16
      %v639 = vor.u32 %v637, %v635
      %v641 = vshll.u32 %v591, 16
      %v643 = vrot.slane %v641, 1
      %v644 = vsel %vm616, %v639, %v643
      %v645 = vshrl.u32 %v591, 16
      %v647 = vor.u32 %v645, %v643
      %v649 = vshll.u32 %v592, 16
      %v651 = vrot.slane %v649, 1
      %v652 = vsel %vm616, %v647, %v651
      %v653 = vshrl.u32 %v592, 16
      %v655 = vor.u32 %v653, %v651
      %v657 = vshll.u32 %v593, 16
      %v659 = vrot.slane %v657, 1
      %v660 = vsel %vm616, %v655, %v659
      %v661 = vshrl.u32 %v593, 16
      %v663 = vor.u32 %v661, %v659
      %v665 = vshll.u32 %v594, 16
      %v667 = vrot.slane %v665, 1
      %v668 = vsel %vm616, %v663, %v667
      %v669 = vshrl.u32 %v594, 16
      %v671 = vor.u32 %v669, %v667
      %v673 = vshll.u32 %v595, 16
      %v675 = vrot.slane %v673, 1
      %v676 = vsel %vm616, %v671, %v675
      %v677 = vshrl.u32 %v595, 16
      %v679 = vor.u32 %v677, %v675
      %v681 = vshll.u32 %v596, 16
      %v683 = vrot.slane %v681, 1
      %v684 = vsel %vm616, %v679, %v683
      %v685 = vshrl.u32 %v596, 16
      %v687 = vor.u32 %v685, %v683
      %v689 = vshll.u32 %v597, 16
      %v691 = vrot.slane %v689, 1
      %v692 = vsel %vm616, %v687, %v691
      %v693 = vshrl.u32 %v597, 16
      %v695 = vor.u32 %v693, %v691
      %v697 = vshll.u32 %v598, 16
      %v699 = vrot.slane %v697, 1
      %v700 = vsel %vm616, %v695, %v699
      %v701 = vshrl.u32 %v598, 16
      %v703 = vor.u32 %v701, %v699
      %v705 = vshll.u32 %v599, 16
      %v707 = vrot.slane %v705, 1
      %v708 = vsel %vm616, %v703, %v707
      %v709 = vshrl.u32 %v599, 16
      %v711 = vor.u32 %v709, %v707
      %v713 = vshll.u32 %v600, 16
      %v715 = vrot.slane %v713, 1
      %v716 = vsel %vm616, %v711, %v715
      %v717 = vshrl.u32 %v600, 16
      %v719 = vor.u32 %v717, %v715
      %v721 = vshll.u32 %v601, 16
      %v723 = vrot.slane %v721, 1
      %v724 = vsel %vm616, %v719, %v723
      %v725 = vshrl.u32 %v601, 16
      %v727 = vor.u32 %v725, %v723
      %v729 = vshll.u32 %v602, 16
      %v731 = vrot.slane %v729, 1
      %v732 = vsel %vm616, %v727, %v731
      %v733 = vshrl.u32 %v602, 16
      %v735 = vor.u32 %v733, %v731
      %v737 = vshll.u32 %v603, 16
      %v739 = vrot.slane %v737, 1
      %v740 = vsel %vm616, %v735, %v739
      %v741 = vshrl.u32 %v603, 16
      %v743 = vor.u32 %v741, %v739
      %v745 = vshll.u32 %v604, 16
      %v747 = vrot.slane %v745, 1
      %v748 = vsel %vm616, %v743, %v747
      %v749 = vshrl.u32 %v604, 16
      %v751 = vor.u32 %v749, %v747
      %v753 = vshll.u32 %v605, 16
      %v755 = vrot.slane %v753, 1
      %v756 = vsel %vm616, %v751, %v755
      %v757 = vshrl.u32 %v605, 16
      %v759 = vor.u32 %v757, %v755
      %v761 = vshll.u32 %v606, 16
      %v763 = vrot.slane %v761, 1
      %v764 = vsel %vm616, %v759, %v763
      %v765 = vshrl.u32 %v606, 16
      %v767 = vor.u32 %v765, %v763
      %v769 = vshll.u32 %v607, 16
      %v771 = vrot.slane %v769, 1
      %v772 = vsel %vm616, %v767, %v771
      %v773 = vshrl.u32 %v607, 16
      %v775 = vor.u32 %v773, %v771
      %v777 = vshll.u32 %v608, 16
      %v779 = vrot.slane %v777, 1
      %v780 = vsel %vm616, %v775, %v779
      %v781 = vshrl.u32 %v608, 16
      %v783 = vor.u32 %v781, %v779
      %v785 = vshll.u32 %v609, 16
      %v787 = vrot.slane %v785, 1
      %v788 = vsel %vm616, %v783, %v787
      %v789 = vshrl.u32 %v609, 16
      %v791 = vor.u32 %v789, %v787
      %v793 = vshll.u32 %v610, 16
      %v795 = vrot.slane %v793, 1
      %v796 = vsel %vm616, %v791, %v795
      %v797 = vshrl.u32 %v610, 16
      %v799 = vor.u32 %v797, %v795
      %v801 = vshll.u32 %v611, 16
      %v803 = vrot.slane %v801, 1
      %v804 = vsel %vm616, %v799, %v803
      %v805 = vshrl.u32 %v611, 16
      %v807 = vor.u32 %v805, %v803
      %v809 = vshll.u32 %v612, 16
      %v811 = vrot.slane %v809, 1
      %v812 = vsel %vm616, %v807, %v811
      %v813 = vshrl.u32 %v612, 16
      %v815 = vor.u32 %v813, %v811
      %v817 = vshll.u32 %v613, 16
      %v819 = vrot.slane %v817, 1
      %v820 = vsel %vm616, %v815, %v819
      %v821 = vshrl.u32 %v613, 16
      %v823 = vor.u32 %v821, %v819
      %v825 = vshll.u32 %v614, 16
      %v827 = vrot.slane %v825, 1
      %v828 = vsel %vm616, %v823, %v827
      %v829 = vshrl.u32 %v614, 16
      %v831 = vor.u32 %v829, %v827
      %v833 = vshll.u32 %v615, 16
      %v835 = vrot.slane %v833, 1
      %v836 = vsel %vm616, %v831, %v835
      %v837 = vshrl.u32 %v615, 16
      %v839 = vor.u32 %v837, %v835
      %840 = vrot.lane.b32.xlu0 %v628, 32
      %v841 = vpop.permute.xlu0 %840
      %842 = vrot.lane.b32.xlu0 %v636, 32
      %v843 = vpop.permute.xlu0 %842
      %844 = vrot.lane.b32.xlu0 %v644, 32
      %v845 = vpop.permute.xlu0 %844
      %846 = vrot.lane.b32.xlu0 %v652, 32
      %v847 = vpop.permute.xlu0 %846
      %848 = vrot.lane.b32.xlu0 %v660, 32
      %v849 = vpop.permute.xlu0 %848
      %850 = vrot.lane.b32.xlu0 %v668, 32
      %v851 = vpop.permute.xlu0 %850
      %852 = vrot.lane.b32.xlu0 %v676, 32
      %v853 = vpop.permute.xlu0 %852
      %854 = vrot.lane.b32.xlu0 %v684, 32
      %v855 = vpop.permute.xlu0 %854
      %856 = vrot.lane.b32.xlu0 %v692, 32
      %v857 = vpop.permute.xlu0 %856
      %858 = vrot.lane.b32.xlu0 %v700, 32
      %v859 = vpop.permute.xlu0 %858
      %860 = vrot.lane.b32.xlu0 %v708, 32
      %v861 = vpop.permute.xlu0 %860
      %862 = vrot.lane.b32.xlu0 %v716, 32
      %v863 = vpop.permute.xlu0 %862
      %864 = vrot.lane.b32.xlu0 %v724, 32
      %v865 = vpop.permute.xlu0 %864
      %866 = vrot.lane.b32.xlu0 %v732, 32
      %v867 = vpop.permute.xlu0 %866
      %868 = vrot.lane.b32.xlu0 %v740, 32
      %v869 = vpop.permute.xlu0 %868
      %870 = vrot.lane.b32.xlu0 %v748, 32
      %v871 = vpop.permute.xlu0 %870
      %872 = vrot.lane.b32.xlu0 %v756, 32
      %v873 = vpop.permute.xlu0 %872
      %874 = vrot.lane.b32.xlu0 %v764, 32
      %v875 = vpop.permute.xlu0 %874
      %876 = vrot.lane.b32.xlu0 %v772, 32
      %v877 = vpop.permute.xlu0 %876
      %878 = vrot.lane.b32.xlu0 %v780, 32
      %v879 = vpop.permute.xlu0 %878
      %880 = vrot.lane.b32.xlu0 %v788, 32
      %v881 = vpop.permute.xlu0 %880
      %882 = vrot.lane.b32.xlu0 %v796, 32
      %v883 = vpop.permute.xlu0 %882
      %884 = vrot.lane.b32.xlu0 %v804, 32
      %v885 = vpop.permute.xlu0 %884
      %886 = vrot.lane.b32.xlu0 %v812, 32
      %v887 = vpop.permute.xlu0 %886
      %888 = vrot.lane.b32.xlu0 %v820, 32
      %v889 = vpop.permute.xlu0 %888
      %890 = vrot.lane.b32.xlu0 %v828, 32
      %v891 = vpop.permute.xlu0 %890
      %892 = vrot.lane.b32.xlu0 %v836, 32
      %v893 = vpop.permute.xlu0 %892
      %894 = vrot.lane.b32.xlu0 %v839, 32
      %v895 = vpop.permute.xlu0 %894
      %vm896 = vcmask 1046528
      %v897 = vrot.slane %v588, 1
      %v898 = vrot.slane %v589, 1
      %v899 = vsel %vm896, %v897, %v898
      %v900 = vrot.slane %v590, 1
      %v901 = vsel %vm896, %v898, %v900
      %v902 = vrot.slane %v591, 1
      %v903 = vsel %vm896, %v900, %v902
      %v904 = vrot.slane %v592, 1
      %v905 = vsel %vm896, %v902, %v904
      %v906 = vrot.slane %v593, 1
      %v907 = vsel %vm896, %v904, %v906
      %v908 = vrot.slane %v594, 1
      %v909 = vsel %vm896, %v906, %v908
      %v910 = vrot.slane %v595, 1
      %v911 = vsel %vm896, %v908, %v910
      %v912 = vrot.slane %v596, 1
      %v913 = vsel %vm896, %v910, %v912
      %v914 = vrot.slane %v597, 1
      %v915 = vsel %vm896, %v912, %v914
      %v916 = vrot.slane %v598, 1
      %v917 = vsel %vm896, %v914, %v916
      %v918 = vrot.slane %v599, 1
      %v919 = vsel %vm896, %v916, %v918
      %v920 = vrot.slane %v600, 1
      %v921 = vsel %vm896, %v918, %v920
      %v922 = vrot.slane %v601, 1
      %v923 = vsel %vm896, %v920, %v922
      %v924 = vrot.slane %v602, 1
      %v925 = vsel %vm896, %v922, %v924
      %v926 = vrot.slane %v603, 1
      %v927 = vsel %vm896, %v924, %v926
      %v928 = vrot.slane %v604, 1
      %v929 = vsel %vm896, %v926, %v928
      %v930 = vrot.slane %v605, 1
      %v931 = vsel %vm896, %v928, %v930
      %v932 = vrot.slane %v606, 1
      %v933 = vsel %vm896, %v930, %v932
      %v934 = vrot.slane %v607, 1
      %v935 = vsel %vm896, %v932, %v934
      %v936 = vrot.slane %v608, 1
      %v937 = vsel %vm896, %v934, %v936
      %v938 = vrot.slane %v609, 1
      %v939 = vsel %vm896, %v936, %v938
      %v940 = vrot.slane %v610, 1
      %v941 = vsel %vm896, %v938, %v940
      %v942 = vrot.slane %v611, 1
      %v943 = vsel %vm896, %v940, %v942
      %v944 = vrot.slane %v612, 1
      %v945 = vsel %vm896, %v942, %v944
      %v946 = vrot.slane %v613, 1
      %v947 = vsel %vm896, %v944, %v946
      %v948 = vrot.slane %v614, 1
      %v949 = vsel %vm896, %v946, %v948
      %v950 = vrot.slane %v615, 1
      %v951 = vsel %vm896, %v948, %v950
      %952 = vrot.lane.b32.xlu0 %v899, 64
      %v953 = vpop.permute.xlu0 %952
      %954 = vrot.lane.b32.xlu0 %v901, 64
      %v955 = vpop.permute.xlu0 %954
      %956 = vrot.lane.b32.xlu0 %v903, 64
      %v957 = vpop.permute.xlu0 %956
      %958 = vrot.lane.b32.xlu0 %v905, 64
      %v959 = vpop.permute.xlu0 %958
      %960 = vrot.lane.b32.xlu0 %v907, 64
      %v961 = vpop.permute.xlu0 %960
      %962 = vrot.lane.b32.xlu0 %v909, 64
      %v963 = vpop.permute.xlu0 %962
      %964 = vrot.lane.b32.xlu0 %v911, 64
      %v965 = vpop.permute.xlu0 %964
      %966 = vrot.lane.b32.xlu0 %v913, 64
      %v967 = vpop.permute.xlu0 %966
      %968 = vrot.lane.b32.xlu0 %v915, 64
      %v969 = vpop.permute.xlu0 %968
      %970 = vrot.lane.b32.xlu0 %v917, 64
      %v971 = vpop.permute.xlu0 %970
      %972 = vrot.lane.b32.xlu0 %v919, 64
      %v973 = vpop.permute.xlu0 %972
      %974 = vrot.lane.b32.xlu0 %v921, 64
      %v975 = vpop.permute.xlu0 %974
      %976 = vrot.lane.b32.xlu0 %v923, 64
      %v977 = vpop.permute.xlu0 %976
      %978 = vrot.lane.b32.xlu0 %v925, 64
      %v979 = vpop.permute.xlu0 %978
      %980 = vrot.lane.b32.xlu0 %v927, 64
      %v981 = vpop.permute.xlu0 %980
      %982 = vrot.lane.b32.xlu0 %v929, 64
      %v983 = vpop.permute.xlu0 %982
      %984 = vrot.lane.b32.xlu0 %v931, 64
      %v985 = vpop.permute.xlu0 %984
      %986 = vrot.lane.b32.xlu0 %v933, 64
      %v987 = vpop.permute.xlu0 %986
      %988 = vrot.lane.b32.xlu0 %v935, 64
      %v989 = vpop.permute.xlu0 %988
      %990 = vrot.lane.b32.xlu0 %v937, 64
      %v991 = vpop.permute.xlu0 %990
      %992 = vrot.lane.b32.xlu0 %v939, 64
      %v993 = vpop.permute.xlu0 %992
      %994 = vrot.lane.b32.xlu0 %v941, 64
      %v995 = vpop.permute.xlu0 %994
      %996 = vrot.lane.b32.xlu0 %v943, 64
      %v997 = vpop.permute.xlu0 %996
      %998 = vrot.lane.b32.xlu0 %v945, 64
      %v999 = vpop.permute.xlu0 %998
      %1000 = vrot.lane.b32.xlu0 %v947, 64
      %v1001 = vpop.permute.xlu0 %1000
      %1002 = vrot.lane.b32.xlu0 %v949, 64
      %v1003 = vpop.permute.xlu0 %1002
      %1004 = vrot.lane.b32.xlu0 %v951, 64
      %v1005 = vpop.permute.xlu0 %1004
      %1006 = vrot.lane.b32.xlu0 %v950, 64
      %v1007 = vpop.permute.xlu0 %1006
      %vm1008 = vcmask 261120
      %v1010 = vsel %vm1008, %v588, %v841
      %v1012 = vsel %vm1008, %v589, %v843
      %v1014 = vsel %vm1008, %v590, %v845
      %v1016 = vsel %vm1008, %v591, %v847
      %v1018 = vsel %vm1008, %v592, %v849
      %v1020 = vsel %vm1008, %v593, %v851
      %v1022 = vsel %vm1008, %v594, %v853
      %v1024 = vsel %vm1008, %v595, %v855
      %v1026 = vsel %vm1008, %v596, %v857
      %v1028 = vsel %vm1008, %v597, %v859
      %v1030 = vsel %vm1008, %v598, %v861
      %v1032 = vsel %vm1008, %v599, %v863
      %v1034 = vsel %vm1008, %v600, %v865
      %v1036 = vsel %vm1008, %v601, %v867
      %v1038 = vsel %vm1008, %v602, %v869
      %v1040 = vsel %vm1008, %v603, %v871
      %v1042 = vsel %vm1008, %v604, %v873
      %v1044 = vsel %vm1008, %v605, %v875
      %v1046 = vsel %vm1008, %v606, %v877
      %v1048 = vsel %vm1008, %v607, %v879
      %v1050 = vsel %vm1008, %v608, %v881
      %v1052 = vsel %vm1008, %v609, %v883
      %v1054 = vsel %vm1008, %v610, %v885
      %v1056 = vsel %vm1008, %v611, %v887
      %v1058 = vsel %vm1008, %v612, %v889
      %v1060 = vsel %vm1008, %v613, %v891
      %v1062 = vsel %vm1008, %v614, %v893
      %v1064 = vsel %vm1008, %v615, %v895
      %vm1065 = vcmask 523264
      %v1067 = vsel %vm1065, %v1010, %v953
      %v1069 = vsel %vm1065, %v1012, %v955
      %v1071 = vsel %vm1065, %v1014, %v957
      %v1073 = vsel %vm1065, %v1016, %v959
      %v1075 = vsel %vm1065, %v1018, %v961
      %v1077 = vsel %vm1065, %v1020, %v963
      %v1079 = vsel %vm1065, %v1022, %v965
      %v1081 = vsel %vm1065, %v1024, %v967
      %v1083 = vsel %vm1065, %v1026, %v969
      %v1085 = vsel %vm1065, %v1028, %v971
      %v1087 = vsel %vm1065, %v1030, %v973
      %v1089 = vsel %vm1065, %v1032, %v975
      %v1091 = vsel %vm1065, %v1034, %v977
      %v1093 = vsel %vm1065, %v1036, %v979
      %v1095 = vsel %vm1065, %v1038, %v981
      %v1097 = vsel %vm1065, %v1040, %v983
      %v1099 = vsel %vm1065, %v1042, %v985
      %v1101 = vsel %vm1065, %v1044, %v987
      %v1103 = vsel %vm1065, %v1046, %v989
      %v1105 = vsel %vm1065, %v1048, %v991
      %v1107 = vsel %vm1065, %v1050, %v993
      %v1109 = vsel %vm1065, %v1052, %v995
      %v1111 = vsel %vm1065, %v1054, %v997
      %v1113 = vsel %vm1065, %v1056, %v999
      %v1115 = vsel %vm1065, %v1058, %v1001
      %v1117 = vsel %vm1065, %v1060, %v1003
      %v1119 = vsel %vm1065, %v1062, %v1005
      %v1121 = vsel %vm1065, %v1064, %v1007
      %v1122 = vld [vmem:[%s2] sm:$0xf]
      %v1123 = vld [vmem:[%s2 + $0x4] sm:$0xf]
      %v1124 = vld [vmem:[%s2 + $0x8] sm:$0xf]
      %v1125 = vld [vmem:[%s2 + $0xc] sm:$0xf]
      %v1126 = vld [vmem:[%s2 + $0x10] sm:$0xf]
      %v1127 = vld [vmem:[%s2 + $0x14] sm:$0xf]
      %v1128 = vld [vmem:[%s2 + $0x18] sm:$0xf]
      %v1129 = vld [vmem:[%s2 + $0x1c] sm:$0xf]
      %v1130 = vld [vmem:[%s2 + $0x20] sm:$0xf]
      %v1131 = vld [vmem:[%s2 + $0x24] sm:$0xf]
      %v1132 = vld [vmem:[%s2 + $0x28] sm:$0xf]
      %v1133 = vld [vmem:[%s2 + $0x2c] sm:$0xf]
      %v1137 = vunpack.c.l.b16 %v416
      %v1138 = vunpack.c.l.b16 %v417
      %v1139 = vunpack.c.l.b16 %v418
      %v1140 = vpack.c.b16 %v1137, %v587
      %v1141 = vpack.c.b16 %v1139, %v1138
      %v1143 = vshll.u32 %v1140, 16
      %v1145 = vrot.slane %v1143, 1
      %v1146 = vsel %vm616, %v831, %v1145
      %v1147 = vshrl.u32 %v1140, 16
      %v1149 = vor.u32 %v1147, %v1145
      %v1151 = vshll.u32 %v1141, 16
      %v1153 = vrot.slane %v1151, 1
      %v1154 = vsel %vm616, %v1149, %v1153
      %v1155 = vshrl.u32 %v1141, 16
      %v1157 = vor.u32 %v1155, %v1153
      %1158 = vrot.lane.b32.xlu0 %v1146, 32
      %v1159 = vpop.permute.xlu0 %1158
      %1160 = vrot.lane.b32.xlu0 %v1154, 32
      %v1161 = vpop.permute.xlu0 %1160
      %1162 = vrot.lane.b32.xlu0 %v1157, 32
      %v1163 = vpop.permute.xlu0 %1162
      %v1164 = vpack.c.b16 %v537, %v536
      %v1165 = vpack.c.b16 %v539, %v538
      %v1166 = vpack.c.b16 %v541, %v540
      %v1167 = vpack.c.b16 %v543, %v542
      %v1168 = vpack.c.b16 %v545, %v544
      %v1169 = vpack.c.b16 %v547, %v546
      %v1170 = vpack.c.b16 %v549, %v548
      %v1171 = vpack.c.b16 %v551, %v550
      %v1172 = vpack.c.b16 %v553, %v552
      %v1173 = vpack.c.b16 %v555, %v554
      %v1174 = vpack.c.b16 %v557, %v556
      %v1175 = vpack.c.b16 %v559, %v558
      %v1176 = vpack.c.b16 %v561, %v560
      %v1177 = vpack.c.b16 %v563, %v562
      %v1178 = vpack.c.b16 %v565, %v564
      %v1179 = vpack.c.b16 %v567, %v566
      %v1180 = vpack.c.b16 %v569, %v568
      %v1181 = vpack.c.b16 %v571, %v570
      %v1182 = vpack.c.b16 %v573, %v572
      %v1183 = vpack.c.b16 %v575, %v574
      %v1184 = vpack.c.b16 %v577, %v576
      %v1185 = vpack.c.b16 %v579, %v578
      %v1186 = vpack.c.b16 %v581, %v580
      %v1187 = vpack.c.b16 %v583, %v582
      %v1188 = vpack.c.b16 %v585, %v584
      %v1189 = vpack.c.b16 %v587, %v586
      %v1190 = vpack.c.b16 %v1138, %v1137
      %v1191 = vpack.c.b16 %v1139, %v1139
      %vm1192 = vcmask 1042432
      %v1193 = vrot.slane %v1164, 5
      %v1194 = vrot.slane %v1165, 5
      %v1195 = vsel %vm1192, %v1193, %v1194
      %v1196 = vrot.slane %v1166, 5
      %v1197 = vsel %vm1192, %v1194, %v1196
      %v1198 = vrot.slane %v1167, 5
      %v1199 = vsel %vm1192, %v1196, %v1198
      %v1200 = vrot.slane %v1168, 5
      %v1201 = vsel %vm1192, %v1198, %v1200
      %v1202 = vrot.slane %v1169, 5
      %v1203 = vsel %vm1192, %v1200, %v1202
      %v1204 = vrot.slane %v1170, 5
      %v1205 = vsel %vm1192, %v1202, %v1204
      %v1206 = vrot.slane %v1171, 5
      %v1207 = vsel %vm1192, %v1204, %v1206
      %v1208 = vrot.slane %v1172, 5
      %v1209 = vsel %vm1192, %v1206, %v1208
      %v1210 = vrot.slane %v1173, 5
      %v1211 = vsel %vm1192, %v1208, %v1210
      %v1212 = vrot.slane %v1174, 5
      %v1213 = vsel %vm1192, %v1210, %v1212
      %v1214 = vrot.slane %v1175, 5
      %v1215 = vsel %vm1192, %v1212, %v1214
      %v1216 = vrot.slane %v1176, 5
      %v1217 = vsel %vm1192, %v1214, %v1216
      %v1218 = vrot.slane %v1177, 5
      %v1219 = vsel %vm1192, %v1216, %v1218
      %v1220 = vrot.slane %v1178, 5
      %v1221 = vsel %vm1192, %v1218, %v1220
      %v1222 = vrot.slane %v1179, 5
      %v1223 = vsel %vm1192, %v1220, %v1222
      %v1224 = vrot.slane %v1180, 5
      %v1225 = vsel %vm1192, %v1222, %v1224
      %v1226 = vrot.slane %v1181, 5
      %v1227 = vsel %vm1192, %v1224, %v1226
      %v1228 = vrot.slane %v1182, 5
      %v1229 = vsel %vm1192, %v1226, %v1228
      %v1230 = vrot.slane %v1183, 5
      %v1231 = vsel %vm1192, %v1228, %v1230
      %v1232 = vrot.slane %v1184, 5
      %v1233 = vsel %vm1192, %v1230, %v1232
      %v1234 = vrot.slane %v1185, 5
      %v1235 = vsel %vm1192, %v1232, %v1234
      %v1236 = vrot.slane %v1186, 5
      %v1237 = vsel %vm1192, %v1234, %v1236
      %v1238 = vrot.slane %v1187, 5
      %v1239 = vsel %vm1192, %v1236, %v1238
      %v1240 = vrot.slane %v1188, 5
      %v1241 = vsel %vm1192, %v1238, %v1240
      %v1242 = vrot.slane %v1189, 5
      %v1243 = vsel %vm1192, %v1240, %v1242
      %v1244 = vrot.slane %v1190, 5
      %v1245 = vsel %vm1192, %v1242, %v1244
      %v1246 = vrot.slane %v1191, 5
      %v1247 = vsel %vm1192, %v1244, %v1246
      %1248 = vrot.lane.b32.xlu0 %v1193, 64
      %v1249 = vpop.permute.xlu0 %1248
      %1250 = vrot.lane.b32.xlu0 %v1195, 64
      %v1251 = vpop.permute.xlu0 %1250
      %1252 = vrot.lane.b32.xlu0 %v1197, 64
      %v1253 = vpop.permute.xlu0 %1252
      %1254 = vrot.lane.b32.xlu0 %v1199, 64
      %v1255 = vpop.permute.xlu0 %1254
      %1256 = vrot.lane.b32.xlu0 %v1201, 64
      %v1257 = vpop.permute.xlu0 %1256
      %1258 = vrot.lane.b32.xlu0 %v1203, 64
      %v1259 = vpop.permute.xlu0 %1258
      %1260 = vrot.lane.b32.xlu0 %v1205, 64
      %v1261 = vpop.permute.xlu0 %1260
      %1262 = vrot.lane.b32.xlu0 %v1207, 64
      %v1263 = vpop.permute.xlu0 %1262
      %1264 = vrot.lane.b32.xlu0 %v1209, 64
      %v1265 = vpop.permute.xlu0 %1264
      %1266 = vrot.lane.b32.xlu0 %v1211, 64
      %v1267 = vpop.permute.xlu0 %1266
      %1268 = vrot.lane.b32.xlu0 %v1213, 64
      %v1269 = vpop.permute.xlu0 %1268
      %1270 = vrot.lane.b32.xlu0 %v1215, 64
      %v1271 = vpop.permute.xlu0 %1270
      %1272 = vrot.lane.b32.xlu0 %v1217, 64
      %v1273 = vpop.permute.xlu0 %1272
      %1274 = vrot.lane.b32.xlu0 %v1219, 64
      %v1275 = vpop.permute.xlu0 %1274
      %1276 = vrot.lane.b32.xlu0 %v1221, 64
      %v1277 = vpop.permute.xlu0 %1276
      %1278 = vrot.lane.b32.xlu0 %v1223, 64
      %v1279 = vpop.permute.xlu0 %1278
      %1280 = vrot.lane.b32.xlu0 %v1225, 64
      %v1281 = vpop.permute.xlu0 %1280
      %1282 = vrot.lane.b32.xlu0 %v1227, 64
      %v1283 = vpop.permute.xlu0 %1282
      %1284 = vrot.lane.b32.xlu0 %v1229, 64
      %v1285 = vpop.permute.xlu0 %1284
      %1286 = vrot.lane.b32.xlu0 %v1231, 64
      %v1287 = vpop.permute.xlu0 %1286
      %1288 = vrot.lane.b32.xlu0 %v1233, 64
      %v1289 = vpop.permute.xlu0 %1288
      %1290 = vrot.lane.b32.xlu0 %v1235, 64
      %v1291 = vpop.permute.xlu0 %1290
      %1292 = vrot.lane.b32.xlu0 %v1237, 64
      %v1293 = vpop.permute.xlu0 %1292
      %1294 = vrot.lane.b32.xlu0 %v1239, 64
      %v1295 = vpop.permute.xlu0 %1294
      %1296 = vrot.lane.b32.xlu0 %v1241, 64
      %v1297 = vpop.permute.xlu0 %1296
      %1298 = vrot.lane.b32.xlu0 %v1243, 64
      %v1299 = vpop.permute.xlu0 %1298
      %1300 = vrot.lane.b32.xlu0 %v1245, 64
      %v1301 = vpop.permute.xlu0 %1300
      %1302 = vrot.lane.b32.xlu0 %v1247, 64
      %v1303 = vpop.permute.xlu0 %1302
      %v1305 = vsel %vm1008, %v614, %v1159
      %v1307 = vsel %vm1008, %v1140, %v1161
      %v1309 = vsel %vm1008, %v1141, %v1163
      %v1311 = vsel %vm1065, %v1012, %v1249
      %v1313 = vsel %vm1065, %v1014, %v1251
      %v1315 = vsel %vm1065, %v1016, %v1253
      %v1317 = vsel %vm1065, %v1018, %v1255
      %v1319 = vsel %vm1065, %v1020, %v1257
      %v1321 = vsel %vm1065, %v1022, %v1259
      %v1323 = vsel %vm1065, %v1024, %v1261
      %v1325 = vsel %vm1065, %v1026, %v1263
      %v1327 = vsel %vm1065, %v1028, %v1265
      %v1329 = vsel %vm1065, %v1030, %v1267
      %v1331 = vsel %vm1065, %v1032, %v1269
      %v1333 = vsel %vm1065, %v1034, %v1271
      %v1335 = vsel %vm1065, %v1036, %v1273
      %v1337 = vsel %vm1065, %v1038, %v1275
      %v1339 = vsel %vm1065, %v1040, %v1277
      %v1341 = vsel %vm1065, %v1042, %v1279
      %v1343 = vsel %vm1065, %v1044, %v1281
      %v1345 = vsel %vm1065, %v1046, %v1283
      %v1347 = vsel %vm1065, %v1048, %v1285
      %v1349 = vsel %vm1065, %v1050, %v1287
      %v1351 = vsel %vm1065, %v1052, %v1289
      %v1353 = vsel %vm1065, %v1054, %v1291
      %v1355 = vsel %vm1065, %v1056, %v1293
      %v1357 = vsel %vm1065, %v1058, %v1295
      %v1359 = vsel %vm1065, %v1060, %v1297
      %v1361 = vsel %vm1065, %v1305, %v1299
      %v1363 = vsel %vm1065, %v1307, %v1301
      %v1365 = vsel %vm1065, %v1309, %v1303
      %s1366 = scalar_lea.vmem %s2, 48
      %v1367 = vld [vmem:[%s1366] sm:$0xf]
      %v1368 = vld [vmem:[%s1366 + $0x4] sm:$0xf]
      %v1369 = vld [vmem:[%s1366 + $0x8] sm:$0xf]
      %v1370 = vld [vmem:[%s1366 + $0xc] sm:$0xf]
      %v1371 = vld [vmem:[%s1366 + $0x10] sm:$0xf]
      %v1372 = vld [vmem:[%s1366 + $0x14] sm:$0xf]
      %v1373 = vld [vmem:[%s1366 + $0x18] sm:$0xf]
      %v1374 = vld [vmem:[%s1366 + $0x1c] sm:$0xf]
      %v1375 = vld [vmem:[%s1366 + $0x20] sm:$0xf]
      %v1376 = vld [vmem:[%s1366 + $0x24] sm:$0xf]
      %v1377 = vld [vmem:[%s1366 + $0x28] sm:$0xf]
      %v1378 = vld [vmem:[%s1366 + $0x2c] sm:$0xf]
      %vm1407 = vcmask 1044480
      %v1408 = vrot.slane %v1311, 3
      %v1409 = vrot.slane %v1313, 3
      %v1410 = vsel %vm1407, %v1408, %v1409
      %v1411 = vrot.slane %v1315, 3
      %v1412 = vsel %vm1407, %v1409, %v1411
      %v1413 = vrot.slane %v1317, 3
      %v1414 = vsel %vm1407, %v1411, %v1413
      %v1415 = vrot.slane %v1319, 3
      %v1416 = vsel %vm1407, %v1413, %v1415
      %v1417 = vrot.slane %v1321, 3
      %v1418 = vsel %vm1407, %v1415, %v1417
      %v1419 = vrot.slane %v1323, 3
      %v1420 = vsel %vm1407, %v1417, %v1419
      %v1421 = vrot.slane %v1325, 3
      %v1422 = vsel %vm1407, %v1419, %v1421
      %v1423 = vrot.slane %v1327, 3
      %v1424 = vsel %vm1407, %v1421, %v1423
      %v1425 = vrot.slane %v1329, 3
      %v1426 = vsel %vm1407, %v1423, %v1425
      %v1427 = vrot.slane %v1331, 3
      %v1428 = vsel %vm1407, %v1425, %v1427
      %v1429 = vrot.slane %v1333, 3
      %v1430 = vsel %vm1407, %v1427, %v1429
      %v1431 = vrot.slane %v1335, 3
      %v1432 = vsel %vm1407, %v1429, %v1431
      %v1433 = vrot.slane %v1337, 3
      %v1434 = vsel %vm1407, %v1431, %v1433
      %v1435 = vrot.slane %v1339, 3
      %v1436 = vsel %vm1407, %v1433, %v1435
      %v1437 = vrot.slane %v1341, 3
      %v1438 = vsel %vm1407, %v1435, %v1437
      %v1439 = vrot.slane %v1343, 3
      %v1440 = vsel %vm1407, %v1437, %v1439
      %v1441 = vrot.slane %v1345, 3
      %v1442 = vsel %vm1407, %v1439, %v1441
      %v1443 = vrot.slane %v1347, 3
      %v1444 = vsel %vm1407, %v1441, %v1443
      %v1445 = vrot.slane %v1349, 3
      %v1446 = vsel %vm1407, %v1443, %v1445
      %v1447 = vrot.slane %v1351, 3
      %v1448 = vsel %vm1407, %v1445, %v1447
      %v1449 = vrot.slane %v1353, 3
      %v1450 = vsel %vm1407, %v1447, %v1449
      %v1451 = vrot.slane %v1355, 3
      %v1452 = vsel %vm1407, %v1449, %v1451
      %v1453 = vrot.slane %v1357, 3
      %v1454 = vsel %vm1407, %v1451, %v1453
      %v1455 = vrot.slane %v1359, 3
      %v1456 = vsel %vm1407, %v1453, %v1455
      %v1457 = vrot.slane %v1361, 3
      %v1458 = vsel %vm1407, %v1455, %v1457
      %v1459 = vrot.slane %v1363, 3
      %v1460 = vsel %vm1407, %v1457, %v1459
      %v1461 = vrot.slane %v1365, 3
      %v1462 = vsel %vm1407, %v1459, %v1461
      %v1475 = vunpack.c.l.b16 %v1367
      %v1476 = vunpack.c.l.b16 %v1368
      %v1477 = vunpack.c.l.b16 %v1369
      %v1478 = vunpack.c.l.b16 %v1370
      %v1479 = vunpack.c.l.b16 %v1371
      %v1480 = vunpack.c.l.b16 %v1372
      %v1481 = vunpack.c.l.b16 %v1373
      %v1482 = vunpack.c.l.b16 %v1374
      %v1483 = vunpack.c.l.b16 %v1375
      %v1484 = vunpack.c.l.b16 %v1376
      %v1485 = vunpack.c.l.b16 %v1377
      %v1486 = vunpack.c.l.b16 %v1378
      %v1487 = vpack.c.b16 %v1476, %v1475
      %v1488 = vpack.c.b16 %v1478, %v1477
      %v1489 = vpack.c.b16 %v1480, %v1479
      %v1490 = vpack.c.b16 %v1482, %v1481
      %v1491 = vpack.c.b16 %v1484, %v1483
      %v1492 = vpack.c.b16 %v1486, %v1485
      %vm1499 = vcmask 785408
      %v1501 = vsel %vm1499, %v1410, 0
      %v1504 = vsel %vm1499, %v1412, 0
      %v1507 = vsel %vm1499, %v1414, 0
      %v1510 = vsel %vm1499, %v1416, 0
      %v1513 = vsel %vm1499, %v1418, 0
      %v1516 = vsel %vm1499, %v1420, 0
      %v1519 = vsel %vm1499, %v1422, 0
      %v1522 = vsel %vm1499, %v1424, 0
      %v1525 = vsel %vm1499, %v1426, 0
      %v1528 = vsel %vm1499, %v1428, 0
      %v1531 = vsel %vm1499, %v1430, 0
      %v1534 = vsel %vm1499, %v1432, 0
      %v1537 = vsel %vm1499, %v1434, 0
      %v1540 = vsel %vm1499, %v1436, 0
      %v1543 = vsel %vm1499, %v1438, 0
      %v1546 = vsel %vm1499, %v1440, 0
      %v1549 = vsel %vm1499, %v1442, 0
      %v1552 = vsel %vm1499, %v1444, 0
      %v1555 = vsel %vm1499, %v1446, 0
      %v1558 = vsel %vm1499, %v1448, 0
      %v1561 = vsel %vm1499, %v1450, 0
      %v1564 = vsel %vm1499, %v1452, 0
      %v1567 = vsel %vm1499, %v1454, 0
      %v1570 = vsel %vm1499, %v1456, 0
      %v1573 = vsel %vm1499, %v1458, 0
      %v1576 = vsel %vm1499, %v1460, 0
      %v1579 = vsel %vm1499, %v1462, 0
      %v1582 = vsel %vm1499, %v1461, 0
      %1584 = vmatprep.subr.bf16.mxu0 0
      %1585 = vmatpush1.bf16.msra.mxu0 0
      %1586 = vmatprep.subr.bf16.mxu0 0
      %1587 = vmatpush1.bf16.msra.mxu0 0
      %1588 = vmatprep.subr.bf16.mxu0 0
      %1589 = vmatpush1.bf16.msra.mxu0 %v1492
      %1590 = vmatprep.subr.bf16.mxu0 0
      %1591 = vmatpush1.bf16.msra.mxu0 %v1491
      %1592 = vmatprep.subr.bf16.mxu0 0
      %1593 = vmatpush1.bf16.msra.mxu0 %v1490
      %1594 = vmatprep.subr.bf16.mxu0 0
      %1595 = vmatpush1.bf16.msra.mxu0 %v1489
      %1596 = vmatprep.subr.bf16.mxu0 0
      %1597 = vmatpush1.bf16.msra.mxu0 %v1488
      %1598 = vmatprep.subr.bf16.mxu0 0
      %1599 = vmatpush1.bf16.msra.mxu0 %v1487
      %1600 = vmatprep.subr.bf16.mxu0 0
      %1601 = vmatpush2.bf16.msra.mxu0 0
      %1602 = vmatprep.subr.bf16.mxu0 0
      %1603 = vmatpush2.bf16.msra.mxu0 0
      %1604 = vmatprep.subr.bf16.mxu0 0
      %1605 = vmatpush2.bf16.msra.mxu0 0
      %1606 = vmatprep.subr.bf16.mxu0 0
      %1607 = vmatpush2.bf16.msra.mxu0 0
      %1608 = vmatprep.subr.bf16.mxu0 0
      %1609 = vmatpush2.bf16.msra.mxu0 0
      %1610 = vmatprep.subr.bf16.mxu0 0
      %1611 = vmatpush2.bf16.msra.mxu0 0
      %1612 = vmatprep.subr.bf16.mxu0 0
      %1613 = vmatpush2.bf16.msra.mxu0 0
      %1614 = vmatprep.subr.bf16.mxu0 0
      %1615 = vmatpush2.bf16.msra.mxu0 0
      %1616 = vmatprep.mubr.bf16.mxu0 0
      %1617 = vmatmul.mubr.bf16.gmra.mxu0 %v1501
      %v1618 = vpop.f32.mrf.mxu0
      %v1619 = vadd.f32 0.0, %v1618
      %v1620 = vpop.f32.mrf.mxu0
      %v1621 = vpop.f32.mrf.mxu0
      %v1622 = vadd.f32 0.0, %v1621
      %v1623 = vpop.f32.mrf.mxu0
      %1624 = vmatprep.mubr.bf16.mxu0 0
      %1625 = vmatmul.mubr.bf16.gmra.mxu0 %v1504
      %v1626 = vpop.f32.mrf.mxu0
      %v1627 = vadd.f32 0.0, %v1626
      %v1628 = vpop.f32.mrf.mxu0
      %v1629 = vpop.f32.mrf.mxu0
      %v1630 = vadd.f32 0.0, %v1629
      %v1631 = vpop.f32.mrf.mxu0
      %1632 = vmatprep.mubr.bf16.mxu0 0
      %1633 = vmatmul.mubr.bf16.gmra.mxu0 %v1507
      %v1634 = vpop.f32.mrf.mxu0
      %v1635 = vadd.f32 0.0, %v1634
      %v1636 = vpop.f32.mrf.mxu0
      %v1637 = vpop.f32.mrf.mxu0
      %v1638 = vadd.f32 0.0, %v1637
      %v1639 = vpop.f32.mrf.mxu0
      %1640 = vmatprep.mubr.bf16.mxu0 0
      %1641 = vmatmul.mubr.bf16.gmra.mxu0 %v1510
      %v1642 = vpop.f32.mrf.mxu0
      %v1643 = vadd.f32 0.0, %v1642
      %v1644 = vpop.f32.mrf.mxu0
      %v1645 = vpop.f32.mrf.mxu0
      %v1646 = vadd.f32 0.0, %v1645
      %v1647 = vpop.f32.mrf.mxu0
      %1648 = vmatprep.mubr.bf16.mxu0 0
      %1649 = vmatmul.mubr.bf16.gmra.mxu0 %v1513
      %v1650 = vpop.f32.mrf.mxu0
      %v1651 = vadd.f32 0.0, %v1650
      %v1652 = vpop.f32.mrf.mxu0
      %v1653 = vpop.f32.mrf.mxu0
      %v1654 = vadd.f32 0.0, %v1653
      %v1655 = vpop.f32.mrf.mxu0
      %1656 = vmatprep.mubr.bf16.mxu0 0
      %1657 = vmatmul.mubr.bf16.gmra.mxu0 %v1516
      %v1658 = vpop.f32.mrf.mxu0
      %v1659 = vadd.f32 0.0, %v1658
      %v1660 = vpop.f32.mrf.mxu0
      %v1661 = vpop.f32.mrf.mxu0
      %v1662 = vadd.f32 0.0, %v1661
      %v1663 = vpop.f32.mrf.mxu0
      %1664 = vmatprep.mubr.bf16.mxu0 0
      %1665 = vmatmul.mubr.bf16.gmra.mxu0 %v1519
      %v1666 = vpop.f32.mrf.mxu0
      %v1667 = vadd.f32 0.0, %v1666
      %v1668 = vpop.f32.mrf.mxu0
      %v1669 = vpop.f32.mrf.mxu0
      %v1670 = vadd.f32 0.0, %v1669
      %v1671 = vpop.f32.mrf.mxu0
      %1672 = vmatprep.mubr.bf16.mxu0 0
      %1673 = vmatmul.mubr.bf16.gmra.mxu0 %v1522
      %v1674 = vpop.f32.mrf.mxu0
      %v1675 = vadd.f32 0.0, %v1674
      %v1676 = vpop.f32.mrf.mxu0
      %v1677 = vpop.f32.mrf.mxu0
      %v1678 = vadd.f32 0.0, %v1677
      %v1679 = vpop.f32.mrf.mxu0
      %1680 = vmatprep.mubr.bf16.mxu0 0
      %1681 = vmatmul.mubr.bf16.gmra.mxu0 %v1525
      %v1682 = vpop.f32.mrf.mxu0
      %v1683 = vadd.f32 0.0, %v1682
      %v1684 = vpop.f32.mrf.mxu0
      %v1685 = vpop.f32.mrf.mxu0
      %v1686 = vadd.f32 0.0, %v1685
      %v1687 = vpop.f32.mrf.mxu0
      %1688 = vmatprep.mubr.bf16.mxu0 0
      %1689 = vmatmul.mubr.bf16.gmra.mxu0 %v1528
      %v1690 = vpop.f32.mrf.mxu0
      %v1691 = vadd.f32 0.0, %v1690
      %v1692 = vpop.f32.mrf.mxu0
      %v1693 = vpop.f32.mrf.mxu0
      %v1694 = vadd.f32 0.0, %v1693
      %v1695 = vpop.f32.mrf.mxu0
      %1696 = vmatprep.mubr.bf16.mxu0 0
      %1697 = vmatmul.mubr.bf16.gmra.mxu0 %v1531
      %v1698 = vpop.f32.mrf.mxu0
      %v1699 = vadd.f32 0.0, %v1698
      %v1700 = vpop.f32.mrf.mxu0
      %v1701 = vpop.f32.mrf.mxu0
      %v1702 = vadd.f32 0.0, %v1701
      %v1703 = vpop.f32.mrf.mxu0
      %1704 = vmatprep.mubr.bf16.mxu0 0
      %1705 = vmatmul.mubr.bf16.gmra.mxu0 %v1534
      %v1706 = vpop.f32.mrf.mxu0
      %v1707 = vadd.f32 0.0, %v1706
      %v1708 = vpop.f32.mrf.mxu0
      %v1709 = vpop.f32.mrf.mxu0
      %v1710 = vadd.f32 0.0, %v1709
      %v1711 = vpop.f32.mrf.mxu0
      %1712 = vmatprep.mubr.bf16.mxu0 0
      %1713 = vmatmul.mubr.bf16.gmra.mxu0 %v1537
      %v1714 = vpop.f32.mrf.mxu0
      %v1715 = vadd.f32 0.0, %v1714
      %v1716 = vpop.f32.mrf.mxu0
      %v1717 = vpop.f32.mrf.mxu0
      %v1718 = vadd.f32 0.0, %v1717
      %v1719 = vpop.f32.mrf.mxu0
      %1720 = vmatprep.mubr.bf16.mxu0 0
      %1721 = vmatmul.mubr.bf16.gmra.mxu0 %v1540
      %v1722 = vpop.f32.mrf.mxu0
      %v1723 = vadd.f32 0.0, %v1722
      %v1724 = vpop.f32.mrf.mxu0
      %v1725 = vpop.f32.mrf.mxu0
      %v1726 = vadd.f32 0.0, %v1725
      %v1727 = vpop.f32.mrf.mxu0
      %1728 = vmatprep.mubr.bf16.mxu0 0
      %1729 = vmatmul.mubr.bf16.gmra.mxu0 %v1543
      %v1730 = vpop.f32.mrf.mxu0
      %v1731 = vadd.f32 0.0, %v1730
      %v1732 = vpop.f32.mrf.mxu0
      %v1733 = vpop.f32.mrf.mxu0
      %v1734 = vadd.f32 0.0, %v1733
      %v1735 = vpop.f32.mrf.mxu0
      %1736 = vmatprep.mubr.bf16.mxu0 0
      %1737 = vmatmul.mubr.bf16.gmra.mxu0 %v1546
      %v1738 = vpop.f32.mrf.mxu0
      %v1739 = vadd.f32 0.0, %v1738
      %v1740 = vpop.f32.mrf.mxu0
      %v1741 = vpop.f32.mrf.mxu0
      %v1742 = vadd.f32 0.0, %v1741
      %v1743 = vpop.f32.mrf.mxu0
      %1744 = vmatprep.mubr.bf16.mxu0 0
      %1745 = vmatmul.mubr.bf16.gmra.mxu0 %v1549
      %v1746 = vpop.f32.mrf.mxu0
      %v1747 = vadd.f32 0.0, %v1746
      %v1748 = vpop.f32.mrf.mxu0
      %v1749 = vpop.f32.mrf.mxu0
      %v1750 = vadd.f32 0.0, %v1749
      %v1751 = vpop.f32.mrf.mxu0
      %1752 = vmatprep.mubr.bf16.mxu0 0
      %1753 = vmatmul.mubr.bf16.gmra.mxu0 %v1552
      %v1754 = vpop.f32.mrf.mxu0
      %v1755 = vadd.f32 0.0, %v1754
      %v1756 = vpop.f32.mrf.mxu0
      %v1757 = vpop.f32.mrf.mxu0
      %v1758 = vadd.f32 0.0, %v1757
      %v1759 = vpop.f32.mrf.mxu0
      %1760 = vmatprep.mubr.bf16.mxu0 0
      %1761 = vmatmul.mubr.bf16.gmra.mxu0 %v1555
      %v1762 = vpop.f32.mrf.mxu0
      %v1763 = vadd.f32 0.0, %v1762
      %v1764 = vpop.f32.mrf.mxu0
      %v1765 = vpop.f32.mrf.mxu0
      %v1766 = vadd.f32 0.0, %v1765
      %v1767 = vpop.f32.mrf.mxu0
      %1768 = vmatprep.mubr.bf16.mxu0 0
      %1769 = vmatmul.mubr.bf16.gmra.mxu0 %v1558
      %v1770 = vpop.f32.mrf.mxu0
      %v1771 = vadd.f32 0.0, %v1770
      %v1772 = vpop.f32.mrf.mxu0
      %v1773 = vpop.f32.mrf.mxu0
      %v1774 = vadd.f32 0.0, %v1773
      %v1775 = vpop.f32.mrf.mxu0
      %1776 = vmatprep.mubr.bf16.mxu0 0
      %1777 = vmatmul.mubr.bf16.gmra.mxu0 %v1561
      %v1778 = vpop.f32.mrf.mxu0
      %v1779 = vadd.f32 0.0, %v1778
      %v1780 = vpop.f32.mrf.mxu0
      %v1781 = vpop.f32.mrf.mxu0
      %v1782 = vadd.f32 0.0, %v1781
      %v1783 = vpop.f32.mrf.mxu0
      %1784 = vmatprep.mubr.bf16.mxu0 0
      %1785 = vmatmul.mubr.bf16.gmra.mxu0 %v1564
      %v1786 = vpop.f32.mrf.mxu0
      %v1787 = vadd.f32 0.0, %v1786
      %v1788 = vpop.f32.mrf.mxu0
      %v1789 = vpop.f32.mrf.mxu0
      %v1790 = vadd.f32 0.0, %v1789
      %v1791 = vpop.f32.mrf.mxu0
      %1792 = vmatprep.mubr.bf16.mxu0 0
      %1793 = vmatmul.mubr.bf16.gmra.mxu0 %v1567
      %v1794 = vpop.f32.mrf.mxu0
      %v1795 = vadd.f32 0.0, %v1794
      %v1796 = vpop.f32.mrf.mxu0
      %v1797 = vpop.f32.mrf.mxu0
      %v1798 = vadd.f32 0.0, %v1797
      %v1799 = vpop.f32.mrf.mxu0
      %1800 = vmatprep.mubr.bf16.mxu0 0
      %1801 = vmatmul.mubr.bf16.gmra.mxu0 %v1570
      %v1802 = vpop.f32.mrf.mxu0
      %v1803 = vadd.f32 0.0, %v1802
      %v1804 = vpop.f32.mrf.mxu0
      %v1805 = vpop.f32.mrf.mxu0
      %v1806 = vadd.f32 0.0, %v1805
      %v1807 = vpop.f32.mrf.mxu0
      %1808 = vmatprep.mubr.bf16.mxu0 0
      %1809 = vmatmul.mubr.bf16.gmra.mxu0 %v1573
      %v1810 = vpop.f32.mrf.mxu0
      %v1811 = vadd.f32 0.0, %v1810
      %v1812 = vpop.f32.mrf.mxu0
      %v1813 = vpop.f32.mrf.mxu0
      %v1814 = vadd.f32 0.0, %v1813
      %v1815 = vpop.f32.mrf.mxu0
      %1816 = vmatprep.mubr.bf16.mxu0 0
      %1817 = vmatmul.mubr.bf16.gmra.mxu0 %v1576
      %v1818 = vpop.f32.mrf.mxu0
      %v1819 = vadd.f32 0.0, %v1818
      %v1820 = vpop.f32.mrf.mxu0
      %v1821 = vpop.f32.mrf.mxu0
      %v1822 = vadd.f32 0.0, %v1821
      %v1823 = vpop.f32.mrf.mxu0
      %1824 = vmatprep.mubr.bf16.mxu0 0
      %1825 = vmatmul.mubr.bf16.gmra.mxu0 %v1579
      %v1826 = vpop.f32.mrf.mxu0
      %v1827 = vadd.f32 0.0, %v1826
      %v1828 = vpop.f32.mrf.mxu0
      %v1829 = vpop.f32.mrf.mxu0
      %v1830 = vadd.f32 0.0, %v1829
      %v1831 = vpop.f32.mrf.mxu0
      %1832 = vmatprep.mubr.bf16.mxu0 0
      %1833 = vmatmul.mubr.bf16.gmra.mxu0 %v1582
      %v1834 = vpop.f32.mrf.mxu0
      %v1835 = vadd.f32 0.0, %v1834
      %v1836 = vpop.f32.mrf.mxu0
      %v1837 = vpop.f32.mrf.mxu0
      %v1838 = vpop.f32.mrf.mxu0
      %1839 = vdwg.mxu0
      %v1852 = vunpack.c.l.b16 %v1122
      %v1853 = vunpack.c.l.b16 %v1123
      %v1854 = vunpack.c.l.b16 %v1124
      %v1855 = vunpack.c.l.b16 %v1125
      %v1856 = vunpack.c.l.b16 %v1126
      %v1857 = vunpack.c.l.b16 %v1127
      %v1858 = vunpack.c.l.b16 %v1128
      %v1859 = vunpack.c.l.b16 %v1129
      %v1860 = vunpack.c.l.b16 %v1130
      %v1861 = vunpack.c.l.b16 %v1131
      %v1862 = vunpack.c.l.b16 %v1132
      %v1863 = vunpack.c.l.b16 %v1133
      %v1864 = vpack.c.b16 %v1853, %v1852
      %v1865 = vpack.c.b16 %v1855, %v1854
      %v1866 = vpack.c.b16 %v1857, %v1856
      %v1867 = vpack.c.b16 %v1859, %v1858
      %v1868 = vpack.c.b16 %v1861, %v1860
      %v1869 = vpack.c.b16 %v1863, %v1862
      %v1876 = vsel %vm1499, %v1067, 0
      %v1878 = vsel %vm1499, %v1069, 0
      %v1880 = vsel %vm1499, %v1071, 0
      %v1882 = vsel %vm1499, %v1073, 0
      %v1884 = vsel %vm1499, %v1075, 0
      %v1886 = vsel %vm1499, %v1077, 0
      %v1888 = vsel %vm1499, %v1079, 0
      %v1890 = vsel %vm1499, %v1081, 0
      %v1892 = vsel %vm1499, %v1083, 0
      %v1894 = vsel %vm1499, %v1085, 0
      %v1896 = vsel %vm1499, %v1087, 0
      %v1898 = vsel %vm1499, %v1089, 0
      %v1900 = vsel %vm1499, %v1091, 0
      %v1902 = vsel %vm1499, %v1093, 0
      %v1904 = vsel %vm1499, %v1095, 0
      %v1906 = vsel %vm1499, %v1097, 0
      %v1908 = vsel %vm1499, %v1099, 0
      %v1910 = vsel %vm1499, %v1101, 0
      %v1912 = vsel %vm1499, %v1103, 0
      %v1914 = vsel %vm1499, %v1105, 0
      %v1916 = vsel %vm1499, %v1107, 0
      %v1918 = vsel %vm1499, %v1109, 0
      %v1920 = vsel %vm1499, %v1111, 0
      %v1922 = vsel %vm1499, %v1113, 0
      %v1924 = vsel %vm1499, %v1115, 0
      %v1926 = vsel %vm1499, %v1117, 0
      %v1928 = vsel %vm1499, %v1119, 0
      %v1930 = vsel %vm1499, %v1121, 0
      %1932 = vmatprep.subr.bf16.mxu0 0
      %1933 = vmatpush1.bf16.msra.mxu0 0
      %1934 = vmatprep.subr.bf16.mxu0 0
      %1935 = vmatpush1.bf16.msra.mxu0 0
      %1936 = vmatprep.subr.bf16.mxu0 0
      %1937 = vmatpush1.bf16.msra.mxu0 %v1869
      %1938 = vmatprep.subr.bf16.mxu0 0
      %1939 = vmatpush1.bf16.msra.mxu0 %v1868
      %1940 = vmatprep.subr.bf16.mxu0 0
      %1941 = vmatpush1.bf16.msra.mxu0 %v1867
      %1942 = vmatprep.subr.bf16.mxu0 0
      %1943 = vmatpush1.bf16.msra.mxu0 %v1866
      %1944 = vmatprep.subr.bf16.mxu0 0
      %1945 = vmatpush1.bf16.msra.mxu0 %v1865
      %1946 = vmatprep.subr.bf16.mxu0 0
      %1947 = vmatpush1.bf16.msra.mxu0 %v1864
      %1948 = vmatprep.subr.bf16.mxu0 0
      %1949 = vmatpush2.bf16.msra.mxu0 0
      %1950 = vmatprep.subr.bf16.mxu0 0
      %1951 = vmatpush2.bf16.msra.mxu0 0
      %1952 = vmatprep.subr.bf16.mxu0 0
      %1953 = vmatpush2.bf16.msra.mxu0 0
      %1954 = vmatprep.subr.bf16.mxu0 0
      %1955 = vmatpush2.bf16.msra.mxu0 0
      %1956 = vmatprep.subr.bf16.mxu0 0
      %1957 = vmatpush2.bf16.msra.mxu0 0
      %1958 = vmatprep.subr.bf16.mxu0 0
      %1959 = vmatpush2.bf16.msra.mxu0 0
      %1960 = vmatprep.subr.bf16.mxu0 0
      %1961 = vmatpush2.bf16.msra.mxu0 0
      %1962 = vmatprep.subr.bf16.mxu0 0
      %1963 = vmatpush2.bf16.msra.mxu0 0
      %1964 = vmatprep.mubr.bf16.mxu0 0
      %1965 = vmatmul.mubr.bf16.gmra.mxu0 %v1876
      %v1966 = vpop.f32.mrf.mxu0
      %v1967 = vadd.f32 %v1619, %v1966
      %v1968 = vpop.f32.mrf.mxu0
      %v1969 = vpop.f32.mrf.mxu0
      %v1970 = vadd.f32 %v1622, %v1969
      %v1971 = vpop.f32.mrf.mxu0
      %1972 = vmatprep.mubr.bf16.mxu0 0
      %1973 = vmatmul.mubr.bf16.gmra.mxu0 %v1878
      %v1974 = vpop.f32.mrf.mxu0
      %v1975 = vadd.f32 %v1627, %v1974
      %v1976 = vpop.f32.mrf.mxu0
      %v1977 = vpop.f32.mrf.mxu0
      %v1978 = vadd.f32 %v1630, %v1977
      %v1979 = vpop.f32.mrf.mxu0
      %1980 = vmatprep.mubr.bf16.mxu0 0
      %1981 = vmatmul.mubr.bf16.gmra.mxu0 %v1880
      %v1982 = vpop.f32.mrf.mxu0
      %v1983 = vadd.f32 %v1635, %v1982
      %v1984 = vpop.f32.mrf.mxu0
      %v1985 = vpop.f32.mrf.mxu0
      %v1986 = vadd.f32 %v1638, %v1985
      %v1987 = vpop.f32.mrf.mxu0
      %1988 = vmatprep.mubr.bf16.mxu0 0
      %1989 = vmatmul.mubr.bf16.gmra.mxu0 %v1882
      %v1990 = vpop.f32.mrf.mxu0
      %v1991 = vadd.f32 %v1643, %v1990
      %v1992 = vpop.f32.mrf.mxu0
      %v1993 = vpop.f32.mrf.mxu0
      %v1994 = vadd.f32 %v1646, %v1993
      %v1995 = vpop.f32.mrf.mxu0
      %1996 = vmatprep.mubr.bf16.mxu0 0
      %1997 = vmatmul.mubr.bf16.gmra.mxu0 %v1884
      %v1998 = vpop.f32.mrf.mxu0
      %v1999 = vadd.f32 %v1651, %v1998
      %v2000 = vpop.f32.mrf.mxu0
      %v2001 = vpop.f32.mrf.mxu0
      %v2002 = vadd.f32 %v1654, %v2001
      %v2003 = vpop.f32.mrf.mxu0
      %2004 = vmatprep.mubr.bf16.mxu0 0
      %2005 = vmatmul.mubr.bf16.gmra.mxu0 %v1886
      %v2006 = vpop.f32.mrf.mxu0
      %v2007 = vadd.f32 %v1659, %v2006
      %v2008 = vpop.f32.mrf.mxu0
      %v2009 = vpop.f32.mrf.mxu0
      %v2010 = vadd.f32 %v1662, %v2009
      %v2011 = vpop.f32.mrf.mxu0
      %2012 = vmatprep.mubr.bf16.mxu0 0
      %2013 = vmatmul.mubr.bf16.gmra.mxu0 %v1888
      %v2014 = vpop.f32.mrf.mxu0
      %v2015 = vadd.f32 %v1667, %v2014
      %v2016 = vpop.f32.mrf.mxu0
      %v2017 = vpop.f32.mrf.mxu0
      %v2018 = vadd.f32 %v1670, %v2017
      %v2019 = vpop.f32.mrf.mxu0
      %2020 = vmatprep.mubr.bf16.mxu0 0
      %2021 = vmatmul.mubr.bf16.gmra.mxu0 %v1890
      %v2022 = vpop.f32.mrf.mxu0
      %v2023 = vadd.f32 %v1675, %v2022
      %v2024 = vpop.f32.mrf.mxu0
      %v2025 = vpop.f32.mrf.mxu0
      %v2026 = vadd.f32 %v1678, %v2025
      %v2027 = vpop.f32.mrf.mxu0
      %2028 = vmatprep.mubr.bf16.mxu0 0
      %2029 = vmatmul.mubr.bf16.gmra.mxu0 %v1892
      %v2030 = vpop.f32.mrf.mxu0
      %v2031 = vadd.f32 %v1683, %v2030
      %v2032 = vpop.f32.mrf.mxu0
      %v2033 = vpop.f32.mrf.mxu0
      %v2034 = vadd.f32 %v1686, %v2033
      %v2035 = vpop.f32.mrf.mxu0
      %2036 = vmatprep.mubr.bf16.mxu0 0
      %2037 = vmatmul.mubr.bf16.gmra.mxu0 %v1894
      %v2038 = vpop.f32.mrf.mxu0
      %v2039 = vadd.f32 %v1691, %v2038
      %v2040 = vpop.f32.mrf.mxu0
      %v2041 = vpop.f32.mrf.mxu0
      %v2042 = vadd.f32 %v1694, %v2041
      %v2043 = vpop.f32.mrf.mxu0
      %2044 = vmatprep.mubr.bf16.mxu0 0
      %2045 = vmatmul.mubr.bf16.gmra.mxu0 %v1896
      %v2046 = vpop.f32.mrf.mxu0
      %v2047 = vadd.f32 %v1699, %v2046
      %v2048 = vpop.f32.mrf.mxu0
      %v2049 = vpop.f32.mrf.mxu0
      %v2050 = vadd.f32 %v1702, %v2049
      %v2051 = vpop.f32.mrf.mxu0
      %2052 = vmatprep.mubr.bf16.mxu0 0
      %2053 = vmatmul.mubr.bf16.gmra.mxu0 %v1898
      %v2054 = vpop.f32.mrf.mxu0
      %v2055 = vadd.f32 %v1707, %v2054
      %v2056 = vpop.f32.mrf.mxu0
      %v2057 = vpop.f32.mrf.mxu0
      %v2058 = vadd.f32 %v1710, %v2057
      %v2059 = vpop.f32.mrf.mxu0
      %2060 = vmatprep.mubr.bf16.mxu0 0
      %2061 = vmatmul.mubr.bf16.gmra.mxu0 %v1900
      %v2062 = vpop.f32.mrf.mxu0
      %v2063 = vadd.f32 %v1715, %v2062
      %v2064 = vpop.f32.mrf.mxu0
      %v2065 = vpop.f32.mrf.mxu0
      %v2066 = vadd.f32 %v1718, %v2065
      %v2067 = vpop.f32.mrf.mxu0
      %2068 = vmatprep.mubr.bf16.mxu0 0
      %2069 = vmatmul.mubr.bf16.gmra.mxu0 %v1902
      %v2070 = vpop.f32.mrf.mxu0
      %v2071 = vadd.f32 %v1723, %v2070
      %v2072 = vpop.f32.mrf.mxu0
      %v2073 = vpop.f32.mrf.mxu0
      %v2074 = vadd.f32 %v1726, %v2073
      %v2075 = vpop.f32.mrf.mxu0
      %2076 = vmatprep.mubr.bf16.mxu0 0
      %2077 = vmatmul.mubr.bf16.gmra.mxu0 %v1904
      %v2078 = vpop.f32.mrf.mxu0
      %v2079 = vadd.f32 %v1731, %v2078
      %v2080 = vpop.f32.mrf.mxu0
      %v2081 = vpop.f32.mrf.mxu0
      %v2082 = vadd.f32 %v1734, %v2081
      %v2083 = vpop.f32.mrf.mxu0
      %2084 = vmatprep.mubr.bf16.mxu0 0
      %2085 = vmatmul.mubr.bf16.gmra.mxu0 %v1906
      %v2086 = vpop.f32.mrf.mxu0
      %v2087 = vadd.f32 %v1739, %v2086
      %v2088 = vpop.f32.mrf.mxu0
      %v2089 = vpop.f32.mrf.mxu0
      %v2090 = vadd.f32 %v1742, %v2089
      %v2091 = vpop.f32.mrf.mxu0
      %2092 = vmatprep.mubr.bf16.mxu0 0
      %2093 = vmatmul.mubr.bf16.gmra.mxu0 %v1908
      %v2094 = vpop.f32.mrf.mxu0
      %v2095 = vadd.f32 %v1747, %v2094
      %v2096 = vpop.f32.mrf.mxu0
      %v2097 = vpop.f32.mrf.mxu0
      %v2098 = vadd.f32 %v1750, %v2097
      %v2099 = vpop.f32.mrf.mxu0
      %2100 = vmatprep.mubr.bf16.mxu0 0
      %2101 = vmatmul.mubr.bf16.gmra.mxu0 %v1910
      %v2102 = vpop.f32.mrf.mxu0
      %v2103 = vadd.f32 %v1755, %v2102
      %v2104 = vpop.f32.mrf.mxu0
      %v2105 = vpop.f32.mrf.mxu0
      %v2106 = vadd.f32 %v1758, %v2105
      %v2107 = vpop.f32.mrf.mxu0
      %2108 = vmatprep.mubr.bf16.mxu0 0
      %2109 = vmatmul.mubr.bf16.gmra.mxu0 %v1912
      %v2110 = vpop.f32.mrf.mxu0
      %v2111 = vadd.f32 %v1763, %v2110
      %v2112 = vpop.f32.mrf.mxu0
      %v2113 = vpop.f32.mrf.mxu0
      %v2114 = vadd.f32 %v1766, %v2113
      %v2115 = vpop.f32.mrf.mxu0
      %2116 = vmatprep.mubr.bf16.mxu0 0
      %2117 = vmatmul.mubr.bf16.gmra.mxu0 %v1914
      %v2118 = vpop.f32.mrf.mxu0
      %v2119 = vadd.f32 %v1771, %v2118
      %v2120 = vpop.f32.mrf.mxu0
      %v2121 = vpop.f32.mrf.mxu0
      %v2122 = vadd.f32 %v1774, %v2121
      %v2123 = vpop.f32.mrf.mxu0
      %2124 = vmatprep.mubr.bf16.mxu0 0
      %2125 = vmatmul.mubr.bf16.gmra.mxu0 %v1916
      %v2126 = vpop.f32.mrf.mxu0
      %v2127 = vadd.f32 %v1779, %v2126
      %v2128 = vpop.f32.mrf.mxu0
      %v2129 = vpop.f32.mrf.mxu0
      %v2130 = vadd.f32 %v1782, %v2129
      %v2131 = vpop.f32.mrf.mxu0
      %2132 = vmatprep.mubr.bf16.mxu0 0
      %2133 = vmatmul.mubr.bf16.gmra.mxu0 %v1918
      %v2134 = vpop.f32.mrf.mxu0
      %v2135 = vadd.f32 %v1787, %v2134
      %v2136 = vpop.f32.mrf.mxu0
      %v2137 = vpop.f32.mrf.mxu0
      %v2138 = vadd.f32 %v1790, %v2137
      %v2139 = vpop.f32.mrf.mxu0
      %2140 = vmatprep.mubr.bf16.mxu0 0
      %2141 = vmatmul.mubr.bf16.gmra.mxu0 %v1920
      %v2142 = vpop.f32.mrf.mxu0
      %v2143 = vadd.f32 %v1795, %v2142
      %v2144 = vpop.f32.mrf.mxu0
      %v2145 = vpop.f32.mrf.mxu0
      %v2146 = vadd.f32 %v1798, %v2145
      %v2147 = vpop.f32.mrf.mxu0
      %2148 = vmatprep.mubr.bf16.mxu0 0
      %2149 = vmatmul.mubr.bf16.gmra.mxu0 %v1922
      %v2150 = vpop.f32.mrf.mxu0
      %v2151 = vadd.f32 %v1803, %v2150
      %v2152 = vpop.f32.mrf.mxu0
      %v2153 = vpop.f32.mrf.mxu0
      %v2154 = vadd.f32 %v1806, %v2153
      %v2155 = vpop.f32.mrf.mxu0
      %2156 = vmatprep.mubr.bf16.mxu0 0
      %2157 = vmatmul.mubr.bf16.gmra.mxu0 %v1924
      %v2158 = vpop.f32.mrf.mxu0
      %v2159 = vadd.f32 %v1811, %v2158
      %v2160 = vpop.f32.mrf.mxu0
      %v2161 = vpop.f32.mrf.mxu0
      %v2162 = vadd.f32 %v1814, %v2161
      %v2163 = vpop.f32.mrf.mxu0
      %2164 = vmatprep.mubr.bf16.mxu0 0
      %2165 = vmatmul.mubr.bf16.gmra.mxu0 %v1926
      %v2166 = vpop.f32.mrf.mxu0
      %v2167 = vadd.f32 %v1819, %v2166
      %v2168 = vpop.f32.mrf.mxu0
      %v2169 = vpop.f32.mrf.mxu0
      %v2170 = vadd.f32 %v1822, %v2169
      %v2171 = vpop.f32.mrf.mxu0
      %2172 = vmatprep.mubr.bf16.mxu0 0
      %2173 = vmatmul.mubr.bf16.gmra.mxu0 %v1928
      %v2174 = vpop.f32.mrf.mxu0
      %v2175 = vadd.f32 %v1827, %v2174
      %v2176 = vpop.f32.mrf.mxu0
      %v2177 = vpop.f32.mrf.mxu0
      %v2178 = vadd.f32 %v1830, %v2177
      %v2179 = vpop.f32.mrf.mxu0
      %2180 = vmatprep.mubr.bf16.mxu0 0
      %2181 = vmatmul.mubr.bf16.gmra.mxu0 %v1930
      %v2182 = vpop.f32.mrf.mxu0
      %v2183 = vadd.f32 %v1835, %v2182
      %v2184 = vpop.f32.mrf.mxu0
      %v2185 = vpop.f32.mrf.mxu0
      %v2186 = vpop.f32.mrf.mxu0
      %2187 = vdwg.mxu0
      %v2191 = vunpack.c.l.b16 %v419
      %v2192 = vunpack.c.l.b16 %v420
      %v2193 = vunpack.c.l.b16 %v421
      %v2194 = vpack.c.b16 %v2191, %v1139
      %v2195 = vpack.c.b16 %v2193, %v2192
      %v2197 = vshrl.u32 %v1165, 16
      %v2199 = vshll.u32 %v1165, 16
      %v2201 = vrot.slane %v2199, 1
      %v2202 = vor.u32 %v2197, %v2201
      %v2204 = vshll.u32 %v1166, 16
      %v2206 = vrot.slane %v2204, 1
      %v2207 = vsel %vm616, %v2202, %v2206
      %v2208 = vshrl.u32 %v1166, 16
      %v2210 = vor.u32 %v2208, %v2206
      %v2212 = vshll.u32 %v1167, 16
      %v2214 = vrot.slane %v2212, 1
      %v2215 = vsel %vm616, %v2210, %v2214
      %v2216 = vshrl.u32 %v1167, 16
      %v2218 = vor.u32 %v2216, %v2214
      %v2220 = vshll.u32 %v1168, 16
      %v2222 = vrot.slane %v2220, 1
      %v2223 = vsel %vm616, %v2218, %v2222
      %v2224 = vshrl.u32 %v1168, 16
      %v2226 = vor.u32 %v2224, %v2222
      %v2228 = vshll.u32 %v1169, 16
      %v2230 = vrot.slane %v2228, 1
      %v2231 = vsel %vm616, %v2226, %v2230
      %v2232 = vshrl.u32 %v1169, 16
      %v2234 = vor.u32 %v2232, %v2230
      %v2236 = vshll.u32 %v1170, 16
      %v2238 = vrot.slane %v2236, 1
      %v2239 = vsel %vm616, %v2234, %v2238
      %v2240 = vshrl.u32 %v1170, 16
      %v2242 = vor.u32 %v2240, %v2238
      %v2244 = vshll.u32 %v1171, 16
      %v2246 = vrot.slane %v2244, 1
      %v2247 = vsel %vm616, %v2242, %v2246
      %v2248 = vshrl.u32 %v1171, 16
      %v2250 = vor.u32 %v2248, %v2246
      %v2252 = vshll.u32 %v1172, 16
      %v2254 = vrot.slane %v2252, 1
      %v2255 = vsel %vm616, %v2250, %v2254
      %v2256 = vshrl.u32 %v1172, 16
      %v2258 = vor.u32 %v2256, %v2254
      %v2260 = vshll.u32 %v1173, 16
      %v2262 = vrot.slane %v2260, 1
      %v2263 = vsel %vm616, %v2258, %v2262
      %v2264 = vshrl.u32 %v1173, 16
      %v2266 = vor.u32 %v2264, %v2262
      %v2268 = vshll.u32 %v1174, 16
      %v2270 = vrot.slane %v2268, 1
      %v2271 = vsel %vm616, %v2266, %v2270
      %v2272 = vshrl.u32 %v1174, 16
      %v2274 = vor.u32 %v2272, %v2270
      %v2276 = vshll.u32 %v1175, 16
      %v2278 = vrot.slane %v2276, 1
      %v2279 = vsel %vm616, %v2274, %v2278
      %v2280 = vshrl.u32 %v1175, 16
      %v2282 = vor.u32 %v2280, %v2278
      %v2284 = vshll.u32 %v1176, 16
      %v2286 = vrot.slane %v2284, 1
      %v2287 = vsel %vm616, %v2282, %v2286
      %v2288 = vshrl.u32 %v1176, 16
      %v2290 = vor.u32 %v2288, %v2286
      %v2292 = vshll.u32 %v1177, 16
      %v2294 = vrot.slane %v2292, 1
      %v2295 = vsel %vm616, %v2290, %v2294
      %v2296 = vshrl.u32 %v1177, 16
      %v2298 = vor.u32 %v2296, %v2294
      %v2300 = vshll.u32 %v1178, 16
      %v2302 = vrot.slane %v2300, 1
      %v2303 = vsel %vm616, %v2298, %v2302
      %v2304 = vshrl.u32 %v1178, 16
      %v2306 = vor.u32 %v2304, %v2302
      %v2308 = vshll.u32 %v1179, 16
      %v2310 = vrot.slane %v2308, 1
      %v2311 = vsel %vm616, %v2306, %v2310
      %v2312 = vshrl.u32 %v1179, 16
      %v2314 = vor.u32 %v2312, %v2310
      %v2316 = vshll.u32 %v1180, 16
      %v2318 = vrot.slane %v2316, 1
      %v2319 = vsel %vm616, %v2314, %v2318
      %v2320 = vshrl.u32 %v1180, 16
      %v2322 = vor.u32 %v2320, %v2318
      %v2324 = vshll.u32 %v1181, 16
      %v2326 = vrot.slane %v2324, 1
      %v2327 = vsel %vm616, %v2322, %v2326
      %v2328 = vshrl.u32 %v1181, 16
      %v2330 = vor.u32 %v2328, %v2326
      %v2332 = vshll.u32 %v1182, 16
      %v2334 = vrot.slane %v2332, 1
      %v2335 = vsel %vm616, %v2330, %v2334
      %v2336 = vshrl.u32 %v1182, 16
      %v2338 = vor.u32 %v2336, %v2334
      %v2340 = vshll.u32 %v1183, 16
      %v2342 = vrot.slane %v2340, 1
      %v2343 = vsel %vm616, %v2338, %v2342
      %v2344 = vshrl.u32 %v1183, 16
      %v2346 = vor.u32 %v2344, %v2342
      %v2348 = vshll.u32 %v1184, 16
      %v2350 = vrot.slane %v2348, 1
      %v2351 = vsel %vm616, %v2346, %v2350
      %v2352 = vshrl.u32 %v1184, 16
      %v2354 = vor.u32 %v2352, %v2350
      %v2356 = vshll.u32 %v1185, 16
      %v2358 = vrot.slane %v2356, 1
      %v2359 = vsel %vm616, %v2354, %v2358
      %v2360 = vshrl.u32 %v1185, 16
      %v2362 = vor.u32 %v2360, %v2358
      %v2364 = vshll.u32 %v1186, 16
      %v2366 = vrot.slane %v2364, 1
      %v2367 = vsel %vm616, %v2362, %v2366
      %v2368 = vshrl.u32 %v1186, 16
      %v2370 = vor.u32 %v2368, %v2366
      %v2372 = vshll.u32 %v1187, 16
      %v2374 = vrot.slane %v2372, 1
      %v2375 = vsel %vm616, %v2370, %v2374
      %v2376 = vshrl.u32 %v1187, 16
      %v2378 = vor.u32 %v2376, %v2374
      %v2380 = vshll.u32 %v1188, 16
      %v2382 = vrot.slane %v2380, 1
      %v2383 = vsel %vm616, %v2378, %v2382
      %v2384 = vshrl.u32 %v1188, 16
      %v2386 = vor.u32 %v2384, %v2382
      %v2388 = vshll.u32 %v1189, 16
      %v2390 = vrot.slane %v2388, 1
      %v2391 = vsel %vm616, %v2386, %v2390
      %v2392 = vshrl.u32 %v1189, 16
      %v2394 = vor.u32 %v2392, %v2390
      %v2396 = vshll.u32 %v1190, 16
      %v2398 = vrot.slane %v2396, 1
      %v2399 = vsel %vm616, %v2394, %v2398
      %v2400 = vshrl.u32 %v1190, 16
      %v2402 = vor.u32 %v2400, %v2398
      %v2404 = vshll.u32 %v2194, 16
      %v2406 = vrot.slane %v2404, 1
      %v2407 = vsel %vm616, %v2402, %v2406
      %v2408 = vshrl.u32 %v2194, 16
      %v2410 = vor.u32 %v2408, %v2406
      %v2412 = vshll.u32 %v2195, 16
      %v2414 = vrot.slane %v2412, 1
      %v2415 = vsel %vm616, %v2410, %v2414
      %v2416 = vshrl.u32 %v2195, 16
      %v2418 = vor.u32 %v2416, %v2414
      %2419 = vrot.lane.b32.xlu0 %v2207, 32
      %v2420 = vpop.permute.xlu0 %2419
      %2421 = vrot.lane.b32.xlu0 %v2215, 32
      %v2422 = vpop.permute.xlu0 %2421
      %2423 = vrot.lane.b32.xlu0 %v2223, 32
      %v2424 = vpop.permute.xlu0 %2423
      %2425 = vrot.lane.b32.xlu0 %v2231, 32
      %v2426 = vpop.permute.xlu0 %2425
      %2427 = vrot.lane.b32.xlu0 %v2239, 32
      %v2428 = vpop.permute.xlu0 %2427
      %2429 = vrot.lane.b32.xlu0 %v2247, 32
      %v2430 = vpop.permute.xlu0 %2429
      %2431 = vrot.lane.b32.xlu0 %v2255, 32
      %v2432 = vpop.permute.xlu0 %2431
      %2433 = vrot.lane.b32.xlu0 %v2263, 32
      %v2434 = vpop.permute.xlu0 %2433
      %2435 = vrot.lane.b32.xlu0 %v2271, 32
      %v2436 = vpop.permute.xlu0 %2435
      %2437 = vrot.lane.b32.xlu0 %v2279, 32
      %v2438 = vpop.permute.xlu0 %2437
      %2439 = vrot.lane.b32.xlu0 %v2287, 32
      %v2440 = vpop.permute.xlu0 %2439
      %2441 = vrot.lane.b32.xlu0 %v2295, 32
      %v2442 = vpop.permute.xlu0 %2441
      %2443 = vrot.lane.b32.xlu0 %v2303, 32
      %v2444 = vpop.permute.xlu0 %2443
      %2445 = vrot.lane.b32.xlu0 %v2311, 32
      %v2446 = vpop.permute.xlu0 %2445
      %2447 = vrot.lane.b32.xlu0 %v2319, 32
      %v2448 = vpop.permute.xlu0 %2447
      %2449 = vrot.lane.b32.xlu0 %v2327, 32
      %v2450 = vpop.permute.xlu0 %2449
      %2451 = vrot.lane.b32.xlu0 %v2335, 32
      %v2452 = vpop.permute.xlu0 %2451
      %2453 = vrot.lane.b32.xlu0 %v2343, 32
      %v2454 = vpop.permute.xlu0 %2453
      %2455 = vrot.lane.b32.xlu0 %v2351, 32
      %v2456 = vpop.permute.xlu0 %2455
      %2457 = vrot.lane.b32.xlu0 %v2359, 32
      %v2458 = vpop.permute.xlu0 %2457
      %2459 = vrot.lane.b32.xlu0 %v2367, 32
      %v2460 = vpop.permute.xlu0 %2459
      %2461 = vrot.lane.b32.xlu0 %v2375, 32
      %v2462 = vpop.permute.xlu0 %2461
      %2463 = vrot.lane.b32.xlu0 %v2383, 32
      %v2464 = vpop.permute.xlu0 %2463
      %2465 = vrot.lane.b32.xlu0 %v2391, 32
      %v2466 = vpop.permute.xlu0 %2465
      %2467 = vrot.lane.b32.xlu0 %v2399, 32
      %v2468 = vpop.permute.xlu0 %2467
      %2469 = vrot.lane.b32.xlu0 %v2407, 32
      %v2470 = vpop.permute.xlu0 %2469
      %2471 = vrot.lane.b32.xlu0 %v2415, 32
      %v2472 = vpop.permute.xlu0 %2471
      %2473 = vrot.lane.b32.xlu0 %v2418, 32
      %v2474 = vpop.permute.xlu0 %2473
      %v2475 = vrot.slane %v1165, 1
      %v2476 = vrot.slane %v1166, 1
      %v2477 = vsel %vm896, %v2475, %v2476
      %v2478 = vrot.slane %v1167, 1
      %v2479 = vsel %vm896, %v2476, %v2478
      %v2480 = vrot.slane %v1168, 1
      %v2481 = vsel %vm896, %v2478, %v2480
      %v2482 = vrot.slane %v1169, 1
      %v2483 = vsel %vm896, %v2480, %v2482
      %v2484 = vrot.slane %v1170, 1
      %v2485 = vsel %vm896, %v2482, %v2484
      %v2486 = vrot.slane %v1171, 1
      %v2487 = vsel %vm896, %v2484, %v2486
      %v2488 = vrot.slane %v1172, 1
      %v2489 = vsel %vm896, %v2486, %v2488
      %v2490 = vrot.slane %v1173, 1
      %v2491 = vsel %vm896, %v2488, %v2490
      %v2492 = vrot.slane %v1174, 1
      %v2493 = vsel %vm896, %v2490, %v2492
      %v2494 = vrot.slane %v1175, 1
      %v2495 = vsel %vm896, %v2492, %v2494
      %v2496 = vrot.slane %v1176, 1
      %v2497 = vsel %vm896, %v2494, %v2496
      %v2498 = vrot.slane %v1177, 1
      %v2499 = vsel %vm896, %v2496, %v2498
      %v2500 = vrot.slane %v1178, 1
      %v2501 = vsel %vm896, %v2498, %v2500
      %v2502 = vrot.slane %v1179, 1
      %v2503 = vsel %vm896, %v2500, %v2502
      %v2504 = vrot.slane %v1180, 1
      %v2505 = vsel %vm896, %v2502, %v2504
      %v2506 = vrot.slane %v1181, 1
      %v2507 = vsel %vm896, %v2504, %v2506
      %v2508 = vrot.slane %v1182, 1
      %v2509 = vsel %vm896, %v2506, %v2508
      %v2510 = vrot.slane %v1183, 1
      %v2511 = vsel %vm896, %v2508, %v2510
      %v2512 = vrot.slane %v1184, 1
      %v2513 = vsel %vm896, %v2510, %v2512
      %v2514 = vrot.slane %v1185, 1
      %v2515 = vsel %vm896, %v2512, %v2514
      %v2516 = vrot.slane %v1186, 1
      %v2517 = vsel %vm896, %v2514, %v2516
      %v2518 = vrot.slane %v1187, 1
      %v2519 = vsel %vm896, %v2516, %v2518
      %v2520 = vrot.slane %v1188, 1
      %v2521 = vsel %vm896, %v2518, %v2520
      %v2522 = vrot.slane %v1189, 1
      %v2523 = vsel %vm896, %v2520, %v2522
      %v2524 = vrot.slane %v1190, 1
      %v2525 = vsel %vm896, %v2522, %v2524
      %v2526 = vrot.slane %v2194, 1
      %v2527 = vsel %vm896, %v2524, %v2526
      %v2528 = vrot.slane %v2195, 1
      %v2529 = vsel %vm896, %v2526, %v2528
      %2530 = vrot.lane.b32.xlu0 %v2477, 64
      %v2531 = vpop.permute.xlu0 %2530
      %2532 = vrot.lane.b32.xlu0 %v2479, 64
      %v2533 = vpop.permute.xlu0 %2532
      %2534 = vrot.lane.b32.xlu0 %v2481, 64
      %v2535 = vpop.permute.xlu0 %2534
      %2536 = vrot.lane.b32.xlu0 %v2483, 64
      %v2537 = vpop.permute.xlu0 %2536
      %2538 = vrot.lane.b32.xlu0 %v2485, 64
      %v2539 = vpop.permute.xlu0 %2538
      %2540 = vrot.lane.b32.xlu0 %v2487, 64
      %v2541 = vpop.permute.xlu0 %2540
      %2542 = vrot.lane.b32.xlu0 %v2489, 64
      %v2543 = vpop.permute.xlu0 %2542
      %2544 = vrot.lane.b32.xlu0 %v2491, 64
      %v2545 = vpop.permute.xlu0 %2544
      %2546 = vrot.lane.b32.xlu0 %v2493, 64
      %v2547 = vpop.permute.xlu0 %2546
      %2548 = vrot.lane.b32.xlu0 %v2495, 64
      %v2549 = vpop.permute.xlu0 %2548
      %2550 = vrot.lane.b32.xlu0 %v2497, 64
      %v2551 = vpop.permute.xlu0 %2550
      %2552 = vrot.lane.b32.xlu0 %v2499, 64
      %v2553 = vpop.permute.xlu0 %2552
      %2554 = vrot.lane.b32.xlu0 %v2501, 64
      %v2555 = vpop.permute.xlu0 %2554
      %2556 = vrot.lane.b32.xlu0 %v2503, 64
      %v2557 = vpop.permute.xlu0 %2556
      %2558 = vrot.lane.b32.xlu0 %v2505, 64
      %v2559 = vpop.permute.xlu0 %2558
      %2560 = vrot.lane.b32.xlu0 %v2507, 64
      %v2561 = vpop.permute.xlu0 %2560
      %2562 = vrot.lane.b32.xlu0 %v2509, 64
      %v2563 = vpop.permute.xlu0 %2562
      %2564 = vrot.lane.b32.xlu0 %v2511, 64
      %v2565 = vpop.permute.xlu0 %2564
      %2566 = vrot.lane.b32.xlu0 %v2513, 64
      %v2567 = vpop.permute.xlu0 %2566
      %2568 = vrot.lane.b32.xlu0 %v2515, 64
      %v2569 = vpop.permute.xlu0 %2568
      %2570 = vrot.lane.b32.xlu0 %v2517, 64
      %v2571 = vpop.permute.xlu0 %2570
      %2572 = vrot.lane.b32.xlu0 %v2519, 64
      %v2573 = vpop.permute.xlu0 %2572
      %2574 = vrot.lane.b32.xlu0 %v2521, 64
      %v2575 = vpop.permute.xlu0 %2574
      %2576 = vrot.lane.b32.xlu0 %v2523, 64
      %v2577 = vpop.permute.xlu0 %2576
      %2578 = vrot.lane.b32.xlu0 %v2525, 64
      %v2579 = vpop.permute.xlu0 %2578
      %2580 = vrot.lane.b32.xlu0 %v2527, 64
      %v2581 = vpop.permute.xlu0 %2580
      %2582 = vrot.lane.b32.xlu0 %v2529, 64
      %v2583 = vpop.permute.xlu0 %2582
      %2584 = vrot.lane.b32.xlu0 %v2528, 64
      %v2585 = vpop.permute.xlu0 %2584
      %v2587 = vsel %vm1008, %v1165, %v2420
      %v2589 = vsel %vm1008, %v1166, %v2422
      %v2591 = vsel %vm1008, %v1167, %v2424
      %v2593 = vsel %vm1008, %v1168, %v2426
      %v2595 = vsel %vm1008, %v1169, %v2428
      %v2597 = vsel %vm1008, %v1170, %v2430
      %v2599 = vsel %vm1008, %v1171, %v2432
      %v2601 = vsel %vm1008, %v1172, %v2434
      %v2603 = vsel %vm1008, %v1173, %v2436
      %v2605 = vsel %vm1008, %v1174, %v2438
      %v2607 = vsel %vm1008, %v1175, %v2440
      %v2609 = vsel %vm1008, %v1176, %v2442
      %v2611 = vsel %vm1008, %v1177, %v2444
      %v2613 = vsel %vm1008, %v1178, %v2446
      %v2615 = vsel %vm1008, %v1179, %v2448
      %v2617 = vsel %vm1008, %v1180, %v2450
      %v2619 = vsel %vm1008, %v1181, %v2452
      %v2621 = vsel %vm1008, %v1182, %v2454
      %v2623 = vsel %vm1008, %v1183, %v2456
      %v2625 = vsel %vm1008, %v1184, %v2458
      %v2627 = vsel %vm1008, %v1185, %v2460
      %v2629 = vsel %vm1008, %v1186, %v2462
      %v2631 = vsel %vm1008, %v1187, %v2464
      %v2633 = vsel %vm1008, %v1188, %v2466
      %v2635 = vsel %vm1008, %v1189, %v2468
      %v2637 = vsel %vm1008, %v1190, %v2470
      %v2639 = vsel %vm1008, %v2194, %v2472
      %v2641 = vsel %vm1008, %v2195, %v2474
      %v2643 = vsel %vm1065, %v2587, %v2531
      %v2645 = vsel %vm1065, %v2589, %v2533
      %v2647 = vsel %vm1065, %v2591, %v2535
      %v2649 = vsel %vm1065, %v2593, %v2537
      %v2651 = vsel %vm1065, %v2595, %v2539
      %v2653 = vsel %vm1065, %v2597, %v2541
      %v2655 = vsel %vm1065, %v2599, %v2543
      %v2657 = vsel %vm1065, %v2601, %v2545
      %v2659 = vsel %vm1065, %v2603, %v2547
      %v2661 = vsel %vm1065, %v2605, %v2549
      %v2663 = vsel %vm1065, %v2607, %v2551
      %v2665 = vsel %vm1065, %v2609, %v2553
      %v2667 = vsel %vm1065, %v2611, %v2555
      %v2669 = vsel %vm1065, %v2613, %v2557
      %v2671 = vsel %vm1065, %v2615, %v2559
      %v2673 = vsel %vm1065, %v2617, %v2561
      %v2675 = vsel %vm1065, %v2619, %v2563
      %v2677 = vsel %vm1065, %v2621, %v2565
      %v2679 = vsel %vm1065, %v2623, %v2567
      %v2681 = vsel %vm1065, %v2625, %v2569
      %v2683 = vsel %vm1065, %v2627, %v2571
      %v2685 = vsel %vm1065, %v2629, %v2573
      %v2687 = vsel %vm1065, %v2631, %v2575
      %v2689 = vsel %vm1065, %v2633, %v2577
      %v2691 = vsel %vm1065, %v2635, %v2579
      %v2693 = vsel %vm1065, %v2637, %v2581
      %v2695 = vsel %vm1065, %v2639, %v2583
      %v2697 = vsel %vm1065, %v2641, %v2585
      %s2698 = scalar_lea.vmem %s2, 96
      %v2699 = vld [vmem:[%s2698] sm:$0xf]
      %v2700 = vld [vmem:[%s2698 + $0x4] sm:$0xf]
      %v2701 = vld [vmem:[%s2698 + $0x8] sm:$0xf]
      %v2702 = vld [vmem:[%s2698 + $0xc] sm:$0xf]
      %v2703 = vld [vmem:[%s2698 + $0x10] sm:$0xf]
      %v2704 = vld [vmem:[%s2698 + $0x14] sm:$0xf]
      %v2705 = vld [vmem:[%s2698 + $0x18] sm:$0xf]
      %v2706 = vld [vmem:[%s2698 + $0x1c] sm:$0xf]
      %v2707 = vld [vmem:[%s2698 + $0x20] sm:$0xf]
      %v2708 = vld [vmem:[%s2698 + $0x24] sm:$0xf]
      %v2709 = vld [vmem:[%s2698 + $0x28] sm:$0xf]
      %v2710 = vld [vmem:[%s2698 + $0x2c] sm:$0xf]
      %vm2739 = vcmask 1045504
      %v2740 = vrot.slane %v2643, 2
      %v2741 = vrot.slane %v2645, 2
      %v2742 = vsel %vm2739, %v2740, %v2741
      %v2743 = vrot.slane %v2647, 2
      %v2744 = vsel %vm2739, %v2741, %v2743
      %v2745 = vrot.slane %v2649, 2
      %v2746 = vsel %vm2739, %v2743, %v2745
      %v2747 = vrot.slane %v2651, 2
      %v2748 = vsel %vm2739, %v2745, %v2747
      %v2749 = vrot.slane %v2653, 2
      %v2750 = vsel %vm2739, %v2747, %v2749
      %v2751 = vrot.slane %v2655, 2
      %v2752 = vsel %vm2739, %v2749, %v2751
      %v2753 = vrot.slane %v2657, 2
      %v2754 = vsel %vm2739, %v2751, %v2753
      %v2755 = vrot.slane %v2659, 2
      %v2756 = vsel %vm2739, %v2753, %v2755
      %v2757 = vrot.slane %v2661, 2
      %v2758 = vsel %vm2739, %v2755, %v2757
      %v2759 = vrot.slane %v2663, 2
      %v2760 = vsel %vm2739, %v2757, %v2759
      %v2761 = vrot.slane %v2665, 2
      %v2762 = vsel %vm2739, %v2759, %v2761
      %v2763 = vrot.slane %v2667, 2
      %v2764 = vsel %vm2739, %v2761, %v2763
      %v2765 = vrot.slane %v2669, 2
      %v2766 = vsel %vm2739, %v2763, %v2765
      %v2767 = vrot.slane %v2671, 2
      %v2768 = vsel %vm2739, %v2765, %v2767
      %v2769 = vrot.slane %v2673, 2
      %v2770 = vsel %vm2739, %v2767, %v2769
      %v2771 = vrot.slane %v2675, 2
      %v2772 = vsel %vm2739, %v2769, %v2771
      %v2773 = vrot.slane %v2677, 2
      %v2774 = vsel %vm2739, %v2771, %v2773
      %v2775 = vrot.slane %v2679, 2
      %v2776 = vsel %vm2739, %v2773, %v2775
      %v2777 = vrot.slane %v2681, 2
      %v2778 = vsel %vm2739, %v2775, %v2777
      %v2779 = vrot.slane %v2683, 2
      %v2780 = vsel %vm2739, %v2777, %v2779
      %v2781 = vrot.slane %v2685, 2
      %v2782 = vsel %vm2739, %v2779, %v2781
      %v2783 = vrot.slane %v2687, 2
      %v2784 = vsel %vm2739, %v2781, %v2783
      %v2785 = vrot.slane %v2689, 2
      %v2786 = vsel %vm2739, %v2783, %v2785
      %v2787 = vrot.slane %v2691, 2
      %v2788 = vsel %vm2739, %v2785, %v2787
      %v2789 = vrot.slane %v2693, 2
      %v2790 = vsel %vm2739, %v2787, %v2789
      %v2791 = vrot.slane %v2695, 2
      %v2792 = vsel %vm2739, %v2789, %v2791
      %v2793 = vrot.slane %v2697, 2
      %v2794 = vsel %vm2739, %v2791, %v2793
      %v2807 = vunpack.c.l.b16 %v2699
      %v2808 = vunpack.c.l.b16 %v2700
      %v2809 = vunpack.c.l.b16 %v2701
      %v2810 = vunpack.c.l.b16 %v2702
      %v2811 = vunpack.c.l.b16 %v2703
      %v2812 = vunpack.c.l.b16 %v2704
      %v2813 = vunpack.c.l.b16 %v2705
      %v2814 = vunpack.c.l.b16 %v2706
      %v2815 = vunpack.c.l.b16 %v2707
      %v2816 = vunpack.c.l.b16 %v2708
      %v2817 = vunpack.c.l.b16 %v2709
      %v2818 = vunpack.c.l.b16 %v2710
      %v2819 = vpack.c.b16 %v2808, %v2807
      %v2820 = vpack.c.b16 %v2810, %v2809
      %v2821 = vpack.c.b16 %v2812, %v2811
      %v2822 = vpack.c.b16 %v2814, %v2813
      %v2823 = vpack.c.b16 %v2816, %v2815
      %v2824 = vpack.c.b16 %v2818, %v2817
      %v2832 = vsel %vm1499, %v2742, 0
      %v2835 = vsel %vm1499, %v2744, 0
      %v2838 = vsel %vm1499, %v2746, 0
      %v2841 = vsel %vm1499, %v2748, 0
      %v2844 = vsel %vm1499, %v2750, 0
      %v2847 = vsel %vm1499, %v2752, 0
      %v2850 = vsel %vm1499, %v2754, 0
      %v2853 = vsel %vm1499, %v2756, 0
      %v2856 = vsel %vm1499, %v2758, 0
      %v2859 = vsel %vm1499, %v2760, 0
      %v2862 = vsel %vm1499, %v2762, 0
      %v2865 = vsel %vm1499, %v2764, 0
      %v2868 = vsel %vm1499, %v2766, 0
      %v2871 = vsel %vm1499, %v2768, 0
      %v2874 = vsel %vm1499, %v2770, 0
      %v2877 = vsel %vm1499, %v2772, 0
      %v2880 = vsel %vm1499, %v2774, 0
      %v2883 = vsel %vm1499, %v2776, 0
      %v2886 = vsel %vm1499, %v2778, 0
      %v2889 = vsel %vm1499, %v2780, 0
      %v2892 = vsel %vm1499, %v2782, 0
      %v2895 = vsel %vm1499, %v2784, 0
      %v2898 = vsel %vm1499, %v2786, 0
      %v2901 = vsel %vm1499, %v2788, 0
      %v2904 = vsel %vm1499, %v2790, 0
      %v2907 = vsel %vm1499, %v2792, 0
      %v2910 = vsel %vm1499, %v2794, 0
      %v2913 = vsel %vm1499, %v2793, 0
      %2915 = vmatprep.subr.bf16.mxu0 0
      %2916 = vmatpush1.bf16.msra.mxu0 0
      %2917 = vmatprep.subr.bf16.mxu0 0
      %2918 = vmatpush1.bf16.msra.mxu0 0
      %2919 = vmatprep.subr.bf16.mxu0 0
      %2920 = vmatpush1.bf16.msra.mxu0 %v2824
      %2921 = vmatprep.subr.bf16.mxu0 0
      %2922 = vmatpush1.bf16.msra.mxu0 %v2823
      %2923 = vmatprep.subr.bf16.mxu0 0
      %2924 = vmatpush1.bf16.msra.mxu0 %v2822
      %2925 = vmatprep.subr.bf16.mxu0 0
      %2926 = vmatpush1.bf16.msra.mxu0 %v2821
      %2927 = vmatprep.subr.bf16.mxu0 0
      %2928 = vmatpush1.bf16.msra.mxu0 %v2820
      %2929 = vmatprep.subr.bf16.mxu0 0
      %2930 = vmatpush1.bf16.msra.mxu0 %v2819
      %2931 = vmatprep.subr.bf16.mxu0 0
      %2932 = vmatpush2.bf16.msra.mxu0 0
      %2933 = vmatprep.subr.bf16.mxu0 0
      %2934 = vmatpush2.bf16.msra.mxu0 0
      %2935 = vmatprep.subr.bf16.mxu0 0
      %2936 = vmatpush2.bf16.msra.mxu0 0
      %2937 = vmatprep.subr.bf16.mxu0 0
      %2938 = vmatpush2.bf16.msra.mxu0 0
      %2939 = vmatprep.subr.bf16.mxu0 0
      %2940 = vmatpush2.bf16.msra.mxu0 0
      %2941 = vmatprep.subr.bf16.mxu0 0
      %2942 = vmatpush2.bf16.msra.mxu0 0
      %2943 = vmatprep.subr.bf16.mxu0 0
      %2944 = vmatpush2.bf16.msra.mxu0 0
      %2945 = vmatprep.subr.bf16.mxu0 0
      %2946 = vmatpush2.bf16.msra.mxu0 0
      %2947 = vmatprep.mubr.bf16.mxu0 0
      %2948 = vmatmul.mubr.bf16.gmra.mxu0 %v2832
      %v2949 = vpop.f32.mrf.mxu0
      %v2950 = vadd.f32 0.0, %v2949
      %v2951 = vpop.f32.mrf.mxu0
      %v2952 = vpop.f32.mrf.mxu0
      %v2953 = vadd.f32 0.0, %v2952
      %v2954 = vpop.f32.mrf.mxu0
      %2955 = vmatprep.mubr.bf16.mxu0 0
      %2956 = vmatmul.mubr.bf16.gmra.mxu0 %v2835
      %v2957 = vpop.f32.mrf.mxu0
      %v2958 = vadd.f32 0.0, %v2957
      %v2959 = vpop.f32.mrf.mxu0
      %v2960 = vpop.f32.mrf.mxu0
      %v2961 = vadd.f32 0.0, %v2960
      %v2962 = vpop.f32.mrf.mxu0
      %2963 = vmatprep.mubr.bf16.mxu0 0
      %2964 = vmatmul.mubr.bf16.gmra.mxu0 %v2838
      %v2965 = vpop.f32.mrf.mxu0
      %v2966 = vadd.f32 0.0, %v2965
      %v2967 = vpop.f32.mrf.mxu0
      %v2968 = vpop.f32.mrf.mxu0
      %v2969 = vadd.f32 0.0, %v2968
      %v2970 = vpop.f32.mrf.mxu0
      %2971 = vmatprep.mubr.bf16.mxu0 0
      %2972 = vmatmul.mubr.bf16.gmra.mxu0 %v2841
      %v2973 = vpop.f32.mrf.mxu0
      %v2974 = vadd.f32 0.0, %v2973
      %v2975 = vpop.f32.mrf.mxu0
      %v2976 = vpop.f32.mrf.mxu0
      %v2977 = vadd.f32 0.0, %v2976
      %v2978 = vpop.f32.mrf.mxu0
      %2979 = vmatprep.mubr.bf16.mxu0 0
      %2980 = vmatmul.mubr.bf16.gmra.mxu0 %v2844
      %v2981 = vpop.f32.mrf.mxu0
      %v2982 = vadd.f32 0.0, %v2981
      %v2983 = vpop.f32.mrf.mxu0
      %v2984 = vpop.f32.mrf.mxu0
      %v2985 = vadd.f32 0.0, %v2984
      %v2986 = vpop.f32.mrf.mxu0
      %2987 = vmatprep.mubr.bf16.mxu0 0
      %2988 = vmatmul.mubr.bf16.gmra.mxu0 %v2847
      %v2989 = vpop.f32.mrf.mxu0
      %v2990 = vadd.f32 0.0, %v2989
      %v2991 = vpop.f32.mrf.mxu0
      %v2992 = vpop.f32.mrf.mxu0
      %v2993 = vadd.f32 0.0, %v2992
      %v2994 = vpop.f32.mrf.mxu0
      %2995 = vmatprep.mubr.bf16.mxu0 0
      %2996 = vmatmul.mubr.bf16.gmra.mxu0 %v2850
      %v2997 = vpop.f32.mrf.mxu0
      %v2998 = vadd.f32 0.0, %v2997
      %v2999 = vpop.f32.mrf.mxu0
      %v3000 = vpop.f32.mrf.mxu0
      %v3001 = vadd.f32 0.0, %v3000
      %v3002 = vpop.f32.mrf.mxu0
      %3003 = vmatprep.mubr.bf16.mxu0 0
      %3004 = vmatmul.mubr.bf16.gmra.mxu0 %v2853
      %v3005 = vpop.f32.mrf.mxu0
      %v3006 = vadd.f32 0.0, %v3005
      %v3007 = vpop.f32.mrf.mxu0
      %v3008 = vpop.f32.mrf.mxu0
      %v3009 = vadd.f32 0.0, %v3008
      %v3010 = vpop.f32.mrf.mxu0
      %3011 = vmatprep.mubr.bf16.mxu0 0
      %3012 = vmatmul.mubr.bf16.gmra.mxu0 %v2856
      %v3013 = vpop.f32.mrf.mxu0
      %v3014 = vadd.f32 0.0, %v3013
      %v3015 = vpop.f32.mrf.mxu0
      %v3016 = vpop.f32.mrf.mxu0
      %v3017 = vadd.f32 0.0, %v3016
      %v3018 = vpop.f32.mrf.mxu0
      %3019 = vmatprep.mubr.bf16.mxu0 0
      %3020 = vmatmul.mubr.bf16.gmra.mxu0 %v2859
      %v3021 = vpop.f32.mrf.mxu0
      %v3022 = vadd.f32 0.0, %v3021
      %v3023 = vpop.f32.mrf.mxu0
      %v3024 = vpop.f32.mrf.mxu0
      %v3025 = vadd.f32 0.0, %v3024
      %v3026 = vpop.f32.mrf.mxu0
      %3027 = vmatprep.mubr.bf16.mxu0 0
      %3028 = vmatmul.mubr.bf16.gmra.mxu0 %v2862
      %v3029 = vpop.f32.mrf.mxu0
      %v3030 = vadd.f32 0.0, %v3029
      %v3031 = vpop.f32.mrf.mxu0
      %v3032 = vpop.f32.mrf.mxu0
      %v3033 = vadd.f32 0.0, %v3032
      %v3034 = vpop.f32.mrf.mxu0
      %3035 = vmatprep.mubr.bf16.mxu0 0
      %3036 = vmatmul.mubr.bf16.gmra.mxu0 %v2865
      %v3037 = vpop.f32.mrf.mxu0
      %v3038 = vadd.f32 0.0, %v3037
      %v3039 = vpop.f32.mrf.mxu0
      %v3040 = vpop.f32.mrf.mxu0
      %v3041 = vadd.f32 0.0, %v3040
      %v3042 = vpop.f32.mrf.mxu0
      %3043 = vmatprep.mubr.bf16.mxu0 0
      %3044 = vmatmul.mubr.bf16.gmra.mxu0 %v2868
      %v3045 = vpop.f32.mrf.mxu0
      %v3046 = vadd.f32 0.0, %v3045
      %v3047 = vpop.f32.mrf.mxu0
      %v3048 = vpop.f32.mrf.mxu0
      %v3049 = vadd.f32 0.0, %v3048
      %v3050 = vpop.f32.mrf.mxu0
      %3051 = vmatprep.mubr.bf16.mxu0 0
      %3052 = vmatmul.mubr.bf16.gmra.mxu0 %v2871
      %v3053 = vpop.f32.mrf.mxu0
      %v3054 = vadd.f32 0.0, %v3053
      %v3055 = vpop.f32.mrf.mxu0
      %v3056 = vpop.f32.mrf.mxu0
      %v3057 = vadd.f32 0.0, %v3056
      %v3058 = vpop.f32.mrf.mxu0
      %3059 = vmatprep.mubr.bf16.mxu0 0
      %3060 = vmatmul.mubr.bf16.gmra.mxu0 %v2874
      %v3061 = vpop.f32.mrf.mxu0
      %v3062 = vadd.f32 0.0, %v3061
      %v3063 = vpop.f32.mrf.mxu0
      %v3064 = vpop.f32.mrf.mxu0
      %v3065 = vadd.f32 0.0, %v3064
      %v3066 = vpop.f32.mrf.mxu0
      %3067 = vmatprep.mubr.bf16.mxu0 0
      %3068 = vmatmul.mubr.bf16.gmra.mxu0 %v2877
      %v3069 = vpop.f32.mrf.mxu0
      %v3070 = vadd.f32 0.0, %v3069
      %v3071 = vpop.f32.mrf.mxu0
      %v3072 = vpop.f32.mrf.mxu0
      %v3073 = vadd.f32 0.0, %v3072
      %v3074 = vpop.f32.mrf.mxu0
      %3075 = vmatprep.mubr.bf16.mxu0 0
      %3076 = vmatmul.mubr.bf16.gmra.mxu0 %v2880
      %v3077 = vpop.f32.mrf.mxu0
      %v3078 = vadd.f32 0.0, %v3077
      %v3079 = vpop.f32.mrf.mxu0
      %v3080 = vpop.f32.mrf.mxu0
      %v3081 = vadd.f32 0.0, %v3080
      %v3082 = vpop.f32.mrf.mxu0
      %3083 = vmatprep.mubr.bf16.mxu0 0
      %3084 = vmatmul.mubr.bf16.gmra.mxu0 %v2883
      %v3085 = vpop.f32.mrf.mxu0
      %v3086 = vadd.f32 0.0, %v3085
      %v3087 = vpop.f32.mrf.mxu0
      %v3088 = vpop.f32.mrf.mxu0
      %v3089 = vadd.f32 0.0, %v3088
      %v3090 = vpop.f32.mrf.mxu0
      %3091 = vmatprep.mubr.bf16.mxu0 0
      %3092 = vmatmul.mubr.bf16.gmra.mxu0 %v2886
      %v3093 = vpop.f32.mrf.mxu0
      %v3094 = vadd.f32 0.0, %v3093
      %v3095 = vpop.f32.mrf.mxu0
      %v3096 = vpop.f32.mrf.mxu0
      %v3097 = vadd.f32 0.0, %v3096
      %v3098 = vpop.f32.mrf.mxu0
      %3099 = vmatprep.mubr.bf16.mxu0 0
      %3100 = vmatmul.mubr.bf16.gmra.mxu0 %v2889
      %v3101 = vpop.f32.mrf.mxu0
      %v3102 = vadd.f32 0.0, %v3101
      %v3103 = vpop.f32.mrf.mxu0
      %v3104 = vpop.f32.mrf.mxu0
      %v3105 = vadd.f32 0.0, %v3104
      %v3106 = vpop.f32.mrf.mxu0
      %3107 = vmatprep.mubr.bf16.mxu0 0
      %3108 = vmatmul.mubr.bf16.gmra.mxu0 %v2892
      %v3109 = vpop.f32.mrf.mxu0
      %v3110 = vadd.f32 0.0, %v3109
      %v3111 = vpop.f32.mrf.mxu0
      %v3112 = vpop.f32.mrf.mxu0
      %v3113 = vadd.f32 0.0, %v3112
      %v3114 = vpop.f32.mrf.mxu0
      %3115 = vmatprep.mubr.bf16.mxu0 0
      %3116 = vmatmul.mubr.bf16.gmra.mxu0 %v2895
      %v3117 = vpop.f32.mrf.mxu0
      %v3118 = vadd.f32 0.0, %v3117
      %v3119 = vpop.f32.mrf.mxu0
      %v3120 = vpop.f32.mrf.mxu0
      %v3121 = vadd.f32 0.0, %v3120
      %v3122 = vpop.f32.mrf.mxu0
      %3123 = vmatprep.mubr.bf16.mxu0 0
      %3124 = vmatmul.mubr.bf16.gmra.mxu0 %v2898
      %v3125 = vpop.f32.mrf.mxu0
      %v3126 = vadd.f32 0.0, %v3125
      %v3127 = vpop.f32.mrf.mxu0
      %v3128 = vpop.f32.mrf.mxu0
      %v3129 = vadd.f32 0.0, %v3128
      %v3130 = vpop.f32.mrf.mxu0
      %3131 = vmatprep.mubr.bf16.mxu0 0
      %3132 = vmatmul.mubr.bf16.gmra.mxu0 %v2901
      %v3133 = vpop.f32.mrf.mxu0
      %v3134 = vadd.f32 0.0, %v3133
      %v3135 = vpop.f32.mrf.mxu0
      %v3136 = vpop.f32.mrf.mxu0
      %v3137 = vadd.f32 0.0, %v3136
      %v3138 = vpop.f32.mrf.mxu0
      %3139 = vmatprep.mubr.bf16.mxu0 0
      %3140 = vmatmul.mubr.bf16.gmra.mxu0 %v2904
      %v3141 = vpop.f32.mrf.mxu0
      %v3142 = vadd.f32 0.0, %v3141
      %v3143 = vpop.f32.mrf.mxu0
      %v3144 = vpop.f32.mrf.mxu0
      %v3145 = vadd.f32 0.0, %v3144
      %v3146 = vpop.f32.mrf.mxu0
      %3147 = vmatprep.mubr.bf16.mxu0 0
      %3148 = vmatmul.mubr.bf16.gmra.mxu0 %v2907
      %v3149 = vpop.f32.mrf.mxu0
      %v3150 = vadd.f32 0.0, %v3149
      %v3151 = vpop.f32.mrf.mxu0
      %v3152 = vpop.f32.mrf.mxu0
      %v3153 = vadd.f32 0.0, %v3152
      %v3154 = vpop.f32.mrf.mxu0
      %3155 = vmatprep.mubr.bf16.mxu0 0
      %3156 = vmatmul.mubr.bf16.gmra.mxu0 %v2910
      %v3157 = vpop.f32.mrf.mxu0
      %v3158 = vadd.f32 0.0, %v3157
      %v3159 = vpop.f32.mrf.mxu0
      %v3160 = vpop.f32.mrf.mxu0
      %v3161 = vadd.f32 0.0, %v3160
      %v3162 = vpop.f32.mrf.mxu0
      %3163 = vmatprep.mubr.bf16.mxu0 0
      %3164 = vmatmul.mubr.bf16.gmra.mxu0 %v2913
      %v3165 = vpop.f32.mrf.mxu0
      %v3166 = vadd.f32 0.0, %v3165
      %v3167 = vpop.f32.mrf.mxu0
      %v3168 = vpop.f32.mrf.mxu0
      %v3169 = vpop.f32.mrf.mxu0
      %3170 = vdwg.mxu0
      %v3171 = vadd.f32 %v1967, %v2950
      %v3172 = vadd.f32 %v1970, %v2953
      %v3173 = vadd.f32 %v1975, %v2958
      %v3174 = vadd.f32 %v1978, %v2961
      %v3175 = vadd.f32 %v1983, %v2966
      %v3176 = vadd.f32 %v1986, %v2969
      %v3177 = vadd.f32 %v1991, %v2974
      %v3178 = vadd.f32 %v1994, %v2977
      %v3179 = vadd.f32 %v1999, %v2982
      %v3180 = vadd.f32 %v2002, %v2985
      %v3181 = vadd.f32 %v2007, %v2990
      %v3182 = vadd.f32 %v2010, %v2993
      %v3183 = vadd.f32 %v2015, %v2998
      %v3184 = vadd.f32 %v2018, %v3001
      %v3185 = vadd.f32 %v2023, %v3006
      %v3186 = vadd.f32 %v2026, %v3009
      %v3187 = vadd.f32 %v2031, %v3014
      %v3188 = vadd.f32 %v2034, %v3017
      %v3189 = vadd.f32 %v2039, %v3022
      %v3190 = vadd.f32 %v2042, %v3025
      %v3191 = vadd.f32 %v2047, %v3030
      %v3192 = vadd.f32 %v2050, %v3033
      %v3193 = vadd.f32 %v2055, %v3038
      %v3194 = vadd.f32 %v2058, %v3041
      %v3195 = vadd.f32 %v2063, %v3046
      %v3196 = vadd.f32 %v2066, %v3049
      %v3197 = vadd.f32 %v2071, %v3054
      %v3198 = vadd.f32 %v2074, %v3057
      %v3199 = vadd.f32 %v2079, %v3062
      %v3200 = vadd.f32 %v2082, %v3065
      %v3201 = vadd.f32 %v2087, %v3070
      %v3202 = vadd.f32 %v2090, %v3073
      %v3203 = vadd.f32 %v2095, %v3078
      %v3204 = vadd.f32 %v2098, %v3081
      %v3205 = vadd.f32 %v2103, %v3086
      %v3206 = vadd.f32 %v2106, %v3089
      %v3207 = vadd.f32 %v2111, %v3094
      %v3208 = vadd.f32 %v2114, %v3097
      %v3209 = vadd.f32 %v2119, %v3102
      %v3210 = vadd.f32 %v2122, %v3105
      %v3211 = vadd.f32 %v2127, %v3110
      %v3212 = vadd.f32 %v2130, %v3113
      %v3213 = vadd.f32 %v2135, %v3118
      %v3214 = vadd.f32 %v2138, %v3121
      %v3215 = vadd.f32 %v2143, %v3126
      %v3216 = vadd.f32 %v2146, %v3129
      %v3217 = vadd.f32 %v2151, %v3134
      %v3218 = vadd.f32 %v2154, %v3137
      %v3219 = vadd.f32 %v2159, %v3142
      %v3220 = vadd.f32 %v2162, %v3145
      %v3221 = vadd.f32 %v2167, %v3150
      %v3222 = vadd.f32 %v2170, %v3153
      %v3223 = vadd.f32 %v2175, %v3158
      %v3224 = vadd.f32 %v2178, %v3161
      %v3225 = vadd.f32 %v2183, %v3166
      %v3226 = vld [vmem:[%s3] sm:$0x1]
      %v3228 = vlaneseq
      %v3229 = vshrl.u32 %v3228, 7
      %v3230 = vsub.s32 0, %v3229
      %v3231 = vrot.slane %v3226, %v3230
      %v3233 = vadd.f32 %v3171, %v3231
      %v3234 = vadd.f32 %v3172, %v3231
      %v3235 = vadd.f32 %v3173, %v3231
      %v3236 = vadd.f32 %v3174, %v3231
      %v3237 = vadd.f32 %v3175, %v3231
      %v3238 = vadd.f32 %v3176, %v3231
      %v3239 = vadd.f32 %v3177, %v3231
      %v3240 = vadd.f32 %v3178, %v3231
      %v3241 = vadd.f32 %v3179, %v3231
      %v3242 = vadd.f32 %v3180, %v3231
      %v3243 = vadd.f32 %v3181, %v3231
      %v3244 = vadd.f32 %v3182, %v3231
      %v3245 = vadd.f32 %v3183, %v3231
      %v3246 = vadd.f32 %v3184, %v3231
      %v3247 = vadd.f32 %v3185, %v3231
      %v3248 = vadd.f32 %v3186, %v3231
      %v3249 = vadd.f32 %v3187, %v3231
      %v3250 = vadd.f32 %v3188, %v3231
      %v3251 = vadd.f32 %v3189, %v3231
      %v3252 = vadd.f32 %v3190, %v3231
      %v3253 = vadd.f32 %v3191, %v3231
      %v3254 = vadd.f32 %v3192, %v3231
      %v3255 = vadd.f32 %v3193, %v3231
      %v3256 = vadd.f32 %v3194, %v3231
      %v3257 = vadd.f32 %v3195, %v3231
      %v3258 = vadd.f32 %v3196, %v3231
      %v3259 = vadd.f32 %v3197, %v3231
      %v3260 = vadd.f32 %v3198, %v3231
      %v3261 = vadd.f32 %v3199, %v3231
      %v3262 = vadd.f32 %v3200, %v3231
      %v3263 = vadd.f32 %v3201, %v3231
      %v3264 = vadd.f32 %v3202, %v3231
      %v3265 = vadd.f32 %v3203, %v3231
      %v3266 = vadd.f32 %v3204, %v3231
      %v3267 = vadd.f32 %v3205, %v3231
      %v3268 = vadd.f32 %v3206, %v3231
      %v3269 = vadd.f32 %v3207, %v3231
      %v3270 = vadd.f32 %v3208, %v3231
      %v3271 = vadd.f32 %v3209, %v3231
      %v3272 = vadd.f32 %v3210, %v3231
      %v3273 = vadd.f32 %v3211, %v3231
      %v3274 = vadd.f32 %v3212, %v3231
      %v3275 = vadd.f32 %v3213, %v3231
      %v3276 = vadd.f32 %v3214, %v3231
      %v3277 = vadd.f32 %v3215, %v3231
      %v3278 = vadd.f32 %v3216, %v3231
      %v3279 = vadd.f32 %v3217, %v3231
      %v3280 = vadd.f32 %v3218, %v3231
      %v3281 = vadd.f32 %v3219, %v3231
      %v3282 = vadd.f32 %v3220, %v3231
      %v3283 = vadd.f32 %v3221, %v3231
      %v3284 = vadd.f32 %v3222, %v3231
      %v3285 = vadd.f32 %v3223, %v3231
      %v3286 = vadd.f32 %v3224, %v3231
      %v3287 = vadd.f32 %v3225, %v3231
      %v3288 = vmax.f32 %v3233, 0.0
      %v3289 = vmax.f32 %v3234, 0.0
      %v3290 = vmax.f32 %v3235, 0.0
      %v3291 = vmax.f32 %v3236, 0.0
      %v3292 = vmax.f32 %v3237, 0.0
      %v3293 = vmax.f32 %v3238, 0.0
      %v3294 = vmax.f32 %v3239, 0.0
      %v3295 = vmax.f32 %v3240, 0.0
      %v3296 = vmax.f32 %v3241, 0.0
      %v3297 = vmax.f32 %v3242, 0.0
      %v3298 = vmax.f32 %v3243, 0.0
      %v3299 = vmax.f32 %v3244, 0.0
      %v3300 = vmax.f32 %v3245, 0.0
      %v3301 = vmax.f32 %v3246, 0.0
      %v3302 = vmax.f32 %v3247, 0.0
      %v3303 = vmax.f32 %v3248, 0.0
      %v3304 = vmax.f32 %v3249, 0.0
      %v3305 = vmax.f32 %v3250, 0.0
      %v3306 = vmax.f32 %v3251, 0.0
      %v3307 = vmax.f32 %v3252, 0.0
      %v3308 = vmax.f32 %v3253, 0.0
      %v3309 = vmax.f32 %v3254, 0.0
      %v3310 = vmax.f32 %v3255, 0.0
      %v3311 = vmax.f32 %v3256, 0.0
      %v3312 = vmax.f32 %v3257, 0.0
      %v3313 = vmax.f32 %v3258, 0.0
      %v3314 = vmax.f32 %v3259, 0.0
      %v3315 = vmax.f32 %v3260, 0.0
      %v3316 = vmax.f32 %v3261, 0.0
      %v3317 = vmax.f32 %v3262, 0.0
      %v3318 = vmax.f32 %v3263, 0.0
      %v3319 = vmax.f32 %v3264, 0.0
      %v3320 = vmax.f32 %v3265, 0.0
      %v3321 = vmax.f32 %v3266, 0.0
      %v3322 = vmax.f32 %v3267, 0.0
      %v3323 = vmax.f32 %v3268, 0.0
      %v3324 = vmax.f32 %v3269, 0.0
      %v3325 = vmax.f32 %v3270, 0.0
      %v3326 = vmax.f32 %v3271, 0.0
      %v3327 = vmax.f32 %v3272, 0.0
      %v3328 = vmax.f32 %v3273, 0.0
      %v3329 = vmax.f32 %v3274, 0.0
      %v3330 = vmax.f32 %v3275, 0.0
      %v3331 = vmax.f32 %v3276, 0.0
      %v3332 = vmax.f32 %v3277, 0.0
      %v3333 = vmax.f32 %v3278, 0.0
      %v3334 = vmax.f32 %v3279, 0.0
      %v3335 = vmax.f32 %v3280, 0.0
      %v3336 = vmax.f32 %v3281, 0.0
      %v3337 = vmax.f32 %v3282, 0.0
      %v3338 = vmax.f32 %v3283, 0.0
      %v3339 = vmax.f32 %v3284, 0.0
      %v3340 = vmax.f32 %v3285, 0.0
      %v3341 = vmax.f32 %v3286, 0.0
      %v3342 = vmax.f32 %v3287, 0.0
      %v3343 = vmin.f32 %v3288, 6.0
      %v3344 = vmin.f32 %v3289, 6.0
      %v3345 = vmin.f32 %v3290, 6.0
      %v3346 = vmin.f32 %v3291, 6.0
      %v3347 = vmin.f32 %v3292, 6.0
      %v3348 = vmin.f32 %v3293, 6.0
      %v3349 = vmin.f32 %v3294, 6.0
      %v3350 = vmin.f32 %v3295, 6.0
      %v3351 = vmin.f32 %v3296, 6.0
      %v3352 = vmin.f32 %v3297, 6.0
      %v3353 = vmin.f32 %v3298, 6.0
      %v3354 = vmin.f32 %v3299, 6.0
      %v3355 = vmin.f32 %v3300, 6.0
      %v3356 = vmin.f32 %v3301, 6.0
      %v3357 = vmin.f32 %v3302, 6.0
      %v3358 = vmin.f32 %v3303, 6.0
      %v3359 = vmin.f32 %v3304, 6.0
      %v3360 = vmin.f32 %v3305, 6.0
      %v3361 = vmin.f32 %v3306, 6.0
      %v3362 = vmin.f32 %v3307, 6.0
      %v3363 = vmin.f32 %v3308, 6.0
      %v3364 = vmin.f32 %v3309, 6.0
      %v3365 = vmin.f32 %v3310, 6.0
      %v3366 = vmin.f32 %v3311, 6.0
      %v3367 = vmin.f32 %v3312, 6.0
      %v3368 = vmin.f32 %v3313, 6.0
      %v3369 = vmin.f32 %v3314, 6.0
      %v3370 = vmin.f32 %v3315, 6.0
      %v3371 = vmin.f32 %v3316, 6.0
      %v3372 = vmin.f32 %v3317, 6.0
      %v3373 = vmin.f32 %v3318, 6.0
      %v3374 = vmin.f32 %v3319, 6.0
      %v3375 = vmin.f32 %v3320, 6.0
      %v3376 = vmin.f32 %v3321, 6.0
      %v3377 = vmin.f32 %v3322, 6.0
      %v3378 = vmin.f32 %v3323, 6.0
      %v3379 = vmin.f32 %v3324, 6.0
      %v3380 = vmin.f32 %v3325, 6.0
      %v3381 = vmin.f32 %v3326, 6.0
      %v3382 = vmin.f32 %v3327, 6.0
      %v3383 = vmin.f32 %v3328, 6.0
      %v3384 = vmin.f32 %v3329, 6.0
      %v3385 = vmin.f32 %v3330, 6.0
      %v3386 = vmin.f32 %v3331, 6.0
      %v3387 = vmin.f32 %v3332, 6.0
      %v3388 = vmin.f32 %v3333, 6.0
      %v3389 = vmin.f32 %v3334, 6.0
      %v3390 = vmin.f32 %v3335, 6.0
      %v3391 = vmin.f32 %v3336, 6.0
      %v3392 = vmin.f32 %v3337, 6.0
      %v3393 = vmin.f32 %v3338, 6.0
      %v3394 = vmin.f32 %v3339, 6.0
      %v3395 = vmin.f32 %v3340, 6.0
      %v3396 = vmin.f32 %v3341, 6.0
      %v3397 = vmin.f32 %v3342, 6.0
      %3453 = vrot.lane.b32.xlu0 %v3343, 96
      %v3454 = vpop.permute.xlu0 %3453
      %3455 = vrot.lane.b32.xlu0 %v3344, 96
      %v3456 = vpop.permute.xlu0 %3455
      %3457 = vrot.lane.b32.xlu0 %v3345, 96
      %v3458 = vpop.permute.xlu0 %3457
      %3459 = vrot.lane.b32.xlu0 %v3346, 96
      %v3460 = vpop.permute.xlu0 %3459
      %3461 = vrot.lane.b32.xlu0 %v3347, 96
      %v3462 = vpop.permute.xlu0 %3461
      %3463 = vrot.lane.b32.xlu0 %v3348, 96
      %v3464 = vpop.permute.xlu0 %3463
      %3465 = vrot.lane.b32.xlu0 %v3349, 96
      %v3466 = vpop.permute.xlu0 %3465
      %3467 = vrot.lane.b32.xlu0 %v3350, 96
      %v3468 = vpop.permute.xlu0 %3467
      %3469 = vrot.lane.b32.xlu0 %v3351, 96
      %v3470 = vpop.permute.xlu0 %3469
      %3471 = vrot.lane.b32.xlu0 %v3352, 96
      %v3472 = vpop.permute.xlu0 %3471
      %3473 = vrot.lane.b32.xlu0 %v3353, 96
      %v3474 = vpop.permute.xlu0 %3473
      %3475 = vrot.lane.b32.xlu0 %v3354, 96
      %v3476 = vpop.permute.xlu0 %3475
      %3477 = vrot.lane.b32.xlu0 %v3355, 96
      %v3478 = vpop.permute.xlu0 %3477
      %3479 = vrot.lane.b32.xlu0 %v3356, 96
      %v3480 = vpop.permute.xlu0 %3479
      %3481 = vrot.lane.b32.xlu0 %v3357, 96
      %v3482 = vpop.permute.xlu0 %3481
      %3483 = vrot.lane.b32.xlu0 %v3358, 96
      %v3484 = vpop.permute.xlu0 %3483
      %3485 = vrot.lane.b32.xlu0 %v3359, 96
      %v3486 = vpop.permute.xlu0 %3485
      %3487 = vrot.lane.b32.xlu0 %v3360, 96
      %v3488 = vpop.permute.xlu0 %3487
      %3489 = vrot.lane.b32.xlu0 %v3361, 96
      %v3490 = vpop.permute.xlu0 %3489
      %3491 = vrot.lane.b32.xlu0 %v3362, 96
      %v3492 = vpop.permute.xlu0 %3491
      %3493 = vrot.lane.b32.xlu0 %v3363, 96
      %v3494 = vpop.permute.xlu0 %3493
      %3495 = vrot.lane.b32.xlu0 %v3364, 96
      %v3496 = vpop.permute.xlu0 %3495
      %3497 = vrot.lane.b32.xlu0 %v3365, 96
      %v3498 = vpop.permute.xlu0 %3497
      %3499 = vrot.lane.b32.xlu0 %v3366, 96
      %v3500 = vpop.permute.xlu0 %3499
      %3501 = vrot.lane.b32.xlu0 %v3367, 96
      %v3502 = vpop.permute.xlu0 %3501
      %3503 = vrot.lane.b32.xlu0 %v3368, 96
      %v3504 = vpop.permute.xlu0 %3503
      %3505 = vrot.lane.b32.xlu0 %v3369, 96
      %v3506 = vpop.permute.xlu0 %3505
      %3507 = vrot.lane.b32.xlu0 %v3370, 96
      %v3508 = vpop.permute.xlu0 %3507
      %3509 = vrot.lane.b32.xlu0 %v3371, 96
      %v3510 = vpop.permute.xlu0 %3509
      %3511 = vrot.lane.b32.xlu0 %v3372, 96
      %v3512 = vpop.permute.xlu0 %3511
      %3513 = vrot.lane.b32.xlu0 %v3373, 96
      %v3514 = vpop.permute.xlu0 %3513
      %3515 = vrot.lane.b32.xlu0 %v3374, 96
      %v3516 = vpop.permute.xlu0 %3515
      %3517 = vrot.lane.b32.xlu0 %v3375, 96
      %v3518 = vpop.permute.xlu0 %3517
      %3519 = vrot.lane.b32.xlu0 %v3376, 96
      %v3520 = vpop.permute.xlu0 %3519
      %3521 = vrot.lane.b32.xlu0 %v3377, 96
      %v3522 = vpop.permute.xlu0 %3521
      %3523 = vrot.lane.b32.xlu0 %v3378, 96
      %v3524 = vpop.permute.xlu0 %3523
      %3525 = vrot.lane.b32.xlu0 %v3379, 96
      %v3526 = vpop.permute.xlu0 %3525
      %3527 = vrot.lane.b32.xlu0 %v3380, 96
      %v3528 = vpop.permute.xlu0 %3527
      %3529 = vrot.lane.b32.xlu0 %v3381, 96
      %v3530 = vpop.permute.xlu0 %3529
      %3531 = vrot.lane.b32.xlu0 %v3382, 96
      %v3532 = vpop.permute.xlu0 %3531
      %3533 = vrot.lane.b32.xlu0 %v3383, 96
      %v3534 = vpop.permute.xlu0 %3533
      %3535 = vrot.lane.b32.xlu0 %v3384, 96
      %v3536 = vpop.permute.xlu0 %3535
      %3537 = vrot.lane.b32.xlu0 %v3385, 96
      %v3538 = vpop.permute.xlu0 %3537
      %3539 = vrot.lane.b32.xlu0 %v3386, 96
      %v3540 = vpop.permute.xlu0 %3539
      %3541 = vrot.lane.b32.xlu0 %v3387, 96
      %v3542 = vpop.permute.xlu0 %3541
      %3543 = vrot.lane.b32.xlu0 %v3388, 96
      %v3544 = vpop.permute.xlu0 %3543
      %3545 = vrot.lane.b32.xlu0 %v3389, 96
      %v3546 = vpop.permute.xlu0 %3545
      %3547 = vrot.lane.b32.xlu0 %v3390, 96
      %v3548 = vpop.permute.xlu0 %3547
      %3549 = vrot.lane.b32.xlu0 %v3391, 96
      %v3550 = vpop.permute.xlu0 %3549
      %3551 = vrot.lane.b32.xlu0 %v3392, 96
      %v3552 = vpop.permute.xlu0 %3551
      %3553 = vrot.lane.b32.xlu0 %v3393, 96
      %v3554 = vpop.permute.xlu0 %3553
      %3555 = vrot.lane.b32.xlu0 %v3394, 96
      %v3556 = vpop.permute.xlu0 %3555
      %3557 = vrot.lane.b32.xlu0 %v3395, 96
      %v3558 = vpop.permute.xlu0 %3557
      %3559 = vrot.lane.b32.xlu0 %v3396, 96
      %v3560 = vpop.permute.xlu0 %3559
      %3561 = vrot.lane.b32.xlu0 %v3397, 96
      %v3562 = vpop.permute.xlu0 %3561
      %v3618 = vadd.f32 %v3343, %v3454
      %v3619 = vadd.f32 %v3344, %v3456
      %v3620 = vadd.f32 %v3345, %v3458
      %v3621 = vadd.f32 %v3346, %v3460
      %v3622 = vadd.f32 %v3347, %v3462
      %v3623 = vadd.f32 %v3348, %v3464
      %v3624 = vadd.f32 %v3349, %v3466
      %v3625 = vadd.f32 %v3350, %v3468
      %v3626 = vadd.f32 %v3351, %v3470
      %v3627 = vadd.f32 %v3352, %v3472
      %v3628 = vadd.f32 %v3353, %v3474
      %v3629 = vadd.f32 %v3354, %v3476
      %v3630 = vadd.f32 %v3355, %v3478
      %v3631 = vadd.f32 %v3356, %v3480
      %v3632 = vadd.f32 %v3357, %v3482
      %v3633 = vadd.f32 %v3358, %v3484
      %v3634 = vadd.f32 %v3359, %v3486
      %v3635 = vadd.f32 %v3360, %v3488
      %v3636 = vadd.f32 %v3361, %v3490
      %v3637 = vadd.f32 %v3362, %v3492
      %v3638 = vadd.f32 %v3363, %v3494
      %v3639 = vadd.f32 %v3364, %v3496
      %v3640 = vadd.f32 %v3365, %v3498
      %v3641 = vadd.f32 %v3366, %v3500
      %v3642 = vadd.f32 %v3367, %v3502
      %v3643 = vadd.f32 %v3368, %v3504
      %v3644 = vadd.f32 %v3369, %v3506
      %v3645 = vadd.f32 %v3370, %v3508
      %v3646 = vadd.f32 %v3371, %v3510
      %v3647 = vadd.f32 %v3372, %v3512
      %v3648 = vadd.f32 %v3373, %v3514
      %v3649 = vadd.f32 %v3374, %v3516
      %v3650 = vadd.f32 %v3375, %v3518
      %v3651 = vadd.f32 %v3376, %v3520
      %v3652 = vadd.f32 %v3377, %v3522
      %v3653 = vadd.f32 %v3378, %v3524
      %v3654 = vadd.f32 %v3379, %v3526
      %v3655 = vadd.f32 %v3380, %v3528
      %v3656 = vadd.f32 %v3381, %v3530
      %v3657 = vadd.f32 %v3382, %v3532
      %v3658 = vadd.f32 %v3383, %v3534
      %v3659 = vadd.f32 %v3384, %v3536
      %v3660 = vadd.f32 %v3385, %v3538
      %v3661 = vadd.f32 %v3386, %v3540
      %v3662 = vadd.f32 %v3387, %v3542
      %v3663 = vadd.f32 %v3388, %v3544
      %v3664 = vadd.f32 %v3389, %v3546
      %v3665 = vadd.f32 %v3390, %v3548
      %v3666 = vadd.f32 %v3391, %v3550
      %v3667 = vadd.f32 %v3392, %v3552
      %v3668 = vadd.f32 %v3393, %v3554
      %v3669 = vadd.f32 %v3394, %v3556
      %v3670 = vadd.f32 %v3395, %v3558
      %v3671 = vadd.f32 %v3396, %v3560
      %v3672 = vadd.f32 %v3397, %v3562
      %3673 = vrot.lane.b32.xlu0 %v3343, 64
      %v3674 = vpop.permute.xlu0 %3673
      %3675 = vrot.lane.b32.xlu0 %v3344, 64
      %v3676 = vpop.permute.xlu0 %3675
      %3677 = vrot.lane.b32.xlu0 %v3345, 64
      %v3678 = vpop.permute.xlu0 %3677
      %3679 = vrot.lane.b32.xlu0 %v3346, 64
      %v3680 = vpop.permute.xlu0 %3679
      %3681 = vrot.lane.b32.xlu0 %v3347, 64
      %v3682 = vpop.permute.xlu0 %3681
      %3683 = vrot.lane.b32.xlu0 %v3348, 64
      %v3684 = vpop.permute.xlu0 %3683
      %3685 = vrot.lane.b32.xlu0 %v3349, 64
      %v3686 = vpop.permute.xlu0 %3685
      %3687 = vrot.lane.b32.xlu0 %v3350, 64
      %v3688 = vpop.permute.xlu0 %3687
      %3689 = vrot.lane.b32.xlu0 %v3351, 64
      %v3690 = vpop.permute.xlu0 %3689
      %3691 = vrot.lane.b32.xlu0 %v3352, 64
      %v3692 = vpop.permute.xlu0 %3691
      %3693 = vrot.lane.b32.xlu0 %v3353, 64
      %v3694 = vpop.permute.xlu0 %3693
      %3695 = vrot.lane.b32.xlu0 %v3354, 64
      %v3696 = vpop.permute.xlu0 %3695
      %3697 = vrot.lane.b32.xlu0 %v3355, 64
      %v3698 = vpop.permute.xlu0 %3697
      %3699 = vrot.lane.b32.xlu0 %v3356, 64
      %v3700 = vpop.permute.xlu0 %3699
      %3701 = vrot.lane.b32.xlu0 %v3357, 64
      %v3702 = vpop.permute.xlu0 %3701
      %3703 = vrot.lane.b32.xlu0 %v3358, 64
      %v3704 = vpop.permute.xlu0 %3703
      %3705 = vrot.lane.b32.xlu0 %v3359, 64
      %v3706 = vpop.permute.xlu0 %3705
      %3707 = vrot.lane.b32.xlu0 %v3360, 64
      %v3708 = vpop.permute.xlu0 %3707
      %3709 = vrot.lane.b32.xlu0 %v3361, 64
      %v3710 = vpop.permute.xlu0 %3709
      %3711 = vrot.lane.b32.xlu0 %v3362, 64
      %v3712 = vpop.permute.xlu0 %3711
      %3713 = vrot.lane.b32.xlu0 %v3363, 64
      %v3714 = vpop.permute.xlu0 %3713
      %3715 = vrot.lane.b32.xlu0 %v3364, 64
      %v3716 = vpop.permute.xlu0 %3715
      %3717 = vrot.lane.b32.xlu0 %v3365, 64
      %v3718 = vpop.permute.xlu0 %3717
      %3719 = vrot.lane.b32.xlu0 %v3366, 64
      %v3720 = vpop.permute.xlu0 %3719
      %3721 = vrot.lane.b32.xlu0 %v3367, 64
      %v3722 = vpop.permute.xlu0 %3721
      %3723 = vrot.lane.b32.xlu0 %v3368, 64
      %v3724 = vpop.permute.xlu0 %3723
      %3725 = vrot.lane.b32.xlu0 %v3369, 64
      %v3726 = vpop.permute.xlu0 %3725
      %3727 = vrot.lane.b32.xlu0 %v3370, 64
      %v3728 = vpop.permute.xlu0 %3727
      %3729 = vrot.lane.b32.xlu0 %v3371, 64
      %v3730 = vpop.permute.xlu0 %3729
      %3731 = vrot.lane.b32.xlu0 %v3372, 64
      %v3732 = vpop.permute.xlu0 %3731
      %3733 = vrot.lane.b32.xlu0 %v3373, 64
      %v3734 = vpop.permute.xlu0 %3733
      %3735 = vrot.lane.b32.xlu0 %v3374, 64
      %v3736 = vpop.permute.xlu0 %3735
      %3737 = vrot.lane.b32.xlu0 %v3375, 64
      %v3738 = vpop.permute.xlu0 %3737
      %3739 = vrot.lane.b32.xlu0 %v3376, 64
      %v3740 = vpop.permute.xlu0 %3739
      %3741 = vrot.lane.b32.xlu0 %v3377, 64
      %v3742 = vpop.permute.xlu0 %3741
      %3743 = vrot.lane.b32.xlu0 %v3378, 64
      %v3744 = vpop.permute.xlu0 %3743
      %3745 = vrot.lane.b32.xlu0 %v3379, 64
      %v3746 = vpop.permute.xlu0 %3745
      %3747 = vrot.lane.b32.xlu0 %v3380, 64
      %v3748 = vpop.permute.xlu0 %3747
      %3749 = vrot.lane.b32.xlu0 %v3381, 64
      %v3750 = vpop.permute.xlu0 %3749
      %3751 = vrot.lane.b32.xlu0 %v3382, 64
      %v3752 = vpop.permute.xlu0 %3751
      %3753 = vrot.lane.b32.xlu0 %v3383, 64
      %v3754 = vpop.permute.xlu0 %3753
      %3755 = vrot.lane.b32.xlu0 %v3384, 64
      %v3756 = vpop.permute.xlu0 %3755
      %3757 = vrot.lane.b32.xlu0 %v3385, 64
      %v3758 = vpop.permute.xlu0 %3757
      %3759 = vrot.lane.b32.xlu0 %v3386, 64
      %v3760 = vpop.permute.xlu0 %3759
      %3761 = vrot.lane.b32.xlu0 %v3387, 64
      %v3762 = vpop.permute.xlu0 %3761
      %3763 = vrot.lane.b32.xlu0 %v3388, 64
      %v3764 = vpop.permute.xlu0 %3763
      %3765 = vrot.lane.b32.xlu0 %v3389, 64
      %v3766 = vpop.permute.xlu0 %3765
      %3767 = vrot.lane.b32.xlu0 %v3390, 64
      %v3768 = vpop.permute.xlu0 %3767
      %3769 = vrot.lane.b32.xlu0 %v3391, 64
      %v3770 = vpop.permute.xlu0 %3769
      %3771 = vrot.lane.b32.xlu0 %v3392, 64
      %v3772 = vpop.permute.xlu0 %3771
      %3773 = vrot.lane.b32.xlu0 %v3393, 64
      %v3774 = vpop.permute.xlu0 %3773
      %3775 = vrot.lane.b32.xlu0 %v3394, 64
      %v3776 = vpop.permute.xlu0 %3775
      %3777 = vrot.lane.b32.xlu0 %v3395, 64
      %v3778 = vpop.permute.xlu0 %3777
      %3779 = vrot.lane.b32.xlu0 %v3396, 64
      %v3780 = vpop.permute.xlu0 %3779
      %3781 = vrot.lane.b32.xlu0 %v3397, 64
      %v3782 = vpop.permute.xlu0 %3781
      %v3838 = vadd.f32 %v3618, %v3674
      %v3839 = vadd.f32 %v3619, %v3676
      %v3840 = vadd.f32 %v3620, %v3678
      %v3841 = vadd.f32 %v3621, %v3680
      %v3842 = vadd.f32 %v3622, %v3682
      %v3843 = vadd.f32 %v3623, %v3684
      %v3844 = vadd.f32 %v3624, %v3686
      %v3845 = vadd.f32 %v3625, %v3688
      %v3846 = vadd.f32 %v3626, %v3690
      %v3847 = vadd.f32 %v3627, %v3692
      %v3848 = vadd.f32 %v3628, %v3694
      %v3849 = vadd.f32 %v3629, %v3696
      %v3850 = vadd.f32 %v3630, %v3698
      %v3851 = vadd.f32 %v3631, %v3700
      %v3852 = vadd.f32 %v3632, %v3702
      %v3853 = vadd.f32 %v3633, %v3704
      %v3854 = vadd.f32 %v3634, %v3706
      %v3855 = vadd.f32 %v3635, %v3708
      %v3856 = vadd.f32 %v3636, %v3710
      %v3857 = vadd.f32 %v3637, %v3712
      %v3858 = vadd.f32 %v3638, %v3714
      %v3859 = vadd.f32 %v3639, %v3716
      %v3860 = vadd.f32 %v3640, %v3718
      %v3861 = vadd.f32 %v3641, %v3720
      %v3862 = vadd.f32 %v3642, %v3722
      %v3863 = vadd.f32 %v3643, %v3724
      %v3864 = vadd.f32 %v3644, %v3726
      %v3865 = vadd.f32 %v3645, %v3728
      %v3866 = vadd.f32 %v3646, %v3730
      %v3867 = vadd.f32 %v3647, %v3732
      %v3868 = vadd.f32 %v3648, %v3734
      %v3869 = vadd.f32 %v3649, %v3736
      %v3870 = vadd.f32 %v3650, %v3738
      %v3871 = vadd.f32 %v3651, %v3740
      %v3872 = vadd.f32 %v3652, %v3742
      %v3873 = vadd.f32 %v3653, %v3744
      %v3874 = vadd.f32 %v3654, %v3746
      %v3875 = vadd.f32 %v3655, %v3748
      %v3876 = vadd.f32 %v3656, %v3750
      %v3877 = vadd.f32 %v3657, %v3752
      %v3878 = vadd.f32 %v3658, %v3754
      %v3879 = vadd.f32 %v3659, %v3756
      %v3880 = vadd.f32 %v3660, %v3758
      %v3881 = vadd.f32 %v3661, %v3760
      %v3882 = vadd.f32 %v3662, %v3762
      %v3883 = vadd.f32 %v3663, %v3764
      %v3884 = vadd.f32 %v3664, %v3766
      %v3885 = vadd.f32 %v3665, %v3768
      %v3886 = vadd.f32 %v3666, %v3770
      %v3887 = vadd.f32 %v3667, %v3772
      %v3888 = vadd.f32 %v3668, %v3774
      %v3889 = vadd.f32 %v3669, %v3776
      %v3890 = vadd.f32 %v3670, %v3778
      %v3891 = vadd.f32 %v3671, %v3780
      %v3892 = vadd.f32 %v3672, %v3782
      %3894 = vset.pattern.permute.xlu0 0
      %3895 = vperm.xlu0 %3894, %v422
      %v3896 = vpop.permute.xlu0 %3895
      %3898 = vset.pattern.permute.xlu0 0
      %3899 = vperm.xlu0 %3898, %v423
      %v3900 = vpop.permute.xlu0 %3899
      %3902 = vset.pattern.permute.xlu0 0
      %3903 = vperm.xlu0 %3902, %v424
      %v3904 = vpop.permute.xlu0 %3903
      %3906 = vset.pattern.permute.xlu0 0
      %3907 = vperm.xlu0 %3906, %v425
      %v3908 = vpop.permute.xlu0 %3907
      %3910 = vset.pattern.permute.xlu0 0
      %3911 = vperm.xlu0 %3910, %v426
      %v3912 = vpop.permute.xlu0 %3911
      %3914 = vset.pattern.permute.xlu0 0
      %3915 = vperm.xlu0 %3914, %v427
      %v3916 = vpop.permute.xlu0 %3915
      %3918 = vset.pattern.permute.xlu0 0
      %3919 = vperm.xlu0 %3918, %v428
      %v3920 = vpop.permute.xlu0 %3919
      %3922 = vset.pattern.permute.xlu0 0
      %3923 = vperm.xlu0 %3922, %v429
      %v3924 = vpop.permute.xlu0 %3923
      %3926 = vset.pattern.permute.xlu0 0
      %3927 = vperm.xlu0 %3926, %v430
      %v3928 = vpop.permute.xlu0 %3927
      %3930 = vset.pattern.permute.xlu0 0
      %3931 = vperm.xlu0 %3930, %v431
      %v3932 = vpop.permute.xlu0 %3931
      %3934 = vset.pattern.permute.xlu0 0
      %3935 = vperm.xlu0 %3934, %v432
      %v3936 = vpop.permute.xlu0 %3935
      %3938 = vset.pattern.permute.xlu0 0
      %3939 = vperm.xlu0 %3938, %v433
      %v3940 = vpop.permute.xlu0 %3939
      %3942 = vset.pattern.permute.xlu0 0
      %3943 = vperm.xlu0 %3942, %v434
      %v3944 = vpop.permute.xlu0 %3943
      %3946 = vset.pattern.permute.xlu0 0
      %3947 = vperm.xlu0 %3946, %v435
      %v3948 = vpop.permute.xlu0 %3947
      %3950 = vset.pattern.permute.xlu0 0
      %3951 = vperm.xlu0 %3950, %v436
      %v3952 = vpop.permute.xlu0 %3951
      %3954 = vset.pattern.permute.xlu0 0
      %3955 = vperm.xlu0 %3954, %v437
      %v3956 = vpop.permute.xlu0 %3955
      %3958 = vset.pattern.permute.xlu0 0
      %3959 = vperm.xlu0 %3958, %v438
      %v3960 = vpop.permute.xlu0 %3959
      %3962 = vset.pattern.permute.xlu0 0
      %3963 = vperm.xlu0 %3962, %v439
      %v3964 = vpop.permute.xlu0 %3963
      %3966 = vset.pattern.permute.xlu0 0
      %3967 = vperm.xlu0 %3966, %v440
      %v3968 = vpop.permute.xlu0 %3967
      %3970 = vset.pattern.permute.xlu0 0
      %3971 = vperm.xlu0 %3970, %v441
      %v3972 = vpop.permute.xlu0 %3971
      %3974 = vset.pattern.permute.xlu0 0
      %3975 = vperm.xlu0 %3974, %v442
      %v3976 = vpop.permute.xlu0 %3975
      %3978 = vset.pattern.permute.xlu0 0
      %3979 = vperm.xlu0 %3978, %v443
      %v3980 = vpop.permute.xlu0 %3979
      %3982 = vset.pattern.permute.xlu0 0
      %3983 = vperm.xlu0 %3982, %v444
      %v3984 = vpop.permute.xlu0 %3983
      %3986 = vset.pattern.permute.xlu0 0
      %3987 = vperm.xlu0 %3986, %v445
      %v3988 = vpop.permute.xlu0 %3987
      %3990 = vset.pattern.permute.xlu0 0
      %3991 = vperm.xlu0 %3990, %v446
      %v3992 = vpop.permute.xlu0 %3991
      %3994 = vset.pattern.permute.xlu0 0
      %3995 = vperm.xlu0 %3994, %v447
      %v3996 = vpop.permute.xlu0 %3995
      %3998 = vset.pattern.permute.xlu0 0
      %3999 = vperm.xlu0 %3998, %v448
      %v4000 = vpop.permute.xlu0 %3999
      %4002 = vset.pattern.permute.xlu0 0
      %4003 = vperm.xlu0 %4002, %v449
      %v4004 = vpop.permute.xlu0 %4003
      %4006 = vset.pattern.permute.xlu0 0
      %4007 = vperm.xlu0 %4006, %v450
      %v4008 = vpop.permute.xlu0 %4007
      %4010 = vset.pattern.permute.xlu0 0
      %4011 = vperm.xlu0 %4010, %v451
      %v4012 = vpop.permute.xlu0 %4011
      %4014 = vset.pattern.permute.xlu0 0
      %4015 = vperm.xlu0 %4014, %v452
      %v4016 = vpop.permute.xlu0 %4015
      %4018 = vset.pattern.permute.xlu0 0
      %4019 = vperm.xlu0 %4018, %v453
      %v4020 = vpop.permute.xlu0 %4019
      %4022 = vset.pattern.permute.xlu0 0
      %4023 = vperm.xlu0 %4022, %v454
      %v4024 = vpop.permute.xlu0 %4023
      %4026 = vset.pattern.permute.xlu0 0
      %4027 = vperm.xlu0 %4026, %v455
      %v4028 = vpop.permute.xlu0 %4027
      %4030 = vset.pattern.permute.xlu0 0
      %4031 = vperm.xlu0 %4030, %v456
      %v4032 = vpop.permute.xlu0 %4031
      %4034 = vset.pattern.permute.xlu0 0
      %4035 = vperm.xlu0 %4034, %v457
      %v4036 = vpop.permute.xlu0 %4035
      %4038 = vset.pattern.permute.xlu0 0
      %4039 = vperm.xlu0 %4038, %v458
      %v4040 = vpop.permute.xlu0 %4039
      %4042 = vset.pattern.permute.xlu0 0
      %4043 = vperm.xlu0 %4042, %v459
      %v4044 = vpop.permute.xlu0 %4043
      %4046 = vset.pattern.permute.xlu0 0
      %4047 = vperm.xlu0 %4046, %v460
      %v4048 = vpop.permute.xlu0 %4047
      %4050 = vset.pattern.permute.xlu0 0
      %4051 = vperm.xlu0 %4050, %v461
      %v4052 = vpop.permute.xlu0 %4051
      %4054 = vset.pattern.permute.xlu0 0
      %4055 = vperm.xlu0 %4054, %v462
      %v4056 = vpop.permute.xlu0 %4055
      %4058 = vset.pattern.permute.xlu0 0
      %4059 = vperm.xlu0 %4058, %v463
      %v4060 = vpop.permute.xlu0 %4059
      %4062 = vset.pattern.permute.xlu0 0
      %4063 = vperm.xlu0 %4062, %v464
      %v4064 = vpop.permute.xlu0 %4063
      %4066 = vset.pattern.permute.xlu0 0
      %4067 = vperm.xlu0 %4066, %v465
      %v4068 = vpop.permute.xlu0 %4067
      %4070 = vset.pattern.permute.xlu0 0
      %4071 = vperm.xlu0 %4070, %v466
      %v4072 = vpop.permute.xlu0 %4071
      %4074 = vset.pattern.permute.xlu0 0
      %4075 = vperm.xlu0 %4074, %v467
      %v4076 = vpop.permute.xlu0 %4075
      %4078 = vset.pattern.permute.xlu0 0
      %4079 = vperm.xlu0 %4078, %v468
      %v4080 = vpop.permute.xlu0 %4079
      %4082 = vset.pattern.permute.xlu0 0
      %4083 = vperm.xlu0 %4082, %v469
      %v4084 = vpop.permute.xlu0 %4083
      %4086 = vset.pattern.permute.xlu0 0
      %4087 = vperm.xlu0 %4086, %v470
      %v4088 = vpop.permute.xlu0 %4087
      %4090 = vset.pattern.permute.xlu0 0
      %4091 = vperm.xlu0 %4090, %v471
      %v4092 = vpop.permute.xlu0 %4091
      %4094 = vset.pattern.permute.xlu0 0
      %4095 = vperm.xlu0 %4094, %v472
      %v4096 = vpop.permute.xlu0 %4095
      %4098 = vset.pattern.permute.xlu0 0
      %4099 = vperm.xlu0 %4098, %v473
      %v4100 = vpop.permute.xlu0 %4099
      %4102 = vset.pattern.permute.xlu0 0
      %4103 = vperm.xlu0 %4102, %v474
      %v4104 = vpop.permute.xlu0 %4103
      %4106 = vset.pattern.permute.xlu0 0
      %4107 = vperm.xlu0 %4106, %v475
      %v4108 = vpop.permute.xlu0 %4107
      %4110 = vset.pattern.permute.xlu0 0
      %4111 = vperm.xlu0 %4110, %v476
      %v4112 = vpop.permute.xlu0 %4111
      %4114 = vset.pattern.permute.xlu0 0
      %4115 = vperm.xlu0 %4114, %v477
      %v4116 = vpop.permute.xlu0 %4115
      %vm4117 = vcmask 1040384
      %v4118 = vrot.slane %v3896, 7
      %v4119 = vrot.slane %v3900, 7
      %v4120 = vsel %vm4117, %v4118, %v4119
      %v4121 = vrot.slane %v3904, 7
      %v4122 = vsel %vm4117, %v4119, %v4121
      %v4123 = vrot.slane %v3908, 7
      %v4124 = vsel %vm4117, %v4121, %v4123
      %v4125 = vrot.slane %v3912, 7
      %v4126 = vsel %vm4117, %v4123, %v4125
      %v4127 = vrot.slane %v3916, 7
      %v4128 = vsel %vm4117, %v4125, %v4127
      %v4129 = vrot.slane %v3920, 7
      %v4130 = vsel %vm4117, %v4127, %v4129
      %v4131 = vrot.slane %v3924, 7
      %v4132 = vsel %vm4117, %v4129, %v4131
      %v4133 = vrot.slane %v3928, 7
      %v4134 = vsel %vm4117, %v4131, %v4133
      %v4135 = vrot.slane %v3932, 7
      %v4136 = vsel %vm4117, %v4133, %v4135
      %v4137 = vrot.slane %v3936, 7
      %v4138 = vsel %vm4117, %v4135, %v4137
      %v4139 = vrot.slane %v3940, 7
      %v4140 = vsel %vm4117, %v4137, %v4139
      %v4141 = vrot.slane %v3944, 7
      %v4142 = vsel %vm4117, %v4139, %v4141
      %v4143 = vrot.slane %v3948, 7
      %v4144 = vsel %vm4117, %v4141, %v4143
      %v4145 = vrot.slane %v3952, 7
      %v4146 = vsel %vm4117, %v4143, %v4145
      %v4147 = vrot.slane %v3956, 7
      %v4148 = vsel %vm4117, %v4145, %v4147
      %v4149 = vrot.slane %v3960, 7
      %v4150 = vsel %vm4117, %v4147, %v4149
      %v4151 = vrot.slane %v3964, 7
      %v4152 = vsel %vm4117, %v4149, %v4151
      %v4153 = vrot.slane %v3968, 7
      %v4154 = vsel %vm4117, %v4151, %v4153
      %v4155 = vrot.slane %v3972, 7
      %v4156 = vsel %vm4117, %v4153, %v4155
      %v4157 = vrot.slane %v3976, 7
      %v4158 = vsel %vm4117, %v4155, %v4157
      %v4159 = vrot.slane %v3980, 7
      %v4160 = vsel %vm4117, %v4157, %v4159
      %v4161 = vrot.slane %v3984, 7
      %v4162 = vsel %vm4117, %v4159, %v4161
      %v4163 = vrot.slane %v3988, 7
      %v4164 = vsel %vm4117, %v4161, %v4163
      %v4165 = vrot.slane %v3992, 7
      %v4166 = vsel %vm4117, %v4163, %v4165
      %v4167 = vrot.slane %v3996, 7
      %v4168 = vsel %vm4117, %v4165, %v4167
      %v4169 = vrot.slane %v4000, 7
      %v4170 = vsel %vm4117, %v4167, %v4169
      %v4171 = vrot.slane %v4004, 7
      %v4172 = vsel %vm4117, %v4169, %v4171
      %v4173 = vrot.slane %v4008, 7
      %v4174 = vsel %vm4117, %v4171, %v4173
      %v4175 = vrot.slane %v4012, 7
      %v4176 = vsel %vm4117, %v4173, %v4175
      %v4177 = vrot.slane %v4016, 7
      %v4178 = vsel %vm4117, %v4175, %v4177
      %v4179 = vrot.slane %v4020, 7
      %v4180 = vsel %vm4117, %v4177, %v4179
      %v4181 = vrot.slane %v4024, 7
      %v4182 = vsel %vm4117, %v4179, %v4181
      %v4183 = vrot.slane %v4028, 7
      %v4184 = vsel %vm4117, %v4181, %v4183
      %v4185 = vrot.slane %v4032, 7
      %v4186 = vsel %vm4117, %v4183, %v4185
      %v4187 = vrot.slane %v4036, 7
      %v4188 = vsel %vm4117, %v4185, %v4187
      %v4189 = vrot.slane %v4040, 7
      %v4190 = vsel %vm4117, %v4187, %v4189
      %v4191 = vrot.slane %v4044, 7
      %v4192 = vsel %vm4117, %v4189, %v4191
      %v4193 = vrot.slane %v4048, 7
      %v4194 = vsel %vm4117, %v4191, %v4193
      %v4195 = vrot.slane %v4052, 7
      %v4196 = vsel %vm4117, %v4193, %v4195
      %v4197 = vrot.slane %v4056, 7
      %v4198 = vsel %vm4117, %v4195, %v4197
      %v4199 = vrot.slane %v4060, 7
      %v4200 = vsel %vm4117, %v4197, %v4199
      %v4201 = vrot.slane %v4064, 7
      %v4202 = vsel %vm4117, %v4199, %v4201
      %v4203 = vrot.slane %v4068, 7
      %v4204 = vsel %vm4117, %v4201, %v4203
      %v4205 = vrot.slane %v4072, 7
      %v4206 = vsel %vm4117, %v4203, %v4205
      %v4207 = vrot.slane %v4076, 7
      %v4208 = vsel %vm4117, %v4205, %v4207
      %v4209 = vrot.slane %v4080, 7
      %v4210 = vsel %vm4117, %v4207, %v4209
      %v4211 = vrot.slane %v4084, 7
      %v4212 = vsel %vm4117, %v4209, %v4211
      %v4213 = vrot.slane %v4088, 7
      %v4214 = vsel %vm4117, %v4211, %v4213
      %v4215 = vrot.slane %v4092, 7
      %v4216 = vsel %vm4117, %v4213, %v4215
      %v4217 = vrot.slane %v4096, 7
      %v4218 = vsel %vm4117, %v4215, %v4217
      %v4219 = vrot.slane %v4100, 7
      %v4220 = vsel %vm4117, %v4217, %v4219
      %v4221 = vrot.slane %v4104, 7
      %v4222 = vsel %vm4117, %v4219, %v4221
      %v4223 = vrot.slane %v4108, 7
      %v4224 = vsel %vm4117, %v4221, %v4223
      %v4225 = vrot.slane %v4112, 7
      %v4226 = vsel %vm4117, %v4223, %v4225
      %v4227 = vrot.slane %v4116, 7
      %v4228 = vsel %vm4117, %v4225, %v4227
      %v4284 = vmul.f32 %v3838, %v4120
      %v4285 = vmul.f32 %v3839, %v4122
      %v4286 = vmul.f32 %v3840, %v4124
      %v4287 = vmul.f32 %v3841, %v4126
      %v4288 = vmul.f32 %v3842, %v4128
      %v4289 = vmul.f32 %v3843, %v4130
      %v4290 = vmul.f32 %v3844, %v4132
      %v4291 = vmul.f32 %v3845, %v4134
      %v4292 = vmul.f32 %v3846, %v4136
      %v4293 = vmul.f32 %v3847, %v4138
      %v4294 = vmul.f32 %v3848, %v4140
      %v4295 = vmul.f32 %v3849, %v4142
      %v4296 = vmul.f32 %v3850, %v4144
      %v4297 = vmul.f32 %v3851, %v4146
      %v4298 = vmul.f32 %v3852, %v4148
      %v4299 = vmul.f32 %v3853, %v4150
      %v4300 = vmul.f32 %v3854, %v4152
      %v4301 = vmul.f32 %v3855, %v4154
      %v4302 = vmul.f32 %v3856, %v4156
      %v4303 = vmul.f32 %v3857, %v4158
      %v4304 = vmul.f32 %v3858, %v4160
      %v4305 = vmul.f32 %v3859, %v4162
      %v4306 = vmul.f32 %v3860, %v4164
      %v4307 = vmul.f32 %v3861, %v4166
      %v4308 = vmul.f32 %v3862, %v4168
      %v4309 = vmul.f32 %v3863, %v4170
      %v4310 = vmul.f32 %v3864, %v4172
      %v4311 = vmul.f32 %v3865, %v4174
      %v4312 = vmul.f32 %v3866, %v4176
      %v4313 = vmul.f32 %v3867, %v4178
      %v4314 = vmul.f32 %v3868, %v4180
      %v4315 = vmul.f32 %v3869, %v4182
      %v4316 = vmul.f32 %v3870, %v4184
      %v4317 = vmul.f32 %v3871, %v4186
      %v4318 = vmul.f32 %v3872, %v4188
      %v4319 = vmul.f32 %v3873, %v4190
      %v4320 = vmul.f32 %v3874, %v4192
      %v4321 = vmul.f32 %v3875, %v4194
      %v4322 = vmul.f32 %v3876, %v4196
      %v4323 = vmul.f32 %v3877, %v4198
      %v4324 = vmul.f32 %v3878, %v4200
      %v4325 = vmul.f32 %v3879, %v4202
      %v4326 = vmul.f32 %v3880, %v4204
      %v4327 = vmul.f32 %v3881, %v4206
      %v4328 = vmul.f32 %v3882, %v4208
      %v4329 = vmul.f32 %v3883, %v4210
      %v4330 = vmul.f32 %v3884, %v4212
      %v4331 = vmul.f32 %v3885, %v4214
      %v4332 = vmul.f32 %v3886, %v4216
      %v4333 = vmul.f32 %v3887, %v4218
      %v4334 = vmul.f32 %v3888, %v4220
      %v4335 = vmul.f32 %v3889, %v4222
      %v4336 = vmul.f32 %v3890, %v4224
      %v4337 = vmul.f32 %v3891, %v4226
      %v4338 = vmul.f32 %v3892, %v4228
      %v4339 = vpack.c.bf16 %v4285, %v4284
      %v4340 = vpack.c.bf16 %v4287, %v4286
      %v4341 = vpack.c.bf16 %v4289, %v4288
      %v4342 = vpack.c.bf16 %v4291, %v4290
      %v4343 = vpack.c.bf16 %v4293, %v4292
      %v4344 = vpack.c.bf16 %v4295, %v4294
      %v4345 = vpack.c.bf16 %v4297, %v4296
      %v4346 = vpack.c.bf16 %v4299, %v4298
      %v4347 = vpack.c.bf16 %v4301, %v4300
      %v4348 = vpack.c.bf16 %v4303, %v4302
      %v4349 = vpack.c.bf16 %v4305, %v4304
      %v4350 = vpack.c.bf16 %v4307, %v4306
      %v4351 = vpack.c.bf16 %v4309, %v4308
      %v4352 = vpack.c.bf16 %v4311, %v4310
      %v4353 = vpack.c.bf16 %v4313, %v4312
      %v4354 = vpack.c.bf16 %v4315, %v4314
      %v4355 = vpack.c.bf16 %v4317, %v4316
      %v4356 = vpack.c.bf16 %v4319, %v4318
      %v4357 = vpack.c.bf16 %v4321, %v4320
      %v4358 = vpack.c.bf16 %v4323, %v4322
      %v4359 = vpack.c.bf16 %v4325, %v4324
      %v4360 = vpack.c.bf16 %v4327, %v4326
      %v4361 = vpack.c.bf16 %v4329, %v4328
      %v4362 = vpack.c.bf16 %v4331, %v4330
      %v4363 = vpack.c.bf16 %v4333, %v4332
      %v4364 = vpack.c.bf16 %v4335, %v4334
      %v4365 = vpack.c.bf16 %v4337, %v4336
      %v4366 = vpack.c.bf16 %v4338, %v4338
      %v4368 = vshrl.u32 %v4339, 16
      %v4370 = vshll.u32 %v4339, 16
      %v4372 = vrot.slane %v4370, 1
      %v4373 = vor.u32 %v4368, %v4372
      %v4375 = vshll.u32 %v4340, 16
      %v4377 = vrot.slane %v4375, 1
      %v4378 = vsel %vm616, %v4373, %v4377
      %v4379 = vshrl.u32 %v4340, 16
      %v4381 = vor.u32 %v4379, %v4377
      %v4383 = vshll.u32 %v4341, 16
      %v4385 = vrot.slane %v4383, 1
      %v4386 = vsel %vm616, %v4381, %v4385
      %v4387 = vshrl.u32 %v4341, 16
      %v4389 = vor.u32 %v4387, %v4385
      %v4391 = vshll.u32 %v4342, 16
      %v4393 = vrot.slane %v4391, 1
      %v4394 = vsel %vm616, %v4389, %v4393
      %v4395 = vshrl.u32 %v4342, 16
      %v4397 = vor.u32 %v4395, %v4393
      %v4399 = vshll.u32 %v4343, 16
      %v4401 = vrot.slane %v4399, 1
      %v4402 = vsel %vm616, %v4397, %v4401
      %v4403 = vshrl.u32 %v4343, 16
      %v4405 = vor.u32 %v4403, %v4401
      %v4407 = vshll.u32 %v4344, 16
      %v4409 = vrot.slane %v4407, 1
      %v4410 = vsel %vm616, %v4405, %v4409
      %v4411 = vshrl.u32 %v4344, 16
      %v4413 = vor.u32 %v4411, %v4409
      %v4415 = vshll.u32 %v4345, 16
      %v4417 = vrot.slane %v4415, 1
      %v4418 = vsel %vm616, %v4413, %v4417
      %v4419 = vshrl.u32 %v4345, 16
      %v4421 = vor.u32 %v4419, %v4417
      %v4423 = vshll.u32 %v4346, 16
      %v4425 = vrot.slane %v4423, 1
      %v4426 = vsel %vm616, %v4421, %v4425
      %v4427 = vshrl.u32 %v4346, 16
      %v4429 = vor.u32 %v4427, %v4425
      %v4431 = vshll.u32 %v4347, 16
      %v4433 = vrot.slane %v4431, 1
      %v4434 = vsel %vm616, %v4429, %v4433
      %v4435 = vshrl.u32 %v4347, 16
      %v4437 = vor.u32 %v4435, %v4433
      %v4439 = vshll.u32 %v4348, 16
      %v4441 = vrot.slane %v4439, 1
      %v4442 = vsel %vm616, %v4437, %v4441
      %v4443 = vshrl.u32 %v4348, 16
      %v4445 = vor.u32 %v4443, %v4441
      %v4447 = vshll.u32 %v4349, 16
      %v4449 = vrot.slane %v4447, 1
      %v4450 = vsel %vm616, %v4445, %v4449
      %v4451 = vshrl.u32 %v4349, 16
      %v4453 = vor.u32 %v4451, %v4449
      %v4455 = vshll.u32 %v4350, 16
      %v4457 = vrot.slane %v4455, 1
      %v4458 = vsel %vm616, %v4453, %v4457
      %v4459 = vshrl.u32 %v4350, 16
      %v4461 = vor.u32 %v4459, %v4457
      %v4463 = vshll.u32 %v4351, 16
      %v4465 = vrot.slane %v4463, 1
      %v4466 = vsel %vm616, %v4461, %v4465
      %v4467 = vshrl.u32 %v4351, 16
      %v4469 = vor.u32 %v4467, %v4465
      %v4471 = vshll.u32 %v4352, 16
      %v4473 = vrot.slane %v4471, 1
      %v4474 = vsel %vm616, %v4469, %v4473
      %v4475 = vshrl.u32 %v4352, 16
      %v4477 = vor.u32 %v4475, %v4473
      %v4479 = vshll.u32 %v4353, 16
      %v4481 = vrot.slane %v4479, 1
      %v4482 = vsel %vm616, %v4477, %v4481
      %v4483 = vshrl.u32 %v4353, 16
      %v4485 = vor.u32 %v4483, %v4481
      %v4487 = vshll.u32 %v4354, 16
      %v4489 = vrot.slane %v4487, 1
      %v4490 = vsel %vm616, %v4485, %v4489
      %v4491 = vshrl.u32 %v4354, 16
      %v4493 = vor.u32 %v4491, %v4489
      %v4495 = vshll.u32 %v4355, 16
      %v4497 = vrot.slane %v4495, 1
      %v4498 = vsel %vm616, %v4493, %v4497
      %v4499 = vshrl.u32 %v4355, 16
      %v4501 = vor.u32 %v4499, %v4497
      %v4503 = vshll.u32 %v4356, 16
      %v4505 = vrot.slane %v4503, 1
      %v4506 = vsel %vm616, %v4501, %v4505
      %v4507 = vshrl.u32 %v4356, 16
      %v4509 = vor.u32 %v4507, %v4505
      %v4511 = vshll.u32 %v4357, 16
      %v4513 = vrot.slane %v4511, 1
      %v4514 = vsel %vm616, %v4509, %v4513
      %v4515 = vshrl.u32 %v4357, 16
      %v4517 = vor.u32 %v4515, %v4513
      %v4519 = vshll.u32 %v4358, 16
      %v4521 = vrot.slane %v4519, 1
      %v4522 = vsel %vm616, %v4517, %v4521
      %v4523 = vshrl.u32 %v4358, 16
      %v4525 = vor.u32 %v4523, %v4521
      %v4527 = vshll.u32 %v4359, 16
      %v4529 = vrot.slane %v4527, 1
      %v4530 = vsel %vm616, %v4525, %v4529
      %v4531 = vshrl.u32 %v4359, 16
      %v4533 = vor.u32 %v4531, %v4529
      %v4535 = vshll.u32 %v4360, 16
      %v4537 = vrot.slane %v4535, 1
      %v4538 = vsel %vm616, %v4533, %v4537
      %v4539 = vshrl.u32 %v4360, 16
      %v4541 = vor.u32 %v4539, %v4537
      %v4543 = vshll.u32 %v4361, 16
      %v4545 = vrot.slane %v4543, 1
      %v4546 = vsel %vm616, %v4541, %v4545
      %v4547 = vshrl.u32 %v4361, 16
      %v4549 = vor.u32 %v4547, %v4545
      %v4551 = vshll.u32 %v4362, 16
      %v4553 = vrot.slane %v4551, 1
      %v4554 = vsel %vm616, %v4549, %v4553
      %v4555 = vshrl.u32 %v4362, 16
      %v4557 = vor.u32 %v4555, %v4553
      %v4559 = vshll.u32 %v4363, 16
      %v4561 = vrot.slane %v4559, 1
      %v4562 = vsel %vm616, %v4557, %v4561
      %v4563 = vshrl.u32 %v4363, 16
      %v4565 = vor.u32 %v4563, %v4561
      %4566 = vrot.lane.b32.xlu0 %v4378, 32
      %v4567 = vpop.permute.xlu0 %4566
      %4568 = vrot.lane.b32.xlu0 %v4386, 32
      %v4569 = vpop.permute.xlu0 %4568
      %4570 = vrot.lane.b32.xlu0 %v4394, 32
      %v4571 = vpop.permute.xlu0 %4570
      %4572 = vrot.lane.b32.xlu0 %v4402, 32
      %v4573 = vpop.permute.xlu0 %4572
      %4574 = vrot.lane.b32.xlu0 %v4410, 32
      %v4575 = vpop.permute.xlu0 %4574
      %4576 = vrot.lane.b32.xlu0 %v4418, 32
      %v4577 = vpop.permute.xlu0 %4576
      %4578 = vrot.lane.b32.xlu0 %v4426, 32
      %v4579 = vpop.permute.xlu0 %4578
      %4580 = vrot.lane.b32.xlu0 %v4434, 32
      %v4581 = vpop.permute.xlu0 %4580
      %4582 = vrot.lane.b32.xlu0 %v4442, 32
      %v4583 = vpop.permute.xlu0 %4582
      %4584 = vrot.lane.b32.xlu0 %v4450, 32
      %v4585 = vpop.permute.xlu0 %4584
      %4586 = vrot.lane.b32.xlu0 %v4458, 32
      %v4587 = vpop.permute.xlu0 %4586
      %4588 = vrot.lane.b32.xlu0 %v4466, 32
      %v4589 = vpop.permute.xlu0 %4588
      %4590 = vrot.lane.b32.xlu0 %v4474, 32
      %v4591 = vpop.permute.xlu0 %4590
      %4592 = vrot.lane.b32.xlu0 %v4482, 32
      %v4593 = vpop.permute.xlu0 %4592
      %4594 = vrot.lane.b32.xlu0 %v4490, 32
      %v4595 = vpop.permute.xlu0 %4594
      %4596 = vrot.lane.b32.xlu0 %v4498, 32
      %v4597 = vpop.permute.xlu0 %4596
      %4598 = vrot.lane.b32.xlu0 %v4506, 32
      %v4599 = vpop.permute.xlu0 %4598
      %4600 = vrot.lane.b32.xlu0 %v4514, 32
      %v4601 = vpop.permute.xlu0 %4600
      %4602 = vrot.lane.b32.xlu0 %v4522, 32
      %v4603 = vpop.permute.xlu0 %4602
      %4604 = vrot.lane.b32.xlu0 %v4530, 32
      %v4605 = vpop.permute.xlu0 %4604
      %4606 = vrot.lane.b32.xlu0 %v4538, 32
      %v4607 = vpop.permute.xlu0 %4606
      %4608 = vrot.lane.b32.xlu0 %v4546, 32
      %v4609 = vpop.permute.xlu0 %4608
      %4610 = vrot.lane.b32.xlu0 %v4554, 32
      %v4611 = vpop.permute.xlu0 %4610
      %4612 = vrot.lane.b32.xlu0 %v4562, 32
      %v4613 = vpop.permute.xlu0 %4612
      %4614 = vrot.lane.b32.xlu0 %v4565, 32
      %v4615 = vpop.permute.xlu0 %4614
      %v4641 = vrot.slane %v4339, 1
      %v4642 = vrot.slane %v4340, 1
      %v4643 = vsel %vm896, %v4641, %v4642
      %v4644 = vrot.slane %v4341, 1
      %v4645 = vsel %vm896, %v4642, %v4644
      %v4646 = vrot.slane %v4342, 1
      %v4647 = vsel %vm896, %v4644, %v4646
      %v4648 = vrot.slane %v4343, 1
      %v4649 = vsel %vm896, %v4646, %v4648
      %v4650 = vrot.slane %v4344, 1
      %v4651 = vsel %vm896, %v4648, %v4650
      %v4652 = vrot.slane %v4345, 1
      %v4653 = vsel %vm896, %v4650, %v4652
      %v4654 = vrot.slane %v4346, 1
      %v4655 = vsel %vm896, %v4652, %v4654
      %v4656 = vrot.slane %v4347, 1
      %v4657 = vsel %vm896, %v4654, %v4656
      %v4658 = vrot.slane %v4348, 1
      %v4659 = vsel %vm896, %v4656, %v4658
      %v4660 = vrot.slane %v4349, 1
      %v4661 = vsel %vm896, %v4658, %v4660
      %v4662 = vrot.slane %v4350, 1
      %v4663 = vsel %vm896, %v4660, %v4662
      %v4664 = vrot.slane %v4351, 1
      %v4665 = vsel %vm896, %v4662, %v4664
      %v4666 = vrot.slane %v4352, 1
      %v4667 = vsel %vm896, %v4664, %v4666
      %v4668 = vrot.slane %v4353, 1
      %v4669 = vsel %vm896, %v4666, %v4668
      %v4670 = vrot.slane %v4354, 1
      %v4671 = vsel %vm896, %v4668, %v4670
      %v4672 = vrot.slane %v4355, 1
      %v4673 = vsel %vm896, %v4670, %v4672
      %v4674 = vrot.slane %v4356, 1
      %v4675 = vsel %vm896, %v4672, %v4674
      %v4676 = vrot.slane %v4357, 1
      %v4677 = vsel %vm896, %v4674, %v4676
      %v4678 = vrot.slane %v4358, 1
      %v4679 = vsel %vm896, %v4676, %v4678
      %v4680 = vrot.slane %v4359, 1
      %v4681 = vsel %vm896, %v4678, %v4680
      %v4682 = vrot.slane %v4360, 1
      %v4683 = vsel %vm896, %v4680, %v4682
      %v4684 = vrot.slane %v4361, 1
      %v4685 = vsel %vm896, %v4682, %v4684
      %v4686 = vrot.slane %v4362, 1
      %v4687 = vsel %vm896, %v4684, %v4686
      %v4688 = vrot.slane %v4363, 1
      %v4689 = vsel %vm896, %v4686, %v4688
      %4690 = vrot.lane.b32.xlu0 %v4643, 64
      %v4691 = vpop.permute.xlu0 %4690
      %4692 = vrot.lane.b32.xlu0 %v4645, 64
      %v4693 = vpop.permute.xlu0 %4692
      %4694 = vrot.lane.b32.xlu0 %v4647, 64
      %v4695 = vpop.permute.xlu0 %4694
      %4696 = vrot.lane.b32.xlu0 %v4649, 64
      %v4697 = vpop.permute.xlu0 %4696
      %4698 = vrot.lane.b32.xlu0 %v4651, 64
      %v4699 = vpop.permute.xlu0 %4698
      %4700 = vrot.lane.b32.xlu0 %v4653, 64
      %v4701 = vpop.permute.xlu0 %4700
      %4702 = vrot.lane.b32.xlu0 %v4655, 64
      %v4703 = vpop.permute.xlu0 %4702
      %4704 = vrot.lane.b32.xlu0 %v4657, 64
      %v4705 = vpop.permute.xlu0 %4704
      %4706 = vrot.lane.b32.xlu0 %v4659, 64
      %v4707 = vpop.permute.xlu0 %4706
      %4708 = vrot.lane.b32.xlu0 %v4661, 64
      %v4709 = vpop.permute.xlu0 %4708
      %4710 = vrot.lane.b32.xlu0 %v4663, 64
      %v4711 = vpop.permute.xlu0 %4710
      %4712 = vrot.lane.b32.xlu0 %v4665, 64
      %v4713 = vpop.permute.xlu0 %4712
      %4714 = vrot.lane.b32.xlu0 %v4667, 64
      %v4715 = vpop.permute.xlu0 %4714
      %4716 = vrot.lane.b32.xlu0 %v4669, 64
      %v4717 = vpop.permute.xlu0 %4716
      %4718 = vrot.lane.b32.xlu0 %v4671, 64
      %v4719 = vpop.permute.xlu0 %4718
      %4720 = vrot.lane.b32.xlu0 %v4673, 64
      %v4721 = vpop.permute.xlu0 %4720
      %4722 = vrot.lane.b32.xlu0 %v4675, 64
      %v4723 = vpop.permute.xlu0 %4722
      %4724 = vrot.lane.b32.xlu0 %v4677, 64
      %v4725 = vpop.permute.xlu0 %4724
      %4726 = vrot.lane.b32.xlu0 %v4679, 64
      %v4727 = vpop.permute.xlu0 %4726
      %4728 = vrot.lane.b32.xlu0 %v4681, 64
      %v4729 = vpop.permute.xlu0 %4728
      %4730 = vrot.lane.b32.xlu0 %v4683, 64
      %v4731 = vpop.permute.xlu0 %4730
      %4732 = vrot.lane.b32.xlu0 %v4685, 64
      %v4733 = vpop.permute.xlu0 %4732
      %4734 = vrot.lane.b32.xlu0 %v4687, 64
      %v4735 = vpop.permute.xlu0 %4734
      %4736 = vrot.lane.b32.xlu0 %v4689, 64
      %v4737 = vpop.permute.xlu0 %4736
      %4738 = vrot.lane.b32.xlu0 %v4688, 64
      %v4739 = vpop.permute.xlu0 %4738
      %v4741 = vsel %vm1008, %v4339, %v4567
      %v4743 = vsel %vm1008, %v4340, %v4569
      %v4745 = vsel %vm1008, %v4341, %v4571
      %v4747 = vsel %vm1008, %v4342, %v4573
      %v4749 = vsel %vm1008, %v4343, %v4575
      %v4751 = vsel %vm1008, %v4344, %v4577
      %v4753 = vsel %vm1008, %v4345, %v4579
      %v4755 = vsel %vm1008, %v4346, %v4581
      %v4757 = vsel %vm1008, %v4347, %v4583
      %v4759 = vsel %vm1008, %v4348, %v4585
      %v4761 = vsel %vm1008, %v4349, %v4587
      %v4763 = vsel %vm1008, %v4350, %v4589
      %v4765 = vsel %vm1008, %v4351, %v4591
      %v4767 = vsel %vm1008, %v4352, %v4593
      %v4769 = vsel %vm1008, %v4353, %v4595
      %v4771 = vsel %vm1008, %v4354, %v4597
      %v4773 = vsel %vm1008, %v4355, %v4599
      %v4775 = vsel %vm1008, %v4356, %v4601
      %v4777 = vsel %vm1008, %v4357, %v4603
      %v4779 = vsel %vm1008, %v4358, %v4605
      %v4781 = vsel %vm1008, %v4359, %v4607
      %v4783 = vsel %vm1008, %v4360, %v4609
      %v4785 = vsel %vm1008, %v4361, %v4611
      %v4787 = vsel %vm1008, %v4362, %v4613
      %v4789 = vsel %vm1008, %v4363, %v4615
      %v4791 = vsel %vm1065, %v4741, %v4691
      %v4793 = vsel %vm1065, %v4743, %v4693
      %v4795 = vsel %vm1065, %v4745, %v4695
      %v4797 = vsel %vm1065, %v4747, %v4697
      %v4799 = vsel %vm1065, %v4749, %v4699
      %v4801 = vsel %vm1065, %v4751, %v4701
      %v4803 = vsel %vm1065, %v4753, %v4703
      %v4805 = vsel %vm1065, %v4755, %v4705
      %v4807 = vsel %vm1065, %v4757, %v4707
      %v4809 = vsel %vm1065, %v4759, %v4709
      %v4811 = vsel %vm1065, %v4761, %v4711
      %v4813 = vsel %vm1065, %v4763, %v4713
      %v4815 = vsel %vm1065, %v4765, %v4715
      %v4817 = vsel %vm1065, %v4767, %v4717
      %v4819 = vsel %vm1065, %v4769, %v4719
      %v4821 = vsel %vm1065, %v4771, %v4721
      %v4823 = vsel %vm1065, %v4773, %v4723
      %v4825 = vsel %vm1065, %v4775, %v4725
      %v4827 = vsel %vm1065, %v4777, %v4727
      %v4829 = vsel %vm1065, %v4779, %v4729
      %v4831 = vsel %vm1065, %v4781, %v4731
      %v4833 = vsel %vm1065, %v4783, %v4733
      %v4835 = vsel %vm1065, %v4785, %v4735
      %v4837 = vsel %vm1065, %v4787, %v4737
      %v4839 = vsel %vm1065, %v4789, %v4739
      %v4840 = vld [vmem:[%s4] sm:$0xf]
      %v4841 = vld [vmem:[%s4 + $0x4] sm:$0xf]
      %v4842 = vld [vmem:[%s4 + $0x8] sm:$0xf]
      %v4843 = vld [vmem:[%s4 + $0xc] sm:$0xf]
      %v4844 = vld [vmem:[%s4 + $0x10] sm:$0xf]
      %v4845 = vld [vmem:[%s4 + $0x14] sm:$0xf]
      %v4846 = vld [vmem:[%s4 + $0x18] sm:$0xf]
      %v4847 = vld [vmem:[%s4 + $0x1c] sm:$0xf]
      %v4848 = vld [vmem:[%s4 + $0x20] sm:$0xf]
      %v4849 = vld [vmem:[%s4 + $0x24] sm:$0xf]
      %v4850 = vld [vmem:[%s4 + $0x28] sm:$0xf]
      %v4851 = vld [vmem:[%s4 + $0x2c] sm:$0xf]
      %v4853 = vshll.u32 %v4364, 16
      %v4855 = vrot.slane %v4853, 1
      %v4856 = vsel %vm616, %v4565, %v4855
      %v4857 = vshrl.u32 %v4364, 16
      %v4859 = vor.u32 %v4857, %v4855
      %4860 = vrot.lane.b32.xlu0 %v4856, 32
      %v4861 = vpop.permute.xlu0 %4860
      %4862 = vrot.lane.b32.xlu0 %v4859, 32
      %v4863 = vpop.permute.xlu0 %4862
      %v4865 = vrot.slane %v4364, 1
      %v4866 = vsel %vm896, %v4688, %v4865
      %4867 = vrot.lane.b32.xlu0 %v4866, 64
      %v4868 = vpop.permute.xlu0 %4867
      %4869 = vrot.lane.b32.xlu0 %v4865, 64
      %v4870 = vpop.permute.xlu0 %4869
      %v4872 = vsel %vm1008, %v4363, %v4861
      %v4874 = vsel %vm1008, %v4364, %v4863
      %v4876 = vsel %vm1065, %v4872, %v4868
      %v4878 = vsel %vm1065, %v4874, %v4870
      %s4879 = scalar_lea.vmem %s4, 48
      %v4880 = vld [vmem:[%s4879] sm:$0xf]
      %v4881 = vld [vmem:[%s4879 + $0x4] sm:$0xf]
      %v4882 = vld [vmem:[%s4879 + $0x8] sm:$0xf]
      %v4883 = vld [vmem:[%s4879 + $0xc] sm:$0xf]
      %v4884 = vld [vmem:[%s4879 + $0x10] sm:$0xf]
      %v4885 = vld [vmem:[%s4879 + $0x14] sm:$0xf]
      %v4886 = vld [vmem:[%s4879 + $0x18] sm:$0xf]
      %v4887 = vld [vmem:[%s4879 + $0x1c] sm:$0xf]
      %v4888 = vld [vmem:[%s4879 + $0x20] sm:$0xf]
      %v4889 = vld [vmem:[%s4879 + $0x24] sm:$0xf]
      %v4890 = vld [vmem:[%s4879 + $0x28] sm:$0xf]
      %v4891 = vld [vmem:[%s4879 + $0x2c] sm:$0xf]
      %v4917 = vrot.slane %v4793, 3
      %v4918 = vrot.slane %v4795, 3
      %v4919 = vsel %vm1407, %v4917, %v4918
      %v4920 = vrot.slane %v4797, 3
      %v4921 = vsel %vm1407, %v4918, %v4920
      %v4922 = vrot.slane %v4799, 3
      %v4923 = vsel %vm1407, %v4920, %v4922
      %v4924 = vrot.slane %v4801, 3
      %v4925 = vsel %vm1407, %v4922, %v4924
      %v4926 = vrot.slane %v4803, 3
      %v4927 = vsel %vm1407, %v4924, %v4926
      %v4928 = vrot.slane %v4805, 3
      %v4929 = vsel %vm1407, %v4926, %v4928
      %v4930 = vrot.slane %v4807, 3
      %v4931 = vsel %vm1407, %v4928, %v4930
      %v4932 = vrot.slane %v4809, 3
      %v4933 = vsel %vm1407, %v4930, %v4932
      %v4934 = vrot.slane %v4811, 3
      %v4935 = vsel %vm1407, %v4932, %v4934
      %v4936 = vrot.slane %v4813, 3
      %v4937 = vsel %vm1407, %v4934, %v4936
      %v4938 = vrot.slane %v4815, 3
      %v4939 = vsel %vm1407, %v4936, %v4938
      %v4940 = vrot.slane %v4817, 3
      %v4941 = vsel %vm1407, %v4938, %v4940
      %v4942 = vrot.slane %v4819, 3
      %v4943 = vsel %vm1407, %v4940, %v4942
      %v4944 = vrot.slane %v4821, 3
      %v4945 = vsel %vm1407, %v4942, %v4944
      %v4946 = vrot.slane %v4823, 3
      %v4947 = vsel %vm1407, %v4944, %v4946
      %v4948 = vrot.slane %v4825, 3
      %v4949 = vsel %vm1407, %v4946, %v4948
      %v4950 = vrot.slane %v4827, 3
      %v4951 = vsel %vm1407, %v4948, %v4950
      %v4952 = vrot.slane %v4829, 3
      %v4953 = vsel %vm1407, %v4950, %v4952
      %v4954 = vrot.slane %v4831, 3
      %v4955 = vsel %vm1407, %v4952, %v4954
      %v4956 = vrot.slane %v4833, 3
      %v4957 = vsel %vm1407, %v4954, %v4956
      %v4958 = vrot.slane %v4835, 3
      %v4959 = vsel %vm1407, %v4956, %v4958
      %v4960 = vrot.slane %v4837, 3
      %v4961 = vsel %vm1407, %v4958, %v4960
      %v4962 = vrot.slane %v4876, 3
      %v4963 = vsel %vm1407, %v4960, %v4962
      %v4964 = vrot.slane %v4878, 3
      %v4965 = vsel %vm1407, %v4962, %v4964
      %v4978 = vunpack.c.l.b16 %v4880
      %v4979 = vunpack.c.l.b16 %v4881
      %v4980 = vunpack.c.l.b16 %v4882
      %v4981 = vunpack.c.l.b16 %v4883
      %v4982 = vunpack.c.l.b16 %v4884
      %v4983 = vunpack.c.l.b16 %v4885
      %v4984 = vunpack.c.l.b16 %v4886
      %v4985 = vunpack.c.l.b16 %v4887
      %v4986 = vunpack.c.l.b16 %v4888
      %v4987 = vunpack.c.l.b16 %v4889
      %v4988 = vunpack.c.l.b16 %v4890
      %v4989 = vunpack.c.l.b16 %v4891
      %v4990 = vpack.c.b16 %v4979, %v4978
      %v4991 = vpack.c.b16 %v4981, %v4980
      %v4992 = vpack.c.b16 %v4983, %v4982
      %v4993 = vpack.c.b16 %v4985, %v4984
      %v4994 = vpack.c.b16 %v4987, %v4986
      %v4995 = vpack.c.b16 %v4989, %v4988
      %v5003 = vsel %vm1499, %v4919, 0
      %v5006 = vsel %vm1499, %v4921, 0
      %v5009 = vsel %vm1499, %v4923, 0
      %v5012 = vsel %vm1499, %v4925, 0
      %v5015 = vsel %vm1499, %v4927, 0
      %v5018 = vsel %vm1499, %v4929, 0
      %v5021 = vsel %vm1499, %v4931, 0
      %v5024 = vsel %vm1499, %v4933, 0
      %v5027 = vsel %vm1499, %v4935, 0
      %v5030 = vsel %vm1499, %v4937, 0
      %v5033 = vsel %vm1499, %v4939, 0
      %v5036 = vsel %vm1499, %v4941, 0
      %v5039 = vsel %vm1499, %v4943, 0
      %v5042 = vsel %vm1499, %v4945, 0
      %v5045 = vsel %vm1499, %v4947, 0
      %v5048 = vsel %vm1499, %v4949, 0
      %v5051 = vsel %vm1499, %v4951, 0
      %v5054 = vsel %vm1499, %v4953, 0
      %v5057 = vsel %vm1499, %v4955, 0
      %v5060 = vsel %vm1499, %v4957, 0
      %v5063 = vsel %vm1499, %v4959, 0
      %v5066 = vsel %vm1499, %v4961, 0
      %v5069 = vsel %vm1499, %v4963, 0
      %v5072 = vsel %vm1499, %v4965, 0
      %v5075 = vsel %vm1499, %v4964, 0
      %5077 = vmatprep.subr.bf16.mxu0 0
      %5078 = vmatpush1.bf16.msra.mxu0 0
      %5079 = vmatprep.subr.bf16.mxu0 0
      %5080 = vmatpush1.bf16.msra.mxu0 0
      %5081 = vmatprep.subr.bf16.mxu0 0
      %5082 = vmatpush1.bf16.msra.mxu0 %v4995
      %5083 = vmatprep.subr.bf16.mxu0 0
      %5084 = vmatpush1.bf16.msra.mxu0 %v4994
      %5085 = vmatprep.subr.bf16.mxu0 0
      %5086 = vmatpush1.bf16.msra.mxu0 %v4993
      %5087 = vmatprep.subr.bf16.mxu0 0
      %5088 = vmatpush1.bf16.msra.mxu0 %v4992
      %5089 = vmatprep.subr.bf16.mxu0 0
      %5090 = vmatpush1.bf16.msra.mxu0 %v4991
      %5091 = vmatprep.subr.bf16.mxu0 0
      %5092 = vmatpush1.bf16.msra.mxu0 %v4990
      %5093 = vmatprep.subr.bf16.mxu0 0
      %5094 = vmatpush2.bf16.msra.mxu0 0
      %5095 = vmatprep.subr.bf16.mxu0 0
      %5096 = vmatpush2.bf16.msra.mxu0 0
      %5097 = vmatprep.subr.bf16.mxu0 0
      %5098 = vmatpush2.bf16.msra.mxu0 0
      %5099 = vmatprep.subr.bf16.mxu0 0
      %5100 = vmatpush2.bf16.msra.mxu0 0
      %5101 = vmatprep.subr.bf16.mxu0 0
      %5102 = vmatpush2.bf16.msra.mxu0 0
      %5103 = vmatprep.subr.bf16.mxu0 0
      %5104 = vmatpush2.bf16.msra.mxu0 0
      %5105 = vmatprep.subr.bf16.mxu0 0
      %5106 = vmatpush2.bf16.msra.mxu0 0
      %5107 = vmatprep.subr.bf16.mxu0 0
      %5108 = vmatpush2.bf16.msra.mxu0 0
      %5109 = vmatprep.mubr.bf16.mxu0 0
      %5110 = vmatmul.mubr.bf16.gmra.mxu0 %v5003
      %v5111 = vpop.f32.mrf.mxu0
      %v5112 = vadd.f32 0.0, %v5111
      %v5113 = vpop.f32.mrf.mxu0
      %v5114 = vpop.f32.mrf.mxu0
      %v5115 = vadd.f32 0.0, %v5114
      %v5116 = vpop.f32.mrf.mxu0
      %5117 = vmatprep.mubr.bf16.mxu0 0
      %5118 = vmatmul.mubr.bf16.gmra.mxu0 %v5006
      %v5119 = vpop.f32.mrf.mxu0
      %v5120 = vadd.f32 0.0, %v5119
      %v5121 = vpop.f32.mrf.mxu0
      %v5122 = vpop.f32.mrf.mxu0
      %v5123 = vadd.f32 0.0, %v5122
      %v5124 = vpop.f32.mrf.mxu0
      %5125 = vmatprep.mubr.bf16.mxu0 0
      %5126 = vmatmul.mubr.bf16.gmra.mxu0 %v5009
      %v5127 = vpop.f32.mrf.mxu0
      %v5128 = vadd.f32 0.0, %v5127
      %v5129 = vpop.f32.mrf.mxu0
      %v5130 = vpop.f32.mrf.mxu0
      %v5131 = vadd.f32 0.0, %v5130
      %v5132 = vpop.f32.mrf.mxu0
      %5133 = vmatprep.mubr.bf16.mxu0 0
      %5134 = vmatmul.mubr.bf16.gmra.mxu0 %v5012
      %v5135 = vpop.f32.mrf.mxu0
      %v5136 = vadd.f32 0.0, %v5135
      %v5137 = vpop.f32.mrf.mxu0
      %v5138 = vpop.f32.mrf.mxu0
      %v5139 = vadd.f32 0.0, %v5138
      %v5140 = vpop.f32.mrf.mxu0
      %5141 = vmatprep.mubr.bf16.mxu0 0
      %5142 = vmatmul.mubr.bf16.gmra.mxu0 %v5015
      %v5143 = vpop.f32.mrf.mxu0
      %v5144 = vadd.f32 0.0, %v5143
      %v5145 = vpop.f32.mrf.mxu0
      %v5146 = vpop.f32.mrf.mxu0
      %v5147 = vadd.f32 0.0, %v5146
      %v5148 = vpop.f32.mrf.mxu0
      %5149 = vmatprep.mubr.bf16.mxu0 0
      %5150 = vmatmul.mubr.bf16.gmra.mxu0 %v5018
      %v5151 = vpop.f32.mrf.mxu0
      %v5152 = vadd.f32 0.0, %v5151
      %v5153 = vpop.f32.mrf.mxu0
      %v5154 = vpop.f32.mrf.mxu0
      %v5155 = vadd.f32 0.0, %v5154
      %v5156 = vpop.f32.mrf.mxu0
      %5157 = vmatprep.mubr.bf16.mxu0 0
      %5158 = vmatmul.mubr.bf16.gmra.mxu0 %v5021
      %v5159 = vpop.f32.mrf.mxu0
      %v5160 = vadd.f32 0.0, %v5159
      %v5161 = vpop.f32.mrf.mxu0
      %v5162 = vpop.f32.mrf.mxu0
      %v5163 = vadd.f32 0.0, %v5162
      %v5164 = vpop.f32.mrf.mxu0
      %5165 = vmatprep.mubr.bf16.mxu0 0
      %5166 = vmatmul.mubr.bf16.gmra.mxu0 %v5024
      %v5167 = vpop.f32.mrf.mxu0
      %v5168 = vadd.f32 0.0, %v5167
      %v5169 = vpop.f32.mrf.mxu0
      %v5170 = vpop.f32.mrf.mxu0
      %v5171 = vadd.f32 0.0, %v5170
      %v5172 = vpop.f32.mrf.mxu0
      %5173 = vmatprep.mubr.bf16.mxu0 0
      %5174 = vmatmul.mubr.bf16.gmra.mxu0 %v5027
      %v5175 = vpop.f32.mrf.mxu0
      %v5176 = vadd.f32 0.0, %v5175
      %v5177 = vpop.f32.mrf.mxu0
      %v5178 = vpop.f32.mrf.mxu0
      %v5179 = vadd.f32 0.0, %v5178
      %v5180 = vpop.f32.mrf.mxu0
      %5181 = vmatprep.mubr.bf16.mxu0 0
      %5182 = vmatmul.mubr.bf16.gmra.mxu0 %v5030
      %v5183 = vpop.f32.mrf.mxu0
      %v5184 = vadd.f32 0.0, %v5183
      %v5185 = vpop.f32.mrf.mxu0
      %v5186 = vpop.f32.mrf.mxu0
      %v5187 = vadd.f32 0.0, %v5186
      %v5188 = vpop.f32.mrf.mxu0
      %5189 = vmatprep.mubr.bf16.mxu0 0
      %5190 = vmatmul.mubr.bf16.gmra.mxu0 %v5033
      %v5191 = vpop.f32.mrf.mxu0
      %v5192 = vadd.f32 0.0, %v5191
      %v5193 = vpop.f32.mrf.mxu0
      %v5194 = vpop.f32.mrf.mxu0
      %v5195 = vadd.f32 0.0, %v5194
      %v5196 = vpop.f32.mrf.mxu0
      %5197 = vmatprep.mubr.bf16.mxu0 0
      %5198 = vmatmul.mubr.bf16.gmra.mxu0 %v5036
      %v5199 = vpop.f32.mrf.mxu0
      %v5200 = vadd.f32 0.0, %v5199
      %v5201 = vpop.f32.mrf.mxu0
      %v5202 = vpop.f32.mrf.mxu0
      %v5203 = vadd.f32 0.0, %v5202
      %v5204 = vpop.f32.mrf.mxu0
      %5205 = vmatprep.mubr.bf16.mxu0 0
      %5206 = vmatmul.mubr.bf16.gmra.mxu0 %v5039
      %v5207 = vpop.f32.mrf.mxu0
      %v5208 = vadd.f32 0.0, %v5207
      %v5209 = vpop.f32.mrf.mxu0
      %v5210 = vpop.f32.mrf.mxu0
      %v5211 = vadd.f32 0.0, %v5210
      %v5212 = vpop.f32.mrf.mxu0
      %5213 = vmatprep.mubr.bf16.mxu0 0
      %5214 = vmatmul.mubr.bf16.gmra.mxu0 %v5042
      %v5215 = vpop.f32.mrf.mxu0
      %v5216 = vadd.f32 0.0, %v5215
      %v5217 = vpop.f32.mrf.mxu0
      %v5218 = vpop.f32.mrf.mxu0
      %v5219 = vadd.f32 0.0, %v5218
      %v5220 = vpop.f32.mrf.mxu0
      %5221 = vmatprep.mubr.bf16.mxu0 0
      %5222 = vmatmul.mubr.bf16.gmra.mxu0 %v5045
      %v5223 = vpop.f32.mrf.mxu0
      %v5224 = vadd.f32 0.0, %v5223
      %v5225 = vpop.f32.mrf.mxu0
      %v5226 = vpop.f32.mrf.mxu0
      %v5227 = vadd.f32 0.0, %v5226
      %v5228 = vpop.f32.mrf.mxu0
      %5229 = vmatprep.mubr.bf16.mxu0 0
      %5230 = vmatmul.mubr.bf16.gmra.mxu0 %v5048
      %v5231 = vpop.f32.mrf.mxu0
      %v5232 = vadd.f32 0.0, %v5231
      %v5233 = vpop.f32.mrf.mxu0
      %v5234 = vpop.f32.mrf.mxu0
      %v5235 = vadd.f32 0.0, %v5234
      %v5236 = vpop.f32.mrf.mxu0
      %5237 = vmatprep.mubr.bf16.mxu0 0
      %5238 = vmatmul.mubr.bf16.gmra.mxu0 %v5051
      %v5239 = vpop.f32.mrf.mxu0
      %v5240 = vadd.f32 0.0, %v5239
      %v5241 = vpop.f32.mrf.mxu0
      %v5242 = vpop.f32.mrf.mxu0
      %v5243 = vadd.f32 0.0, %v5242
      %v5244 = vpop.f32.mrf.mxu0
      %5245 = vmatprep.mubr.bf16.mxu0 0
      %5246 = vmatmul.mubr.bf16.gmra.mxu0 %v5054
      %v5247 = vpop.f32.mrf.mxu0
      %v5248 = vadd.f32 0.0, %v5247
      %v5249 = vpop.f32.mrf.mxu0
      %v5250 = vpop.f32.mrf.mxu0
      %v5251 = vadd.f32 0.0, %v5250
      %v5252 = vpop.f32.mrf.mxu0
      %5253 = vmatprep.mubr.bf16.mxu0 0
      %5254 = vmatmul.mubr.bf16.gmra.mxu0 %v5057
      %v5255 = vpop.f32.mrf.mxu0
      %v5256 = vadd.f32 0.0, %v5255
      %v5257 = vpop.f32.mrf.mxu0
      %v5258 = vpop.f32.mrf.mxu0
      %v5259 = vadd.f32 0.0, %v5258
      %v5260 = vpop.f32.mrf.mxu0
      %5261 = vmatprep.mubr.bf16.mxu0 0
      %5262 = vmatmul.mubr.bf16.gmra.mxu0 %v5060
      %v5263 = vpop.f32.mrf.mxu0
      %v5264 = vadd.f32 0.0, %v5263
      %v5265 = vpop.f32.mrf.mxu0
      %v5266 = vpop.f32.mrf.mxu0
      %v5267 = vadd.f32 0.0, %v5266
      %v5268 = vpop.f32.mrf.mxu0
      %5269 = vmatprep.mubr.bf16.mxu0 0
      %5270 = vmatmul.mubr.bf16.gmra.mxu0 %v5063
      %v5271 = vpop.f32.mrf.mxu0
      %v5272 = vadd.f32 0.0, %v5271
      %v5273 = vpop.f32.mrf.mxu0
      %v5274 = vpop.f32.mrf.mxu0
      %v5275 = vadd.f32 0.0, %v5274
      %v5276 = vpop.f32.mrf.mxu0
      %5277 = vmatprep.mubr.bf16.mxu0 0
      %5278 = vmatmul.mubr.bf16.gmra.mxu0 %v5066
      %v5279 = vpop.f32.mrf.mxu0
      %v5280 = vadd.f32 0.0, %v5279
      %v5281 = vpop.f32.mrf.mxu0
      %v5282 = vpop.f32.mrf.mxu0
      %v5283 = vadd.f32 0.0, %v5282
      %v5284 = vpop.f32.mrf.mxu0
      %5285 = vmatprep.mubr.bf16.mxu0 0
      %5286 = vmatmul.mubr.bf16.gmra.mxu0 %v5069
      %v5287 = vpop.f32.mrf.mxu0
      %v5288 = vadd.f32 0.0, %v5287
      %v5289 = vpop.f32.mrf.mxu0
      %v5290 = vpop.f32.mrf.mxu0
      %v5291 = vadd.f32 0.0, %v5290
      %v5292 = vpop.f32.mrf.mxu0
      %5293 = vmatprep.mubr.bf16.mxu0 0
      %5294 = vmatmul.mubr.bf16.gmra.mxu0 %v5072
      %v5295 = vpop.f32.mrf.mxu0
      %v5296 = vadd.f32 0.0, %v5295
      %v5297 = vpop.f32.mrf.mxu0
      %v5298 = vpop.f32.mrf.mxu0
      %v5299 = vadd.f32 0.0, %v5298
      %v5300 = vpop.f32.mrf.mxu0
      %5301 = vmatprep.mubr.bf16.mxu0 0
      %5302 = vmatmul.mubr.bf16.gmra.mxu0 %v5075
      %v5303 = vpop.f32.mrf.mxu0
      %v5304 = vadd.f32 0.0, %v5303
      %v5305 = vpop.f32.mrf.mxu0
      %v5306 = vpop.f32.mrf.mxu0
      %v5307 = vpop.f32.mrf.mxu0
      %5308 = vdwg.mxu0
      %v5321 = vunpack.c.l.b16 %v4840
      %v5322 = vunpack.c.l.b16 %v4841
      %v5323 = vunpack.c.l.b16 %v4842
      %v5324 = vunpack.c.l.b16 %v4843
      %v5325 = vunpack.c.l.b16 %v4844
      %v5326 = vunpack.c.l.b16 %v4845
      %v5327 = vunpack.c.l.b16 %v4846
      %v5328 = vunpack.c.l.b16 %v4847
      %v5329 = vunpack.c.l.b16 %v4848
      %v5330 = vunpack.c.l.b16 %v4849
      %v5331 = vunpack.c.l.b16 %v4850
      %v5332 = vunpack.c.l.b16 %v4851
      %v5333 = vpack.c.b16 %v5322, %v5321
      %v5334 = vpack.c.b16 %v5324, %v5323
      %v5335 = vpack.c.b16 %v5326, %v5325
      %v5336 = vpack.c.b16 %v5328, %v5327
      %v5337 = vpack.c.b16 %v5330, %v5329
      %v5338 = vpack.c.b16 %v5332, %v5331
      %v5345 = vsel %vm1499, %v4791, 0
      %v5347 = vsel %vm1499, %v4793, 0
      %v5349 = vsel %vm1499, %v4795, 0
      %v5351 = vsel %vm1499, %v4797, 0
      %v5353 = vsel %vm1499, %v4799, 0
      %v5355 = vsel %vm1499, %v4801, 0
      %v5357 = vsel %vm1499, %v4803, 0
      %v5359 = vsel %vm1499, %v4805, 0
      %v5361 = vsel %vm1499, %v4807, 0
      %v5363 = vsel %vm1499, %v4809, 0
      %v5365 = vsel %vm1499, %v4811, 0
      %v5367 = vsel %vm1499, %v4813, 0
      %v5369 = vsel %vm1499, %v4815, 0
      %v5371 = vsel %vm1499, %v4817, 0
      %v5373 = vsel %vm1499, %v4819, 0
      %v5375 = vsel %vm1499, %v4821, 0
      %v5377 = vsel %vm1499, %v4823, 0
      %v5379 = vsel %vm1499, %v4825, 0
      %v5381 = vsel %vm1499, %v4827, 0
      %v5383 = vsel %vm1499, %v4829, 0
      %v5385 = vsel %vm1499, %v4831, 0
      %v5387 = vsel %vm1499, %v4833, 0
      %v5389 = vsel %vm1499, %v4835, 0
      %v5391 = vsel %vm1499, %v4837, 0
      %v5393 = vsel %vm1499, %v4839, 0
      %5395 = vmatprep.subr.bf16.mxu0 0
      %5396 = vmatpush1.bf16.msra.mxu0 0
      %5397 = vmatprep.subr.bf16.mxu0 0
      %5398 = vmatpush1.bf16.msra.mxu0 0
      %5399 = vmatprep.subr.bf16.mxu0 0
      %5400 = vmatpush1.bf16.msra.mxu0 %v5338
      %5401 = vmatprep.subr.bf16.mxu0 0
      %5402 = vmatpush1.bf16.msra.mxu0 %v5337
      %5403 = vmatprep.subr.bf16.mxu0 0
      %5404 = vmatpush1.bf16.msra.mxu0 %v5336
      %5405 = vmatprep.subr.bf16.mxu0 0
      %5406 = vmatpush1.bf16.msra.mxu0 %v5335
      %5407 = vmatprep.subr.bf16.mxu0 0
      %5408 = vmatpush1.bf16.msra.mxu0 %v5334
      %5409 = vmatprep.subr.bf16.mxu0 0
      %5410 = vmatpush1.bf16.msra.mxu0 %v5333
      %5411 = vmatprep.subr.bf16.mxu0 0
      %5412 = vmatpush2.bf16.msra.mxu0 0
      %5413 = vmatprep.subr.bf16.mxu0 0
      %5414 = vmatpush2.bf16.msra.mxu0 0
      %5415 = vmatprep.subr.bf16.mxu0 0
      %5416 = vmatpush2.bf16.msra.mxu0 0
      %5417 = vmatprep.subr.bf16.mxu0 0
      %5418 = vmatpush2.bf16.msra.mxu0 0
      %5419 = vmatprep.subr.bf16.mxu0 0
      %5420 = vmatpush2.bf16.msra.mxu0 0
      %5421 = vmatprep.subr.bf16.mxu0 0
      %5422 = vmatpush2.bf16.msra.mxu0 0
      %5423 = vmatprep.subr.bf16.mxu0 0
      %5424 = vmatpush2.bf16.msra.mxu0 0
      %5425 = vmatprep.subr.bf16.mxu0 0
      %5426 = vmatpush2.bf16.msra.mxu0 0
      %5427 = vmatprep.mubr.bf16.mxu0 0
      %5428 = vmatmul.mubr.bf16.gmra.mxu0 %v5345
      %v5429 = vpop.f32.mrf.mxu0
      %v5430 = vadd.f32 %v5112, %v5429
      %v5431 = vpop.f32.mrf.mxu0
      %v5432 = vpop.f32.mrf.mxu0
      %v5433 = vadd.f32 %v5115, %v5432
      %v5434 = vpop.f32.mrf.mxu0
      %5435 = vmatprep.mubr.bf16.mxu0 0
      %5436 = vmatmul.mubr.bf16.gmra.mxu0 %v5347
      %v5437 = vpop.f32.mrf.mxu0
      %v5438 = vadd.f32 %v5120, %v5437
      %v5439 = vpop.f32.mrf.mxu0
      %v5440 = vpop.f32.mrf.mxu0
      %v5441 = vadd.f32 %v5123, %v5440
      %v5442 = vpop.f32.mrf.mxu0
      %5443 = vmatprep.mubr.bf16.mxu0 0
      %5444 = vmatmul.mubr.bf16.gmra.mxu0 %v5349
      %v5445 = vpop.f32.mrf.mxu0
      %v5446 = vadd.f32 %v5128, %v5445
      %v5447 = vpop.f32.mrf.mxu0
      %v5448 = vpop.f32.mrf.mxu0
      %v5449 = vadd.f32 %v5131, %v5448
      %v5450 = vpop.f32.mrf.mxu0
      %5451 = vmatprep.mubr.bf16.mxu0 0
      %5452 = vmatmul.mubr.bf16.gmra.mxu0 %v5351
      %v5453 = vpop.f32.mrf.mxu0
      %v5454 = vadd.f32 %v5136, %v5453
      %v5455 = vpop.f32.mrf.mxu0
      %v5456 = vpop.f32.mrf.mxu0
      %v5457 = vadd.f32 %v5139, %v5456
      %v5458 = vpop.f32.mrf.mxu0
      %5459 = vmatprep.mubr.bf16.mxu0 0
      %5460 = vmatmul.mubr.bf16.gmra.mxu0 %v5353
      %v5461 = vpop.f32.mrf.mxu0
      %v5462 = vadd.f32 %v5144, %v5461
      %v5463 = vpop.f32.mrf.mxu0
      %v5464 = vpop.f32.mrf.mxu0
      %v5465 = vadd.f32 %v5147, %v5464
      %v5466 = vpop.f32.mrf.mxu0
      %5467 = vmatprep.mubr.bf16.mxu0 0
      %5468 = vmatmul.mubr.bf16.gmra.mxu0 %v5355
      %v5469 = vpop.f32.mrf.mxu0
      %v5470 = vadd.f32 %v5152, %v5469
      %v5471 = vpop.f32.mrf.mxu0
      %v5472 = vpop.f32.mrf.mxu0
      %v5473 = vadd.f32 %v5155, %v5472
      %v5474 = vpop.f32.mrf.mxu0
      %5475 = vmatprep.mubr.bf16.mxu0 0
      %5476 = vmatmul.mubr.bf16.gmra.mxu0 %v5357
      %v5477 = vpop.f32.mrf.mxu0
      %v5478 = vadd.f32 %v5160, %v5477
      %v5479 = vpop.f32.mrf.mxu0
      %v5480 = vpop.f32.mrf.mxu0
      %v5481 = vadd.f32 %v5163, %v5480
      %v5482 = vpop.f32.mrf.mxu0
      %5483 = vmatprep.mubr.bf16.mxu0 0
      %5484 = vmatmul.mubr.bf16.gmra.mxu0 %v5359
      %v5485 = vpop.f32.mrf.mxu0
      %v5486 = vadd.f32 %v5168, %v5485
      %v5487 = vpop.f32.mrf.mxu0
      %v5488 = vpop.f32.mrf.mxu0
      %v5489 = vadd.f32 %v5171, %v5488
      %v5490 = vpop.f32.mrf.mxu0
      %5491 = vmatprep.mubr.bf16.mxu0 0
      %5492 = vmatmul.mubr.bf16.gmra.mxu0 %v5361
      %v5493 = vpop.f32.mrf.mxu0
      %v5494 = vadd.f32 %v5176, %v5493
      %v5495 = vpop.f32.mrf.mxu0
      %v5496 = vpop.f32.mrf.mxu0
      %v5497 = vadd.f32 %v5179, %v5496
      %v5498 = vpop.f32.mrf.mxu0
      %5499 = vmatprep.mubr.bf16.mxu0 0
      %5500 = vmatmul.mubr.bf16.gmra.mxu0 %v5363
      %v5501 = vpop.f32.mrf.mxu0
      %v5502 = vadd.f32 %v5184, %v5501
      %v5503 = vpop.f32.mrf.mxu0
      %v5504 = vpop.f32.mrf.mxu0
      %v5505 = vadd.f32 %v5187, %v5504
      %v5506 = vpop.f32.mrf.mxu0
      %5507 = vmatprep.mubr.bf16.mxu0 0
      %5508 = vmatmul.mubr.bf16.gmra.mxu0 %v5365
      %v5509 = vpop.f32.mrf.mxu0
      %v5510 = vadd.f32 %v5192, %v5509
      %v5511 = vpop.f32.mrf.mxu0
      %v5512 = vpop.f32.mrf.mxu0
      %v5513 = vadd.f32 %v5195, %v5512
      %v5514 = vpop.f32.mrf.mxu0
      %5515 = vmatprep.mubr.bf16.mxu0 0
      %5516 = vmatmul.mubr.bf16.gmra.mxu0 %v5367
      %v5517 = vpop.f32.mrf.mxu0
      %v5518 = vadd.f32 %v5200, %v5517
      %v5519 = vpop.f32.mrf.mxu0
      %v5520 = vpop.f32.mrf.mxu0
      %v5521 = vadd.f32 %v5203, %v5520
      %v5522 = vpop.f32.mrf.mxu0
      %5523 = vmatprep.mubr.bf16.mxu0 0
      %5524 = vmatmul.mubr.bf16.gmra.mxu0 %v5369
      %v5525 = vpop.f32.mrf.mxu0
      %v5526 = vadd.f32 %v5208, %v5525
      %v5527 = vpop.f32.mrf.mxu0
      %v5528 = vpop.f32.mrf.mxu0
      %v5529 = vadd.f32 %v5211, %v5528
      %v5530 = vpop.f32.mrf.mxu0
      %5531 = vmatprep.mubr.bf16.mxu0 0
      %5532 = vmatmul.mubr.bf16.gmra.mxu0 %v5371
      %v5533 = vpop.f32.mrf.mxu0
      %v5534 = vadd.f32 %v5216, %v5533
      %v5535 = vpop.f32.mrf.mxu0
      %v5536 = vpop.f32.mrf.mxu0
      %v5537 = vadd.f32 %v5219, %v5536
      %v5538 = vpop.f32.mrf.mxu0
      %5539 = vmatprep.mubr.bf16.mxu0 0
      %5540 = vmatmul.mubr.bf16.gmra.mxu0 %v5373
      %v5541 = vpop.f32.mrf.mxu0
      %v5542 = vadd.f32 %v5224, %v5541
      %v5543 = vpop.f32.mrf.mxu0
      %v5544 = vpop.f32.mrf.mxu0
      %v5545 = vadd.f32 %v5227, %v5544
      %v5546 = vpop.f32.mrf.mxu0
      %5547 = vmatprep.mubr.bf16.mxu0 0
      %5548 = vmatmul.mubr.bf16.gmra.mxu0 %v5375
      %v5549 = vpop.f32.mrf.mxu0
      %v5550 = vadd.f32 %v5232, %v5549
      %v5551 = vpop.f32.mrf.mxu0
      %v5552 = vpop.f32.mrf.mxu0
      %v5553 = vadd.f32 %v5235, %v5552
      %v5554 = vpop.f32.mrf.mxu0
      %5555 = vmatprep.mubr.bf16.mxu0 0
      %5556 = vmatmul.mubr.bf16.gmra.mxu0 %v5377
      %v5557 = vpop.f32.mrf.mxu0
      %v5558 = vadd.f32 %v5240, %v5557
      %v5559 = vpop.f32.mrf.mxu0
      %v5560 = vpop.f32.mrf.mxu0
      %v5561 = vadd.f32 %v5243, %v5560
      %v5562 = vpop.f32.mrf.mxu0
      %5563 = vmatprep.mubr.bf16.mxu0 0
      %5564 = vmatmul.mubr.bf16.gmra.mxu0 %v5379
      %v5565 = vpop.f32.mrf.mxu0
      %v5566 = vadd.f32 %v5248, %v5565
      %v5567 = vpop.f32.mrf.mxu0
      %v5568 = vpop.f32.mrf.mxu0
      %v5569 = vadd.f32 %v5251, %v5568
      %v5570 = vpop.f32.mrf.mxu0
      %5571 = vmatprep.mubr.bf16.mxu0 0
      %5572 = vmatmul.mubr.bf16.gmra.mxu0 %v5381
      %v5573 = vpop.f32.mrf.mxu0
      %v5574 = vadd.f32 %v5256, %v5573
      %v5575 = vpop.f32.mrf.mxu0
      %v5576 = vpop.f32.mrf.mxu0
      %v5577 = vadd.f32 %v5259, %v5576
      %v5578 = vpop.f32.mrf.mxu0
      %5579 = vmatprep.mubr.bf16.mxu0 0
      %5580 = vmatmul.mubr.bf16.gmra.mxu0 %v5383
      %v5581 = vpop.f32.mrf.mxu0
      %v5582 = vadd.f32 %v5264, %v5581
      %v5583 = vpop.f32.mrf.mxu0
      %v5584 = vpop.f32.mrf.mxu0
      %v5585 = vadd.f32 %v5267, %v5584
      %v5586 = vpop.f32.mrf.mxu0
      %5587 = vmatprep.mubr.bf16.mxu0 0
      %5588 = vmatmul.mubr.bf16.gmra.mxu0 %v5385
      %v5589 = vpop.f32.mrf.mxu0
      %v5590 = vadd.f32 %v5272, %v5589
      %v5591 = vpop.f32.mrf.mxu0
      %v5592 = vpop.f32.mrf.mxu0
      %v5593 = vadd.f32 %v5275, %v5592
      %v5594 = vpop.f32.mrf.mxu0
      %5595 = vmatprep.mubr.bf16.mxu0 0
      %5596 = vmatmul.mubr.bf16.gmra.mxu0 %v5387
      %v5597 = vpop.f32.mrf.mxu0
      %v5598 = vadd.f32 %v5280, %v5597
      %v5599 = vpop.f32.mrf.mxu0
      %v5600 = vpop.f32.mrf.mxu0
      %v5601 = vadd.f32 %v5283, %v5600
      %v5602 = vpop.f32.mrf.mxu0
      %5603 = vmatprep.mubr.bf16.mxu0 0
      %5604 = vmatmul.mubr.bf16.gmra.mxu0 %v5389
      %v5605 = vpop.f32.mrf.mxu0
      %v5606 = vadd.f32 %v5288, %v5605
      %v5607 = vpop.f32.mrf.mxu0
      %v5608 = vpop.f32.mrf.mxu0
      %v5609 = vadd.f32 %v5291, %v5608
      %v5610 = vpop.f32.mrf.mxu0
      %5611 = vmatprep.mubr.bf16.mxu0 0
      %5612 = vmatmul.mubr.bf16.gmra.mxu0 %v5391
      %v5613 = vpop.f32.mrf.mxu0
      %v5614 = vadd.f32 %v5296, %v5613
      %v5615 = vpop.f32.mrf.mxu0
      %v5616 = vpop.f32.mrf.mxu0
      %v5617 = vadd.f32 %v5299, %v5616
      %v5618 = vpop.f32.mrf.mxu0
      %5619 = vmatprep.mubr.bf16.mxu0 0
      %5620 = vmatmul.mubr.bf16.gmra.mxu0 %v5393
      %v5621 = vpop.f32.mrf.mxu0
      %v5622 = vadd.f32 %v5304, %v5621
      %v5623 = vpop.f32.mrf.mxu0
      %v5624 = vpop.f32.mrf.mxu0
      %v5625 = vpop.f32.mrf.mxu0
      %5626 = vdwg.mxu0
      %v5628 = vshll.u32 %v4365, 16
      %v5630 = vrot.slane %v5628, 1
      %v5631 = vsel %vm616, %v4859, %v5630
      %v5632 = vshrl.u32 %v4365, 16
      %v5634 = vor.u32 %v5632, %v5630
      %v5636 = vshll.u32 %v4366, 16
      %v5638 = vrot.slane %v5636, 1
      %v5639 = vsel %vm616, %v5634, %v5638
      %v5640 = vshrl.u32 %v4366, 16
      %v5642 = vor.u32 %v5640, %v5638
      %5643 = vrot.lane.b32.xlu0 %v5631, 32
      %v5644 = vpop.permute.xlu0 %5643
      %5645 = vrot.lane.b32.xlu0 %v5639, 32
      %v5646 = vpop.permute.xlu0 %5645
      %5647 = vrot.lane.b32.xlu0 %v5642, 32
      %v5648 = vpop.permute.xlu0 %5647
      %v5651 = vrot.slane %v4365, 1
      %v5652 = vsel %vm896, %v4865, %v5651
      %v5653 = vrot.slane %v4366, 1
      %v5654 = vsel %vm896, %v5651, %v5653
      %5655 = vrot.lane.b32.xlu0 %v5652, 64
      %v5656 = vpop.permute.xlu0 %5655
      %5657 = vrot.lane.b32.xlu0 %v5654, 64
      %v5658 = vpop.permute.xlu0 %5657
      %5659 = vrot.lane.b32.xlu0 %v5653, 64
      %v5660 = vpop.permute.xlu0 %5659
      %v5662 = vsel %vm1008, %v4364, %v5644
      %v5664 = vsel %vm1008, %v4365, %v5646
      %v5666 = vsel %vm1008, %v4366, %v5648
      %v5668 = vsel %vm1065, %v5662, %v5656
      %v5670 = vsel %vm1065, %v5664, %v5658
      %v5672 = vsel %vm1065, %v5666, %v5660
      %s5673 = scalar_lea.vmem %s4, 96
      %v5674 = vld [vmem:[%s5673] sm:$0xf]
      %v5675 = vld [vmem:[%s5673 + $0x4] sm:$0xf]
      %v5676 = vld [vmem:[%s5673 + $0x8] sm:$0xf]
      %v5677 = vld [vmem:[%s5673 + $0xc] sm:$0xf]
      %v5678 = vld [vmem:[%s5673 + $0x10] sm:$0xf]
      %v5679 = vld [vmem:[%s5673 + $0x14] sm:$0xf]
      %v5680 = vld [vmem:[%s5673 + $0x18] sm:$0xf]
      %v5681 = vld [vmem:[%s5673 + $0x1c] sm:$0xf]
      %v5682 = vld [vmem:[%s5673 + $0x20] sm:$0xf]
      %v5683 = vld [vmem:[%s5673 + $0x24] sm:$0xf]
      %v5684 = vld [vmem:[%s5673 + $0x28] sm:$0xf]
      %v5685 = vld [vmem:[%s5673 + $0x2c] sm:$0xf]
      %vm5689 = vcmask 1041408
      %v5690 = vrot.slane %v4795, 6
      %v5691 = vrot.slane %v4797, 6
      %v5692 = vsel %vm5689, %v5690, %v5691
      %v5693 = vrot.slane %v4799, 6
      %v5694 = vsel %vm5689, %v5691, %v5693
      %v5695 = vrot.slane %v4801, 6
      %v5696 = vsel %vm5689, %v5693, %v5695
      %v5697 = vrot.slane %v4803, 6
      %v5698 = vsel %vm5689, %v5695, %v5697
      %v5699 = vrot.slane %v4805, 6
      %v5700 = vsel %vm5689, %v5697, %v5699
      %v5701 = vrot.slane %v4807, 6
      %v5702 = vsel %vm5689, %v5699, %v5701
      %v5703 = vrot.slane %v4809, 6
      %v5704 = vsel %vm5689, %v5701, %v5703
      %v5705 = vrot.slane %v4811, 6
      %v5706 = vsel %vm5689, %v5703, %v5705
      %v5707 = vrot.slane %v4813, 6
      %v5708 = vsel %vm5689, %v5705, %v5707
      %v5709 = vrot.slane %v4815, 6
      %v5710 = vsel %vm5689, %v5707, %v5709
      %v5711 = vrot.slane %v4817, 6
      %v5712 = vsel %vm5689, %v5709, %v5711
      %v5713 = vrot.slane %v4819, 6
      %v5714 = vsel %vm5689, %v5711, %v5713
      %v5715 = vrot.slane %v4821, 6
      %v5716 = vsel %vm5689, %v5713, %v5715
      %v5717 = vrot.slane %v4823, 6
      %v5718 = vsel %vm5689, %v5715, %v5717
      %v5719 = vrot.slane %v4825, 6
      %v5720 = vsel %vm5689, %v5717, %v5719
      %v5721 = vrot.slane %v4827, 6
      %v5722 = vsel %vm5689, %v5719, %v5721
      %v5723 = vrot.slane %v4829, 6
      %v5724 = vsel %vm5689, %v5721, %v5723
      %v5725 = vrot.slane %v4831, 6
      %v5726 = vsel %vm5689, %v5723, %v5725
      %v5727 = vrot.slane %v4833, 6
      %v5728 = vsel %vm5689, %v5725, %v5727
      %v5729 = vrot.slane %v4835, 6
      %v5730 = vsel %vm5689, %v5727, %v5729
      %v5731 = vrot.slane %v4837, 6
      %v5732 = vsel %vm5689, %v5729, %v5731
      %v5733 = vrot.slane %v4876, 6
      %v5734 = vsel %vm5689, %v5731, %v5733
      %v5735 = vrot.slane %v5668, 6
      %v5736 = vsel %vm5689, %v5733, %v5735
      %v5737 = vrot.slane %v5670, 6
      %v5738 = vsel %vm5689, %v5735, %v5737
      %v5739 = vrot.slane %v5672, 6
      %v5740 = vsel %vm5689, %v5737, %v5739
      %v5753 = vunpack.c.l.b16 %v5674
      %v5754 = vunpack.c.l.b16 %v5675
      %v5755 = vunpack.c.l.b16 %v5676
      %v5756 = vunpack.c.l.b16 %v5677
      %v5757 = vunpack.c.l.b16 %v5678
      %v5758 = vunpack.c.l.b16 %v5679
      %v5759 = vunpack.c.l.b16 %v5680
      %v5760 = vunpack.c.l.b16 %v5681
      %v5761 = vunpack.c.l.b16 %v5682
      %v5762 = vunpack.c.l.b16 %v5683
      %v5763 = vunpack.c.l.b16 %v5684
      %v5764 = vunpack.c.l.b16 %v5685
      %v5765 = vpack.c.b16 %v5754, %v5753
      %v5766 = vpack.c.b16 %v5756, %v5755
      %v5767 = vpack.c.b16 %v5758, %v5757
      %v5768 = vpack.c.b16 %v5760, %v5759
      %v5769 = vpack.c.b16 %v5762, %v5761
      %v5770 = vpack.c.b16 %v5764, %v5763
      %v5778 = vsel %vm1499, %v5692, 0
      %v5781 = vsel %vm1499, %v5694, 0
      %v5784 = vsel %vm1499, %v5696, 0
      %v5787 = vsel %vm1499, %v5698, 0
      %v5790 = vsel %vm1499, %v5700, 0
      %v5793 = vsel %vm1499, %v5702, 0
      %v5796 = vsel %vm1499, %v5704, 0
      %v5799 = vsel %vm1499, %v5706, 0
      %v5802 = vsel %vm1499, %v5708, 0
      %v5805 = vsel %vm1499, %v5710, 0
      %v5808 = vsel %vm1499, %v5712, 0
      %v5811 = vsel %vm1499, %v5714, 0
      %v5814 = vsel %vm1499, %v5716, 0
      %v5817 = vsel %vm1499, %v5718, 0
      %v5820 = vsel %vm1499, %v5720, 0
      %v5823 = vsel %vm1499, %v5722, 0
      %v5826 = vsel %vm1499, %v5724, 0
      %v5829 = vsel %vm1499, %v5726, 0
      %v5832 = vsel %vm1499, %v5728, 0
      %v5835 = vsel %vm1499, %v5730, 0
      %v5838 = vsel %vm1499, %v5732, 0
      %v5841 = vsel %vm1499, %v5734, 0
      %v5844 = vsel %vm1499, %v5736, 0
      %v5847 = vsel %vm1499, %v5738, 0
      %v5850 = vsel %vm1499, %v5740, 0
      %5852 = vmatprep.subr.bf16.mxu0 0
      %5853 = vmatpush1.bf16.msra.mxu0 0
      %5854 = vmatprep.subr.bf16.mxu0 0
      %5855 = vmatpush1.bf16.msra.mxu0 0
      %5856 = vmatprep.subr.bf16.mxu0 0
      %5857 = vmatpush1.bf16.msra.mxu0 %v5770
      %5858 = vmatprep.subr.bf16.mxu0 0
      %5859 = vmatpush1.bf16.msra.mxu0 %v5769
      %5860 = vmatprep.subr.bf16.mxu0 0
      %5861 = vmatpush1.bf16.msra.mxu0 %v5768
      %5862 = vmatprep.subr.bf16.mxu0 0
      %5863 = vmatpush1.bf16.msra.mxu0 %v5767
      %5864 = vmatprep.subr.bf16.mxu0 0
      %5865 = vmatpush1.bf16.msra.mxu0 %v5766
      %5866 = vmatprep.subr.bf16.mxu0 0
      %5867 = vmatpush1.bf16.msra.mxu0 %v5765
      %5868 = vmatprep.subr.bf16.mxu0 0
      %5869 = vmatpush2.bf16.msra.mxu0 0
      %5870 = vmatprep.subr.bf16.mxu0 0
      %5871 = vmatpush2.bf16.msra.mxu0 0
      %5872 = vmatprep.subr.bf16.mxu0 0
      %5873 = vmatpush2.bf16.msra.mxu0 0
      %5874 = vmatprep.subr.bf16.mxu0 0
      %5875 = vmatpush2.bf16.msra.mxu0 0
      %5876 = vmatprep.subr.bf16.mxu0 0
      %5877 = vmatpush2.bf16.msra.mxu0 0
      %5878 = vmatprep.subr.bf16.mxu0 0
      %5879 = vmatpush2.bf16.msra.mxu0 0
      %5880 = vmatprep.subr.bf16.mxu0 0
      %5881 = vmatpush2.bf16.msra.mxu0 0
      %5882 = vmatprep.subr.bf16.mxu0 0
      %5883 = vmatpush2.bf16.msra.mxu0 0
      %5884 = vmatprep.mubr.bf16.mxu0 0
      %5885 = vmatmul.mubr.bf16.gmra.mxu0 %v5778
      %v5886 = vpop.f32.mrf.mxu0
      %v5887 = vadd.f32 0.0, %v5886
      %v5888 = vpop.f32.mrf.mxu0
      %v5889 = vpop.f32.mrf.mxu0
      %v5890 = vadd.f32 0.0, %v5889
      %v5891 = vpop.f32.mrf.mxu0
      %5892 = vmatprep.mubr.bf16.mxu0 0
      %5893 = vmatmul.mubr.bf16.gmra.mxu0 %v5781
      %v5894 = vpop.f32.mrf.mxu0
      %v5895 = vadd.f32 0.0, %v5894
      %v5896 = vpop.f32.mrf.mxu0
      %v5897 = vpop.f32.mrf.mxu0
      %v5898 = vadd.f32 0.0, %v5897
      %v5899 = vpop.f32.mrf.mxu0
      %5900 = vmatprep.mubr.bf16.mxu0 0
      %5901 = vmatmul.mubr.bf16.gmra.mxu0 %v5784
      %v5902 = vpop.f32.mrf.mxu0
      %v5903 = vadd.f32 0.0, %v5902
      %v5904 = vpop.f32.mrf.mxu0
      %v5905 = vpop.f32.mrf.mxu0
      %v5906 = vadd.f32 0.0, %v5905
      %v5907 = vpop.f32.mrf.mxu0
      %5908 = vmatprep.mubr.bf16.mxu0 0
      %5909 = vmatmul.mubr.bf16.gmra.mxu0 %v5787
      %v5910 = vpop.f32.mrf.mxu0
      %v5911 = vadd.f32 0.0, %v5910
      %v5912 = vpop.f32.mrf.mxu0
      %v5913 = vpop.f32.mrf.mxu0
      %v5914 = vadd.f32 0.0, %v5913
      %v5915 = vpop.f32.mrf.mxu0
      %5916 = vmatprep.mubr.bf16.mxu0 0
      %5917 = vmatmul.mubr.bf16.gmra.mxu0 %v5790
      %v5918 = vpop.f32.mrf.mxu0
      %v5919 = vadd.f32 0.0, %v5918
      %v5920 = vpop.f32.mrf.mxu0
      %v5921 = vpop.f32.mrf.mxu0
      %v5922 = vadd.f32 0.0, %v5921
      %v5923 = vpop.f32.mrf.mxu0
      %5924 = vmatprep.mubr.bf16.mxu0 0
      %5925 = vmatmul.mubr.bf16.gmra.mxu0 %v5793
      %v5926 = vpop.f32.mrf.mxu0
      %v5927 = vadd.f32 0.0, %v5926
      %v5928 = vpop.f32.mrf.mxu0
      %v5929 = vpop.f32.mrf.mxu0
      %v5930 = vadd.f32 0.0, %v5929
      %v5931 = vpop.f32.mrf.mxu0
      %5932 = vmatprep.mubr.bf16.mxu0 0
      %5933 = vmatmul.mubr.bf16.gmra.mxu0 %v5796
      %v5934 = vpop.f32.mrf.mxu0
      %v5935 = vadd.f32 0.0, %v5934
      %v5936 = vpop.f32.mrf.mxu0
      %v5937 = vpop.f32.mrf.mxu0
      %v5938 = vadd.f32 0.0, %v5937
      %v5939 = vpop.f32.mrf.mxu0
      %5940 = vmatprep.mubr.bf16.mxu0 0
      %5941 = vmatmul.mubr.bf16.gmra.mxu0 %v5799
      %v5942 = vpop.f32.mrf.mxu0
      %v5943 = vadd.f32 0.0, %v5942
      %v5944 = vpop.f32.mrf.mxu0
      %v5945 = vpop.f32.mrf.mxu0
      %v5946 = vadd.f32 0.0, %v5945
      %v5947 = vpop.f32.mrf.mxu0
      %5948 = vmatprep.mubr.bf16.mxu0 0
      %5949 = vmatmul.mubr.bf16.gmra.mxu0 %v5802
      %v5950 = vpop.f32.mrf.mxu0
      %v5951 = vadd.f32 0.0, %v5950
      %v5952 = vpop.f32.mrf.mxu0
      %v5953 = vpop.f32.mrf.mxu0
      %v5954 = vadd.f32 0.0, %v5953
      %v5955 = vpop.f32.mrf.mxu0
      %5956 = vmatprep.mubr.bf16.mxu0 0
      %5957 = vmatmul.mubr.bf16.gmra.mxu0 %v5805
      %v5958 = vpop.f32.mrf.mxu0
      %v5959 = vadd.f32 0.0, %v5958
      %v5960 = vpop.f32.mrf.mxu0
      %v5961 = vpop.f32.mrf.mxu0
      %v5962 = vadd.f32 0.0, %v5961
      %v5963 = vpop.f32.mrf.mxu0
      %5964 = vmatprep.mubr.bf16.mxu0 0
      %5965 = vmatmul.mubr.bf16.gmra.mxu0 %v5808
      %v5966 = vpop.f32.mrf.mxu0
      %v5967 = vadd.f32 0.0, %v5966
      %v5968 = vpop.f32.mrf.mxu0
      %v5969 = vpop.f32.mrf.mxu0
      %v5970 = vadd.f32 0.0, %v5969
      %v5971 = vpop.f32.mrf.mxu0
      %5972 = vmatprep.mubr.bf16.mxu0 0
      %5973 = vmatmul.mubr.bf16.gmra.mxu0 %v5811
      %v5974 = vpop.f32.mrf.mxu0
      %v5975 = vadd.f32 0.0, %v5974
      %v5976 = vpop.f32.mrf.mxu0
      %v5977 = vpop.f32.mrf.mxu0
      %v5978 = vadd.f32 0.0, %v5977
      %v5979 = vpop.f32.mrf.mxu0
      %5980 = vmatprep.mubr.bf16.mxu0 0
      %5981 = vmatmul.mubr.bf16.gmra.mxu0 %v5814
      %v5982 = vpop.f32.mrf.mxu0
      %v5983 = vadd.f32 0.0, %v5982
      %v5984 = vpop.f32.mrf.mxu0
      %v5985 = vpop.f32.mrf.mxu0
      %v5986 = vadd.f32 0.0, %v5985
      %v5987 = vpop.f32.mrf.mxu0
      %5988 = vmatprep.mubr.bf16.mxu0 0
      %5989 = vmatmul.mubr.bf16.gmra.mxu0 %v5817
      %v5990 = vpop.f32.mrf.mxu0
      %v5991 = vadd.f32 0.0, %v5990
      %v5992 = vpop.f32.mrf.mxu0
      %v5993 = vpop.f32.mrf.mxu0
      %v5994 = vadd.f32 0.0, %v5993
      %v5995 = vpop.f32.mrf.mxu0
      %5996 = vmatprep.mubr.bf16.mxu0 0
      %5997 = vmatmul.mubr.bf16.gmra.mxu0 %v5820
      %v5998 = vpop.f32.mrf.mxu0
      %v5999 = vadd.f32 0.0, %v5998
      %v6000 = vpop.f32.mrf.mxu0
      %v6001 = vpop.f32.mrf.mxu0
      %v6002 = vadd.f32 0.0, %v6001
      %v6003 = vpop.f32.mrf.mxu0
      %6004 = vmatprep.mubr.bf16.mxu0 0
      %6005 = vmatmul.mubr.bf16.gmra.mxu0 %v5823
      %v6006 = vpop.f32.mrf.mxu0
      %v6007 = vadd.f32 0.0, %v6006
      %v6008 = vpop.f32.mrf.mxu0
      %v6009 = vpop.f32.mrf.mxu0
      %v6010 = vadd.f32 0.0, %v6009
      %v6011 = vpop.f32.mrf.mxu0
      %6012 = vmatprep.mubr.bf16.mxu0 0
      %6013 = vmatmul.mubr.bf16.gmra.mxu0 %v5826
      %v6014 = vpop.f32.mrf.mxu0
      %v6015 = vadd.f32 0.0, %v6014
      %v6016 = vpop.f32.mrf.mxu0
      %v6017 = vpop.f32.mrf.mxu0
      %v6018 = vadd.f32 0.0, %v6017
      %v6019 = vpop.f32.mrf.mxu0
      %6020 = vmatprep.mubr.bf16.mxu0 0
      %6021 = vmatmul.mubr.bf16.gmra.mxu0 %v5829
      %v6022 = vpop.f32.mrf.mxu0
      %v6023 = vadd.f32 0.0, %v6022
      %v6024 = vpop.f32.mrf.mxu0
      %v6025 = vpop.f32.mrf.mxu0
      %v6026 = vadd.f32 0.0, %v6025
      %v6027 = vpop.f32.mrf.mxu0
      %6028 = vmatprep.mubr.bf16.mxu0 0
      %6029 = vmatmul.mubr.bf16.gmra.mxu0 %v5832
      %v6030 = vpop.f32.mrf.mxu0
      %v6031 = vadd.f32 0.0, %v6030
      %v6032 = vpop.f32.mrf.mxu0
      %v6033 = vpop.f32.mrf.mxu0
      %v6034 = vadd.f32 0.0, %v6033
      %v6035 = vpop.f32.mrf.mxu0
      %6036 = vmatprep.mubr.bf16.mxu0 0
      %6037 = vmatmul.mubr.bf16.gmra.mxu0 %v5835
      %v6038 = vpop.f32.mrf.mxu0
      %v6039 = vadd.f32 0.0, %v6038
      %v6040 = vpop.f32.mrf.mxu0
      %v6041 = vpop.f32.mrf.mxu0
      %v6042 = vadd.f32 0.0, %v6041
      %v6043 = vpop.f32.mrf.mxu0
      %6044 = vmatprep.mubr.bf16.mxu0 0
      %6045 = vmatmul.mubr.bf16.gmra.mxu0 %v5838
      %v6046 = vpop.f32.mrf.mxu0
      %v6047 = vadd.f32 0.0, %v6046
      %v6048 = vpop.f32.mrf.mxu0
      %v6049 = vpop.f32.mrf.mxu0
      %v6050 = vadd.f32 0.0, %v6049
      %v6051 = vpop.f32.mrf.mxu0
      %6052 = vmatprep.mubr.bf16.mxu0 0
      %6053 = vmatmul.mubr.bf16.gmra.mxu0 %v5841
      %v6054 = vpop.f32.mrf.mxu0
      %v6055 = vadd.f32 0.0, %v6054
      %v6056 = vpop.f32.mrf.mxu0
      %v6057 = vpop.f32.mrf.mxu0
      %v6058 = vadd.f32 0.0, %v6057
      %v6059 = vpop.f32.mrf.mxu0
      %6060 = vmatprep.mubr.bf16.mxu0 0
      %6061 = vmatmul.mubr.bf16.gmra.mxu0 %v5844
      %v6062 = vpop.f32.mrf.mxu0
      %v6063 = vadd.f32 0.0, %v6062
      %v6064 = vpop.f32.mrf.mxu0
      %v6065 = vpop.f32.mrf.mxu0
      %v6066 = vadd.f32 0.0, %v6065
      %v6067 = vpop.f32.mrf.mxu0
      %6068 = vmatprep.mubr.bf16.mxu0 0
      %6069 = vmatmul.mubr.bf16.gmra.mxu0 %v5847
      %v6070 = vpop.f32.mrf.mxu0
      %v6071 = vadd.f32 0.0, %v6070
      %v6072 = vpop.f32.mrf.mxu0
      %v6073 = vpop.f32.mrf.mxu0
      %v6074 = vadd.f32 0.0, %v6073
      %v6075 = vpop.f32.mrf.mxu0
      %6076 = vmatprep.mubr.bf16.mxu0 0
      %6077 = vmatmul.mubr.bf16.gmra.mxu0 %v5850
      %v6078 = vpop.f32.mrf.mxu0
      %v6079 = vadd.f32 0.0, %v6078
      %v6080 = vpop.f32.mrf.mxu0
      %v6081 = vpop.f32.mrf.mxu0
      %v6082 = vpop.f32.mrf.mxu0
      %6083 = vdwg.mxu0
      %v6084 = vadd.f32 %v5430, %v5887
      %v6085 = vadd.f32 %v5433, %v5890
      %v6086 = vadd.f32 %v5438, %v5895
      %v6087 = vadd.f32 %v5441, %v5898
      %v6088 = vadd.f32 %v5446, %v5903
      %v6089 = vadd.f32 %v5449, %v5906
      %v6090 = vadd.f32 %v5454, %v5911
      %v6091 = vadd.f32 %v5457, %v5914
      %v6092 = vadd.f32 %v5462, %v5919
      %v6093 = vadd.f32 %v5465, %v5922
      %v6094 = vadd.f32 %v5470, %v5927
      %v6095 = vadd.f32 %v5473, %v5930
      %v6096 = vadd.f32 %v5478, %v5935
      %v6097 = vadd.f32 %v5481, %v5938
      %v6098 = vadd.f32 %v5486, %v5943
      %v6099 = vadd.f32 %v5489, %v5946
      %v6100 = vadd.f32 %v5494, %v5951
      %v6101 = vadd.f32 %v5497, %v5954
      %v6102 = vadd.f32 %v5502, %v5959
      %v6103 = vadd.f32 %v5505, %v5962
      %v6104 = vadd.f32 %v5510, %v5967
      %v6105 = vadd.f32 %v5513, %v5970
      %v6106 = vadd.f32 %v5518, %v5975
      %v6107 = vadd.f32 %v5521, %v5978
      %v6108 = vadd.f32 %v5526, %v5983
      %v6109 = vadd.f32 %v5529, %v5986
      %v6110 = vadd.f32 %v5534, %v5991
      %v6111 = vadd.f32 %v5537, %v5994
      %v6112 = vadd.f32 %v5542, %v5999
      %v6113 = vadd.f32 %v5545, %v6002
      %v6114 = vadd.f32 %v5550, %v6007
      %v6115 = vadd.f32 %v5553, %v6010
      %v6116 = vadd.f32 %v5558, %v6015
      %v6117 = vadd.f32 %v5561, %v6018
      %v6118 = vadd.f32 %v5566, %v6023
      %v6119 = vadd.f32 %v5569, %v6026
      %v6120 = vadd.f32 %v5574, %v6031
      %v6121 = vadd.f32 %v5577, %v6034
      %v6122 = vadd.f32 %v5582, %v6039
      %v6123 = vadd.f32 %v5585, %v6042
      %v6124 = vadd.f32 %v5590, %v6047
      %v6125 = vadd.f32 %v5593, %v6050
      %v6126 = vadd.f32 %v5598, %v6055
      %v6127 = vadd.f32 %v5601, %v6058
      %v6128 = vadd.f32 %v5606, %v6063
      %v6129 = vadd.f32 %v5609, %v6066
      %v6130 = vadd.f32 %v5614, %v6071
      %v6131 = vadd.f32 %v5617, %v6074
      %v6132 = vadd.f32 %v5622, %v6079
      %v6133 = vld [vmem:[%s5] sm:$0x1]
      %v6135 = vlaneseq
      %v6136 = vshrl.u32 %v6135, 7
      %v6137 = vsub.s32 0, %v6136
      %v6138 = vrot.slane %v6133, %v6137
      %v6140 = vadd.f32 %v6084, %v6138
      %v6141 = vadd.f32 %v6085, %v6138
      %v6142 = vadd.f32 %v6086, %v6138
      %v6143 = vadd.f32 %v6087, %v6138
      %v6144 = vadd.f32 %v6088, %v6138
      %v6145 = vadd.f32 %v6089, %v6138
      %v6146 = vadd.f32 %v6090, %v6138
      %v6147 = vadd.f32 %v6091, %v6138
      %v6148 = vadd.f32 %v6092, %v6138
      %v6149 = vadd.f32 %v6093, %v6138
      %v6150 = vadd.f32 %v6094, %v6138
      %v6151 = vadd.f32 %v6095, %v6138
      %v6152 = vadd.f32 %v6096, %v6138
      %v6153 = vadd.f32 %v6097, %v6138
      %v6154 = vadd.f32 %v6098, %v6138
      %v6155 = vadd.f32 %v6099, %v6138
      %v6156 = vadd.f32 %v6100, %v6138
      %v6157 = vadd.f32 %v6101, %v6138
      %v6158 = vadd.f32 %v6102, %v6138
      %v6159 = vadd.f32 %v6103, %v6138
      %v6160 = vadd.f32 %v6104, %v6138
      %v6161 = vadd.f32 %v6105, %v6138
      %v6162 = vadd.f32 %v6106, %v6138
      %v6163 = vadd.f32 %v6107, %v6138
      %v6164 = vadd.f32 %v6108, %v6138
      %v6165 = vadd.f32 %v6109, %v6138
      %v6166 = vadd.f32 %v6110, %v6138
      %v6167 = vadd.f32 %v6111, %v6138
      %v6168 = vadd.f32 %v6112, %v6138
      %v6169 = vadd.f32 %v6113, %v6138
      %v6170 = vadd.f32 %v6114, %v6138
      %v6171 = vadd.f32 %v6115, %v6138
      %v6172 = vadd.f32 %v6116, %v6138
      %v6173 = vadd.f32 %v6117, %v6138
      %v6174 = vadd.f32 %v6118, %v6138
      %v6175 = vadd.f32 %v6119, %v6138
      %v6176 = vadd.f32 %v6120, %v6138
      %v6177 = vadd.f32 %v6121, %v6138
      %v6178 = vadd.f32 %v6122, %v6138
      %v6179 = vadd.f32 %v6123, %v6138
      %v6180 = vadd.f32 %v6124, %v6138
      %v6181 = vadd.f32 %v6125, %v6138
      %v6182 = vadd.f32 %v6126, %v6138
      %v6183 = vadd.f32 %v6127, %v6138
      %v6184 = vadd.f32 %v6128, %v6138
      %v6185 = vadd.f32 %v6129, %v6138
      %v6186 = vadd.f32 %v6130, %v6138
      %v6187 = vadd.f32 %v6131, %v6138
      %v6188 = vadd.f32 %v6132, %v6138
      %v6189 = vmax.f32 %v6140, 0.0
      %v6190 = vmax.f32 %v6141, 0.0
      %v6191 = vmax.f32 %v6142, 0.0
      %v6192 = vmax.f32 %v6143, 0.0
      %v6193 = vmax.f32 %v6144, 0.0
      %v6194 = vmax.f32 %v6145, 0.0
      %v6195 = vmax.f32 %v6146, 0.0
      %v6196 = vmax.f32 %v6147, 0.0
      %v6197 = vmax.f32 %v6148, 0.0
      %v6198 = vmax.f32 %v6149, 0.0
      %v6199 = vmax.f32 %v6150, 0.0
      %v6200 = vmax.f32 %v6151, 0.0
      %v6201 = vmax.f32 %v6152, 0.0
      %v6202 = vmax.f32 %v6153, 0.0
      %v6203 = vmax.f32 %v6154, 0.0
      %v6204 = vmax.f32 %v6155, 0.0
      %v6205 = vmax.f32 %v6156, 0.0
      %v6206 = vmax.f32 %v6157, 0.0
      %v6207 = vmax.f32 %v6158, 0.0
      %v6208 = vmax.f32 %v6159, 0.0
      %v6209 = vmax.f32 %v6160, 0.0
      %v6210 = vmax.f32 %v6161, 0.0
      %v6211 = vmax.f32 %v6162, 0.0
      %v6212 = vmax.f32 %v6163, 0.0
      %v6213 = vmax.f32 %v6164, 0.0
      %v6214 = vmax.f32 %v6165, 0.0
      %v6215 = vmax.f32 %v6166, 0.0
      %v6216 = vmax.f32 %v6167, 0.0
      %v6217 = vmax.f32 %v6168, 0.0
      %v6218 = vmax.f32 %v6169, 0.0
      %v6219 = vmax.f32 %v6170, 0.0
      %v6220 = vmax.f32 %v6171, 0.0
      %v6221 = vmax.f32 %v6172, 0.0
      %v6222 = vmax.f32 %v6173, 0.0
      %v6223 = vmax.f32 %v6174, 0.0
      %v6224 = vmax.f32 %v6175, 0.0
      %v6225 = vmax.f32 %v6176, 0.0
      %v6226 = vmax.f32 %v6177, 0.0
      %v6227 = vmax.f32 %v6178, 0.0
      %v6228 = vmax.f32 %v6179, 0.0
      %v6229 = vmax.f32 %v6180, 0.0
      %v6230 = vmax.f32 %v6181, 0.0
      %v6231 = vmax.f32 %v6182, 0.0
      %v6232 = vmax.f32 %v6183, 0.0
      %v6233 = vmax.f32 %v6184, 0.0
      %v6234 = vmax.f32 %v6185, 0.0
      %v6235 = vmax.f32 %v6186, 0.0
      %v6236 = vmax.f32 %v6187, 0.0
      %v6237 = vmax.f32 %v6188, 0.0
      %v6238 = vmin.f32 %v6189, 6.0
      %v6239 = vmin.f32 %v6190, 6.0
      %v6240 = vmin.f32 %v6191, 6.0
      %v6241 = vmin.f32 %v6192, 6.0
      %v6242 = vmin.f32 %v6193, 6.0
      %v6243 = vmin.f32 %v6194, 6.0
      %v6244 = vmin.f32 %v6195, 6.0
      %v6245 = vmin.f32 %v6196, 6.0
      %v6246 = vmin.f32 %v6197, 6.0
      %v6247 = vmin.f32 %v6198, 6.0
      %v6248 = vmin.f32 %v6199, 6.0
      %v6249 = vmin.f32 %v6200, 6.0
      %v6250 = vmin.f32 %v6201, 6.0
      %v6251 = vmin.f32 %v6202, 6.0
      %v6252 = vmin.f32 %v6203, 6.0
      %v6253 = vmin.f32 %v6204, 6.0
      %v6254 = vmin.f32 %v6205, 6.0
      %v6255 = vmin.f32 %v6206, 6.0
      %v6256 = vmin.f32 %v6207, 6.0
      %v6257 = vmin.f32 %v6208, 6.0
      %v6258 = vmin.f32 %v6209, 6.0
      %v6259 = vmin.f32 %v6210, 6.0
      %v6260 = vmin.f32 %v6211, 6.0
      %v6261 = vmin.f32 %v6212, 6.0
      %v6262 = vmin.f32 %v6213, 6.0
      %v6263 = vmin.f32 %v6214, 6.0
      %v6264 = vmin.f32 %v6215, 6.0
      %v6265 = vmin.f32 %v6216, 6.0
      %v6266 = vmin.f32 %v6217, 6.0
      %v6267 = vmin.f32 %v6218, 6.0
      %v6268 = vmin.f32 %v6219, 6.0
      %v6269 = vmin.f32 %v6220, 6.0
      %v6270 = vmin.f32 %v6221, 6.0
      %v6271 = vmin.f32 %v6222, 6.0
      %v6272 = vmin.f32 %v6223, 6.0
      %v6273 = vmin.f32 %v6224, 6.0
      %v6274 = vmin.f32 %v6225, 6.0
      %v6275 = vmin.f32 %v6226, 6.0
      %v6276 = vmin.f32 %v6227, 6.0
      %v6277 = vmin.f32 %v6228, 6.0
      %v6278 = vmin.f32 %v6229, 6.0
      %v6279 = vmin.f32 %v6230, 6.0
      %v6280 = vmin.f32 %v6231, 6.0
      %v6281 = vmin.f32 %v6232, 6.0
      %v6282 = vmin.f32 %v6233, 6.0
      %v6283 = vmin.f32 %v6234, 6.0
      %v6284 = vmin.f32 %v6235, 6.0
      %v6285 = vmin.f32 %v6236, 6.0
      %v6286 = vmin.f32 %v6237, 6.0
      %6336 = vrot.lane.b32.xlu0 %v6238, 96
      %v6337 = vpop.permute.xlu0 %6336
      %6338 = vrot.lane.b32.xlu0 %v6239, 96
      %v6339 = vpop.permute.xlu0 %6338
      %6340 = vrot.lane.b32.xlu0 %v6240, 96
      %v6341 = vpop.permute.xlu0 %6340
      %6342 = vrot.lane.b32.xlu0 %v6241, 96
      %v6343 = vpop.permute.xlu0 %6342
      %6344 = vrot.lane.b32.xlu0 %v6242, 96
      %v6345 = vpop.permute.xlu0 %6344
      %6346 = vrot.lane.b32.xlu0 %v6243, 96
      %v6347 = vpop.permute.xlu0 %6346
      %6348 = vrot.lane.b32.xlu0 %v6244, 96
      %v6349 = vpop.permute.xlu0 %6348
      %6350 = vrot.lane.b32.xlu0 %v6245, 96
      %v6351 = vpop.permute.xlu0 %6350
      %6352 = vrot.lane.b32.xlu0 %v6246, 96
      %v6353 = vpop.permute.xlu0 %6352
      %6354 = vrot.lane.b32.xlu0 %v6247, 96
      %v6355 = vpop.permute.xlu0 %6354
      %6356 = vrot.lane.b32.xlu0 %v6248, 96
      %v6357 = vpop.permute.xlu0 %6356
      %6358 = vrot.lane.b32.xlu0 %v6249, 96
      %v6359 = vpop.permute.xlu0 %6358
      %6360 = vrot.lane.b32.xlu0 %v6250, 96
      %v6361 = vpop.permute.xlu0 %6360
      %6362 = vrot.lane.b32.xlu0 %v6251, 96
      %v6363 = vpop.permute.xlu0 %6362
      %6364 = vrot.lane.b32.xlu0 %v6252, 96
      %v6365 = vpop.permute.xlu0 %6364
      %6366 = vrot.lane.b32.xlu0 %v6253, 96
      %v6367 = vpop.permute.xlu0 %6366
      %6368 = vrot.lane.b32.xlu0 %v6254, 96
      %v6369 = vpop.permute.xlu0 %6368
      %6370 = vrot.lane.b32.xlu0 %v6255, 96
      %v6371 = vpop.permute.xlu0 %6370
      %6372 = vrot.lane.b32.xlu0 %v6256, 96
      %v6373 = vpop.permute.xlu0 %6372
      %6374 = vrot.lane.b32.xlu0 %v6257, 96
      %v6375 = vpop.permute.xlu0 %6374
      %6376 = vrot.lane.b32.xlu0 %v6258, 96
      %v6377 = vpop.permute.xlu0 %6376
      %6378 = vrot.lane.b32.xlu0 %v6259, 96
      %v6379 = vpop.permute.xlu0 %6378
      %6380 = vrot.lane.b32.xlu0 %v6260, 96
      %v6381 = vpop.permute.xlu0 %6380
      %6382 = vrot.lane.b32.xlu0 %v6261, 96
      %v6383 = vpop.permute.xlu0 %6382
      %6384 = vrot.lane.b32.xlu0 %v6262, 96
      %v6385 = vpop.permute.xlu0 %6384
      %6386 = vrot.lane.b32.xlu0 %v6263, 96
      %v6387 = vpop.permute.xlu0 %6386
      %6388 = vrot.lane.b32.xlu0 %v6264, 96
      %v6389 = vpop.permute.xlu0 %6388
      %6390 = vrot.lane.b32.xlu0 %v6265, 96
      %v6391 = vpop.permute.xlu0 %6390
      %6392 = vrot.lane.b32.xlu0 %v6266, 96
      %v6393 = vpop.permute.xlu0 %6392
      %6394 = vrot.lane.b32.xlu0 %v6267, 96
      %v6395 = vpop.permute.xlu0 %6394
      %6396 = vrot.lane.b32.xlu0 %v6268, 96
      %v6397 = vpop.permute.xlu0 %6396
      %6398 = vrot.lane.b32.xlu0 %v6269, 96
      %v6399 = vpop.permute.xlu0 %6398
      %6400 = vrot.lane.b32.xlu0 %v6270, 96
      %v6401 = vpop.permute.xlu0 %6400
      %6402 = vrot.lane.b32.xlu0 %v6271, 96
      %v6403 = vpop.permute.xlu0 %6402
      %6404 = vrot.lane.b32.xlu0 %v6272, 96
      %v6405 = vpop.permute.xlu0 %6404
      %6406 = vrot.lane.b32.xlu0 %v6273, 96
      %v6407 = vpop.permute.xlu0 %6406
      %6408 = vrot.lane.b32.xlu0 %v6274, 96
      %v6409 = vpop.permute.xlu0 %6408
      %6410 = vrot.lane.b32.xlu0 %v6275, 96
      %v6411 = vpop.permute.xlu0 %6410
      %6412 = vrot.lane.b32.xlu0 %v6276, 96
      %v6413 = vpop.permute.xlu0 %6412
      %6414 = vrot.lane.b32.xlu0 %v6277, 96
      %v6415 = vpop.permute.xlu0 %6414
      %6416 = vrot.lane.b32.xlu0 %v6278, 96
      %v6417 = vpop.permute.xlu0 %6416
      %6418 = vrot.lane.b32.xlu0 %v6279, 96
      %v6419 = vpop.permute.xlu0 %6418
      %6420 = vrot.lane.b32.xlu0 %v6280, 96
      %v6421 = vpop.permute.xlu0 %6420
      %6422 = vrot.lane.b32.xlu0 %v6281, 96
      %v6423 = vpop.permute.xlu0 %6422
      %6424 = vrot.lane.b32.xlu0 %v6282, 96
      %v6425 = vpop.permute.xlu0 %6424
      %6426 = vrot.lane.b32.xlu0 %v6283, 96
      %v6427 = vpop.permute.xlu0 %6426
      %6428 = vrot.lane.b32.xlu0 %v6284, 96
      %v6429 = vpop.permute.xlu0 %6428
      %6430 = vrot.lane.b32.xlu0 %v6285, 96
      %v6431 = vpop.permute.xlu0 %6430
      %6432 = vrot.lane.b32.xlu0 %v6286, 96
      %v6433 = vpop.permute.xlu0 %6432
      %v6483 = vadd.f32 %v6238, %v6337
      %v6484 = vadd.f32 %v6239, %v6339
      %v6485 = vadd.f32 %v6240, %v6341
      %v6486 = vadd.f32 %v6241, %v6343
      %v6487 = vadd.f32 %v6242, %v6345
      %v6488 = vadd.f32 %v6243, %v6347
      %v6489 = vadd.f32 %v6244, %v6349
      %v6490 = vadd.f32 %v6245, %v6351
      %v6491 = vadd.f32 %v6246, %v6353
      %v6492 = vadd.f32 %v6247, %v6355
      %v6493 = vadd.f32 %v6248, %v6357
      %v6494 = vadd.f32 %v6249, %v6359
      %v6495 = vadd.f32 %v6250, %v6361
      %v6496 = vadd.f32 %v6251, %v6363
      %v6497 = vadd.f32 %v6252, %v6365
      %v6498 = vadd.f32 %v6253, %v6367
      %v6499 = vadd.f32 %v6254, %v6369
      %v6500 = vadd.f32 %v6255, %v6371
      %v6501 = vadd.f32 %v6256, %v6373
      %v6502 = vadd.f32 %v6257, %v6375
      %v6503 = vadd.f32 %v6258, %v6377
      %v6504 = vadd.f32 %v6259, %v6379
      %v6505 = vadd.f32 %v6260, %v6381
      %v6506 = vadd.f32 %v6261, %v6383
      %v6507 = vadd.f32 %v6262, %v6385
      %v6508 = vadd.f32 %v6263, %v6387
      %v6509 = vadd.f32 %v6264, %v6389
      %v6510 = vadd.f32 %v6265, %v6391
      %v6511 = vadd.f32 %v6266, %v6393
      %v6512 = vadd.f32 %v6267, %v6395
      %v6513 = vadd.f32 %v6268, %v6397
      %v6514 = vadd.f32 %v6269, %v6399
      %v6515 = vadd.f32 %v6270, %v6401
      %v6516 = vadd.f32 %v6271, %v6403
      %v6517 = vadd.f32 %v6272, %v6405
      %v6518 = vadd.f32 %v6273, %v6407
      %v6519 = vadd.f32 %v6274, %v6409
      %v6520 = vadd.f32 %v6275, %v6411
      %v6521 = vadd.f32 %v6276, %v6413
      %v6522 = vadd.f32 %v6277, %v6415
      %v6523 = vadd.f32 %v6278, %v6417
      %v6524 = vadd.f32 %v6279, %v6419
      %v6525 = vadd.f32 %v6280, %v6421
      %v6526 = vadd.f32 %v6281, %v6423
      %v6527 = vadd.f32 %v6282, %v6425
      %v6528 = vadd.f32 %v6283, %v6427
      %v6529 = vadd.f32 %v6284, %v6429
      %v6530 = vadd.f32 %v6285, %v6431
      %v6531 = vadd.f32 %v6286, %v6433
      %vm6532 = vcmask 1041408
      %v6533 = vrot.slane %v3908, 6
      %v6534 = vrot.slane %v3912, 6
      %v6535 = vsel %vm6532, %v6533, %v6534
      %v6536 = vrot.slane %v3916, 6
      %v6537 = vsel %vm6532, %v6534, %v6536
      %v6538 = vrot.slane %v3920, 6
      %v6539 = vsel %vm6532, %v6536, %v6538
      %v6540 = vrot.slane %v3924, 6
      %v6541 = vsel %vm6532, %v6538, %v6540
      %v6542 = vrot.slane %v3928, 6
      %v6543 = vsel %vm6532, %v6540, %v6542
      %v6544 = vrot.slane %v3932, 6
      %v6545 = vsel %vm6532, %v6542, %v6544
      %v6546 = vrot.slane %v3936, 6
      %v6547 = vsel %vm6532, %v6544, %v6546
      %v6548 = vrot.slane %v3940, 6
      %v6549 = vsel %vm6532, %v6546, %v6548
      %v6550 = vrot.slane %v3944, 6
      %v6551 = vsel %vm6532, %v6548, %v6550
      %v6552 = vrot.slane %v3948, 6
      %v6553 = vsel %vm6532, %v6550, %v6552
      %v6554 = vrot.slane %v3952, 6
      %v6555 = vsel %vm6532, %v6552, %v6554
      %v6556 = vrot.slane %v3956, 6
      %v6557 = vsel %vm6532, %v6554, %v6556
      %v6558 = vrot.slane %v3960, 6
      %v6559 = vsel %vm6532, %v6556, %v6558
      %v6560 = vrot.slane %v3964, 6
      %v6561 = vsel %vm6532, %v6558, %v6560
      %v6562 = vrot.slane %v3968, 6
      %v6563 = vsel %vm6532, %v6560, %v6562
      %v6564 = vrot.slane %v3972, 6
      %v6565 = vsel %vm6532, %v6562, %v6564
      %v6566 = vrot.slane %v3976, 6
      %v6567 = vsel %vm6532, %v6564, %v6566
      %v6568 = vrot.slane %v3980, 6
      %v6569 = vsel %vm6532, %v6566, %v6568
      %v6570 = vrot.slane %v3984, 6
      %v6571 = vsel %vm6532, %v6568, %v6570
      %v6572 = vrot.slane %v3988, 6
      %v6573 = vsel %vm6532, %v6570, %v6572
      %v6574 = vrot.slane %v3992, 6
      %v6575 = vsel %vm6532, %v6572, %v6574
      %v6576 = vrot.slane %v3996, 6
      %v6577 = vsel %vm6532, %v6574, %v6576
      %v6578 = vrot.slane %v4000, 6
      %v6579 = vsel %vm6532, %v6576, %v6578
      %v6580 = vrot.slane %v4004, 6
      %v6581 = vsel %vm6532, %v6578, %v6580
      %v6582 = vrot.slane %v4008, 6
      %v6583 = vsel %vm6532, %v6580, %v6582
      %v6584 = vrot.slane %v4012, 6
      %v6585 = vsel %vm6532, %v6582, %v6584
      %v6586 = vrot.slane %v4016, 6
      %v6587 = vsel %vm6532, %v6584, %v6586
      %v6588 = vrot.slane %v4020, 6
      %v6589 = vsel %vm6532, %v6586, %v6588
      %v6590 = vrot.slane %v4024, 6
      %v6591 = vsel %vm6532, %v6588, %v6590
      %v6592 = vrot.slane %v4028, 6
      %v6593 = vsel %vm6532, %v6590, %v6592
      %v6594 = vrot.slane %v4032, 6
      %v6595 = vsel %vm6532, %v6592, %v6594
      %v6596 = vrot.slane %v4036, 6
      %v6597 = vsel %vm6532, %v6594, %v6596
      %v6598 = vrot.slane %v4040, 6
      %v6599 = vsel %vm6532, %v6596, %v6598
      %v6600 = vrot.slane %v4044, 6
      %v6601 = vsel %vm6532, %v6598, %v6600
      %v6602 = vrot.slane %v4048, 6
      %v6603 = vsel %vm6532, %v6600, %v6602
      %v6604 = vrot.slane %v4052, 6
      %v6605 = vsel %vm6532, %v6602, %v6604
      %v6606 = vrot.slane %v4056, 6
      %v6607 = vsel %vm6532, %v6604, %v6606
      %v6608 = vrot.slane %v4060, 6
      %v6609 = vsel %vm6532, %v6606, %v6608
      %v6610 = vrot.slane %v4064, 6
      %v6611 = vsel %vm6532, %v6608, %v6610
      %v6612 = vrot.slane %v4068, 6
      %v6613 = vsel %vm6532, %v6610, %v6612
      %v6614 = vrot.slane %v4072, 6
      %v6615 = vsel %vm6532, %v6612, %v6614
      %v6616 = vrot.slane %v4076, 6
      %v6617 = vsel %vm6532, %v6614, %v6616
      %v6618 = vrot.slane %v4080, 6
      %v6619 = vsel %vm6532, %v6616, %v6618
      %v6620 = vrot.slane %v4084, 6
      %v6621 = vsel %vm6532, %v6618, %v6620
      %v6622 = vrot.slane %v4088, 6
      %v6623 = vsel %vm6532, %v6620, %v6622
      %v6624 = vrot.slane %v4092, 6
      %v6625 = vsel %vm6532, %v6622, %v6624
      %v6626 = vrot.slane %v4096, 6
      %v6627 = vsel %vm6532, %v6624, %v6626
      %v6628 = vrot.slane %v4100, 6
      %v6629 = vsel %vm6532, %v6626, %v6628
      %v6630 = vrot.slane %v4104, 6
      %v6631 = vsel %vm6532, %v6628, %v6630
      %v6681 = vmul.f32 %v6483, %v6535
      %v6682 = vmul.f32 %v6484, %v6537
      %v6683 = vmul.f32 %v6485, %v6539
      %v6684 = vmul.f32 %v6486, %v6541
      %v6685 = vmul.f32 %v6487, %v6543
      %v6686 = vmul.f32 %v6488, %v6545
      %v6687 = vmul.f32 %v6489, %v6547
      %v6688 = vmul.f32 %v6490, %v6549
      %v6689 = vmul.f32 %v6491, %v6551
      %v6690 = vmul.f32 %v6492, %v6553
      %v6691 = vmul.f32 %v6493, %v6555
      %v6692 = vmul.f32 %v6494, %v6557
      %v6693 = vmul.f32 %v6495, %v6559
      %v6694 = vmul.f32 %v6496, %v6561
      %v6695 = vmul.f32 %v6497, %v6563
      %v6696 = vmul.f32 %v6498, %v6565
      %v6697 = vmul.f32 %v6499, %v6567
      %v6698 = vmul.f32 %v6500, %v6569
      %v6699 = vmul.f32 %v6501, %v6571
      %v6700 = vmul.f32 %v6502, %v6573
      %v6701 = vmul.f32 %v6503, %v6575
      %v6702 = vmul.f32 %v6504, %v6577
      %v6703 = vmul.f32 %v6505, %v6579
      %v6704 = vmul.f32 %v6506, %v6581
      %v6705 = vmul.f32 %v6507, %v6583
      %v6706 = vmul.f32 %v6508, %v6585
      %v6707 = vmul.f32 %v6509, %v6587
      %v6708 = vmul.f32 %v6510, %v6589
      %v6709 = vmul.f32 %v6511, %v6591
      %v6710 = vmul.f32 %v6512, %v6593
      %v6711 = vmul.f32 %v6513, %v6595
      %v6712 = vmul.f32 %v6514, %v6597
      %v6713 = vmul.f32 %v6515, %v6599
      %v6714 = vmul.f32 %v6516, %v6601
      %v6715 = vmul.f32 %v6517, %v6603
      %v6716 = vmul.f32 %v6518, %v6605
      %v6717 = vmul.f32 %v6519, %v6607
      %v6718 = vmul.f32 %v6520, %v6609
      %v6719 = vmul.f32 %v6521, %v6611
      %v6720 = vmul.f32 %v6522, %v6613
      %v6721 = vmul.f32 %v6523, %v6615
      %v6722 = vmul.f32 %v6524, %v6617
      %v6723 = vmul.f32 %v6525, %v6619
      %v6724 = vmul.f32 %v6526, %v6621
      %v6725 = vmul.f32 %v6527, %v6623
      %v6726 = vmul.f32 %v6528, %v6625
      %v6727 = vmul.f32 %v6529, %v6627
      %v6728 = vmul.f32 %v6530, %v6629
      %v6729 = vmul.f32 %v6531, %v6631
      %v6730 = vpack.c.bf16 %v6682, %v6681
      %v6731 = vpack.c.bf16 %v6684, %v6683
      %v6732 = vpack.c.bf16 %v6686, %v6685
      %v6733 = vpack.c.bf16 %v6688, %v6687
      %v6734 = vpack.c.bf16 %v6690, %v6689
      %v6735 = vpack.c.bf16 %v6692, %v6691
      %v6736 = vpack.c.bf16 %v6694, %v6693
      %v6737 = vpack.c.bf16 %v6696, %v6695
      %v6738 = vpack.c.bf16 %v6698, %v6697
      %v6739 = vpack.c.bf16 %v6700, %v6699
      %v6740 = vpack.c.bf16 %v6702, %v6701
      %v6741 = vpack.c.bf16 %v6704, %v6703
      %v6742 = vpack.c.bf16 %v6706, %v6705
      %v6743 = vpack.c.bf16 %v6708, %v6707
      %v6744 = vpack.c.bf16 %v6710, %v6709
      %v6745 = vpack.c.bf16 %v6712, %v6711
      %v6746 = vpack.c.bf16 %v6714, %v6713
      %v6747 = vpack.c.bf16 %v6716, %v6715
      %v6748 = vpack.c.bf16 %v6718, %v6717
      %v6749 = vpack.c.bf16 %v6720, %v6719
      %v6750 = vpack.c.bf16 %v6722, %v6721
      %v6751 = vpack.c.bf16 %v6724, %v6723
      %v6752 = vpack.c.bf16 %v6726, %v6725
      %v6753 = vpack.c.bf16 %v6728, %v6727
      %v6754 = vpack.c.bf16 %v6729, %v6729
      %v6756 = vshrl.u32 %v6730, 16
      %v6758 = vshll.u32 %v6730, 16
      %v6760 = vrot.slane %v6758, 1
      %v6761 = vor.u32 %v6756, %v6760
      %v6763 = vshll.u32 %v6731, 16
      %v6765 = vrot.slane %v6763, 1
      %v6766 = vsel %vm616, %v6761, %v6765
      %v6767 = vshrl.u32 %v6731, 16
      %v6769 = vor.u32 %v6767, %v6765
      %v6771 = vshll.u32 %v6732, 16
      %v6773 = vrot.slane %v6771, 1
      %v6774 = vsel %vm616, %v6769, %v6773
      %v6775 = vshrl.u32 %v6732, 16
      %v6777 = vor.u32 %v6775, %v6773
      %v6779 = vshll.u32 %v6733, 16
      %v6781 = vrot.slane %v6779, 1
      %v6782 = vsel %vm616, %v6777, %v6781
      %v6783 = vshrl.u32 %v6733, 16
      %v6785 = vor.u32 %v6783, %v6781
      %v6787 = vshll.u32 %v6734, 16
      %v6789 = vrot.slane %v6787, 1
      %v6790 = vsel %vm616, %v6785, %v6789
      %v6791 = vshrl.u32 %v6734, 16
      %v6793 = vor.u32 %v6791, %v6789
      %v6795 = vshll.u32 %v6735, 16
      %v6797 = vrot.slane %v6795, 1
      %v6798 = vsel %vm616, %v6793, %v6797
      %v6799 = vshrl.u32 %v6735, 16
      %v6801 = vor.u32 %v6799, %v6797
      %v6803 = vshll.u32 %v6736, 16
      %v6805 = vrot.slane %v6803, 1
      %v6806 = vsel %vm616, %v6801, %v6805
      %v6807 = vshrl.u32 %v6736, 16
      %v6809 = vor.u32 %v6807, %v6805
      %v6811 = vshll.u32 %v6737, 16
      %v6813 = vrot.slane %v6811, 1
      %v6814 = vsel %vm616, %v6809, %v6813
      %v6815 = vshrl.u32 %v6737, 16
      %v6817 = vor.u32 %v6815, %v6813
      %v6819 = vshll.u32 %v6738, 16
      %v6821 = vrot.slane %v6819, 1
      %v6822 = vsel %vm616, %v6817, %v6821
      %v6823 = vshrl.u32 %v6738, 16
      %v6825 = vor.u32 %v6823, %v6821
      %v6827 = vshll.u32 %v6739, 16
      %v6829 = vrot.slane %v6827, 1
      %v6830 = vsel %vm616, %v6825, %v6829
      %v6831 = vshrl.u32 %v6739, 16
      %v6833 = vor.u32 %v6831, %v6829
      %v6835 = vshll.u32 %v6740, 16
      %v6837 = vrot.slane %v6835, 1
      %v6838 = vsel %vm616, %v6833, %v6837
      %v6839 = vshrl.u32 %v6740, 16
      %v6841 = vor.u32 %v6839, %v6837
      %v6843 = vshll.u32 %v6741, 16
      %v6845 = vrot.slane %v6843, 1
      %v6846 = vsel %vm616, %v6841, %v6845
      %v6847 = vshrl.u32 %v6741, 16
      %v6849 = vor.u32 %v6847, %v6845
      %v6851 = vshll.u32 %v6742, 16
      %v6853 = vrot.slane %v6851, 1
      %v6854 = vsel %vm616, %v6849, %v6853
      %v6855 = vshrl.u32 %v6742, 16
      %v6857 = vor.u32 %v6855, %v6853
      %v6859 = vshll.u32 %v6743, 16
      %v6861 = vrot.slane %v6859, 1
      %v6862 = vsel %vm616, %v6857, %v6861
      %v6863 = vshrl.u32 %v6743, 16
      %v6865 = vor.u32 %v6863, %v6861
      %v6867 = vshll.u32 %v6744, 16
      %v6869 = vrot.slane %v6867, 1
      %v6870 = vsel %vm616, %v6865, %v6869
      %v6871 = vshrl.u32 %v6744, 16
      %v6873 = vor.u32 %v6871, %v6869
      %v6875 = vshll.u32 %v6745, 16
      %v6877 = vrot.slane %v6875, 1
      %v6878 = vsel %vm616, %v6873, %v6877
      %v6879 = vshrl.u32 %v6745, 16
      %v6881 = vor.u32 %v6879, %v6877
      %v6883 = vshll.u32 %v6746, 16
      %v6885 = vrot.slane %v6883, 1
      %v6886 = vsel %vm616, %v6881, %v6885
      %v6887 = vshrl.u32 %v6746, 16
      %v6889 = vor.u32 %v6887, %v6885
      %v6891 = vshll.u32 %v6747, 16
      %v6893 = vrot.slane %v6891, 1
      %v6894 = vsel %vm616, %v6889, %v6893
      %v6895 = vshrl.u32 %v6747, 16
      %v6897 = vor.u32 %v6895, %v6893
      %v6899 = vshll.u32 %v6748, 16
      %v6901 = vrot.slane %v6899, 1
      %v6902 = vsel %vm616, %v6897, %v6901
      %v6903 = vshrl.u32 %v6748, 16
      %v6905 = vor.u32 %v6903, %v6901
      %v6907 = vshll.u32 %v6749, 16
      %v6909 = vrot.slane %v6907, 1
      %v6910 = vsel %vm616, %v6905, %v6909
      %v6911 = vshrl.u32 %v6749, 16
      %v6913 = vor.u32 %v6911, %v6909
      %v6915 = vshll.u32 %v6750, 16
      %v6917 = vrot.slane %v6915, 1
      %v6918 = vsel %vm616, %v6913, %v6917
      %v6919 = vshrl.u32 %v6750, 16
      %v6921 = vor.u32 %v6919, %v6917
      %v6923 = vshll.u32 %v6751, 16
      %v6925 = vrot.slane %v6923, 1
      %v6926 = vsel %vm616, %v6921, %v6925
      %v6927 = vshrl.u32 %v6751, 16
      %v6929 = vor.u32 %v6927, %v6925
      %6930 = vrot.lane.b32.xlu0 %v6766, 32
      %v6931 = vpop.permute.xlu0 %6930
      %6932 = vrot.lane.b32.xlu0 %v6774, 32
      %v6933 = vpop.permute.xlu0 %6932
      %6934 = vrot.lane.b32.xlu0 %v6782, 32
      %v6935 = vpop.permute.xlu0 %6934
      %6936 = vrot.lane.b32.xlu0 %v6790, 32
      %v6937 = vpop.permute.xlu0 %6936
      %6938 = vrot.lane.b32.xlu0 %v6798, 32
      %v6939 = vpop.permute.xlu0 %6938
      %6940 = vrot.lane.b32.xlu0 %v6806, 32
      %v6941 = vpop.permute.xlu0 %6940
      %6942 = vrot.lane.b32.xlu0 %v6814, 32
      %v6943 = vpop.permute.xlu0 %6942
      %6944 = vrot.lane.b32.xlu0 %v6822, 32
      %v6945 = vpop.permute.xlu0 %6944
      %6946 = vrot.lane.b32.xlu0 %v6830, 32
      %v6947 = vpop.permute.xlu0 %6946
      %6948 = vrot.lane.b32.xlu0 %v6838, 32
      %v6949 = vpop.permute.xlu0 %6948
      %6950 = vrot.lane.b32.xlu0 %v6846, 32
      %v6951 = vpop.permute.xlu0 %6950
      %6952 = vrot.lane.b32.xlu0 %v6854, 32
      %v6953 = vpop.permute.xlu0 %6952
      %6954 = vrot.lane.b32.xlu0 %v6862, 32
      %v6955 = vpop.permute.xlu0 %6954
      %6956 = vrot.lane.b32.xlu0 %v6870, 32
      %v6957 = vpop.permute.xlu0 %6956
      %6958 = vrot.lane.b32.xlu0 %v6878, 32
      %v6959 = vpop.permute.xlu0 %6958
      %6960 = vrot.lane.b32.xlu0 %v6886, 32
      %v6961 = vpop.permute.xlu0 %6960
      %6962 = vrot.lane.b32.xlu0 %v6894, 32
      %v6963 = vpop.permute.xlu0 %6962
      %6964 = vrot.lane.b32.xlu0 %v6902, 32
      %v6965 = vpop.permute.xlu0 %6964
      %6966 = vrot.lane.b32.xlu0 %v6910, 32
      %v6967 = vpop.permute.xlu0 %6966
      %6968 = vrot.lane.b32.xlu0 %v6918, 32
      %v6969 = vpop.permute.xlu0 %6968
      %6970 = vrot.lane.b32.xlu0 %v6926, 32
      %v6971 = vpop.permute.xlu0 %6970
      %6972 = vrot.lane.b32.xlu0 %v6929, 32
      %v6973 = vpop.permute.xlu0 %6972
      %v6996 = vrot.slane %v6730, 1
      %v6997 = vrot.slane %v6731, 1
      %v6998 = vsel %vm896, %v6996, %v6997
      %v6999 = vrot.slane %v6732, 1
      %v7000 = vsel %vm896, %v6997, %v6999
      %v7001 = vrot.slane %v6733, 1
      %v7002 = vsel %vm896, %v6999, %v7001
      %v7003 = vrot.slane %v6734, 1
      %v7004 = vsel %vm896, %v7001, %v7003
      %v7005 = vrot.slane %v6735, 1
      %v7006 = vsel %vm896, %v7003, %v7005
      %v7007 = vrot.slane %v6736, 1
      %v7008 = vsel %vm896, %v7005, %v7007
      %v7009 = vrot.slane %v6737, 1
      %v7010 = vsel %vm896, %v7007, %v7009
      %v7011 = vrot.slane %v6738, 1
      %v7012 = vsel %vm896, %v7009, %v7011
      %v7013 = vrot.slane %v6739, 1
      %v7014 = vsel %vm896, %v7011, %v7013
      %v7015 = vrot.slane %v6740, 1
      %v7016 = vsel %vm896, %v7013, %v7015
      %v7017 = vrot.slane %v6741, 1
      %v7018 = vsel %vm896, %v7015, %v7017
      %v7019 = vrot.slane %v6742, 1
      %v7020 = vsel %vm896, %v7017, %v7019
      %v7021 = vrot.slane %v6743, 1
      %v7022 = vsel %vm896, %v7019, %v7021
      %v7023 = vrot.slane %v6744, 1
      %v7024 = vsel %vm896, %v7021, %v7023
      %v7025 = vrot.slane %v6745, 1
      %v7026 = vsel %vm896, %v7023, %v7025
      %v7027 = vrot.slane %v6746, 1
      %v7028 = vsel %vm896, %v7025, %v7027
      %v7029 = vrot.slane %v6747, 1
      %v7030 = vsel %vm896, %v7027, %v7029
      %v7031 = vrot.slane %v6748, 1
      %v7032 = vsel %vm896, %v7029, %v7031
      %v7033 = vrot.slane %v6749, 1
      %v7034 = vsel %vm896, %v7031, %v7033
      %v7035 = vrot.slane %v6750, 1
      %v7036 = vsel %vm896, %v7033, %v7035
      %v7037 = vrot.slane %v6751, 1
      %v7038 = vsel %vm896, %v7035, %v7037
      %7039 = vrot.lane.b32.xlu0 %v6998, 64
      %v7040 = vpop.permute.xlu0 %7039
      %7041 = vrot.lane.b32.xlu0 %v7000, 64
      %v7042 = vpop.permute.xlu0 %7041
      %7043 = vrot.lane.b32.xlu0 %v7002, 64
      %v7044 = vpop.permute.xlu0 %7043
      %7045 = vrot.lane.b32.xlu0 %v7004, 64
      %v7046 = vpop.permute.xlu0 %7045
      %7047 = vrot.lane.b32.xlu0 %v7006, 64
      %v7048 = vpop.permute.xlu0 %7047
      %7049 = vrot.lane.b32.xlu0 %v7008, 64
      %v7050 = vpop.permute.xlu0 %7049
      %7051 = vrot.lane.b32.xlu0 %v7010, 64
      %v7052 = vpop.permute.xlu0 %7051
      %7053 = vrot.lane.b32.xlu0 %v7012, 64
      %v7054 = vpop.permute.xlu0 %7053
      %7055 = vrot.lane.b32.xlu0 %v7014, 64
      %v7056 = vpop.permute.xlu0 %7055
      %7057 = vrot.lane.b32.xlu0 %v7016, 64
      %v7058 = vpop.permute.xlu0 %7057
      %7059 = vrot.lane.b32.xlu0 %v7018, 64
      %v7060 = vpop.permute.xlu0 %7059
      %7061 = vrot.lane.b32.xlu0 %v7020, 64
      %v7062 = vpop.permute.xlu0 %7061
      %7063 = vrot.lane.b32.xlu0 %v7022, 64
      %v7064 = vpop.permute.xlu0 %7063
      %7065 = vrot.lane.b32.xlu0 %v7024, 64
      %v7066 = vpop.permute.xlu0 %7065
      %7067 = vrot.lane.b32.xlu0 %v7026, 64
      %v7068 = vpop.permute.xlu0 %7067
      %7069 = vrot.lane.b32.xlu0 %v7028, 64
      %v7070 = vpop.permute.xlu0 %7069
      %7071 = vrot.lane.b32.xlu0 %v7030, 64
      %v7072 = vpop.permute.xlu0 %7071
      %7073 = vrot.lane.b32.xlu0 %v7032, 64
      %v7074 = vpop.permute.xlu0 %7073
      %7075 = vrot.lane.b32.xlu0 %v7034, 64
      %v7076 = vpop.permute.xlu0 %7075
      %7077 = vrot.lane.b32.xlu0 %v7036, 64
      %v7078 = vpop.permute.xlu0 %7077
      %7079 = vrot.lane.b32.xlu0 %v7038, 64
      %v7080 = vpop.permute.xlu0 %7079
      %7081 = vrot.lane.b32.xlu0 %v7037, 64
      %v7082 = vpop.permute.xlu0 %7081
      %v7084 = vsel %vm1008, %v6730, %v6931
      %v7086 = vsel %vm1008, %v6731, %v6933
      %v7088 = vsel %vm1008, %v6732, %v6935
      %v7090 = vsel %vm1008, %v6733, %v6937
      %v7092 = vsel %vm1008, %v6734, %v6939
      %v7094 = vsel %vm1008, %v6735, %v6941
      %v7096 = vsel %vm1008, %v6736, %v6943
      %v7098 = vsel %vm1008, %v6737, %v6945
      %v7100 = vsel %vm1008, %v6738, %v6947
      %v7102 = vsel %vm1008, %v6739, %v6949
      %v7104 = vsel %vm1008, %v6740, %v6951
      %v7106 = vsel %vm1008, %v6741, %v6953
      %v7108 = vsel %vm1008, %v6742, %v6955
      %v7110 = vsel %vm1008, %v6743, %v6957
      %v7112 = vsel %vm1008, %v6744, %v6959
      %v7114 = vsel %vm1008, %v6745, %v6961
      %v7116 = vsel %vm1008, %v6746, %v6963
      %v7118 = vsel %vm1008, %v6747, %v6965
      %v7120 = vsel %vm1008, %v6748, %v6967
      %v7122 = vsel %vm1008, %v6749, %v6969
      %v7124 = vsel %vm1008, %v6750, %v6971
      %v7126 = vsel %vm1008, %v6751, %v6973
      %v7128 = vsel %vm1065, %v7084, %v7040
      %v7130 = vsel %vm1065, %v7086, %v7042
      %v7132 = vsel %vm1065, %v7088, %v7044
      %v7134 = vsel %vm1065, %v7090, %v7046
      %v7136 = vsel %vm1065, %v7092, %v7048
      %v7138 = vsel %vm1065, %v7094, %v7050
      %v7140 = vsel %vm1065, %v7096, %v7052
      %v7142 = vsel %vm1065, %v7098, %v7054
      %v7144 = vsel %vm1065, %v7100, %v7056
      %v7146 = vsel %vm1065, %v7102, %v7058
      %v7148 = vsel %vm1065, %v7104, %v7060
      %v7150 = vsel %vm1065, %v7106, %v7062
      %v7152 = vsel %vm1065, %v7108, %v7064
      %v7154 = vsel %vm1065, %v7110, %v7066
      %v7156 = vsel %vm1065, %v7112, %v7068
      %v7158 = vsel %vm1065, %v7114, %v7070
      %v7160 = vsel %vm1065, %v7116, %v7072
      %v7162 = vsel %vm1065, %v7118, %v7074
      %v7164 = vsel %vm1065, %v7120, %v7076
      %v7166 = vsel %vm1065, %v7122, %v7078
      %v7168 = vsel %vm1065, %v7124, %v7080
      %v7170 = vsel %vm1065, %v7126, %v7082
      %v7171 = vld [vmem:[%s6] sm:$0xf]
      %v7172 = vld [vmem:[%s6 + $0x4] sm:$0xf]
      %v7173 = vld [vmem:[%s6 + $0x8] sm:$0xf]
      %v7174 = vld [vmem:[%s6 + $0xc] sm:$0xf]
      %v7175 = vld [vmem:[%s6 + $0x10] sm:$0xf]
      %v7176 = vld [vmem:[%s6 + $0x14] sm:$0xf]
      %v7177 = vld [vmem:[%s6 + $0x18] sm:$0xf]
      %v7178 = vld [vmem:[%s6 + $0x1c] sm:$0xf]
      %v7179 = vld [vmem:[%s6 + $0x20] sm:$0xf]
      %v7180 = vld [vmem:[%s6 + $0x24] sm:$0xf]
      %v7181 = vld [vmem:[%s6 + $0x28] sm:$0xf]
      %v7182 = vld [vmem:[%s6 + $0x2c] sm:$0xf]
      %v7184 = vshll.u32 %v6752, 16
      %v7186 = vrot.slane %v7184, 1
      %v7187 = vsel %vm616, %v6929, %v7186
      %v7188 = vshrl.u32 %v6752, 16
      %v7190 = vor.u32 %v7188, %v7186
      %v7192 = vshll.u32 %v6753, 16
      %v7194 = vrot.slane %v7192, 1
      %v7195 = vsel %vm616, %v7190, %v7194
      %7196 = vrot.lane.b32.xlu0 %v7187, 32
      %v7197 = vpop.permute.xlu0 %7196
      %7198 = vrot.lane.b32.xlu0 %v7195, 32
      %v7199 = vpop.permute.xlu0 %7198
      %v7202 = vrot.slane %v6752, 1
      %v7203 = vsel %vm896, %v7037, %v7202
      %v7204 = vrot.slane %v6753, 1
      %v7205 = vsel %vm896, %v7202, %v7204
      %7206 = vrot.lane.b32.xlu0 %v7203, 64
      %v7207 = vpop.permute.xlu0 %7206
      %7208 = vrot.lane.b32.xlu0 %v7205, 64
      %v7209 = vpop.permute.xlu0 %7208
      %v7211 = vsel %vm1008, %v6751, %v7197
      %v7213 = vsel %vm1008, %v6752, %v7199
      %v7215 = vsel %vm1065, %v7211, %v7207
      %v7217 = vsel %vm1065, %v7213, %v7209
      %s7218 = scalar_lea.vmem %s6, 48
      %v7219 = vld [vmem:[%s7218] sm:$0xf]
      %v7220 = vld [vmem:[%s7218 + $0x4] sm:$0xf]
      %v7221 = vld [vmem:[%s7218 + $0x8] sm:$0xf]
      %v7222 = vld [vmem:[%s7218 + $0xc] sm:$0xf]
      %v7223 = vld [vmem:[%s7218 + $0x10] sm:$0xf]
      %v7224 = vld [vmem:[%s7218 + $0x14] sm:$0xf]
      %v7225 = vld [vmem:[%s7218 + $0x18] sm:$0xf]
      %v7226 = vld [vmem:[%s7218 + $0x1c] sm:$0xf]
      %v7227 = vld [vmem:[%s7218 + $0x20] sm:$0xf]
      %v7228 = vld [vmem:[%s7218 + $0x24] sm:$0xf]
      %v7229 = vld [vmem:[%s7218 + $0x28] sm:$0xf]
      %v7230 = vld [vmem:[%s7218 + $0x2c] sm:$0xf]
      %v7253 = vrot.slane %v7130, 3
      %v7254 = vrot.slane %v7132, 3
      %v7255 = vsel %vm1407, %v7253, %v7254
      %v7256 = vrot.slane %v7134, 3
      %v7257 = vsel %vm1407, %v7254, %v7256
      %v7258 = vrot.slane %v7136, 3
      %v7259 = vsel %vm1407, %v7256, %v7258
      %v7260 = vrot.slane %v7138, 3
      %v7261 = vsel %vm1407, %v7258, %v7260
      %v7262 = vrot.slane %v7140, 3
      %v7263 = vsel %vm1407, %v7260, %v7262
      %v7264 = vrot.slane %v7142, 3
      %v7265 = vsel %vm1407, %v7262, %v7264
      %v7266 = vrot.slane %v7144, 3
      %v7267 = vsel %vm1407, %v7264, %v7266
      %v7268 = vrot.slane %v7146, 3
      %v7269 = vsel %vm1407, %v7266, %v7268
      %v7270 = vrot.slane %v7148, 3
      %v7271 = vsel %vm1407, %v7268, %v7270
      %v7272 = vrot.slane %v7150, 3
      %v7273 = vsel %vm1407, %v7270, %v7272
      %v7274 = vrot.slane %v7152, 3
      %v7275 = vsel %vm1407, %v7272, %v7274
      %v7276 = vrot.slane %v7154, 3
      %v7277 = vsel %vm1407, %v7274, %v7276
      %v7278 = vrot.slane %v7156, 3
      %v7279 = vsel %vm1407, %v7276, %v7278
      %v7280 = vrot.slane %v7158, 3
      %v7281 = vsel %vm1407, %v7278, %v7280
      %v7282 = vrot.slane %v7160, 3
      %v7283 = vsel %vm1407, %v7280, %v7282
      %v7284 = vrot.slane %v7162, 3
      %v7285 = vsel %vm1407, %v7282, %v7284
      %v7286 = vrot.slane %v7164, 3
      %v7287 = vsel %vm1407, %v7284, %v7286
      %v7288 = vrot.slane %v7166, 3
      %v7289 = vsel %vm1407, %v7286, %v7288
      %v7290 = vrot.slane %v7168, 3
      %v7291 = vsel %vm1407, %v7288, %v7290
      %v7292 = vrot.slane %v7215, 3
      %v7293 = vsel %vm1407, %v7290, %v7292
      %v7294 = vrot.slane %v7217, 3
      %v7295 = vsel %vm1407, %v7292, %v7294
      %v7308 = vunpack.c.l.b16 %v7219
      %v7309 = vunpack.c.l.b16 %v7220
      %v7310 = vunpack.c.l.b16 %v7221
      %v7311 = vunpack.c.l.b16 %v7222
      %v7312 = vunpack.c.l.b16 %v7223
      %v7313 = vunpack.c.l.b16 %v7224
      %v7314 = vunpack.c.l.b16 %v7225
      %v7315 = vunpack.c.l.b16 %v7226
      %v7316 = vunpack.c.l.b16 %v7227
      %v7317 = vunpack.c.l.b16 %v7228
      %v7318 = vunpack.c.l.b16 %v7229
      %v7319 = vunpack.c.l.b16 %v7230
      %v7320 = vpack.c.b16 %v7309, %v7308
      %v7321 = vpack.c.b16 %v7311, %v7310
      %v7322 = vpack.c.b16 %v7313, %v7312
      %v7323 = vpack.c.b16 %v7315, %v7314
      %v7324 = vpack.c.b16 %v7317, %v7316
      %v7325 = vpack.c.b16 %v7319, %v7318
      %v7333 = vsel %vm1499, %v7255, 0
      %v7336 = vsel %vm1499, %v7257, 0
      %v7339 = vsel %vm1499, %v7259, 0
      %v7342 = vsel %vm1499, %v7261, 0
      %v7345 = vsel %vm1499, %v7263, 0
      %v7348 = vsel %vm1499, %v7265, 0
      %v7351 = vsel %vm1499, %v7267, 0
      %v7354 = vsel %vm1499, %v7269, 0
      %v7357 = vsel %vm1499, %v7271, 0
      %v7360 = vsel %vm1499, %v7273, 0
      %v7363 = vsel %vm1499, %v7275, 0
      %v7366 = vsel %vm1499, %v7277, 0
      %v7369 = vsel %vm1499, %v7279, 0
      %v7372 = vsel %vm1499, %v7281, 0
      %v7375 = vsel %vm1499, %v7283, 0
      %v7378 = vsel %vm1499, %v7285, 0
      %v7381 = vsel %vm1499, %v7287, 0
      %v7384 = vsel %vm1499, %v7289, 0
      %v7387 = vsel %vm1499, %v7291, 0
      %v7390 = vsel %vm1499, %v7293, 0
      %v7393 = vsel %vm1499, %v7295, 0
      %v7396 = vsel %vm1499, %v7294, 0
      %7398 = vmatprep.subr.bf16.mxu0 0
      %7399 = vmatpush1.bf16.msra.mxu0 0
      %7400 = vmatprep.subr.bf16.mxu0 0
      %7401 = vmatpush1.bf16.msra.mxu0 0
      %7402 = vmatprep.subr.bf16.mxu0 0
      %7403 = vmatpush1.bf16.msra.mxu0 %v7325
      %7404 = vmatprep.subr.bf16.mxu0 0
      %7405 = vmatpush1.bf16.msra.mxu0 %v7324
      %7406 = vmatprep.subr.bf16.mxu0 0
      %7407 = vmatpush1.bf16.msra.mxu0 %v7323
      %7408 = vmatprep.subr.bf16.mxu0 0
      %7409 = vmatpush1.bf16.msra.mxu0 %v7322
      %7410 = vmatprep.subr.bf16.mxu0 0
      %7411 = vmatpush1.bf16.msra.mxu0 %v7321
      %7412 = vmatprep.subr.bf16.mxu0 0
      %7413 = vmatpush1.bf16.msra.mxu0 %v7320
      %7414 = vmatprep.subr.bf16.mxu0 0
      %7415 = vmatpush2.bf16.msra.mxu0 0
      %7416 = vmatprep.subr.bf16.mxu0 0
      %7417 = vmatpush2.bf16.msra.mxu0 0
      %7418 = vmatprep.subr.bf16.mxu0 0
      %7419 = vmatpush2.bf16.msra.mxu0 0
      %7420 = vmatprep.subr.bf16.mxu0 0
      %7421 = vmatpush2.bf16.msra.mxu0 0
      %7422 = vmatprep.subr.bf16.mxu0 0
      %7423 = vmatpush2.bf16.msra.mxu0 0
      %7424 = vmatprep.subr.bf16.mxu0 0
      %7425 = vmatpush2.bf16.msra.mxu0 0
      %7426 = vmatprep.subr.bf16.mxu0 0
      %7427 = vmatpush2.bf16.msra.mxu0 0
      %7428 = vmatprep.subr.bf16.mxu0 0
      %7429 = vmatpush2.bf16.msra.mxu0 0
      %7430 = vmatprep.mubr.bf16.mxu0 0
      %7431 = vmatmul.mubr.bf16.gmra.mxu0 %v7333
      %v7432 = vpop.f32.mrf.mxu0
      %v7433 = vadd.f32 0.0, %v7432
      %v7434 = vpop.f32.mrf.mxu0
      %v7435 = vpop.f32.mrf.mxu0
      %v7436 = vadd.f32 0.0, %v7435
      %v7437 = vpop.f32.mrf.mxu0
      %7438 = vmatprep.mubr.bf16.mxu0 0
      %7439 = vmatmul.mubr.bf16.gmra.mxu0 %v7336
      %v7440 = vpop.f32.mrf.mxu0
      %v7441 = vadd.f32 0.0, %v7440
      %v7442 = vpop.f32.mrf.mxu0
      %v7443 = vpop.f32.mrf.mxu0
      %v7444 = vadd.f32 0.0, %v7443
      %v7445 = vpop.f32.mrf.mxu0
      %7446 = vmatprep.mubr.bf16.mxu0 0
      %7447 = vmatmul.mubr.bf16.gmra.mxu0 %v7339
      %v7448 = vpop.f32.mrf.mxu0
      %v7449 = vadd.f32 0.0, %v7448
      %v7450 = vpop.f32.mrf.mxu0
      %v7451 = vpop.f32.mrf.mxu0
      %v7452 = vadd.f32 0.0, %v7451
      %v7453 = vpop.f32.mrf.mxu0
      %7454 = vmatprep.mubr.bf16.mxu0 0
      %7455 = vmatmul.mubr.bf16.gmra.mxu0 %v7342
      %v7456 = vpop.f32.mrf.mxu0
      %v7457 = vadd.f32 0.0, %v7456
      %v7458 = vpop.f32.mrf.mxu0
      %v7459 = vpop.f32.mrf.mxu0
      %v7460 = vadd.f32 0.0, %v7459
      %v7461 = vpop.f32.mrf.mxu0
      %7462 = vmatprep.mubr.bf16.mxu0 0
      %7463 = vmatmul.mubr.bf16.gmra.mxu0 %v7345
      %v7464 = vpop.f32.mrf.mxu0
      %v7465 = vadd.f32 0.0, %v7464
      %v7466 = vpop.f32.mrf.mxu0
      %v7467 = vpop.f32.mrf.mxu0
      %v7468 = vadd.f32 0.0, %v7467
      %v7469 = vpop.f32.mrf.mxu0
      %7470 = vmatprep.mubr.bf16.mxu0 0
      %7471 = vmatmul.mubr.bf16.gmra.mxu0 %v7348
      %v7472 = vpop.f32.mrf.mxu0
      %v7473 = vadd.f32 0.0, %v7472
      %v7474 = vpop.f32.mrf.mxu0
      %v7475 = vpop.f32.mrf.mxu0
      %v7476 = vadd.f32 0.0, %v7475
      %v7477 = vpop.f32.mrf.mxu0
      %7478 = vmatprep.mubr.bf16.mxu0 0
      %7479 = vmatmul.mubr.bf16.gmra.mxu0 %v7351
      %v7480 = vpop.f32.mrf.mxu0
      %v7481 = vadd.f32 0.0, %v7480
      %v7482 = vpop.f32.mrf.mxu0
      %v7483 = vpop.f32.mrf.mxu0
      %v7484 = vadd.f32 0.0, %v7483
      %v7485 = vpop.f32.mrf.mxu0
      %7486 = vmatprep.mubr.bf16.mxu0 0
      %7487 = vmatmul.mubr.bf16.gmra.mxu0 %v7354
      %v7488 = vpop.f32.mrf.mxu0
      %v7489 = vadd.f32 0.0, %v7488
      %v7490 = vpop.f32.mrf.mxu0
      %v7491 = vpop.f32.mrf.mxu0
      %v7492 = vadd.f32 0.0, %v7491
      %v7493 = vpop.f32.mrf.mxu0
      %7494 = vmatprep.mubr.bf16.mxu0 0
      %7495 = vmatmul.mubr.bf16.gmra.mxu0 %v7357
      %v7496 = vpop.f32.mrf.mxu0
      %v7497 = vadd.f32 0.0, %v7496
      %v7498 = vpop.f32.mrf.mxu0
      %v7499 = vpop.f32.mrf.mxu0
      %v7500 = vadd.f32 0.0, %v7499
      %v7501 = vpop.f32.mrf.mxu0
      %7502 = vmatprep.mubr.bf16.mxu0 0
      %7503 = vmatmul.mubr.bf16.gmra.mxu0 %v7360
      %v7504 = vpop.f32.mrf.mxu0
      %v7505 = vadd.f32 0.0, %v7504
      %v7506 = vpop.f32.mrf.mxu0
      %v7507 = vpop.f32.mrf.mxu0
      %v7508 = vadd.f32 0.0, %v7507
      %v7509 = vpop.f32.mrf.mxu0
      %7510 = vmatprep.mubr.bf16.mxu0 0
      %7511 = vmatmul.mubr.bf16.gmra.mxu0 %v7363
      %v7512 = vpop.f32.mrf.mxu0
      %v7513 = vadd.f32 0.0, %v7512
      %v7514 = vpop.f32.mrf.mxu0
      %v7515 = vpop.f32.mrf.mxu0
      %v7516 = vadd.f32 0.0, %v7515
      %v7517 = vpop.f32.mrf.mxu0
      %7518 = vmatprep.mubr.bf16.mxu0 0
      %7519 = vmatmul.mubr.bf16.gmra.mxu0 %v7366
      %v7520 = vpop.f32.mrf.mxu0
      %v7521 = vadd.f32 0.0, %v7520
      %v7522 = vpop.f32.mrf.mxu0
      %v7523 = vpop.f32.mrf.mxu0
      %v7524 = vadd.f32 0.0, %v7523
      %v7525 = vpop.f32.mrf.mxu0
      %7526 = vmatprep.mubr.bf16.mxu0 0
      %7527 = vmatmul.mubr.bf16.gmra.mxu0 %v7369
      %v7528 = vpop.f32.mrf.mxu0
      %v7529 = vadd.f32 0.0, %v7528
      %v7530 = vpop.f32.mrf.mxu0
      %v7531 = vpop.f32.mrf.mxu0
      %v7532 = vadd.f32 0.0, %v7531
      %v7533 = vpop.f32.mrf.mxu0
      %7534 = vmatprep.mubr.bf16.mxu0 0
      %7535 = vmatmul.mubr.bf16.gmra.mxu0 %v7372
      %v7536 = vpop.f32.mrf.mxu0
      %v7537 = vadd.f32 0.0, %v7536
      %v7538 = vpop.f32.mrf.mxu0
      %v7539 = vpop.f32.mrf.mxu0
      %v7540 = vadd.f32 0.0, %v7539
      %v7541 = vpop.f32.mrf.mxu0
      %7542 = vmatprep.mubr.bf16.mxu0 0
      %7543 = vmatmul.mubr.bf16.gmra.mxu0 %v7375
      %v7544 = vpop.f32.mrf.mxu0
      %v7545 = vadd.f32 0.0, %v7544
      %v7546 = vpop.f32.mrf.mxu0
      %v7547 = vpop.f32.mrf.mxu0
      %v7548 = vadd.f32 0.0, %v7547
      %v7549 = vpop.f32.mrf.mxu0
      %7550 = vmatprep.mubr.bf16.mxu0 0
      %7551 = vmatmul.mubr.bf16.gmra.mxu0 %v7378
      %v7552 = vpop.f32.mrf.mxu0
      %v7553 = vadd.f32 0.0, %v7552
      %v7554 = vpop.f32.mrf.mxu0
      %v7555 = vpop.f32.mrf.mxu0
      %v7556 = vadd.f32 0.0, %v7555
      %v7557 = vpop.f32.mrf.mxu0
      %7558 = vmatprep.mubr.bf16.mxu0 0
      %7559 = vmatmul.mubr.bf16.gmra.mxu0 %v7381
      %v7560 = vpop.f32.mrf.mxu0
      %v7561 = vadd.f32 0.0, %v7560
      %v7562 = vpop.f32.mrf.mxu0
      %v7563 = vpop.f32.mrf.mxu0
      %v7564 = vadd.f32 0.0, %v7563
      %v7565 = vpop.f32.mrf.mxu0
      %7566 = vmatprep.mubr.bf16.mxu0 0
      %7567 = vmatmul.mubr.bf16.gmra.mxu0 %v7384
      %v7568 = vpop.f32.mrf.mxu0
      %v7569 = vadd.f32 0.0, %v7568
      %v7570 = vpop.f32.mrf.mxu0
      %v7571 = vpop.f32.mrf.mxu0
      %v7572 = vadd.f32 0.0, %v7571
      %v7573 = vpop.f32.mrf.mxu0
      %7574 = vmatprep.mubr.bf16.mxu0 0
      %7575 = vmatmul.mubr.bf16.gmra.mxu0 %v7387
      %v7576 = vpop.f32.mrf.mxu0
      %v7577 = vadd.f32 0.0, %v7576
      %v7578 = vpop.f32.mrf.mxu0
      %v7579 = vpop.f32.mrf.mxu0
      %v7580 = vadd.f32 0.0, %v7579
      %v7581 = vpop.f32.mrf.mxu0
      %7582 = vmatprep.mubr.bf16.mxu0 0
      %7583 = vmatmul.mubr.bf16.gmra.mxu0 %v7390
      %v7584 = vpop.f32.mrf.mxu0
      %v7585 = vadd.f32 0.0, %v7584
      %v7586 = vpop.f32.mrf.mxu0
      %v7587 = vpop.f32.mrf.mxu0
      %v7588 = vadd.f32 0.0, %v7587
      %v7589 = vpop.f32.mrf.mxu0
      %7590 = vmatprep.mubr.bf16.mxu0 0
      %7591 = vmatmul.mubr.bf16.gmra.mxu0 %v7393
      %v7592 = vpop.f32.mrf.mxu0
      %v7593 = vadd.f32 0.0, %v7592
      %v7594 = vpop.f32.mrf.mxu0
      %v7595 = vpop.f32.mrf.mxu0
      %v7596 = vadd.f32 0.0, %v7595
      %v7597 = vpop.f32.mrf.mxu0
      %7598 = vmatprep.mubr.bf16.mxu0 0
      %7599 = vmatmul.mubr.bf16.gmra.mxu0 %v7396
      %v7600 = vpop.f32.mrf.mxu0
      %v7601 = vadd.f32 0.0, %v7600
      %v7602 = vpop.f32.mrf.mxu0
      %v7603 = vpop.f32.mrf.mxu0
      %v7604 = vadd.f32 0.0, %v7603
      %v7605 = vpop.f32.mrf.mxu0
      %7606 = vdwg.mxu0
      %v7619 = vunpack.c.l.b16 %v7171
      %v7620 = vunpack.c.l.b16 %v7172
      %v7621 = vunpack.c.l.b16 %v7173
      %v7622 = vunpack.c.l.b16 %v7174
      %v7623 = vunpack.c.l.b16 %v7175
      %v7624 = vunpack.c.l.b16 %v7176
      %v7625 = vunpack.c.l.b16 %v7177
      %v7626 = vunpack.c.l.b16 %v7178
      %v7627 = vunpack.c.l.b16 %v7179
      %v7628 = vunpack.c.l.b16 %v7180
      %v7629 = vunpack.c.l.b16 %v7181
      %v7630 = vunpack.c.l.b16 %v7182
      %v7631 = vpack.c.b16 %v7620, %v7619
      %v7632 = vpack.c.b16 %v7622, %v7621
      %v7633 = vpack.c.b16 %v7624, %v7623
      %v7634 = vpack.c.b16 %v7626, %v7625
      %v7635 = vpack.c.b16 %v7628, %v7627
      %v7636 = vpack.c.b16 %v7630, %v7629
      %v7643 = vsel %vm1499, %v7128, 0
      %v7645 = vsel %vm1499, %v7130, 0
      %v7647 = vsel %vm1499, %v7132, 0
      %v7649 = vsel %vm1499, %v7134, 0
      %v7651 = vsel %vm1499, %v7136, 0
      %v7653 = vsel %vm1499, %v7138, 0
      %v7655 = vsel %vm1499, %v7140, 0
      %v7657 = vsel %vm1499, %v7142, 0
      %v7659 = vsel %vm1499, %v7144, 0
      %v7661 = vsel %vm1499, %v7146, 0
      %v7663 = vsel %vm1499, %v7148, 0
      %v7665 = vsel %vm1499, %v7150, 0
      %v7667 = vsel %vm1499, %v7152, 0
      %v7669 = vsel %vm1499, %v7154, 0
      %v7671 = vsel %vm1499, %v7156, 0
      %v7673 = vsel %vm1499, %v7158, 0
      %v7675 = vsel %vm1499, %v7160, 0
      %v7677 = vsel %vm1499, %v7162, 0
      %v7679 = vsel %vm1499, %v7164, 0
      %v7681 = vsel %vm1499, %v7166, 0
      %v7683 = vsel %vm1499, %v7168, 0
      %v7685 = vsel %vm1499, %v7170, 0
      %7687 = vmatprep.subr.bf16.mxu0 0
      %7688 = vmatpush1.bf16.msra.mxu0 0
      %7689 = vmatprep.subr.bf16.mxu0 0
      %7690 = vmatpush1.bf16.msra.mxu0 0
      %7691 = vmatprep.subr.bf16.mxu0 0
      %7692 = vmatpush1.bf16.msra.mxu0 %v7636
      %7693 = vmatprep.subr.bf16.mxu0 0
      %7694 = vmatpush1.bf16.msra.mxu0 %v7635
      %7695 = vmatprep.subr.bf16.mxu0 0
      %7696 = vmatpush1.bf16.msra.mxu0 %v7634
      %7697 = vmatprep.subr.bf16.mxu0 0
      %7698 = vmatpush1.bf16.msra.mxu0 %v7633
      %7699 = vmatprep.subr.bf16.mxu0 0
      %7700 = vmatpush1.bf16.msra.mxu0 %v7632
      %7701 = vmatprep.subr.bf16.mxu0 0
      %7702 = vmatpush1.bf16.msra.mxu0 %v7631
      %7703 = vmatprep.subr.bf16.mxu0 0
      %7704 = vmatpush2.bf16.msra.mxu0 0
      %7705 = vmatprep.subr.bf16.mxu0 0
      %7706 = vmatpush2.bf16.msra.mxu0 0
      %7707 = vmatprep.subr.bf16.mxu0 0
      %7708 = vmatpush2.bf16.msra.mxu0 0
      %7709 = vmatprep.subr.bf16.mxu0 0
      %7710 = vmatpush2.bf16.msra.mxu0 0
      %7711 = vmatprep.subr.bf16.mxu0 0
      %7712 = vmatpush2.bf16.msra.mxu0 0
      %7713 = vmatprep.subr.bf16.mxu0 0
      %7714 = vmatpush2.bf16.msra.mxu0 0
      %7715 = vmatprep.subr.bf16.mxu0 0
      %7716 = vmatpush2.bf16.msra.mxu0 0
      %7717 = vmatprep.subr.bf16.mxu0 0
      %7718 = vmatpush2.bf16.msra.mxu0 0
      %7719 = vmatprep.mubr.bf16.mxu0 0
      %7720 = vmatmul.mubr.bf16.gmra.mxu0 %v7643
      %v7721 = vpop.f32.mrf.mxu0
      %v7722 = vadd.f32 %v7433, %v7721
      %v7723 = vpop.f32.mrf.mxu0
      %v7724 = vpop.f32.mrf.mxu0
      %v7725 = vadd.f32 %v7436, %v7724
      %v7726 = vpop.f32.mrf.mxu0
      %7727 = vmatprep.mubr.bf16.mxu0 0
      %7728 = vmatmul.mubr.bf16.gmra.mxu0 %v7645
      %v7729 = vpop.f32.mrf.mxu0
      %v7730 = vadd.f32 %v7441, %v7729
      %v7731 = vpop.f32.mrf.mxu0
      %v7732 = vpop.f32.mrf.mxu0
      %v7733 = vadd.f32 %v7444, %v7732
      %v7734 = vpop.f32.mrf.mxu0
      %7735 = vmatprep.mubr.bf16.mxu0 0
      %7736 = vmatmul.mubr.bf16.gmra.mxu0 %v7647
      %v7737 = vpop.f32.mrf.mxu0
      %v7738 = vadd.f32 %v7449, %v7737
      %v7739 = vpop.f32.mrf.mxu0
      %v7740 = vpop.f32.mrf.mxu0
      %v7741 = vadd.f32 %v7452, %v7740
      %v7742 = vpop.f32.mrf.mxu0
      %7743 = vmatprep.mubr.bf16.mxu0 0
      %7744 = vmatmul.mubr.bf16.gmra.mxu0 %v7649
      %v7745 = vpop.f32.mrf.mxu0
      %v7746 = vadd.f32 %v7457, %v7745
      %v7747 = vpop.f32.mrf.mxu0
      %v7748 = vpop.f32.mrf.mxu0
      %v7749 = vadd.f32 %v7460, %v7748
      %v7750 = vpop.f32.mrf.mxu0
      %7751 = vmatprep.mubr.bf16.mxu0 0
      %7752 = vmatmul.mubr.bf16.gmra.mxu0 %v7651
      %v7753 = vpop.f32.mrf.mxu0
      %v7754 = vadd.f32 %v7465, %v7753
      %v7755 = vpop.f32.mrf.mxu0
      %v7756 = vpop.f32.mrf.mxu0
      %v7757 = vadd.f32 %v7468, %v7756
      %v7758 = vpop.f32.mrf.mxu0
      %7759 = vmatprep.mubr.bf16.mxu0 0
      %7760 = vmatmul.mubr.bf16.gmra.mxu0 %v7653
      %v7761 = vpop.f32.mrf.mxu0
      %v7762 = vadd.f32 %v7473, %v7761
      %v7763 = vpop.f32.mrf.mxu0
      %v7764 = vpop.f32.mrf.mxu0
      %v7765 = vadd.f32 %v7476, %v7764
      %v7766 = vpop.f32.mrf.mxu0
      %7767 = vmatprep.mubr.bf16.mxu0 0
      %7768 = vmatmul.mubr.bf16.gmra.mxu0 %v7655
      %v7769 = vpop.f32.mrf.mxu0
      %v7770 = vadd.f32 %v7481, %v7769
      %v7771 = vpop.f32.mrf.mxu0
      %v7772 = vpop.f32.mrf.mxu0
      %v7773 = vadd.f32 %v7484, %v7772
      %v7774 = vpop.f32.mrf.mxu0
      %7775 = vmatprep.mubr.bf16.mxu0 0
      %7776 = vmatmul.mubr.bf16.gmra.mxu0 %v7657
      %v7777 = vpop.f32.mrf.mxu0
      %v7778 = vadd.f32 %v7489, %v7777
      %v7779 = vpop.f32.mrf.mxu0
      %v7780 = vpop.f32.mrf.mxu0
      %v7781 = vadd.f32 %v7492, %v7780
      %v7782 = vpop.f32.mrf.mxu0
      %7783 = vmatprep.mubr.bf16.mxu0 0
      %7784 = vmatmul.mubr.bf16.gmra.mxu0 %v7659
      %v7785 = vpop.f32.mrf.mxu0
      %v7786 = vadd.f32 %v7497, %v7785
      %v7787 = vpop.f32.mrf.mxu0
      %v7788 = vpop.f32.mrf.mxu0
      %v7789 = vadd.f32 %v7500, %v7788
      %v7790 = vpop.f32.mrf.mxu0
      %7791 = vmatprep.mubr.bf16.mxu0 0
      %7792 = vmatmul.mubr.bf16.gmra.mxu0 %v7661
      %v7793 = vpop.f32.mrf.mxu0
      %v7794 = vadd.f32 %v7505, %v7793
      %v7795 = vpop.f32.mrf.mxu0
      %v7796 = vpop.f32.mrf.mxu0
      %v7797 = vadd.f32 %v7508, %v7796
      %v7798 = vpop.f32.mrf.mxu0
      %7799 = vmatprep.mubr.bf16.mxu0 0
      %7800 = vmatmul.mubr.bf16.gmra.mxu0 %v7663
      %v7801 = vpop.f32.mrf.mxu0
      %v7802 = vadd.f32 %v7513, %v7801
      %v7803 = vpop.f32.mrf.mxu0
      %v7804 = vpop.f32.mrf.mxu0
      %v7805 = vadd.f32 %v7516, %v7804
      %v7806 = vpop.f32.mrf.mxu0
      %7807 = vmatprep.mubr.bf16.mxu0 0
      %7808 = vmatmul.mubr.bf16.gmra.mxu0 %v7665
      %v7809 = vpop.f32.mrf.mxu0
      %v7810 = vadd.f32 %v7521, %v7809
      %v7811 = vpop.f32.mrf.mxu0
      %v7812 = vpop.f32.mrf.mxu0
      %v7813 = vadd.f32 %v7524, %v7812
      %v7814 = vpop.f32.mrf.mxu0
      %7815 = vmatprep.mubr.bf16.mxu0 0
      %7816 = vmatmul.mubr.bf16.gmra.mxu0 %v7667
      %v7817 = vpop.f32.mrf.mxu0
      %v7818 = vadd.f32 %v7529, %v7817
      %v7819 = vpop.f32.mrf.mxu0
      %v7820 = vpop.f32.mrf.mxu0
      %v7821 = vadd.f32 %v7532, %v7820
      %v7822 = vpop.f32.mrf.mxu0
      %7823 = vmatprep.mubr.bf16.mxu0 0
      %7824 = vmatmul.mubr.bf16.gmra.mxu0 %v7669
      %v7825 = vpop.f32.mrf.mxu0
      %v7826 = vadd.f32 %v7537, %v7825
      %v7827 = vpop.f32.mrf.mxu0
      %v7828 = vpop.f32.mrf.mxu0
      %v7829 = vadd.f32 %v7540, %v7828
      %v7830 = vpop.f32.mrf.mxu0
      %7831 = vmatprep.mubr.bf16.mxu0 0
      %7832 = vmatmul.mubr.bf16.gmra.mxu0 %v7671
      %v7833 = vpop.f32.mrf.mxu0
      %v7834 = vadd.f32 %v7545, %v7833
      %v7835 = vpop.f32.mrf.mxu0
      %v7836 = vpop.f32.mrf.mxu0
      %v7837 = vadd.f32 %v7548, %v7836
      %v7838 = vpop.f32.mrf.mxu0
      %7839 = vmatprep.mubr.bf16.mxu0 0
      %7840 = vmatmul.mubr.bf16.gmra.mxu0 %v7673
      %v7841 = vpop.f32.mrf.mxu0
      %v7842 = vadd.f32 %v7553, %v7841
      %v7843 = vpop.f32.mrf.mxu0
      %v7844 = vpop.f32.mrf.mxu0
      %v7845 = vadd.f32 %v7556, %v7844
      %v7846 = vpop.f32.mrf.mxu0
      %7847 = vmatprep.mubr.bf16.mxu0 0
      %7848 = vmatmul.mubr.bf16.gmra.mxu0 %v7675
      %v7849 = vpop.f32.mrf.mxu0
      %v7850 = vadd.f32 %v7561, %v7849
      %v7851 = vpop.f32.mrf.mxu0
      %v7852 = vpop.f32.mrf.mxu0
      %v7853 = vadd.f32 %v7564, %v7852
      %v7854 = vpop.f32.mrf.mxu0
      %7855 = vmatprep.mubr.bf16.mxu0 0
      %7856 = vmatmul.mubr.bf16.gmra.mxu0 %v7677
      %v7857 = vpop.f32.mrf.mxu0
      %v7858 = vadd.f32 %v7569, %v7857
      %v7859 = vpop.f32.mrf.mxu0
      %v7860 = vpop.f32.mrf.mxu0
      %v7861 = vadd.f32 %v7572, %v7860
      %v7862 = vpop.f32.mrf.mxu0
      %7863 = vmatprep.mubr.bf16.mxu0 0
      %7864 = vmatmul.mubr.bf16.gmra.mxu0 %v7679
      %v7865 = vpop.f32.mrf.mxu0
      %v7866 = vadd.f32 %v7577, %v7865
      %v7867 = vpop.f32.mrf.mxu0
      %v7868 = vpop.f32.mrf.mxu0
      %v7869 = vadd.f32 %v7580, %v7868
      %v7870 = vpop.f32.mrf.mxu0
      %7871 = vmatprep.mubr.bf16.mxu0 0
      %7872 = vmatmul.mubr.bf16.gmra.mxu0 %v7681
      %v7873 = vpop.f32.mrf.mxu0
      %v7874 = vadd.f32 %v7585, %v7873
      %v7875 = vpop.f32.mrf.mxu0
      %v7876 = vpop.f32.mrf.mxu0
      %v7877 = vadd.f32 %v7588, %v7876
      %v7878 = vpop.f32.mrf.mxu0
      %7879 = vmatprep.mubr.bf16.mxu0 0
      %7880 = vmatmul.mubr.bf16.gmra.mxu0 %v7683
      %v7881 = vpop.f32.mrf.mxu0
      %v7882 = vadd.f32 %v7593, %v7881
      %v7883 = vpop.f32.mrf.mxu0
      %v7884 = vpop.f32.mrf.mxu0
      %v7885 = vadd.f32 %v7596, %v7884
      %v7886 = vpop.f32.mrf.mxu0
      %7887 = vmatprep.mubr.bf16.mxu0 0
      %7888 = vmatmul.mubr.bf16.gmra.mxu0 %v7685
      %v7889 = vpop.f32.mrf.mxu0
      %v7890 = vadd.f32 %v7601, %v7889
      %v7891 = vpop.f32.mrf.mxu0
      %v7892 = vpop.f32.mrf.mxu0
      %v7893 = vadd.f32 %v7604, %v7892
      %v7894 = vpop.f32.mrf.mxu0
      %7895 = vdwg.mxu0
      %v7896 = vshrl.u32 %v6753, 16
      %v7898 = vor.u32 %v7896, %v7194
      %v7900 = vshll.u32 %v6754, 16
      %v7902 = vrot.slane %v7900, 1
      %v7903 = vsel %vm616, %v7898, %v7902
      %v7904 = vshrl.u32 %v6754, 16
      %v7906 = vor.u32 %v7904, %v7902
      %7907 = vrot.lane.b32.xlu0 %v7903, 32
      %v7908 = vpop.permute.xlu0 %7907
      %7909 = vrot.lane.b32.xlu0 %v7906, 32
      %v7910 = vpop.permute.xlu0 %7909
      %v7912 = vrot.slane %v6754, 1
      %v7913 = vsel %vm896, %v7204, %v7912
      %7914 = vrot.lane.b32.xlu0 %v7913, 64
      %v7915 = vpop.permute.xlu0 %7914
      %7916 = vrot.lane.b32.xlu0 %v7912, 64
      %v7917 = vpop.permute.xlu0 %7916
      %v7919 = vsel %vm1008, %v6753, %v7908
      %v7921 = vsel %vm1008, %v6754, %v7910
      %v7923 = vsel %vm1065, %v7919, %v7915
      %v7925 = vsel %vm1065, %v7921, %v7917
      %s7926 = scalar_lea.vmem %s6, 96
      %v7927 = vld [vmem:[%s7926] sm:$0xf]
      %v7928 = vld [vmem:[%s7926 + $0x4] sm:$0xf]
      %v7929 = vld [vmem:[%s7926 + $0x8] sm:$0xf]
      %v7930 = vld [vmem:[%s7926 + $0xc] sm:$0xf]
      %v7931 = vld [vmem:[%s7926 + $0x10] sm:$0xf]
      %v7932 = vld [vmem:[%s7926 + $0x14] sm:$0xf]
      %v7933 = vld [vmem:[%s7926 + $0x18] sm:$0xf]
      %v7934 = vld [vmem:[%s7926 + $0x1c] sm:$0xf]
      %v7935 = vld [vmem:[%s7926 + $0x20] sm:$0xf]
      %v7936 = vld [vmem:[%s7926 + $0x24] sm:$0xf]
      %v7937 = vld [vmem:[%s7926 + $0x28] sm:$0xf]
      %v7938 = vld [vmem:[%s7926 + $0x2c] sm:$0xf]
      %v7941 = vrot.slane %v7132, 6
      %v7942 = vrot.slane %v7134, 6
      %v7943 = vsel %vm5689, %v7941, %v7942
      %v7944 = vrot.slane %v7136, 6
      %v7945 = vsel %vm5689, %v7942, %v7944
      %v7946 = vrot.slane %v7138, 6
      %v7947 = vsel %vm5689, %v7944, %v7946
      %v7948 = vrot.slane %v7140, 6
      %v7949 = vsel %vm5689, %v7946, %v7948
      %v7950 = vrot.slane %v7142, 6
      %v7951 = vsel %vm5689, %v7948, %v7950
      %v7952 = vrot.slane %v7144, 6
      %v7953 = vsel %vm5689, %v7950, %v7952
      %v7954 = vrot.slane %v7146, 6
      %v7955 = vsel %vm5689, %v7952, %v7954
      %v7956 = vrot.slane %v7148, 6
      %v7957 = vsel %vm5689, %v7954, %v7956
      %v7958 = vrot.slane %v7150, 6
      %v7959 = vsel %vm5689, %v7956, %v7958
      %v7960 = vrot.slane %v7152, 6
      %v7961 = vsel %vm5689, %v7958, %v7960
      %v7962 = vrot.slane %v7154, 6
      %v7963 = vsel %vm5689, %v7960, %v7962
      %v7964 = vrot.slane %v7156, 6
      %v7965 = vsel %vm5689, %v7962, %v7964
      %v7966 = vrot.slane %v7158, 6
      %v7967 = vsel %vm5689, %v7964, %v7966
      %v7968 = vrot.slane %v7160, 6
      %v7969 = vsel %vm5689, %v7966, %v7968
      %v7970 = vrot.slane %v7162, 6
      %v7971 = vsel %vm5689, %v7968, %v7970
      %v7972 = vrot.slane %v7164, 6
      %v7973 = vsel %vm5689, %v7970, %v7972
      %v7974 = vrot.slane %v7166, 6
      %v7975 = vsel %vm5689, %v7972, %v7974
      %v7976 = vrot.slane %v7168, 6
      %v7977 = vsel %vm5689, %v7974, %v7976
      %v7978 = vrot.slane %v7215, 6
      %v7979 = vsel %vm5689, %v7976, %v7978
      %v7980 = vrot.slane %v7217, 6
      %v7981 = vsel %vm5689, %v7978, %v7980
      %v7982 = vrot.slane %v7923, 6
      %v7983 = vsel %vm5689, %v7980, %v7982
      %v7984 = vrot.slane %v7925, 6
      %v7985 = vsel %vm5689, %v7982, %v7984
      %v7998 = vunpack.c.l.b16 %v7927
      %v7999 = vunpack.c.l.b16 %v7928
      %v8000 = vunpack.c.l.b16 %v7929
      %v8001 = vunpack.c.l.b16 %v7930
      %v8002 = vunpack.c.l.b16 %v7931
      %v8003 = vunpack.c.l.b16 %v7932
      %v8004 = vunpack.c.l.b16 %v7933
      %v8005 = vunpack.c.l.b16 %v7934
      %v8006 = vunpack.c.l.b16 %v7935
      %v8007 = vunpack.c.l.b16 %v7936
      %v8008 = vunpack.c.l.b16 %v7937
      %v8009 = vunpack.c.l.b16 %v7938
      %v8010 = vpack.c.b16 %v7999, %v7998
      %v8011 = vpack.c.b16 %v8001, %v8000
      %v8012 = vpack.c.b16 %v8003, %v8002
      %v8013 = vpack.c.b16 %v8005, %v8004
      %v8014 = vpack.c.b16 %v8007, %v8006
      %v8015 = vpack.c.b16 %v8009, %v8008
      %v8023 = vsel %vm1499, %v7943, 0
      %v8026 = vsel %vm1499, %v7945, 0
      %v8029 = vsel %vm1499, %v7947, 0
      %v8032 = vsel %vm1499, %v7949, 0
      %v8035 = vsel %vm1499, %v7951, 0
      %v8038 = vsel %vm1499, %v7953, 0
      %v8041 = vsel %vm1499, %v7955, 0
      %v8044 = vsel %vm1499, %v7957, 0
      %v8047 = vsel %vm1499, %v7959, 0
      %v8050 = vsel %vm1499, %v7961, 0
      %v8053 = vsel %vm1499, %v7963, 0
      %v8056 = vsel %vm1499, %v7965, 0
      %v8059 = vsel %vm1499, %v7967, 0
      %v8062 = vsel %vm1499, %v7969, 0
      %v8065 = vsel %vm1499, %v7971, 0
      %v8068 = vsel %vm1499, %v7973, 0
      %v8071 = vsel %vm1499, %v7975, 0
      %v8074 = vsel %vm1499, %v7977, 0
      %v8077 = vsel %vm1499, %v7979, 0
      %v8080 = vsel %vm1499, %v7981, 0
      %v8083 = vsel %vm1499, %v7983, 0
      %v8086 = vsel %vm1499, %v7985, 0
      %8088 = vmatprep.subr.bf16.mxu0 0
      %8089 = vmatpush1.bf16.msra.mxu0 0
      %8090 = vmatprep.subr.bf16.mxu0 0
      %8091 = vmatpush1.bf16.msra.mxu0 0
      %8092 = vmatprep.subr.bf16.mxu0 0
      %8093 = vmatpush1.bf16.msra.mxu0 %v8015
      %8094 = vmatprep.subr.bf16.mxu0 0
      %8095 = vmatpush1.bf16.msra.mxu0 %v8014
      %8096 = vmatprep.subr.bf16.mxu0 0
      %8097 = vmatpush1.bf16.msra.mxu0 %v8013
      %8098 = vmatprep.subr.bf16.mxu0 0
      %8099 = vmatpush1.bf16.msra.mxu0 %v8012
      %8100 = vmatprep.subr.bf16.mxu0 0
      %8101 = vmatpush1.bf16.msra.mxu0 %v8011
      %8102 = vmatprep.subr.bf16.mxu0 0
      %8103 = vmatpush1.bf16.msra.mxu0 %v8010
      %8104 = vmatprep.subr.bf16.mxu0 0
      %8105 = vmatpush2.bf16.msra.mxu0 0
      %8106 = vmatprep.subr.bf16.mxu0 0
      %8107 = vmatpush2.bf16.msra.mxu0 0
      %8108 = vmatprep.subr.bf16.mxu0 0
      %8109 = vmatpush2.bf16.msra.mxu0 0
      %8110 = vmatprep.subr.bf16.mxu0 0
      %8111 = vmatpush2.bf16.msra.mxu0 0
      %8112 = vmatprep.subr.bf16.mxu0 0
      %8113 = vmatpush2.bf16.msra.mxu0 0
      %8114 = vmatprep.subr.bf16.mxu0 0
      %8115 = vmatpush2.bf16.msra.mxu0 0
      %8116 = vmatprep.subr.bf16.mxu0 0
      %8117 = vmatpush2.bf16.msra.mxu0 0
      %8118 = vmatprep.subr.bf16.mxu0 0
      %8119 = vmatpush2.bf16.msra.mxu0 0
      %8120 = vmatprep.mubr.bf16.mxu0 0
      %8121 = vmatmul.mubr.bf16.gmra.mxu0 %v8023
      %v8122 = vpop.f32.mrf.mxu0
      %v8123 = vadd.f32 0.0, %v8122
      %v8124 = vpop.f32.mrf.mxu0
      %v8125 = vpop.f32.mrf.mxu0
      %v8126 = vadd.f32 0.0, %v8125
      %v8127 = vpop.f32.mrf.mxu0
      %8128 = vmatprep.mubr.bf16.mxu0 0
      %8129 = vmatmul.mubr.bf16.gmra.mxu0 %v8026
      %v8130 = vpop.f32.mrf.mxu0
      %v8131 = vadd.f32 0.0, %v8130
      %v8132 = vpop.f32.mrf.mxu0
      %v8133 = vpop.f32.mrf.mxu0
      %v8134 = vadd.f32 0.0, %v8133
      %v8135 = vpop.f32.mrf.mxu0
      %8136 = vmatprep.mubr.bf16.mxu0 0
      %8137 = vmatmul.mubr.bf16.gmra.mxu0 %v8029
      %v8138 = vpop.f32.mrf.mxu0
      %v8139 = vadd.f32 0.0, %v8138
      %v8140 = vpop.f32.mrf.mxu0
      %v8141 = vpop.f32.mrf.mxu0
      %v8142 = vadd.f32 0.0, %v8141
      %v8143 = vpop.f32.mrf.mxu0
      %8144 = vmatprep.mubr.bf16.mxu0 0
      %8145 = vmatmul.mubr.bf16.gmra.mxu0 %v8032
      %v8146 = vpop.f32.mrf.mxu0
      %v8147 = vadd.f32 0.0, %v8146
      %v8148 = vpop.f32.mrf.mxu0
      %v8149 = vpop.f32.mrf.mxu0
      %v8150 = vadd.f32 0.0, %v8149
      %v8151 = vpop.f32.mrf.mxu0
      %8152 = vmatprep.mubr.bf16.mxu0 0
      %8153 = vmatmul.mubr.bf16.gmra.mxu0 %v8035
      %v8154 = vpop.f32.mrf.mxu0
      %v8155 = vadd.f32 0.0, %v8154
      %v8156 = vpop.f32.mrf.mxu0
      %v8157 = vpop.f32.mrf.mxu0
      %v8158 = vadd.f32 0.0, %v8157
      %v8159 = vpop.f32.mrf.mxu0
      %8160 = vmatprep.mubr.bf16.mxu0 0
      %8161 = vmatmul.mubr.bf16.gmra.mxu0 %v8038
      %v8162 = vpop.f32.mrf.mxu0
      %v8163 = vadd.f32 0.0, %v8162
      %v8164 = vpop.f32.mrf.mxu0
      %v8165 = vpop.f32.mrf.mxu0
      %v8166 = vadd.f32 0.0, %v8165
      %v8167 = vpop.f32.mrf.mxu0
      %8168 = vmatprep.mubr.bf16.mxu0 0
      %8169 = vmatmul.mubr.bf16.gmra.mxu0 %v8041
      %v8170 = vpop.f32.mrf.mxu0
      %v8171 = vadd.f32 0.0, %v8170
      %v8172 = vpop.f32.mrf.mxu0
      %v8173 = vpop.f32.mrf.mxu0
      %v8174 = vadd.f32 0.0, %v8173
      %v8175 = vpop.f32.mrf.mxu0
      %8176 = vmatprep.mubr.bf16.mxu0 0
      %8177 = vmatmul.mubr.bf16.gmra.mxu0 %v8044
      %v8178 = vpop.f32.mrf.mxu0
      %v8179 = vadd.f32 0.0, %v8178
      %v8180 = vpop.f32.mrf.mxu0
      %v8181 = vpop.f32.mrf.mxu0
      %v8182 = vadd.f32 0.0, %v8181
      %v8183 = vpop.f32.mrf.mxu0
      %8184 = vmatprep.mubr.bf16.mxu0 0
      %8185 = vmatmul.mubr.bf16.gmra.mxu0 %v8047
      %v8186 = vpop.f32.mrf.mxu0
      %v8187 = vadd.f32 0.0, %v8186
      %v8188 = vpop.f32.mrf.mxu0
      %v8189 = vpop.f32.mrf.mxu0
      %v8190 = vadd.f32 0.0, %v8189
      %v8191 = vpop.f32.mrf.mxu0
      %8192 = vmatprep.mubr.bf16.mxu0 0
      %8193 = vmatmul.mubr.bf16.gmra.mxu0 %v8050
      %v8194 = vpop.f32.mrf.mxu0
      %v8195 = vadd.f32 0.0, %v8194
      %v8196 = vpop.f32.mrf.mxu0
      %v8197 = vpop.f32.mrf.mxu0
      %v8198 = vadd.f32 0.0, %v8197
      %v8199 = vpop.f32.mrf.mxu0
      %8200 = vmatprep.mubr.bf16.mxu0 0
      %8201 = vmatmul.mubr.bf16.gmra.mxu0 %v8053
      %v8202 = vpop.f32.mrf.mxu0
      %v8203 = vadd.f32 0.0, %v8202
      %v8204 = vpop.f32.mrf.mxu0
      %v8205 = vpop.f32.mrf.mxu0
      %v8206 = vadd.f32 0.0, %v8205
      %v8207 = vpop.f32.mrf.mxu0
      %8208 = vmatprep.mubr.bf16.mxu0 0
      %8209 = vmatmul.mubr.bf16.gmra.mxu0 %v8056
      %v8210 = vpop.f32.mrf.mxu0
      %v8211 = vadd.f32 0.0, %v8210
      %v8212 = vpop.f32.mrf.mxu0
      %v8213 = vpop.f32.mrf.mxu0
      %v8214 = vadd.f32 0.0, %v8213
      %v8215 = vpop.f32.mrf.mxu0
      %8216 = vmatprep.mubr.bf16.mxu0 0
      %8217 = vmatmul.mubr.bf16.gmra.mxu0 %v8059
      %v8218 = vpop.f32.mrf.mxu0
      %v8219 = vadd.f32 0.0, %v8218
      %v8220 = vpop.f32.mrf.mxu0
      %v8221 = vpop.f32.mrf.mxu0
      %v8222 = vadd.f32 0.0, %v8221
      %v8223 = vpop.f32.mrf.mxu0
      %8224 = vmatprep.mubr.bf16.mxu0 0
      %8225 = vmatmul.mubr.bf16.gmra.mxu0 %v8062
      %v8226 = vpop.f32.mrf.mxu0
      %v8227 = vadd.f32 0.0, %v8226
      %v8228 = vpop.f32.mrf.mxu0
      %v8229 = vpop.f32.mrf.mxu0
      %v8230 = vadd.f32 0.0, %v8229
      %v8231 = vpop.f32.mrf.mxu0
      %8232 = vmatprep.mubr.bf16.mxu0 0
      %8233 = vmatmul.mubr.bf16.gmra.mxu0 %v8065
      %v8234 = vpop.f32.mrf.mxu0
      %v8235 = vadd.f32 0.0, %v8234
      %v8236 = vpop.f32.mrf.mxu0
      %v8237 = vpop.f32.mrf.mxu0
      %v8238 = vadd.f32 0.0, %v8237
      %v8239 = vpop.f32.mrf.mxu0
      %8240 = vmatprep.mubr.bf16.mxu0 0
      %8241 = vmatmul.mubr.bf16.gmra.mxu0 %v8068
      %v8242 = vpop.f32.mrf.mxu0
      %v8243 = vadd.f32 0.0, %v8242
      %v8244 = vpop.f32.mrf.mxu0
      %v8245 = vpop.f32.mrf.mxu0
      %v8246 = vadd.f32 0.0, %v8245
      %v8247 = vpop.f32.mrf.mxu0
      %8248 = vmatprep.mubr.bf16.mxu0 0
      %8249 = vmatmul.mubr.bf16.gmra.mxu0 %v8071
      %v8250 = vpop.f32.mrf.mxu0
      %v8251 = vadd.f32 0.0, %v8250
      %v8252 = vpop.f32.mrf.mxu0
      %v8253 = vpop.f32.mrf.mxu0
      %v8254 = vadd.f32 0.0, %v8253
      %v8255 = vpop.f32.mrf.mxu0
      %8256 = vmatprep.mubr.bf16.mxu0 0
      %8257 = vmatmul.mubr.bf16.gmra.mxu0 %v8074
      %v8258 = vpop.f32.mrf.mxu0
      %v8259 = vadd.f32 0.0, %v8258
      %v8260 = vpop.f32.mrf.mxu0
      %v8261 = vpop.f32.mrf.mxu0
      %v8262 = vadd.f32 0.0, %v8261
      %v8263 = vpop.f32.mrf.mxu0
      %8264 = vmatprep.mubr.bf16.mxu0 0
      %8265 = vmatmul.mubr.bf16.gmra.mxu0 %v8077
      %v8266 = vpop.f32.mrf.mxu0
      %v8267 = vadd.f32 0.0, %v8266
      %v8268 = vpop.f32.mrf.mxu0
      %v8269 = vpop.f32.mrf.mxu0
      %v8270 = vadd.f32 0.0, %v8269
      %v8271 = vpop.f32.mrf.mxu0
      %8272 = vmatprep.mubr.bf16.mxu0 0
      %8273 = vmatmul.mubr.bf16.gmra.mxu0 %v8080
      %v8274 = vpop.f32.mrf.mxu0
      %v8275 = vadd.f32 0.0, %v8274
      %v8276 = vpop.f32.mrf.mxu0
      %v8277 = vpop.f32.mrf.mxu0
      %v8278 = vadd.f32 0.0, %v8277
      %v8279 = vpop.f32.mrf.mxu0
      %8280 = vmatprep.mubr.bf16.mxu0 0
      %8281 = vmatmul.mubr.bf16.gmra.mxu0 %v8083
      %v8282 = vpop.f32.mrf.mxu0
      %v8283 = vadd.f32 0.0, %v8282
      %v8284 = vpop.f32.mrf.mxu0
      %v8285 = vpop.f32.mrf.mxu0
      %v8286 = vadd.f32 0.0, %v8285
      %v8287 = vpop.f32.mrf.mxu0
      %8288 = vmatprep.mubr.bf16.mxu0 0
      %8289 = vmatmul.mubr.bf16.gmra.mxu0 %v8086
      %v8290 = vpop.f32.mrf.mxu0
      %v8291 = vadd.f32 0.0, %v8290
      %v8292 = vpop.f32.mrf.mxu0
      %v8293 = vpop.f32.mrf.mxu0
      %v8294 = vadd.f32 0.0, %v8293
      %v8295 = vpop.f32.mrf.mxu0
      %8296 = vdwg.mxu0
      %v8297 = vadd.f32 %v7722, %v8123
      %v8298 = vadd.f32 %v7725, %v8126
      %v8299 = vadd.f32 %v7730, %v8131
      %v8300 = vadd.f32 %v7733, %v8134
      %v8301 = vadd.f32 %v7738, %v8139
      %v8302 = vadd.f32 %v7741, %v8142
      %v8303 = vadd.f32 %v7746, %v8147
      %v8304 = vadd.f32 %v7749, %v8150
      %v8305 = vadd.f32 %v7754, %v8155
      %v8306 = vadd.f32 %v7757, %v8158
      %v8307 = vadd.f32 %v7762, %v8163
      %v8308 = vadd.f32 %v7765, %v8166
      %v8309 = vadd.f32 %v7770, %v8171
      %v8310 = vadd.f32 %v7773, %v8174
      %v8311 = vadd.f32 %v7778, %v8179
      %v8312 = vadd.f32 %v7781, %v8182
      %v8313 = vadd.f32 %v7786, %v8187
      %v8314 = vadd.f32 %v7789, %v8190
      %v8315 = vadd.f32 %v7794, %v8195
      %v8316 = vadd.f32 %v7797, %v8198
      %v8317 = vadd.f32 %v7802, %v8203
      %v8318 = vadd.f32 %v7805, %v8206
      %v8319 = vadd.f32 %v7810, %v8211
      %v8320 = vadd.f32 %v7813, %v8214
      %v8321 = vadd.f32 %v7818, %v8219
      %v8322 = vadd.f32 %v7821, %v8222
      %v8323 = vadd.f32 %v7826, %v8227
      %v8324 = vadd.f32 %v7829, %v8230
      %v8325 = vadd.f32 %v7834, %v8235
      %v8326 = vadd.f32 %v7837, %v8238
      %v8327 = vadd.f32 %v7842, %v8243
      %v8328 = vadd.f32 %v7845, %v8246
      %v8329 = vadd.f32 %v7850, %v8251
      %v8330 = vadd.f32 %v7853, %v8254
      %v8331 = vadd.f32 %v7858, %v8259
      %v8332 = vadd.f32 %v7861, %v8262
      %v8333 = vadd.f32 %v7866, %v8267
      %v8334 = vadd.f32 %v7869, %v8270
      %v8335 = vadd.f32 %v7874, %v8275
      %v8336 = vadd.f32 %v7877, %v8278
      %v8337 = vadd.f32 %v7882, %v8283
      %v8338 = vadd.f32 %v7885, %v8286
      %v8339 = vadd.f32 %v7890, %v8291
      %v8340 = vadd.f32 %v7893, %v8294
      %v8341 = vld [vmem:[%s7] sm:$0x1]
      %v8343 = vlaneseq
      %v8344 = vshrl.u32 %v8343, 7
      %v8345 = vsub.s32 0, %v8344
      %v8346 = vrot.slane %v8341, %v8345
      %v8348 = vadd.f32 %v8297, %v8346
      %v8349 = vadd.f32 %v8298, %v8346
      %v8350 = vadd.f32 %v8299, %v8346
      %v8351 = vadd.f32 %v8300, %v8346
      %v8352 = vadd.f32 %v8301, %v8346
      %v8353 = vadd.f32 %v8302, %v8346
      %v8354 = vadd.f32 %v8303, %v8346
      %v8355 = vadd.f32 %v8304, %v8346
      %v8356 = vadd.f32 %v8305, %v8346
      %v8357 = vadd.f32 %v8306, %v8346
      %v8358 = vadd.f32 %v8307, %v8346
      %v8359 = vadd.f32 %v8308, %v8346
      %v8360 = vadd.f32 %v8309, %v8346
      %v8361 = vadd.f32 %v8310, %v8346
      %v8362 = vadd.f32 %v8311, %v8346
      %v8363 = vadd.f32 %v8312, %v8346
      %v8364 = vadd.f32 %v8313, %v8346
      %v8365 = vadd.f32 %v8314, %v8346
      %v8366 = vadd.f32 %v8315, %v8346
      %v8367 = vadd.f32 %v8316, %v8346
      %v8368 = vadd.f32 %v8317, %v8346
      %v8369 = vadd.f32 %v8318, %v8346
      %v8370 = vadd.f32 %v8319, %v8346
      %v8371 = vadd.f32 %v8320, %v8346
      %v8372 = vadd.f32 %v8321, %v8346
      %v8373 = vadd.f32 %v8322, %v8346
      %v8374 = vadd.f32 %v8323, %v8346
      %v8375 = vadd.f32 %v8324, %v8346
      %v8376 = vadd.f32 %v8325, %v8346
      %v8377 = vadd.f32 %v8326, %v8346
      %v8378 = vadd.f32 %v8327, %v8346
      %v8379 = vadd.f32 %v8328, %v8346
      %v8380 = vadd.f32 %v8329, %v8346
      %v8381 = vadd.f32 %v8330, %v8346
      %v8382 = vadd.f32 %v8331, %v8346
      %v8383 = vadd.f32 %v8332, %v8346
      %v8384 = vadd.f32 %v8333, %v8346
      %v8385 = vadd.f32 %v8334, %v8346
      %v8386 = vadd.f32 %v8335, %v8346
      %v8387 = vadd.f32 %v8336, %v8346
      %v8388 = vadd.f32 %v8337, %v8346
      %v8389 = vadd.f32 %v8338, %v8346
      %v8390 = vadd.f32 %v8339, %v8346
      %v8391 = vadd.f32 %v8340, %v8346
      %v8392 = vmax.f32 %v8348, 0.0
      %v8393 = vmax.f32 %v8349, 0.0
      %v8394 = vmax.f32 %v8350, 0.0
      %v8395 = vmax.f32 %v8351, 0.0
      %v8396 = vmax.f32 %v8352, 0.0
      %v8397 = vmax.f32 %v8353, 0.0
      %v8398 = vmax.f32 %v8354, 0.0
      %v8399 = vmax.f32 %v8355, 0.0
      %v8400 = vmax.f32 %v8356, 0.0
      %v8401 = vmax.f32 %v8357, 0.0
      %v8402 = vmax.f32 %v8358, 0.0
      %v8403 = vmax.f32 %v8359, 0.0
      %v8404 = vmax.f32 %v8360, 0.0
      %v8405 = vmax.f32 %v8361, 0.0
      %v8406 = vmax.f32 %v8362, 0.0
      %v8407 = vmax.f32 %v8363, 0.0
      %v8408 = vmax.f32 %v8364, 0.0
      %v8409 = vmax.f32 %v8365, 0.0
      %v8410 = vmax.f32 %v8366, 0.0
      %v8411 = vmax.f32 %v8367, 0.0
      %v8412 = vmax.f32 %v8368, 0.0
      %v8413 = vmax.f32 %v8369, 0.0
      %v8414 = vmax.f32 %v8370, 0.0
      %v8415 = vmax.f32 %v8371, 0.0
      %v8416 = vmax.f32 %v8372, 0.0
      %v8417 = vmax.f32 %v8373, 0.0
      %v8418 = vmax.f32 %v8374, 0.0
      %v8419 = vmax.f32 %v8375, 0.0
      %v8420 = vmax.f32 %v8376, 0.0
      %v8421 = vmax.f32 %v8377, 0.0
      %v8422 = vmax.f32 %v8378, 0.0
      %v8423 = vmax.f32 %v8379, 0.0
      %v8424 = vmax.f32 %v8380, 0.0
      %v8425 = vmax.f32 %v8381, 0.0
      %v8426 = vmax.f32 %v8382, 0.0
      %v8427 = vmax.f32 %v8383, 0.0
      %v8428 = vmax.f32 %v8384, 0.0
      %v8429 = vmax.f32 %v8385, 0.0
      %v8430 = vmax.f32 %v8386, 0.0
      %v8431 = vmax.f32 %v8387, 0.0
      %v8432 = vmax.f32 %v8388, 0.0
      %v8433 = vmax.f32 %v8389, 0.0
      %v8434 = vmax.f32 %v8390, 0.0
      %v8435 = vmax.f32 %v8391, 0.0
      %v8436 = vmin.f32 %v8392, 6.0
      %v8437 = vmin.f32 %v8393, 6.0
      %v8438 = vmin.f32 %v8394, 6.0
      %v8439 = vmin.f32 %v8395, 6.0
      %v8440 = vmin.f32 %v8396, 6.0
      %v8441 = vmin.f32 %v8397, 6.0
      %v8442 = vmin.f32 %v8398, 6.0
      %v8443 = vmin.f32 %v8399, 6.0
      %v8444 = vmin.f32 %v8400, 6.0
      %v8445 = vmin.f32 %v8401, 6.0
      %v8446 = vmin.f32 %v8402, 6.0
      %v8447 = vmin.f32 %v8403, 6.0
      %v8448 = vmin.f32 %v8404, 6.0
      %v8449 = vmin.f32 %v8405, 6.0
      %v8450 = vmin.f32 %v8406, 6.0
      %v8451 = vmin.f32 %v8407, 6.0
      %v8452 = vmin.f32 %v8408, 6.0
      %v8453 = vmin.f32 %v8409, 6.0
      %v8454 = vmin.f32 %v8410, 6.0
      %v8455 = vmin.f32 %v8411, 6.0
      %v8456 = vmin.f32 %v8412, 6.0
      %v8457 = vmin.f32 %v8413, 6.0
      %v8458 = vmin.f32 %v8414, 6.0
      %v8459 = vmin.f32 %v8415, 6.0
      %v8460 = vmin.f32 %v8416, 6.0
      %v8461 = vmin.f32 %v8417, 6.0
      %v8462 = vmin.f32 %v8418, 6.0
      %v8463 = vmin.f32 %v8419, 6.0
      %v8464 = vmin.f32 %v8420, 6.0
      %v8465 = vmin.f32 %v8421, 6.0
      %v8466 = vmin.f32 %v8422, 6.0
      %v8467 = vmin.f32 %v8423, 6.0
      %v8468 = vmin.f32 %v8424, 6.0
      %v8469 = vmin.f32 %v8425, 6.0
      %v8470 = vmin.f32 %v8426, 6.0
      %v8471 = vmin.f32 %v8427, 6.0
      %v8472 = vmin.f32 %v8428, 6.0
      %v8473 = vmin.f32 %v8429, 6.0
      %v8474 = vmin.f32 %v8430, 6.0
      %v8475 = vmin.f32 %v8431, 6.0
      %v8476 = vmin.f32 %v8432, 6.0
      %v8477 = vmin.f32 %v8433, 6.0
      %v8478 = vmin.f32 %v8434, 6.0
      %v8479 = vmin.f32 %v8435, 6.0
      %v8480 = vpack.c.bf16 %v8437, %v8436
      %v8481 = vpack.c.bf16 %v8439, %v8438
      %v8482 = vpack.c.bf16 %v8441, %v8440
      %v8483 = vpack.c.bf16 %v8443, %v8442
      %v8484 = vpack.c.bf16 %v8445, %v8444
      %v8485 = vpack.c.bf16 %v8447, %v8446
      %v8486 = vpack.c.bf16 %v8449, %v8448
      %v8487 = vpack.c.bf16 %v8451, %v8450
      %v8488 = vpack.c.bf16 %v8453, %v8452
      %v8489 = vpack.c.bf16 %v8455, %v8454
      %v8490 = vpack.c.bf16 %v8457, %v8456
      %v8491 = vpack.c.bf16 %v8459, %v8458
      %v8492 = vpack.c.bf16 %v8461, %v8460
      %v8493 = vpack.c.bf16 %v8463, %v8462
      %v8494 = vpack.c.bf16 %v8465, %v8464
      %v8495 = vpack.c.bf16 %v8467, %v8466
      %v8496 = vpack.c.bf16 %v8469, %v8468
      %v8497 = vpack.c.bf16 %v8471, %v8470
      %v8498 = vpack.c.bf16 %v8473, %v8472
      %v8499 = vpack.c.bf16 %v8475, %v8474
      %v8500 = vpack.c.bf16 %v8477, %v8476
      %v8501 = vpack.c.bf16 %v8479, %v8478
      %vm8502 = vsmask.f32 3328
      %v8503 = vrot.slane %v6767, 4
      %v8504 = vrot.slane %v6763, 5
      %v8505 = vor.u32 %v8503, %v8504
      %v8506 = vrot.slane %v6775, 4
      %v8507 = vrot.slane %v6771, 5
      %v8508 = vor.u32 %v8506, %v8507
      %v8509 = vsel %vm8502, %v8505, %v8508
      %v8510 = vrot.slane %v6783, 4
      %v8511 = vrot.slane %v6779, 5
      %v8512 = vor.u32 %v8510, %v8511
      %v8513 = vsel %vm8502, %v8508, %v8512
      %v8514 = vrot.slane %v6791, 4
      %v8515 = vrot.slane %v6787, 5
      %v8516 = vor.u32 %v8514, %v8515
      %v8517 = vsel %vm8502, %v8512, %v8516
      %v8518 = vrot.slane %v6799, 4
      %v8519 = vrot.slane %v6795, 5
      %v8520 = vor.u32 %v8518, %v8519
      %v8521 = vsel %vm8502, %v8516, %v8520
      %v8522 = vrot.slane %v6807, 4
      %v8523 = vrot.slane %v6803, 5
      %v8524 = vor.u32 %v8522, %v8523
      %v8525 = vsel %vm8502, %v8520, %v8524
      %v8526 = vrot.slane %v6815, 4
      %v8527 = vrot.slane %v6811, 5
      %v8528 = vor.u32 %v8526, %v8527
      %v8529 = vsel %vm8502, %v8524, %v8528
      %v8530 = vrot.slane %v6823, 4
      %v8531 = vrot.slane %v6819, 5
      %v8532 = vor.u32 %v8530, %v8531
      %v8533 = vsel %vm8502, %v8528, %v8532
      %v8534 = vrot.slane %v6831, 4
      %v8535 = vrot.slane %v6827, 5
      %v8536 = vor.u32 %v8534, %v8535
      %v8537 = vsel %vm8502, %v8532, %v8536
      %v8538 = vrot.slane %v6839, 4
      %v8539 = vrot.slane %v6835, 5
      %v8540 = vor.u32 %v8538, %v8539
      %v8541 = vsel %vm8502, %v8536, %v8540
      %v8542 = vrot.slane %v6847, 4
      %v8543 = vrot.slane %v6843, 5
      %v8544 = vor.u32 %v8542, %v8543
      %v8545 = vsel %vm8502, %v8540, %v8544
      %v8546 = vrot.slane %v6855, 4
      %v8547 = vrot.slane %v6851, 5
      %v8548 = vor.u32 %v8546, %v8547
      %v8549 = vsel %vm8502, %v8544, %v8548
      %v8550 = vrot.slane %v6863, 4
      %v8551 = vrot.slane %v6859, 5
      %v8552 = vor.u32 %v8550, %v8551
      %v8553 = vsel %vm8502, %v8548, %v8552
      %v8554 = vrot.slane %v6871, 4
      %v8555 = vrot.slane %v6867, 5
      %v8556 = vor.u32 %v8554, %v8555
      %v8557 = vsel %vm8502, %v8552, %v8556
      %v8558 = vrot.slane %v6879, 4
      %v8559 = vrot.slane %v6875, 5
      %v8560 = vor.u32 %v8558, %v8559
      %v8561 = vsel %vm8502, %v8556, %v8560
      %v8562 = vrot.slane %v6887, 4
      %v8563 = vrot.slane %v6883, 5
      %v8564 = vor.u32 %v8562, %v8563
      %v8565 = vsel %vm8502, %v8560, %v8564
      %v8566 = vrot.slane %v6895, 4
      %v8567 = vrot.slane %v6891, 5
      %v8568 = vor.u32 %v8566, %v8567
      %v8569 = vsel %vm8502, %v8564, %v8568
      %v8570 = vrot.slane %v6903, 4
      %v8571 = vrot.slane %v6899, 5
      %v8572 = vor.u32 %v8570, %v8571
      %v8573 = vsel %vm8502, %v8568, %v8572
      %v8574 = vrot.slane %v6911, 4
      %v8575 = vrot.slane %v6907, 5
      %v8576 = vor.u32 %v8574, %v8575
      %v8577 = vsel %vm8502, %v8572, %v8576
      %v8578 = vrot.slane %v6919, 4
      %v8579 = vrot.slane %v6915, 5
      %v8580 = vor.u32 %v8578, %v8579
      %v8581 = vsel %vm8502, %v8576, %v8580
      %v8582 = vrot.slane %v6927, 4
      %v8583 = vrot.slane %v6923, 5
      %v8584 = vor.u32 %v8582, %v8583
      %v8585 = vsel %vm8502, %v8580, %v8584
      %v8586 = vrot.slane %v7188, 4
      %v8587 = vrot.slane %v7184, 5
      %v8588 = vor.u32 %v8586, %v8587
      %v8589 = vsel %vm8502, %v8584, %v8588
      %v8590 = vrot.slane %v7192, 5
      %v8591 = vsel %vm8502, %v8588, %v8590
      %8592 = vrot.lane.b32.xlu0 %v8505, 32
      %v8593 = vpop.permute.xlu0 %8592
      %8594 = vrot.lane.b32.xlu0 %v8509, 32
      %v8595 = vpop.permute.xlu0 %8594
      %8596 = vrot.lane.b32.xlu0 %v8513, 32
      %v8597 = vpop.permute.xlu0 %8596
      %8598 = vrot.lane.b32.xlu0 %v8517, 32
      %v8599 = vpop.permute.xlu0 %8598
      %8600 = vrot.lane.b32.xlu0 %v8521, 32
      %v8601 = vpop.permute.xlu0 %8600
      %8602 = vrot.lane.b32.xlu0 %v8525, 32
      %v8603 = vpop.permute.xlu0 %8602
      %8604 = vrot.lane.b32.xlu0 %v8529, 32
      %v8605 = vpop.permute.xlu0 %8604
      %8606 = vrot.lane.b32.xlu0 %v8533, 32
      %v8607 = vpop.permute.xlu0 %8606
      %8608 = vrot.lane.b32.xlu0 %v8537, 32
      %v8609 = vpop.permute.xlu0 %8608
      %8610 = vrot.lane.b32.xlu0 %v8541, 32
      %v8611 = vpop.permute.xlu0 %8610
      %8612 = vrot.lane.b32.xlu0 %v8545, 32
      %v8613 = vpop.permute.xlu0 %8612
      %8614 = vrot.lane.b32.xlu0 %v8549, 32
      %v8615 = vpop.permute.xlu0 %8614
      %8616 = vrot.lane.b32.xlu0 %v8553, 32
      %v8617 = vpop.permute.xlu0 %8616
      %8618 = vrot.lane.b32.xlu0 %v8557, 32
      %v8619 = vpop.permute.xlu0 %8618
      %8620 = vrot.lane.b32.xlu0 %v8561, 32
      %v8621 = vpop.permute.xlu0 %8620
      %8622 = vrot.lane.b32.xlu0 %v8565, 32
      %v8623 = vpop.permute.xlu0 %8622
      %8624 = vrot.lane.b32.xlu0 %v8569, 32
      %v8625 = vpop.permute.xlu0 %8624
      %8626 = vrot.lane.b32.xlu0 %v8573, 32
      %v8627 = vpop.permute.xlu0 %8626
      %8628 = vrot.lane.b32.xlu0 %v8577, 32
      %v8629 = vpop.permute.xlu0 %8628
      %8630 = vrot.lane.b32.xlu0 %v8581, 32
      %v8631 = vpop.permute.xlu0 %8630
      %8632 = vrot.lane.b32.xlu0 %v8585, 32
      %v8633 = vpop.permute.xlu0 %8632
      %8634 = vrot.lane.b32.xlu0 %v8589, 32
      %v8635 = vpop.permute.xlu0 %8634
      %8636 = vrot.lane.b32.xlu0 %v8591, 32
      %v8637 = vpop.permute.xlu0 %8636
      %v8660 = vrot.slane %v8480, 1
      %v8661 = vrot.slane %v8481, 1
      %v8662 = vsel %vm896, %v8660, %v8661
      %v8663 = vrot.slane %v8482, 1
      %v8664 = vsel %vm896, %v8661, %v8663
      %v8665 = vrot.slane %v8483, 1
      %v8666 = vsel %vm896, %v8663, %v8665
      %v8667 = vrot.slane %v8484, 1
      %v8668 = vsel %vm896, %v8665, %v8667
      %v8669 = vrot.slane %v8485, 1
      %v8670 = vsel %vm896, %v8667, %v8669
      %v8671 = vrot.slane %v8486, 1
      %v8672 = vsel %vm896, %v8669, %v8671
      %v8673 = vrot.slane %v8487, 1
      %v8674 = vsel %vm896, %v8671, %v8673
      %v8675 = vrot.slane %v8488, 1
      %v8676 = vsel %vm896, %v8673, %v8675
      %v8677 = vrot.slane %v8489, 1
      %v8678 = vsel %vm896, %v8675, %v8677
      %v8679 = vrot.slane %v8490, 1
      %v8680 = vsel %vm896, %v8677, %v8679
      %v8681 = vrot.slane %v8491, 1
      %v8682 = vsel %vm896, %v8679, %v8681
      %v8683 = vrot.slane %v8492, 1
      %v8684 = vsel %vm896, %v8681, %v8683
      %v8685 = vrot.slane %v8493, 1
      %v8686 = vsel %vm896, %v8683, %v8685
      %v8687 = vrot.slane %v8494, 1
      %v8688 = vsel %vm896, %v8685, %v8687
      %v8689 = vrot.slane %v8495, 1
      %v8690 = vsel %vm896, %v8687, %v8689
      %v8691 = vrot.slane %v8496, 1
      %v8692 = vsel %vm896, %v8689, %v8691
      %v8693 = vrot.slane %v8497, 1
      %v8694 = vsel %vm896, %v8691, %v8693
      %v8695 = vrot.slane %v8498, 1
      %v8696 = vsel %vm896, %v8693, %v8695
      %v8697 = vrot.slane %v8499, 1
      %v8698 = vsel %vm896, %v8695, %v8697
      %v8699 = vrot.slane %v8500, 1
      %v8700 = vsel %vm896, %v8697, %v8699
      %v8701 = vrot.slane %v8501, 1
      %v8702 = vsel %vm896, %v8699, %v8701
      %8703 = vrot.lane.b32.xlu0 %v8660, 64
      %v8704 = vpop.permute.xlu0 %8703
      %8705 = vrot.lane.b32.xlu0 %v8662, 64
      %v8706 = vpop.permute.xlu0 %8705
      %8707 = vrot.lane.b32.xlu0 %v8664, 64
      %v8708 = vpop.permute.xlu0 %8707
      %8709 = vrot.lane.b32.xlu0 %v8666, 64
      %v8710 = vpop.permute.xlu0 %8709
      %8711 = vrot.lane.b32.xlu0 %v8668, 64
      %v8712 = vpop.permute.xlu0 %8711
      %8713 = vrot.lane.b32.xlu0 %v8670, 64
      %v8714 = vpop.permute.xlu0 %8713
      %8715 = vrot.lane.b32.xlu0 %v8672, 64
      %v8716 = vpop.permute.xlu0 %8715
      %8717 = vrot.lane.b32.xlu0 %v8674, 64
      %v8718 = vpop.permute.xlu0 %8717
      %8719 = vrot.lane.b32.xlu0 %v8676, 64
      %v8720 = vpop.permute.xlu0 %8719
      %8721 = vrot.lane.b32.xlu0 %v8678, 64
      %v8722 = vpop.permute.xlu0 %8721
      %8723 = vrot.lane.b32.xlu0 %v8680, 64
      %v8724 = vpop.permute.xlu0 %8723
      %8725 = vrot.lane.b32.xlu0 %v8682, 64
      %v8726 = vpop.permute.xlu0 %8725
      %8727 = vrot.lane.b32.xlu0 %v8684, 64
      %v8728 = vpop.permute.xlu0 %8727
      %8729 = vrot.lane.b32.xlu0 %v8686, 64
      %v8730 = vpop.permute.xlu0 %8729
      %8731 = vrot.lane.b32.xlu0 %v8688, 64
      %v8732 = vpop.permute.xlu0 %8731
      %8733 = vrot.lane.b32.xlu0 %v8690, 64
      %v8734 = vpop.permute.xlu0 %8733
      %8735 = vrot.lane.b32.xlu0 %v8692, 64
      %v8736 = vpop.permute.xlu0 %8735
      %8737 = vrot.lane.b32.xlu0 %v8694, 64
      %v8738 = vpop.permute.xlu0 %8737
      %8739 = vrot.lane.b32.xlu0 %v8696, 64
      %v8740 = vpop.permute.xlu0 %8739
      %8741 = vrot.lane.b32.xlu0 %v8698, 64
      %v8742 = vpop.permute.xlu0 %8741
      %8743 = vrot.lane.b32.xlu0 %v8700, 64
      %v8744 = vpop.permute.xlu0 %8743
      %8745 = vrot.lane.b32.xlu0 %v8702, 64
      %v8746 = vpop.permute.xlu0 %8745
      %8747 = vrot.lane.b32.xlu0 %v8701, 64
      %v8748 = vpop.permute.xlu0 %8747
      %v8750 = vsel %vm1008, %v4341, %v8593
      %v8752 = vsel %vm1008, %v4342, %v8595
      %v8754 = vsel %vm1008, %v4343, %v8597
      %v8756 = vsel %vm1008, %v4344, %v8599
      %v8758 = vsel %vm1008, %v4345, %v8601
      %v8760 = vsel %vm1008, %v4346, %v8603
      %v8762 = vsel %vm1008, %v4347, %v8605
      %v8764 = vsel %vm1008, %v4348, %v8607
      %v8766 = vsel %vm1008, %v4349, %v8609
      %v8768 = vsel %vm1008, %v4350, %v8611
      %v8770 = vsel %vm1008, %v4351, %v8613
      %v8772 = vsel %vm1008, %v4352, %v8615
      %v8774 = vsel %vm1008, %v4353, %v8617
      %v8776 = vsel %vm1008, %v4354, %v8619
      %v8778 = vsel %vm1008, %v4355, %v8621
      %v8780 = vsel %vm1008, %v4356, %v8623
      %v8782 = vsel %vm1008, %v4357, %v8625
      %v8784 = vsel %vm1008, %v4358, %v8627
      %v8786 = vsel %vm1008, %v4359, %v8629
      %v8788 = vsel %vm1008, %v4360, %v8631
      %v8790 = vsel %vm1008, %v4361, %v8633
      %v8792 = vsel %vm1008, %v4362, %v8635
      %v8794 = vsel %vm1008, %v4363, %v8637
      %v8796 = vsel %vm1065, %v8750, %v8704
      %v8798 = vsel %vm1065, %v8752, %v8706
      %v8800 = vsel %vm1065, %v8754, %v8708
      %v8802 = vsel %vm1065, %v8756, %v8710
      %v8804 = vsel %vm1065, %v8758, %v8712
      %v8806 = vsel %vm1065, %v8760, %v8714
      %v8808 = vsel %vm1065, %v8762, %v8716
      %v8810 = vsel %vm1065, %v8764, %v8718
      %v8812 = vsel %vm1065, %v8766, %v8720
      %v8814 = vsel %vm1065, %v8768, %v8722
      %v8816 = vsel %vm1065, %v8770, %v8724
      %v8818 = vsel %vm1065, %v8772, %v8726
      %v8820 = vsel %vm1065, %v8774, %v8728
      %v8822 = vsel %vm1065, %v8776, %v8730
      %v8824 = vsel %vm1065, %v8778, %v8732
      %v8826 = vsel %vm1065, %v8780, %v8734
      %v8828 = vsel %vm1065, %v8782, %v8736
      %v8830 = vsel %vm1065, %v8784, %v8738
      %v8832 = vsel %vm1065, %v8786, %v8740
      %v8834 = vsel %vm1065, %v8788, %v8742
      %v8836 = vsel %vm1065, %v8790, %v8744
      %v8838 = vsel %vm1065, %v8792, %v8746
      %v8840 = vsel %vm1065, %v8794, %v8748
      %v8841 = vunpack.c.l.bf16 %v369
      %v8842 = vunpack.c.l.bf16 %v370
      %v8843 = vunpack.c.l.bf16 %v371
      %v8844 = vunpack.c.l.bf16 %v372
      %v8845 = vunpack.c.l.bf16 %v373
      %v8846 = vunpack.c.l.bf16 %v374
      %v8847 = vunpack.c.l.bf16 %v375
      %v8848 = vunpack.c.l.bf16 %v376
      %v8849 = vunpack.c.l.bf16 %v377
      %v8850 = vunpack.c.l.bf16 %v378
      %v8851 = vunpack.c.l.bf16 %v379
      %v8852 = vunpack.c.l.bf16 %v380
      %v8853 = vunpack.c.l.bf16 %v381
      %v8854 = vunpack.c.l.bf16 %v382
      %v8855 = vunpack.c.l.bf16 %v383
      %v8856 = vunpack.c.l.bf16 %v384
      %v8857 = vunpack.c.l.bf16 %v385
      %v8858 = vunpack.c.l.bf16 %v386
      %v8859 = vunpack.c.l.bf16 %v387
      %v8860 = vunpack.c.l.bf16 %v388
      %v8861 = vunpack.c.l.bf16 %v389
      %v8862 = vunpack.c.l.bf16 %v390
      %v8863 = vunpack.c.l.bf16 %v391
      %v8864 = vunpack.c.l.bf16 %v392
      %v8865 = vunpack.c.l.bf16 %v393
      %v8866 = vunpack.c.l.bf16 %v394
      %v8867 = vunpack.c.l.bf16 %v395
      %v8868 = vunpack.c.l.bf16 %v396
      %v8869 = vunpack.c.l.bf16 %v397
      %v8870 = vunpack.c.l.bf16 %v398
      %v8871 = vunpack.c.l.bf16 %v399
      %v8872 = vunpack.c.l.bf16 %v400
      %v8873 = vunpack.c.l.bf16 %v401
      %v8874 = vunpack.c.l.bf16 %v402
      %v8875 = vunpack.c.l.bf16 %v403
      %v8876 = vunpack.c.l.bf16 %v404
      %v8877 = vunpack.c.l.bf16 %v405
      %v8878 = vunpack.c.l.bf16 %v406
      %v8879 = vunpack.c.l.bf16 %v407
      %v8880 = vunpack.c.l.bf16 %v408
      %v8881 = vunpack.c.l.bf16 %v409
      %v8882 = vunpack.c.l.bf16 %v410
      %v8883 = vunpack.c.l.bf16 %v411
      %v8884 = vunpack.c.l.bf16 %v412
      %v8885 = vld [vmem:[%s8] sm:$0xf]
      %v8886 = vld [vmem:[%s8 + $0x4] sm:$0xf]
      %v8887 = vld [vmem:[%s8 + $0x8] sm:$0xf]
      %v8888 = vld [vmem:[%s8 + $0xc] sm:$0xf]
      %v8889 = vld [vmem:[%s8 + $0x10] sm:$0xf]
      %v8890 = vld [vmem:[%s8 + $0x14] sm:$0xf]
      %v8891 = vld [vmem:[%s8 + $0x18] sm:$0xf]
      %v8892 = vld [vmem:[%s8 + $0x1c] sm:$0xf]
      %v8893 = vld [vmem:[%s8 + $0x20] sm:$0xf]
      %v8894 = vld [vmem:[%s8 + $0x24] sm:$0xf]
      %v8895 = vld [vmem:[%s8 + $0x28] sm:$0xf]
      %v8896 = vld [vmem:[%s8 + $0x2c] sm:$0xf]
      %v8897 = vld [vmem:[%s9] sm:$0x1]
      %v8899 = vlaneseq
      %v8900 = vshrl.u32 %v8899, 7
      %v8901 = vsub.s32 0, %v8900
      %v8902 = vrot.slane %v8897, %v8901
      %vm8927 = vcmask 1040384
      %v8928 = vrot.slane %v8796, 7
      %v8929 = vrot.slane %v8798, 7
      %v8930 = vsel %vm8927, %v8928, %v8929
      %v8931 = vrot.slane %v8800, 7
      %v8932 = vsel %vm8927, %v8929, %v8931
      %v8933 = vrot.slane %v8802, 7
      %v8934 = vsel %vm8927, %v8931, %v8933
      %v8935 = vrot.slane %v8804, 7
      %v8936 = vsel %vm8927, %v8933, %v8935
      %v8937 = vrot.slane %v8806, 7
      %v8938 = vsel %vm8927, %v8935, %v8937
      %v8939 = vrot.slane %v8808, 7
      %v8940 = vsel %vm8927, %v8937, %v8939
      %v8941 = vrot.slane %v8810, 7
      %v8942 = vsel %vm8927, %v8939, %v8941
      %v8943 = vrot.slane %v8812, 7
      %v8944 = vsel %vm8927, %v8941, %v8943
      %v8945 = vrot.slane %v8814, 7
      %v8946 = vsel %vm8927, %v8943, %v8945
      %v8947 = vrot.slane %v8816, 7
      %v8948 = vsel %vm8927, %v8945, %v8947
      %v8949 = vrot.slane %v8818, 7
      %v8950 = vsel %vm8927, %v8947, %v8949
      %v8951 = vrot.slane %v8820, 7
      %v8952 = vsel %vm8927, %v8949, %v8951
      %v8953 = vrot.slane %v8822, 7
      %v8954 = vsel %vm8927, %v8951, %v8953
      %v8955 = vrot.slane %v8824, 7
      %v8956 = vsel %vm8927, %v8953, %v8955
      %v8957 = vrot.slane %v8826, 7
      %v8958 = vsel %vm8927, %v8955, %v8957
      %v8959 = vrot.slane %v8828, 7
      %v8960 = vsel %vm8927, %v8957, %v8959
      %v8961 = vrot.slane %v8830, 7
      %v8962 = vsel %vm8927, %v8959, %v8961
      %v8963 = vrot.slane %v8832, 7
      %v8964 = vsel %vm8927, %v8961, %v8963
      %v8965 = vrot.slane %v8834, 7
      %v8966 = vsel %vm8927, %v8963, %v8965
      %v8967 = vrot.slane %v8836, 7
      %v8968 = vsel %vm8927, %v8965, %v8967
      %v8969 = vrot.slane %v8838, 7
      %v8970 = vsel %vm8927, %v8967, %v8969
      %v8971 = vrot.slane %v8840, 7
      %v8972 = vsel %vm8927, %v8969, %v8971
      %v8985 = vunpack.c.l.b16 %v8885
      %v8986 = vunpack.c.l.b16 %v8886
      %v8987 = vunpack.c.l.b16 %v8887
      %v8988 = vunpack.c.l.b16 %v8888
      %v8989 = vunpack.c.l.b16 %v8889
      %v8990 = vunpack.c.l.b16 %v8890
      %v8991 = vunpack.c.l.b16 %v8891
      %v8992 = vunpack.c.l.b16 %v8892
      %v8993 = vunpack.c.l.b16 %v8893
      %v8994 = vunpack.c.l.b16 %v8894
      %v8995 = vunpack.c.l.b16 %v8895
      %v8996 = vunpack.c.l.b16 %v8896
      %v8997 = vpack.c.b16 %v8986, %v8985
      %v8998 = vpack.c.b16 %v8988, %v8987
      %v8999 = vpack.c.b16 %v8990, %v8989
      %v9000 = vpack.c.b16 %v8992, %v8991
      %v9001 = vpack.c.b16 %v8994, %v8993
      %v9002 = vpack.c.b16 %v8996, %v8995
      %v9010 = vsel %vm1499, %v8930, 0
      %v9013 = vsel %vm1499, %v8932, 0
      %v9016 = vsel %vm1499, %v8934, 0
      %v9019 = vsel %vm1499, %v8936, 0
      %v9022 = vsel %vm1499, %v8938, 0
      %v9025 = vsel %vm1499, %v8940, 0
      %v9028 = vsel %vm1499, %v8942, 0
      %v9031 = vsel %vm1499, %v8944, 0
      %v9034 = vsel %vm1499, %v8946, 0
      %v9037 = vsel %vm1499, %v8948, 0
      %v9040 = vsel %vm1499, %v8950, 0
      %v9043 = vsel %vm1499, %v8952, 0
      %v9046 = vsel %vm1499, %v8954, 0
      %v9049 = vsel %vm1499, %v8956, 0
      %v9052 = vsel %vm1499, %v8958, 0
      %v9055 = vsel %vm1499, %v8960, 0
      %v9058 = vsel %vm1499, %v8962, 0
      %v9061 = vsel %vm1499, %v8964, 0
      %v9064 = vsel %vm1499, %v8966, 0
      %v9067 = vsel %vm1499, %v8968, 0
      %v9070 = vsel %vm1499, %v8970, 0
      %v9073 = vsel %vm1499, %v8972, 0
      %9075 = vmatprep.subr.bf16.mxu0 0
      %9076 = vmatpush1.bf16.msra.mxu0 0
      %9077 = vmatprep.subr.bf16.mxu0 0
      %9078 = vmatpush1.bf16.msra.mxu0 0
      %9079 = vmatprep.subr.bf16.mxu0 0
      %9080 = vmatpush1.bf16.msra.mxu0 %v9002
      %9081 = vmatprep.subr.bf16.mxu0 0
      %9082 = vmatpush1.bf16.msra.mxu0 %v9001
      %9083 = vmatprep.subr.bf16.mxu0 0
      %9084 = vmatpush1.bf16.msra.mxu0 %v9000
      %9085 = vmatprep.subr.bf16.mxu0 0
      %9086 = vmatpush1.bf16.msra.mxu0 %v8999
      %9087 = vmatprep.subr.bf16.mxu0 0
      %9088 = vmatpush1.bf16.msra.mxu0 %v8998
      %9089 = vmatprep.subr.bf16.mxu0 0
      %9090 = vmatpush1.bf16.msra.mxu0 %v8997
      %9091 = vmatprep.subr.bf16.mxu0 0
      %9092 = vmatpush2.bf16.msra.mxu0 0
      %9093 = vmatprep.subr.bf16.mxu0 0
      %9094 = vmatpush2.bf16.msra.mxu0 0
      %9095 = vmatprep.subr.bf16.mxu0 0
      %9096 = vmatpush2.bf16.msra.mxu0 0
      %9097 = vmatprep.subr.bf16.mxu0 0
      %9098 = vmatpush2.bf16.msra.mxu0 0
      %9099 = vmatprep.subr.bf16.mxu0 0
      %9100 = vmatpush2.bf16.msra.mxu0 0
      %9101 = vmatprep.subr.bf16.mxu0 0
      %9102 = vmatpush2.bf16.msra.mxu0 0
      %9103 = vmatprep.subr.bf16.mxu0 0
      %9104 = vmatpush2.bf16.msra.mxu0 0
      %9105 = vmatprep.subr.bf16.mxu0 0
      %9106 = vmatpush2.bf16.msra.mxu0 0
      %9107 = vmatprep.mubr.bf16.mxu0 0
      %9108 = vmatmul.mubr.bf16.gmra.mxu0 %v9010
      %v9109 = vpop.f32.mrf.mxu0
      %v9110 = vadd.f32 %v8902, %v9109
      %v9111 = vpop.f32.mrf.mxu0
      %v9112 = vpop.f32.mrf.mxu0
      %v9113 = vadd.f32 %v8902, %v9112
      %v9114 = vpop.f32.mrf.mxu0
      %9115 = vmatprep.mubr.bf16.mxu0 0
      %9116 = vmatmul.mubr.bf16.gmra.mxu0 %v9013
      %v9117 = vpop.f32.mrf.mxu0
      %v9118 = vadd.f32 %v8902, %v9117
      %v9119 = vpop.f32.mrf.mxu0
      %v9120 = vpop.f32.mrf.mxu0
      %v9121 = vadd.f32 %v8902, %v9120
      %v9122 = vpop.f32.mrf.mxu0
      %9123 = vmatprep.mubr.bf16.mxu0 0
      %9124 = vmatmul.mubr.bf16.gmra.mxu0 %v9016
      %v9125 = vpop.f32.mrf.mxu0
      %v9126 = vadd.f32 %v8902, %v9125
      %v9127 = vpop.f32.mrf.mxu0
      %v9128 = vpop.f32.mrf.mxu0
      %v9129 = vadd.f32 %v8902, %v9128
      %v9130 = vpop.f32.mrf.mxu0
      %9131 = vmatprep.mubr.bf16.mxu0 0
      %9132 = vmatmul.mubr.bf16.gmra.mxu0 %v9019
      %v9133 = vpop.f32.mrf.mxu0
      %v9134 = vadd.f32 %v8902, %v9133
      %v9135 = vpop.f32.mrf.mxu0
      %v9136 = vpop.f32.mrf.mxu0
      %v9137 = vadd.f32 %v8902, %v9136
      %v9138 = vpop.f32.mrf.mxu0
      %9139 = vmatprep.mubr.bf16.mxu0 0
      %9140 = vmatmul.mubr.bf16.gmra.mxu0 %v9022
      %v9141 = vpop.f32.mrf.mxu0
      %v9142 = vadd.f32 %v8902, %v9141
      %v9143 = vpop.f32.mrf.mxu0
      %v9144 = vpop.f32.mrf.mxu0
      %v9145 = vadd.f32 %v8902, %v9144
      %v9146 = vpop.f32.mrf.mxu0
      %9147 = vmatprep.mubr.bf16.mxu0 0
      %9148 = vmatmul.mubr.bf16.gmra.mxu0 %v9025
      %v9149 = vpop.f32.mrf.mxu0
      %v9150 = vadd.f32 %v8902, %v9149
      %v9151 = vpop.f32.mrf.mxu0
      %v9152 = vpop.f32.mrf.mxu0
      %v9153 = vadd.f32 %v8902, %v9152
      %v9154 = vpop.f32.mrf.mxu0
      %9155 = vmatprep.mubr.bf16.mxu0 0
      %9156 = vmatmul.mubr.bf16.gmra.mxu0 %v9028
      %v9157 = vpop.f32.mrf.mxu0
      %v9158 = vadd.f32 %v8902, %v9157
      %v9159 = vpop.f32.mrf.mxu0
      %v9160 = vpop.f32.mrf.mxu0
      %v9161 = vadd.f32 %v8902, %v9160
      %v9162 = vpop.f32.mrf.mxu0
      %9163 = vmatprep.mubr.bf16.mxu0 0
      %9164 = vmatmul.mubr.bf16.gmra.mxu0 %v9031
      %v9165 = vpop.f32.mrf.mxu0
      %v9166 = vadd.f32 %v8902, %v9165
      %v9167 = vpop.f32.mrf.mxu0
      %v9168 = vpop.f32.mrf.mxu0
      %v9169 = vadd.f32 %v8902, %v9168
      %v9170 = vpop.f32.mrf.mxu0
      %9171 = vmatprep.mubr.bf16.mxu0 0
      %9172 = vmatmul.mubr.bf16.gmra.mxu0 %v9034
      %v9173 = vpop.f32.mrf.mxu0
      %v9174 = vadd.f32 %v8902, %v9173
      %v9175 = vpop.f32.mrf.mxu0
      %v9176 = vpop.f32.mrf.mxu0
      %v9177 = vadd.f32 %v8902, %v9176
      %v9178 = vpop.f32.mrf.mxu0
      %9179 = vmatprep.mubr.bf16.mxu0 0
      %9180 = vmatmul.mubr.bf16.gmra.mxu0 %v9037
      %v9181 = vpop.f32.mrf.mxu0
      %v9182 = vadd.f32 %v8902, %v9181
      %v9183 = vpop.f32.mrf.mxu0
      %v9184 = vpop.f32.mrf.mxu0
      %v9185 = vadd.f32 %v8902, %v9184
      %v9186 = vpop.f32.mrf.mxu0
      %9187 = vmatprep.mubr.bf16.mxu0 0
      %9188 = vmatmul.mubr.bf16.gmra.mxu0 %v9040
      %v9189 = vpop.f32.mrf.mxu0
      %v9190 = vadd.f32 %v8902, %v9189
      %v9191 = vpop.f32.mrf.mxu0
      %v9192 = vpop.f32.mrf.mxu0
      %v9193 = vadd.f32 %v8902, %v9192
      %v9194 = vpop.f32.mrf.mxu0
      %9195 = vmatprep.mubr.bf16.mxu0 0
      %9196 = vmatmul.mubr.bf16.gmra.mxu0 %v9043
      %v9197 = vpop.f32.mrf.mxu0
      %v9198 = vadd.f32 %v8902, %v9197
      %v9199 = vpop.f32.mrf.mxu0
      %v9200 = vpop.f32.mrf.mxu0
      %v9201 = vadd.f32 %v8902, %v9200
      %v9202 = vpop.f32.mrf.mxu0
      %9203 = vmatprep.mubr.bf16.mxu0 0
      %9204 = vmatmul.mubr.bf16.gmra.mxu0 %v9046
      %v9205 = vpop.f32.mrf.mxu0
      %v9206 = vadd.f32 %v8902, %v9205
      %v9207 = vpop.f32.mrf.mxu0
      %v9208 = vpop.f32.mrf.mxu0
      %v9209 = vadd.f32 %v8902, %v9208
      %v9210 = vpop.f32.mrf.mxu0
      %9211 = vmatprep.mubr.bf16.mxu0 0
      %9212 = vmatmul.mubr.bf16.gmra.mxu0 %v9049
      %v9213 = vpop.f32.mrf.mxu0
      %v9214 = vadd.f32 %v8902, %v9213
      %v9215 = vpop.f32.mrf.mxu0
      %v9216 = vpop.f32.mrf.mxu0
      %v9217 = vadd.f32 %v8902, %v9216
      %v9218 = vpop.f32.mrf.mxu0
      %9219 = vmatprep.mubr.bf16.mxu0 0
      %9220 = vmatmul.mubr.bf16.gmra.mxu0 %v9052
      %v9221 = vpop.f32.mrf.mxu0
      %v9222 = vadd.f32 %v8902, %v9221
      %v9223 = vpop.f32.mrf.mxu0
      %v9224 = vpop.f32.mrf.mxu0
      %v9225 = vadd.f32 %v8902, %v9224
      %v9226 = vpop.f32.mrf.mxu0
      %9227 = vmatprep.mubr.bf16.mxu0 0
      %9228 = vmatmul.mubr.bf16.gmra.mxu0 %v9055
      %v9229 = vpop.f32.mrf.mxu0
      %v9230 = vadd.f32 %v8902, %v9229
      %v9231 = vpop.f32.mrf.mxu0
      %v9232 = vpop.f32.mrf.mxu0
      %v9233 = vadd.f32 %v8902, %v9232
      %v9234 = vpop.f32.mrf.mxu0
      %9235 = vmatprep.mubr.bf16.mxu0 0
      %9236 = vmatmul.mubr.bf16.gmra.mxu0 %v9058
      %v9237 = vpop.f32.mrf.mxu0
      %v9238 = vadd.f32 %v8902, %v9237
      %v9239 = vpop.f32.mrf.mxu0
      %v9240 = vpop.f32.mrf.mxu0
      %v9241 = vadd.f32 %v8902, %v9240
      %v9242 = vpop.f32.mrf.mxu0
      %9243 = vmatprep.mubr.bf16.mxu0 0
      %9244 = vmatmul.mubr.bf16.gmra.mxu0 %v9061
      %v9245 = vpop.f32.mrf.mxu0
      %v9246 = vadd.f32 %v8902, %v9245
      %v9247 = vpop.f32.mrf.mxu0
      %v9248 = vpop.f32.mrf.mxu0
      %v9249 = vadd.f32 %v8902, %v9248
      %v9250 = vpop.f32.mrf.mxu0
      %9251 = vmatprep.mubr.bf16.mxu0 0
      %9252 = vmatmul.mubr.bf16.gmra.mxu0 %v9064
      %v9253 = vpop.f32.mrf.mxu0
      %v9254 = vadd.f32 %v8902, %v9253
      %v9255 = vpop.f32.mrf.mxu0
      %v9256 = vpop.f32.mrf.mxu0
      %v9257 = vadd.f32 %v8902, %v9256
      %v9258 = vpop.f32.mrf.mxu0
      %9259 = vmatprep.mubr.bf16.mxu0 0
      %9260 = vmatmul.mubr.bf16.gmra.mxu0 %v9067
      %v9261 = vpop.f32.mrf.mxu0
      %v9262 = vadd.f32 %v8902, %v9261
      %v9263 = vpop.f32.mrf.mxu0
      %v9264 = vpop.f32.mrf.mxu0
      %v9265 = vadd.f32 %v8902, %v9264
      %v9266 = vpop.f32.mrf.mxu0
      %9267 = vmatprep.mubr.bf16.mxu0 0
      %9268 = vmatmul.mubr.bf16.gmra.mxu0 %v9070
      %v9269 = vpop.f32.mrf.mxu0
      %v9270 = vadd.f32 %v8902, %v9269
      %v9271 = vpop.f32.mrf.mxu0
      %v9272 = vpop.f32.mrf.mxu0
      %v9273 = vadd.f32 %v8902, %v9272
      %v9274 = vpop.f32.mrf.mxu0
      %9275 = vmatprep.mubr.bf16.mxu0 0
      %9276 = vmatmul.mubr.bf16.gmra.mxu0 %v9073
      %v9277 = vpop.f32.mrf.mxu0
      %v9278 = vadd.f32 %v8902, %v9277
      %v9279 = vpop.f32.mrf.mxu0
      %v9280 = vpop.f32.mrf.mxu0
      %v9281 = vadd.f32 %v8902, %v9280
      %v9282 = vpop.f32.mrf.mxu0
      %9283 = vdwg.mxu0
      %vm9328 = vcmask 1042432
      %v9329 = vrot.slane %v8841, 5
      %v9330 = vrot.slane %v8842, 5
      %v9331 = vsel %vm9328, %v9329, %v9330
      %v9332 = vrot.slane %v8843, 5
      %v9333 = vsel %vm9328, %v9330, %v9332
      %v9334 = vrot.slane %v8844, 5
      %v9335 = vsel %vm9328, %v9332, %v9334
      %v9336 = vrot.slane %v8845, 5
      %v9337 = vsel %vm9328, %v9334, %v9336
      %v9338 = vrot.slane %v8846, 5
      %v9339 = vsel %vm9328, %v9336, %v9338
      %v9340 = vrot.slane %v8847, 5
      %v9341 = vsel %vm9328, %v9338, %v9340
      %v9342 = vrot.slane %v8848, 5
      %v9343 = vsel %vm9328, %v9340, %v9342
      %v9344 = vrot.slane %v8849, 5
      %v9345 = vsel %vm9328, %v9342, %v9344
      %v9346 = vrot.slane %v8850, 5
      %v9347 = vsel %vm9328, %v9344, %v9346
      %v9348 = vrot.slane %v8851, 5
      %v9349 = vsel %vm9328, %v9346, %v9348
      %v9350 = vrot.slane %v8852, 5
      %v9351 = vsel %vm9328, %v9348, %v9350
      %v9352 = vrot.slane %v8853, 5
      %v9353 = vsel %vm9328, %v9350, %v9352
      %v9354 = vrot.slane %v8854, 5
      %v9355 = vsel %vm9328, %v9352, %v9354
      %v9356 = vrot.slane %v8855, 5
      %v9357 = vsel %vm9328, %v9354, %v9356
      %v9358 = vrot.slane %v8856, 5
      %v9359 = vsel %vm9328, %v9356, %v9358
      %v9360 = vrot.slane %v8857, 5
      %v9361 = vsel %vm9328, %v9358, %v9360
      %v9362 = vrot.slane %v8858, 5
      %v9363 = vsel %vm9328, %v9360, %v9362
      %v9364 = vrot.slane %v8859, 5
      %v9365 = vsel %vm9328, %v9362, %v9364
      %v9366 = vrot.slane %v8860, 5
      %v9367 = vsel %vm9328, %v9364, %v9366
      %v9368 = vrot.slane %v8861, 5
      %v9369 = vsel %vm9328, %v9366, %v9368
      %v9370 = vrot.slane %v8862, 5
      %v9371 = vsel %vm9328, %v9368, %v9370
      %v9372 = vrot.slane %v8863, 5
      %v9373 = vsel %vm9328, %v9370, %v9372
      %v9374 = vrot.slane %v8864, 5
      %v9375 = vsel %vm9328, %v9372, %v9374
      %v9376 = vrot.slane %v8865, 5
      %v9377 = vsel %vm9328, %v9374, %v9376
      %v9378 = vrot.slane %v8866, 5
      %v9379 = vsel %vm9328, %v9376, %v9378
      %v9380 = vrot.slane %v8867, 5
      %v9381 = vsel %vm9328, %v9378, %v9380
      %v9382 = vrot.slane %v8868, 5
      %v9383 = vsel %vm9328, %v9380, %v9382
      %v9384 = vrot.slane %v8869, 5
      %v9385 = vsel %vm9328, %v9382, %v9384
      %v9386 = vrot.slane %v8870, 5
      %v9387 = vsel %vm9328, %v9384, %v9386
      %v9388 = vrot.slane %v8871, 5
      %v9389 = vsel %vm9328, %v9386, %v9388
      %v9390 = vrot.slane %v8872, 5
      %v9391 = vsel %vm9328, %v9388, %v9390
      %v9392 = vrot.slane %v8873, 5
      %v9393 = vsel %vm9328, %v9390, %v9392
      %v9394 = vrot.slane %v8874, 5
      %v9395 = vsel %vm9328, %v9392, %v9394
      %v9396 = vrot.slane %v8875, 5
      %v9397 = vsel %vm9328, %v9394, %v9396
      %v9398 = vrot.slane %v8876, 5
      %v9399 = vsel %vm9328, %v9396, %v9398
      %v9400 = vrot.slane %v8877, 5
      %v9401 = vsel %vm9328, %v9398, %v9400
      %v9402 = vrot.slane %v8878, 5
      %v9403 = vsel %vm9328, %v9400, %v9402
      %v9404 = vrot.slane %v8879, 5
      %v9405 = vsel %vm9328, %v9402, %v9404
      %v9406 = vrot.slane %v8880, 5
      %v9407 = vsel %vm9328, %v9404, %v9406
      %v9408 = vrot.slane %v8881, 5
      %v9409 = vsel %vm9328, %v9406, %v9408
      %v9410 = vrot.slane %v8882, 5
      %v9411 = vsel %vm9328, %v9408, %v9410
      %v9412 = vrot.slane %v8883, 5
      %v9413 = vsel %vm9328, %v9410, %v9412
      %v9414 = vrot.slane %v8884, 5
      %v9415 = vsel %vm9328, %v9412, %v9414
      %v9460 = vadd.f32 %v9110, %v9331
      %v9461 = vadd.f32 %v9113, %v9333
      %v9462 = vadd.f32 %v9118, %v9335
      %v9463 = vadd.f32 %v9121, %v9337
      %v9464 = vadd.f32 %v9126, %v9339
      %v9465 = vadd.f32 %v9129, %v9341
      %v9466 = vadd.f32 %v9134, %v9343
      %v9467 = vadd.f32 %v9137, %v9345
      %v9468 = vadd.f32 %v9142, %v9347
      %v9469 = vadd.f32 %v9145, %v9349
      %v9470 = vadd.f32 %v9150, %v9351
      %v9471 = vadd.f32 %v9153, %v9353
      %v9472 = vadd.f32 %v9158, %v9355
      %v9473 = vadd.f32 %v9161, %v9357
      %v9474 = vadd.f32 %v9166, %v9359
      %v9475 = vadd.f32 %v9169, %v9361
      %v9476 = vadd.f32 %v9174, %v9363
      %v9477 = vadd.f32 %v9177, %v9365
      %v9478 = vadd.f32 %v9182, %v9367
      %v9479 = vadd.f32 %v9185, %v9369
      %v9480 = vadd.f32 %v9190, %v9371
      %v9481 = vadd.f32 %v9193, %v9373
      %v9482 = vadd.f32 %v9198, %v9375
      %v9483 = vadd.f32 %v9201, %v9377
      %v9484 = vadd.f32 %v9206, %v9379
      %v9485 = vadd.f32 %v9209, %v9381
      %v9486 = vadd.f32 %v9214, %v9383
      %v9487 = vadd.f32 %v9217, %v9385
      %v9488 = vadd.f32 %v9222, %v9387
      %v9489 = vadd.f32 %v9225, %v9389
      %v9490 = vadd.f32 %v9230, %v9391
      %v9491 = vadd.f32 %v9233, %v9393
      %v9492 = vadd.f32 %v9238, %v9395
      %v9493 = vadd.f32 %v9241, %v9397
      %v9494 = vadd.f32 %v9246, %v9399
      %v9495 = vadd.f32 %v9249, %v9401
      %v9496 = vadd.f32 %v9254, %v9403
      %v9497 = vadd.f32 %v9257, %v9405
      %v9498 = vadd.f32 %v9262, %v9407
      %v9499 = vadd.f32 %v9265, %v9409
      %v9500 = vadd.f32 %v9270, %v9411
      %v9501 = vadd.f32 %v9273, %v9413
      %v9502 = vadd.f32 %v9278, %v9415
      %v9503 = vadd.f32 %v9281, %v9414
      %v9504 = vmax.f32 %v9460, 0.0
      %v9505 = vmax.f32 %v9461, 0.0
      %v9506 = vmax.f32 %v9462, 0.0
      %v9507 = vmax.f32 %v9463, 0.0
      %v9508 = vmax.f32 %v9464, 0.0
      %v9509 = vmax.f32 %v9465, 0.0
      %v9510 = vmax.f32 %v9466, 0.0
      %v9511 = vmax.f32 %v9467, 0.0
      %v9512 = vmax.f32 %v9468, 0.0
      %v9513 = vmax.f32 %v9469, 0.0
      %v9514 = vmax.f32 %v9470, 0.0
      %v9515 = vmax.f32 %v9471, 0.0
      %v9516 = vmax.f32 %v9472, 0.0
      %v9517 = vmax.f32 %v9473, 0.0
      %v9518 = vmax.f32 %v9474, 0.0
      %v9519 = vmax.f32 %v9475, 0.0
      %v9520 = vmax.f32 %v9476, 0.0
      %v9521 = vmax.f32 %v9477, 0.0
      %v9522 = vmax.f32 %v9478, 0.0
      %v9523 = vmax.f32 %v9479, 0.0
      %v9524 = vmax.f32 %v9480, 0.0
      %v9525 = vmax.f32 %v9481, 0.0
      %v9526 = vmax.f32 %v9482, 0.0
      %v9527 = vmax.f32 %v9483, 0.0
      %v9528 = vmax.f32 %v9484, 0.0
      %v9529 = vmax.f32 %v9485, 0.0
      %v9530 = vmax.f32 %v9486, 0.0
      %v9531 = vmax.f32 %v9487, 0.0
      %v9532 = vmax.f32 %v9488, 0.0
      %v9533 = vmax.f32 %v9489, 0.0
      %v9534 = vmax.f32 %v9490, 0.0
      %v9535 = vmax.f32 %v9491, 0.0
      %v9536 = vmax.f32 %v9492, 0.0
      %v9537 = vmax.f32 %v9493, 0.0
      %v9538 = vmax.f32 %v9494, 0.0
      %v9539 = vmax.f32 %v9495, 0.0
      %v9540 = vmax.f32 %v9496, 0.0
      %v9541 = vmax.f32 %v9497, 0.0
      %v9542 = vmax.f32 %v9498, 0.0
      %v9543 = vmax.f32 %v9499, 0.0
      %v9544 = vmax.f32 %v9500, 0.0
      %v9545 = vmax.f32 %v9501, 0.0
      %v9546 = vmax.f32 %v9502, 0.0
      %v9547 = vmax.f32 %v9503, 0.0
      %9548 = vst.msk [vmem:[%s359] sm:$0xff] %vm1008, %v9504
      %9549 = vst.msk [vmem:[%s359 + $0x8] sm:$0xff] %vm1008, %v9505
      %9550 = vst.msk [vmem:[%s359 + $0x10] sm:$0xff] %vm1008, %v9506
      %9551 = vst.msk [vmem:[%s359 + $0x18] sm:$0xff] %vm1008, %v9507
      %9552 = vst.msk [vmem:[%s359 + $0x20] sm:$0xff] %vm1008, %v9508
      %9553 = vst.msk [vmem:[%s359 + $0x28] sm:$0xff] %vm1008, %v9509
      %9554 = vst.msk [vmem:[%s359 + $0x30] sm:$0xff] %vm1008, %v9510
      %9555 = vst.msk [vmem:[%s359 + $0x38] sm:$0xff] %vm1008, %v9511
      %9556 = vst.msk [vmem:[%s359 + $0x40] sm:$0xff] %vm1008, %v9512
      %9557 = vst.msk [vmem:[%s359 + $0x48] sm:$0xff] %vm1008, %v9513
      %9558 = vst.msk [vmem:[%s359 + $0x50] sm:$0xff] %vm1008, %v9514
      %9559 = vst.msk [vmem:[%s359 + $0x58] sm:$0xff] %vm1008, %v9515
      %9560 = vst.msk [vmem:[%s359 + $0x60] sm:$0xff] %vm1008, %v9516
      %9561 = vst.msk [vmem:[%s359 + $0x68] sm:$0xff] %vm1008, %v9517
      %9562 = vst.msk [vmem:[%s359 + $0x70] sm:$0xff] %vm1008, %v9518
      %9563 = vst.msk [vmem:[%s359 + $0x78] sm:$0xff] %vm1008, %v9519
      %9564 = vst.msk [vmem:[%s359 + $0x80] sm:$0xff] %vm1008, %v9520
      %9565 = vst.msk [vmem:[%s359 + $0x88] sm:$0xff] %vm1008, %v9521
      %9566 = vst.msk [vmem:[%s359 + $0x90] sm:$0xff] %vm1008, %v9522
      %9567 = vst.msk [vmem:[%s359 + $0x98] sm:$0xff] %vm1008, %v9523
      %9568 = vst.msk [vmem:[%s359 + $0xa0] sm:$0xff] %vm1008, %v9524
      %9569 = vst.msk [vmem:[%s359 + $0xa8] sm:$0xff] %vm1008, %v9525
      %9570 = vst.msk [vmem:[%s359 + $0xb0] sm:$0xff] %vm1008, %v9526
      %9571 = vst.msk [vmem:[%s359 + $0xb8] sm:$0xff] %vm1008, %v9527
      %9572 = vst.msk [vmem:[%s359 + $0xc0] sm:$0xff] %vm1008, %v9528
      %9573 = vst.msk [vmem:[%s359 + $0xc8] sm:$0xff] %vm1008, %v9529
      %9574 = vst.msk [vmem:[%s359 + $0xd0] sm:$0xff] %vm1008, %v9530
      %9575 = vst.msk [vmem:[%s359 + $0xd8] sm:$0xff] %vm1008, %v9531
      %9576 = vst.msk [vmem:[%s359 + $0xe0] sm:$0xff] %vm1008, %v9532
      %9577 = vst.msk [vmem:[%s359 + $0xe8] sm:$0xff] %vm1008, %v9533
      %9578 = vst.msk [vmem:[%s359 + $0xf0] sm:$0xff] %vm1008, %v9534
      %9579 = vst.msk [vmem:[%s359 + $0xf8] sm:$0xff] %vm1008, %v9535
      %9580 = vst.msk [vmem:[%s359 + $0x100] sm:$0xff] %vm1008, %v9536
      %9581 = vst.msk [vmem:[%s359 + $0x108] sm:$0xff] %vm1008, %v9537
      %9582 = vst.msk [vmem:[%s359 + $0x110] sm:$0xff] %vm1008, %v9538
      %9583 = vst.msk [vmem:[%s359 + $0x118] sm:$0xff] %vm1008, %v9539
      %9584 = vst.msk [vmem:[%s359 + $0x120] sm:$0xff] %vm1008, %v9540
      %9585 = vst.msk [vmem:[%s359 + $0x128] sm:$0xff] %vm1008, %v9541
      %9586 = vst.msk [vmem:[%s359 + $0x130] sm:$0xff] %vm1008, %v9542
      %9587 = vst.msk [vmem:[%s359 + $0x138] sm:$0xff] %vm1008, %v9543
      %9588 = vst.msk [vmem:[%s359 + $0x140] sm:$0xff] %vm1008, %v9544
      %9589 = vst.msk [vmem:[%s359 + $0x148] sm:$0xff] %vm1008, %v9545
      %9590 = vst.msk [vmem:[%s359 + $0x150] sm:$0xff] %vm1008, %v9546
      %vm9591 = vcmask 254976
      %9592 = vst.msk [vmem:[%s359 + $0x158] sm:$0x3] %vm9591, %v9547
      %vm9593 = vcmask 259072
      %9594 = vst.msk [vmem:[%s359 + $0x15a] sm:$0x3f] %vm9593, 0.0
      %p9595 = scmp.lt.s32.totalorder %s21, 1
      %s9596 = scalar_select %p9595, %s21, 1
      %s9597 = smul.addr %s9596, 44
      %s9598 = smul.addr %s9597, 8
      %s9599 = scalar_lea.vmem %s10, %s9598
      // Predicated region
      $region61: #{msconv_forward.1} parent=59 // pred_check
        %p9600 = pneg %p254
      $region62: #{msconv_forward.1} parent=59 // pred_check_branch
        %9602 = sbr.rel (%p9600) target = $region64
      $region63: #{msconv_forward.1} parent=59 // pred_region
        _
      $region64: #{msconv_forward.1} parent=59 // pred_fallthru
        _
    $region60: #{msconv_forward.1} parent=5 // pred_fallthru
      _
    %p9603 = scmp.le.s32.totalorder 2, %s16
    // Predicated region
    $region65: #{msconv_forward.1} parent=5 // pred_check
      %p9604 = pneg %p9603
    $region66: #{msconv_forward.1} parent=5 // pred_check_branch
      %9606 = sbr.rel (%p9604) target = $region68
    $region67: #{msconv_forward.1} parent=5 // pred_region
      %s9607 = ssub.s32 %s16, 2
      // Predicated region
      $region69: #{msconv_forward.1} parent=67 // pred_check
        %p9608 = pneg %p260
      $region70: #{msconv_forward.1} parent=67 // pred_check_branch
        %9610 = sbr.rel (%p9608) target = $region72
      $region71: #{msconv_forward.1} parent=67 // pred_region
        %p9611 = scmp.lt.s32.totalorder %s22, 1
        %s9612 = scalar_select %p9611, %s22, 1
        %s9613 = smul.addr %s9612, 44
        %s9614 = smul.addr %s9613, 8
        %s9615 = scalar_lea.vmem %s10, %s9614
      $region72: #{msconv_forward.1} parent=67 // pred_fallthru
        _
    $region68: #{msconv_forward.1} parent=5 // pred_fallthru
      _
  $region6: #{msconv_forward.1} parent=0 // loop_footer
    %s20 = sadd.s32 1, %s16
  $region7: #{msconv_forward.1} parent=0 // loop_footer_branch
    %15 = sbr.rel target = $region3
  $region8: #{msconv_forward.1} parent=0 // loop_exit
    _

</llo_original>
